<compile_context>
chip_gen: v7x
topology: tpu7x:2x2x1
jax: 0.10.0
libtpu: 0.0.40
codegen_flags: <defaults>
</compile_context>

<pallas_src>
import functools

import jax
import jax.numpy as jnp
from jax import lax
from jax.experimental import pallas as pl
from jax.experimental.pallas import tpu as pltpu

# exp(-x) is exactly 0.0f (even with denormals) once x > ~103.98; using 104
# keeps the pl.when level-skip bit-identical with the non-skipped computation.
_EXP_UNDERFLOW = 104.0

# Flag-gated bf16 exp path (v6e/v7x have a ~2x bf16 EUP path; keep False for
# v5e and for bit-accuracy vs. the f32 reference).
_USE_BF16_EXP = False


def _emd_kernel(p1_ref, p2_ref, cost_ref,
                remain_l_ref, remain_r_ref, cost_cols_ref, *, use_bf16_exp):
    """Per-grid-step approximate EMD (auction-style approxmatch + matchcost).

    p1_ref  : (Bb, N1, 3)   generated point cloud (points on sublanes)
    p2_ref  : (Bb, 3, N2)   ground-truth cloud, channels-first (points on lanes)
    cost_ref: (Bb, 8, 128)  per-batch output tiles; the scalar EMD cost is
              broadcast into each (lane-dense) tile.
    remain_l_ref/remain_r_ref/cost_cols_ref: small VMEM scratch holding the
              per-batch auction state so levels can be pl.when-gated.
    """
    bb = p1_ref.shape[0]
    n1 = p1_ref.shape[1]
    n2 = p2_ref.shape[2]

    multi_l = max(float(n2) / float(n1), 1.0)
    multi_r = max(float(n1) / float(n2), 1.0)

    # Hoisted constants (JAX does not CSE broadcast_in_dim). These turn every
    # per-level row/column reduction into an MXU mat-vec instead of an XLU
    # rotate+add chain -- the MXU is otherwise idle after the K=3 matmul.
    ones_col = jnp.ones((n2, 1), dtype=jnp.float32)   # row sums:  w @ ones_col
    ones_row = jnp.ones((1, n1), dtype=jnp.float32)   # col sums:  ones_row @ w

    def batch_body(b, carry):
        p1 = p1_ref[b]        # (N1, 3)
        p2t = p2_ref[b]       # (3, N2) channels-first: N2 lane-dense, no transpose

        # Pairwise squared distances: |p1|^2 + |p2|^2 - 2 p1.p2 (small-K matmul).
        sq1 = jnp.sum(p1 * p1, axis=-1, keepdims=True)                # (N1, 1)
        sq2 = jnp.sum(p2t * p2t, axis=0, keepdims=True)               # (1, N2)
        cross = jnp.dot(p1, p2t, preferred_element_type=jnp.float32)  # (N1, N2)
        d2 = jnp.maximum(sq1 + sq2 - 2.0 * cross, 0.0)
        sqrt_d = jnp.sqrt(d2)
        # Scalar used only to gate fully-underflowing levels. d2 is dead after
        # this point: only sqrt_d stays live across the level loop and the
        # squared distance is recomputed as sqrt_d*sqrt_d at the exp.
        min_d2 = jnp.min(d2)

        remain_l_ref[...] = jnp.full((n1, 1), multi_l, dtype=jnp.float32)
        remain_r_ref[...] = jnp.full((1, n2), multi_r, dtype=jnp.float32)
        cost_cols_ref[...] = jnp.zeros((1, n2), dtype=jnp.float32)

        # approxmatch (auction-style soft assignment), statically unrolled
        # 10 levels: level = -4**j for j = 7..-1, then level = 0.
        for j in range(7, -3, -1):
            level = None if j == -2 else -(4.0 ** j)

            def level_body(level=level):
                remain_l = remain_l_ref[...]
                remain_r = remain_r_ref[...]
                if level is None:
                    # level == 0 => exp(0) == 1; skip the transcendental.
                    w = jnp.broadcast_to(remain_r, (n1, n2))
                elif use_bf16_exp:
                    w = jnp.exp((level * (sqrt_d * sqrt_d)).astype(jnp.bfloat16)
                                ).astype(jnp.float32) * remain_r
                else:
                    w = jnp.exp(level * (sqrt_d * sqrt_d)) * remain_r
                # Row-normalize, scaled by each source point's remaining supply.
                rowsum = jnp.dot(w, ones_col,
                                 preferred_element_type=jnp.float32)   # (N1, 1)
                w = w * (remain_l / (rowsum + 1e-9))
                # Cap by the remaining capacity of each target point.
                colsum = jnp.dot(ones_row, w,
                                 preferred_element_type=jnp.float32)   # (1, N2)
                ratio_r = jnp.minimum(remain_r / (colsum + 1e-9), 1.0)
                w = w * ratio_r
                # Match cost for this level: sum_ij sqrt(dist_ij) * w_ij.
                cost_cols_ref[...] += jnp.dot(
                    ones_row, sqrt_d * w, preferred_element_type=jnp.float32)
                remain_l_ref[...] = jnp.maximum(
                    remain_l - jnp.dot(w, ones_col,
                                       preferred_element_type=jnp.float32), 0.0)
                # Column sums of the final w are exactly colsum * ratio_r.
                remain_r_ref[...] = jnp.maximum(remain_r - colsum * ratio_r, 0.0)

            if j >= 4:
                # If exp underflows to exactly 0 for every pair, the whole level
                # is a no-op (w == 0 leaves cost/remain_l/remain_r unchanged):
                # skipping is bit-identical and saves an EUP exp pass plus four
                # MXU reductions.
                pl.when((4.0 ** j) * min_d2 <= _EXP_UNDERFLOW)(level_body)
            else:
                level_body()

        cost = jnp.sum(cost_cols_ref[...])            # scalar per-batch EMD
        cost_ref[b] = jnp.broadcast_to(cost, cost_ref.shape[1:]).astype(jnp.float32)
        return carry

    lax.fori_loop(0, bb, batch_body, 0)


def _pick_batch_block(batch, n1, n2):
    # Amortize the ~0.35us per-grid-step overhead and tiny DMAs at small N;
    # keep one batch per step once the (N1, N2) working set gets large.
    if n1 * n2 > 512 * 512:
        return 1
    for cand in (8, 4, 2):
        if batch % cand == 0:
            return cand
    return 1


def emd_per_batch(pc_gen, pc_gt, *, use_bf16_exp=_USE_BF16_EXP):
    """Per-batch approximate EMD cost, shape (B,), float32.

    pc_gen: (B, N1, 3), pc_gt: (B, N2, 3)  -- transpose=False convention.
    """
    B, N1, _ = pc_gen.shape
    _, N2, _ = pc_gt.shape
    p1 = pc_gen.astype(jnp.float32)                               # (B, N1, 3)
    p2t = jnp.transpose(pc_gt.astype(jnp.float32), (0, 2, 1))     # (B, 3, N2)

    bb = _pick_batch_block(B, N1, N2)

    # Rough working-set estimate (sqrt_dist + w + exp temps, f32, plus inputs);
    # raise the scoped-VMEM limit past the 16/32 MiB defaults but never past
    # v7x's 64 MiB physical VMEM.
    workset = 6 * 4 * N1 * N2 + 4 * bb * 4 * (N1 * 3 + 3 * N2) + (1 << 20)
    vmem_limit = int(min(64 * 1024 * 1024, max(32 * 1024 * 1024, workset)))

    # TODO(synk): for large clouds (N >~ 1024-2048, esp. v7x's 64 MiB VMEM) tile
    # the N2 axis inside the kernel: keep each sqrt_dist tile resident in VMEM
    # scratch across all 10 levels and rebuild distance tiles on the MXU via the
    # K=5 augmented operands instead of materializing full N1xN2 matrices.
    kernel = functools.partial(_emd_kernel, use_bf16_exp=use_bf16_exp)
    out = pl.pallas_call(
        kernel,
        out_shape=jax.ShapeDtypeStruct((B, 8, 128), jnp.float32),
        grid=(B // bb,),
        in_specs=[
            pl.BlockSpec((bb, N1, 3), lambda i: (i, 0, 0)),
            pl.BlockSpec((bb, 3, N2), lambda i: (i, 0, 0)),
        ],
        # One aligned (8, 128) tile per batch -> lane-dense unmasked stores and
        # fully independent grid steps (batch axis shardable across TensorCores).
        out_specs=pl.BlockSpec((bb, 8, 128), lambda i: (i, 0, 0)),
        scratch_shapes=[
            pltpu.VMEM((N1, 1), jnp.float32),    # remain_l (per-source supply)
            pltpu.VMEM((1, N2), jnp.float32),    # remain_r (per-target capacity)
            pltpu.VMEM((1, N2), jnp.float32),    # per-level cost accumulator
        ],
        compiler_params=pltpu.CompilerParams(
            dimension_semantics=("parallel",),
            vmem_limit_bytes=vmem_limit),
    )(p1, p2t)
    return out[:, 0, 0]


@jax.jit
def emd_loss(pc_gen, pc_gt):
    """Equivalent of EMDloss.forward: (dist / N1).mean()."""
    N1 = pc_gen.shape[1]
    dist = emd_per_batch(pc_gen, pc_gt)   # (B,)
    return (dist / N1).mean()


if __name__ == "__main__":
    key = jax.random.PRNGKey(0)
    k1, k2 = jax.random.split(key)
    B, N, C = 2, 128, 3                    # small point clouds: (B, N, 3)
    pc_gen = jax.random.normal(k1, (B, N, C), dtype=jnp.float32)
    pc_gt = jax.random.normal(k2, (B, N, C), dtype=jnp.float32)

    loss = emd_loss(pc_gen, pc_gt)
    jax.block_until_ready(loss)
    assert loss.shape == () and jnp.isfinite(loss)
    print("KERNEL_OK")
</pallas_src>

<mosaic_0001>
module attributes {stable_mosaic.version = 11 : i64} {
  func.func @_emd_kernel(%arg0: i32, %arg1: memref<2x128x3xf32, #tpu.memory_space<vmem>>, %arg2: memref<2x3x128xf32, #tpu.memory_space<vmem>>, %arg3: memref<2x8x128xf32, #tpu.memory_space<vmem>>, %arg4: memref<128x1xf32, #tpu.memory_space<vmem>>, %arg5: memref<1x128xf32, #tpu.memory_space<vmem>>, %arg6: memref<1x128xf32, #tpu.memory_space<vmem>>) attributes {dimension_semantics = [#tpu.dimension_semantics<parallel>], iteration_bounds = array<i64: 1>, scalar_prefetch = 0 : i64, scratch_operands = 3 : i64, tpu.core_type = #tpu.core_type<tc>, window_params = [{transform_indices = @transform_0, window_bounds = array<i64: 2, 128, 3>}, {transform_indices = @transform_1, window_bounds = array<i64: 2, 3, 128>}, {transform_indices = @transform_2, window_bounds = array<i64: 2, 8, 128>}]} {
    %cst = arith.constant 1.000000e+00 : f32
    %0 = vector.broadcast %cst : f32 to vector<128x1xf32>
    %cst_0 = arith.constant 1.000000e+00 : f32
    %1 = vector.broadcast %cst_0 : f32 to vector<1x128xf32>
    %c0_i32 = arith.constant 0 : i32
    %c2_i32 = arith.constant 2 : i32
    %2 = arith.addi %c0_i32, %c2_i32 : i32
    %c1_i32 = arith.constant 1 : i32
    scf.for %arg7 = %c0_i32 to %2 step %c1_i32  : i32 {
      %3 = arith.index_cast %arg7 : i32 to index
      %c0 = arith.constant 0 : index
      %c0_2 = arith.constant 0 : index
      %4 = vector.load %arg1[%3, %c0, %c0_2] : memref<2x128x3xf32, #tpu.memory_space<vmem>>, vector<1x128x3xf32>
      %5 = vector.shape_cast %4 : vector<1x128x3xf32> to vector<128x3xf32>
      %6 = arith.index_cast %arg7 : i32 to index
      %c0_3 = arith.constant 0 : index
      %c0_4 = arith.constant 0 : index
      %7 = vector.load %arg2[%6, %c0_3, %c0_4] : memref<2x3x128xf32, #tpu.memory_space<vmem>>, vector<1x3x128xf32>
      %8 = vector.shape_cast %7 : vector<1x3x128xf32> to vector<3x128xf32>
      %9 = arith.mulf %5, %5 : vector<128x3xf32>
      %cst_5 = arith.constant dense<0.000000e+00> : vector<128xf32>
      %10 = vector.multi_reduction <add>, %9, %cst_5 [1] : vector<128x3xf32> to vector<128xf32>
      %11 = vector.shape_cast %10 : vector<128xf32> to vector<128x1xf32>
      %12 = arith.mulf %8, %8 : vector<3x128xf32>
      %cst_6 = arith.constant dense<0.000000e+00> : vector<128xf32>
      %13 = vector.multi_reduction <add>, %12, %cst_6 [0] : vector<3x128xf32> to vector<128xf32>
      %14 = vector.shape_cast %13 : vector<128xf32> to vector<1x128xf32>
      %cst_7 = arith.constant dense<0.000000e+00> : vector<128x128xf32>
      %15 = tpu.matmul %5, %8, %cst_7 {dimension_numbers = #tpu.dot_dimension_numbers<[1], [0], [0], [1], [0, 0, 1, 1], [], []>} : vector<128x3xf32>, vector<3x128xf32>, vector<128x128xf32> -> vector<128x128xf32>
      %16 = vector.broadcast %11 : vector<128x1xf32> to vector<128x128xf32>
      %17 = vector.broadcast %14 : vector<1x128xf32> to vector<128x128xf32>
      %18 = arith.addf %16, %17 : vector<128x128xf32>
      %cst_8 = arith.constant 2.000000e+00 : f32
      %19 = vector.broadcast %cst_8 : f32 to vector<128x128xf32>
      %20 = arith.mulf %19, %15 : vector<128x128xf32>
      %21 = arith.subf %18, %20 : vector<128x128xf32>
      %cst_9 = arith.constant 0.000000e+00 : f32
      %22 = vector.broadcast %cst_9 : f32 to vector<128x128xf32>
      %23 = arith.maximumf %21, %22 : vector<128x128xf32>
      %24 = math.sqrt %23 : vector<128x128xf32>
      %25 = vector.shape_cast %23 : vector<128x128xf32> to vector<1x128x128xf32>
      %cst_10 = arith.constant dense<0x7F800000> : vector<1xf32>
      %26 = vector.multi_reduction <minimumf>, %25, %cst_10 [1, 2] : vector<1x128x128xf32> to vector<1xf32>
      %27 = vector.shape_cast %26 : vector<1xf32> to vector<1x1x1xf32>
      %28 = vector.extract %27[0, 0, 0] : f32 from vector<1x1x1xf32>
      %cst_11 = arith.constant 1.000000e+00 : f32
      %29 = vector.broadcast %cst_11 : f32 to vector<128x1xf32>
      %c0_12 = arith.constant 0 : index
      %c0_13 = arith.constant 0 : index
      %30 = vector.load %arg4[%c0_12, %c0_13] : memref<128x1xf32, #tpu.memory_space<vmem>>, vector<128x1xf32>
      tpu.vector_store %arg4[%c0_12, %c0_13], %29 {strides = array<i32>} : memref<128x1xf32, #tpu.memory_space<vmem>>, vector<128x1xf32>,
      %cst_14 = arith.constant 1.000000e+00 : f32
      %31 = vector.broadcast %cst_14 : f32 to vector<1x128xf32>
      %c0_15 = arith.constant 0 : index
      %c0_16 = arith.constant 0 : index
      %32 = vector.load %arg5[%c0_15, %c0_16] : memref<1x128xf32, #tpu.memory_space<vmem>>, vector<1x128xf32>
      tpu.vector_store %arg5[%c0_15, %c0_16], %31 {strides = array<i32>} : memref<1x128xf32, #tpu.memory_space<vmem>>, vector<1x128xf32>,
      %cst_17 = arith.constant 0.000000e+00 : f32
      %33 = vector.broadcast %cst_17 : f32 to vector<1x128xf32>
      %c0_18 = arith.constant 0 : index
      %c0_19 = arith.constant 0 : index
      %34 = vector.load %arg6[%c0_18, %c0_19] : memref<1x128xf32, #tpu.memory_space<vmem>>, vector<1x128xf32>
      tpu.vector_store %arg6[%c0_18, %c0_19], %33 {strides = array<i32>} : memref<1x128xf32, #tpu.memory_space<vmem>>, vector<1x128xf32>,
      %cst_20 = arith.constant 1.638400e+04 : f32
      %35 = arith.mulf %cst_20, %28 : f32
      %cst_21 = arith.constant 1.040000e+02 : f32
      %36 = arith.cmpf ole, %35, %cst_21 : f32
      %37 = arith.extui %36 : i1 to i32
      %c0_i32_22 = arith.constant 0 : i32
      %38 = arith.cmpi ne, %37, %c0_i32_22 : i32
      scf.if %38 {
        %c0_168 = arith.constant 0 : index
        %c0_169 = arith.constant 0 : index
        %279 = vector.load %arg4[%c0_168, %c0_169] : memref<128x1xf32, #tpu.memory_space<vmem>>, vector<128x1xf32>
        %c0_170 = arith.constant 0 : index
        %c0_171 = arith.constant 0 : index
        %280 = vector.load %arg5[%c0_170, %c0_171] : memref<1x128xf32, #tpu.memory_space<vmem>>, vector<1x128xf32>
        %281 = arith.mulf %24, %24 : vector<128x128xf32>
        %cst_172 = arith.constant -1.638400e+04 : f32
        %282 = vector.broadcast %cst_172 : f32 to vector<128x128xf32>
        %283 = arith.mulf %282, %281 : vector<128x128xf32>
        %284 = math.exp %283 : vector<128x128xf32>
        %285 = vector.broadcast %280 : vector<1x128xf32> to vector<128x128xf32>
        %286 = arith.mulf %284, %285 : vector<128x128xf32>
        %cst_173 = arith.constant dense<0.000000e+00> : vector<128x1xf32>
        %287 = tpu.matmul %286, %0, %cst_173 {dimension_numbers = #tpu.dot_dimension_numbers<[1], [0], [0], [1], [0, 0, 1, 1], [], []>} : vector<128x128xf32>, vector<128x1xf32>, vector<128x1xf32> -> vector<128x1xf32>
        %cst_174 = arith.constant 9.99999971E-10 : f32
        %288 = vector.broadcast %cst_174 : f32 to vector<128x1xf32>
        %289 = arith.addf %287, %288 : vector<128x1xf32>
        %290 = arith.divf %279, %289 : vector<128x1xf32>
        %291 = vector.broadcast %290 : vector<128x1xf32> to vector<128x128xf32>
        %292 = arith.mulf %286, %291 : vector<128x128xf32>
        %cst_175 = arith.constant dense<0.000000e+00> : vector<1x128xf32>
        %293 = tpu.matmul %1, %292, %cst_175 {dimension_numbers = #tpu.dot_dimension_numbers<[1], [0], [0], [1], [0, 0, 1, 1], [], []>} : vector<1x128xf32>, vector<128x128xf32>, vector<1x128xf32> -> vector<1x128xf32>
        %cst_176 = arith.constant 9.99999971E-10 : f32
        %294 = vector.broadcast %cst_176 : f32 to vector<1x128xf32>
        %295 = arith.addf %293, %294 : vector<1x128xf32>
        %296 = arith.divf %280, %295 : vector<1x128xf32>
        %cst_177 = arith.constant 1.000000e+00 : f32
        %297 = vector.broadcast %cst_177 : f32 to vector<1x128xf32>
        %298 = arith.minimumf %296, %297 : vector<1x128xf32>
        %299 = vector.broadcast %298 : vector<1x128xf32> to vector<128x128xf32>
        %300 = arith.mulf %292, %299 : vector<128x128xf32>
        %c0_178 = arith.constant 0 : index
        %c0_179 = arith.constant 0 : index
        %301 = vector.load %arg6[%c0_178, %c0_179] : memref<1x128xf32, #tpu.memory_space<vmem>>, vector<1x128xf32>
        %302 = arith.mulf %24, %300 : vector<128x128xf32>
        %cst_180 = arith.constant dense<0.000000e+00> : vector<1x128xf32>
        %303 = tpu.matmul %1, %302, %cst_180 {dimension_numbers = #tpu.dot_dimension_numbers<[1], [0], [0], [1], [0, 0, 1, 1], [], []>} : vector<1x128xf32>, vector<128x128xf32>, vector<1x128xf32> -> vector<1x128xf32>
        %304 = arith.addf %301, %303 : vector<1x128xf32>
        %c0_181 = arith.constant 0 : index
        %c0_182 = arith.constant 0 : index
        %305 = vector.load %arg6[%c0_181, %c0_182] : memref<1x128xf32, #tpu.memory_space<vmem>>, vector<1x128xf32>
        tpu.vector_store %arg6[%c0_181, %c0_182], %304 {strides = array<i32>} : memref<1x128xf32, #tpu.memory_space<vmem>>, vector<1x128xf32>,
        %cst_183 = arith.constant dense<0.000000e+00> : vector<128x1xf32>
        %306 = tpu.matmul %300, %0, %cst_183 {dimension_numbers = #tpu.dot_dimension_numbers<[1], [0], [0], [1], [0, 0, 1, 1], [], []>} : vector<128x128xf32>, vector<128x1xf32>, vector<128x1xf32> -> vector<128x1xf32>
        %307 = arith.subf %279, %306 : vector<128x1xf32>
        %cst_184 = arith.constant 0.000000e+00 : f32
        %308 = vector.broadcast %cst_184 : f32 to vector<128x1xf32>
        %309 = arith.maximumf %307, %308 : vector<128x1xf32>
        %c0_185 = arith.constant 0 : index
        %c0_186 = arith.constant 0 : index
        %310 = vector.load %arg4[%c0_185, %c0_186] : memref<128x1xf32, #tpu.memory_space<vmem>>, vector<128x1xf32>
        tpu.vector_store %arg4[%c0_185, %c0_186], %309 {strides = array<i32>} : memref<128x1xf32, #tpu.memory_space<vmem>>, vector<128x1xf32>,
        %311 = arith.mulf %293, %298 : vector<1x128xf32>
        %312 = arith.subf %280, %311 : vector<1x128xf32>
        %cst_187 = arith.constant 0.000000e+00 : f32
        %313 = vector.broadcast %cst_187 : f32 to vector<1x128xf32>
        %314 = arith.maximumf %312, %313 : vector<1x128xf32>
        %c0_188 = arith.constant 0 : index
        %c0_189 = arith.constant 0 : index
        %315 = vector.load %arg5[%c0_188, %c0_189] : memref<1x128xf32, #tpu.memory_space<vmem>>, vector<1x128xf32>
        tpu.vector_store %arg5[%c0_188, %c0_189], %314 {strides = array<i32>} : memref<1x128xf32, #tpu.memory_space<vmem>>, vector<1x128xf32>,
      } else {
      }
      %cst_23 = arith.constant 4.096000e+03 : f32
      %39 = arith.mulf %cst_23, %28 : f32
      %cst_24 = arith.constant 1.040000e+02 : f32
      %40 = arith.cmpf ole, %39, %cst_24 : f32
      %41 = arith.extui %40 : i1 to i32
      %c0_i32_25 = arith.constant 0 : i32
      %42 = arith.cmpi ne, %41, %c0_i32_25 : i32
      scf.if %42 {
        %c0_168 = arith.constant 0 : index
        %c0_169 = arith.constant 0 : index
        %279 = vector.load %arg4[%c0_168, %c0_169] : memref<128x1xf32, #tpu.memory_space<vmem>>, vector<128x1xf32>
        %c0_170 = arith.constant 0 : index
        %c0_171 = arith.constant 0 : index
        %280 = vector.load %arg5[%c0_170, %c0_171] : memref<1x128xf32, #tpu.memory_space<vmem>>, vector<1x128xf32>
        %281 = arith.mulf %24, %24 : vector<128x128xf32>
        %cst_172 = arith.constant -4.096000e+03 : f32
        %282 = vector.broadcast %cst_172 : f32 to vector<128x128xf32>
        %283 = arith.mulf %282, %281 : vector<128x128xf32>
        %284 = math.exp %283 : vector<128x128xf32>
        %285 = vector.broadcast %280 : vector<1x128xf32> to vector<128x128xf32>
        %286 = arith.mulf %284, %285 : vector<128x128xf32>
        %cst_173 = arith.constant dense<0.000000e+00> : vector<128x1xf32>
        %287 = tpu.matmul %286, %0, %cst_173 {dimension_numbers = #tpu.dot_dimension_numbers<[1], [0], [0], [1], [0, 0, 1, 1], [], []>} : vector<128x128xf32>, vector<128x1xf32>, vector<128x1xf32> -> vector<128x1xf32>
        %cst_174 = arith.constant 9.99999971E-10 : f32
        %288 = vector.broadcast %cst_174 : f32 to vector<128x1xf32>
        %289 = arith.addf %287, %288 : vector<128x1xf32>
        %290 = arith.divf %279, %289 : vector<128x1xf32>
        %291 = vector.broadcast %290 : vector<128x1xf32> to vector<128x128xf32>
        %292 = arith.mulf %286, %291 : vector<128x128xf32>
        %cst_175 = arith.constant dense<0.000000e+00> : vector<1x128xf32>
        %293 = tpu.matmul %1, %292, %cst_175 {dimension_numbers = #tpu.dot_dimension_numbers<[1], [0], [0], [1], [0, 0, 1, 1], [], []>} : vector<1x128xf32>, vector<128x128xf32>, vector<1x128xf32> -> vector<1x128xf32>
        %cst_176 = arith.constant 9.99999971E-10 : f32
        %294 = vector.broadcast %cst_176 : f32 to vector<1x128xf32>
        %295 = arith.addf %293, %294 : vector<1x128xf32>
        %296 = arith.divf %280, %295 : vector<1x128xf32>
        %cst_177 = arith.constant 1.000000e+00 : f32
        %297 = vector.broadcast %cst_177 : f32 to vector<1x128xf32>
        %298 = arith.minimumf %296, %297 : vector<1x128xf32>
        %299 = vector.broadcast %298 : vector<1x128xf32> to vector<128x128xf32>
        %300 = arith.mulf %292, %299 : vector<128x128xf32>
        %c0_178 = arith.constant 0 : index
        %c0_179 = arith.constant 0 : index
        %301 = vector.load %arg6[%c0_178, %c0_179] : memref<1x128xf32, #tpu.memory_space<vmem>>, vector<1x128xf32>
        %302 = arith.mulf %24, %300 : vector<128x128xf32>
        %cst_180 = arith.constant dense<0.000000e+00> : vector<1x128xf32>
        %303 = tpu.matmul %1, %302, %cst_180 {dimension_numbers = #tpu.dot_dimension_numbers<[1], [0], [0], [1], [0, 0, 1, 1], [], []>} : vector<1x128xf32>, vector<128x128xf32>, vector<1x128xf32> -> vector<1x128xf32>
        %304 = arith.addf %301, %303 : vector<1x128xf32>
        %c0_181 = arith.constant 0 : index
        %c0_182 = arith.constant 0 : index
        %305 = vector.load %arg6[%c0_181, %c0_182] : memref<1x128xf32, #tpu.memory_space<vmem>>, vector<1x128xf32>
        tpu.vector_store %arg6[%c0_181, %c0_182], %304 {strides = array<i32>} : memref<1x128xf32, #tpu.memory_space<vmem>>, vector<1x128xf32>,
        %cst_183 = arith.constant dense<0.000000e+00> : vector<128x1xf32>
        %306 = tpu.matmul %300, %0, %cst_183 {dimension_numbers = #tpu.dot_dimension_numbers<[1], [0], [0], [1], [0, 0, 1, 1], [], []>} : vector<128x128xf32>, vector<128x1xf32>, vector<128x1xf32> -> vector<128x1xf32>
        %307 = arith.subf %279, %306 : vector<128x1xf32>
        %cst_184 = arith.constant 0.000000e+00 : f32
        %308 = vector.broadcast %cst_184 : f32 to vector<128x1xf32>
        %309 = arith.maximumf %307, %308 : vector<128x1xf32>
        %c0_185 = arith.constant 0 : index
        %c0_186 = arith.constant 0 : index
        %310 = vector.load %arg4[%c0_185, %c0_186] : memref<128x1xf32, #tpu.memory_space<vmem>>, vector<128x1xf32>
        tpu.vector_store %arg4[%c0_185, %c0_186], %309 {strides = array<i32>} : memref<128x1xf32, #tpu.memory_space<vmem>>, vector<128x1xf32>,
        %311 = arith.mulf %293, %298 : vector<1x128xf32>
        %312 = arith.subf %280, %311 : vector<1x128xf32>
        %cst_187 = arith.constant 0.000000e+00 : f32
        %313 = vector.broadcast %cst_187 : f32 to vector<1x128xf32>
        %314 = arith.maximumf %312, %313 : vector<1x128xf32>
        %c0_188 = arith.constant 0 : index
        %c0_189 = arith.constant 0 : index
        %315 = vector.load %arg5[%c0_188, %c0_189] : memref<1x128xf32, #tpu.memory_space<vmem>>, vector<1x128xf32>
        tpu.vector_store %arg5[%c0_188, %c0_189], %314 {strides = array<i32>} : memref<1x128xf32, #tpu.memory_space<vmem>>, vector<1x128xf32>,
      } else {
      }
      %cst_26 = arith.constant 1.024000e+03 : f32
      %43 = arith.mulf %cst_26, %28 : f32
      %cst_27 = arith.constant 1.040000e+02 : f32
      %44 = arith.cmpf ole, %43, %cst_27 : f32
      %45 = arith.extui %44 : i1 to i32
      %c0_i32_28 = arith.constant 0 : i32
      %46 = arith.cmpi ne, %45, %c0_i32_28 : i32
      scf.if %46 {
        %c0_168 = arith.constant 0 : index
        %c0_169 = arith.constant 0 : index
        %279 = vector.load %arg4[%c0_168, %c0_169] : memref<128x1xf32, #tpu.memory_space<vmem>>, vector<128x1xf32>
        %c0_170 = arith.constant 0 : index
        %c0_171 = arith.constant 0 : index
        %280 = vector.load %arg5[%c0_170, %c0_171] : memref<1x128xf32, #tpu.memory_space<vmem>>, vector<1x128xf32>
        %281 = arith.mulf %24, %24 : vector<128x128xf32>
        %cst_172 = arith.constant -1.024000e+03 : f32
        %282 = vector.broadcast %cst_172 : f32 to vector<128x128xf32>
        %283 = arith.mulf %282, %281 : vector<128x128xf32>
        %284 = math.exp %283 : vector<128x128xf32>
        %285 = vector.broadcast %280 : vector<1x128xf32> to vector<128x128xf32>
        %286 = arith.mulf %284, %285 : vector<128x128xf32>
        %cst_173 = arith.constant dense<0.000000e+00> : vector<128x1xf32>
        %287 = tpu.matmul %286, %0, %cst_173 {dimension_numbers = #tpu.dot_dimension_numbers<[1], [0], [0], [1], [0, 0, 1, 1], [], []>} : vector<128x128xf32>, vector<128x1xf32>, vector<128x1xf32> -> vector<128x1xf32>
        %cst_174 = arith.constant 9.99999971E-10 : f32
        %288 = vector.broadcast %cst_174 : f32 to vector<128x1xf32>
        %289 = arith.addf %287, %288 : vector<128x1xf32>
        %290 = arith.divf %279, %289 : vector<128x1xf32>
        %291 = vector.broadcast %290 : vector<128x1xf32> to vector<128x128xf32>
        %292 = arith.mulf %286, %291 : vector<128x128xf32>
        %cst_175 = arith.constant dense<0.000000e+00> : vector<1x128xf32>
        %293 = tpu.matmul %1, %292, %cst_175 {dimension_numbers = #tpu.dot_dimension_numbers<[1], [0], [0], [1], [0, 0, 1, 1], [], []>} : vector<1x128xf32>, vector<128x128xf32>, vector<1x128xf32> -> vector<1x128xf32>
        %cst_176 = arith.constant 9.99999971E-10 : f32
        %294 = vector.broadcast %cst_176 : f32 to vector<1x128xf32>
        %295 = arith.addf %293, %294 : vector<1x128xf32>
        %296 = arith.divf %280, %295 : vector<1x128xf32>
        %cst_177 = arith.constant 1.000000e+00 : f32
        %297 = vector.broadcast %cst_177 : f32 to vector<1x128xf32>
        %298 = arith.minimumf %296, %297 : vector<1x128xf32>
        %299 = vector.broadcast %298 : vector<1x128xf32> to vector<128x128xf32>
        %300 = arith.mulf %292, %299 : vector<128x128xf32>
        %c0_178 = arith.constant 0 : index
        %c0_179 = arith.constant 0 : index
        %301 = vector.load %arg6[%c0_178, %c0_179] : memref<1x128xf32, #tpu.memory_space<vmem>>, vector<1x128xf32>
        %302 = arith.mulf %24, %300 : vector<128x128xf32>
        %cst_180 = arith.constant dense<0.000000e+00> : vector<1x128xf32>
        %303 = tpu.matmul %1, %302, %cst_180 {dimension_numbers = #tpu.dot_dimension_numbers<[1], [0], [0], [1], [0, 0, 1, 1], [], []>} : vector<1x128xf32>, vector<128x128xf32>, vector<1x128xf32> -> vector<1x128xf32>
        %304 = arith.addf %301, %303 : vector<1x128xf32>
        %c0_181 = arith.constant 0 : index
        %c0_182 = arith.constant 0 : index
        %305 = vector.load %arg6[%c0_181, %c0_182] : memref<1x128xf32, #tpu.memory_space<vmem>>, vector<1x128xf32>
        tpu.vector_store %arg6[%c0_181, %c0_182], %304 {strides = array<i32>} : memref<1x128xf32, #tpu.memory_space<vmem>>, vector<1x128xf32>,
        %cst_183 = arith.constant dense<0.000000e+00> : vector<128x1xf32>
        %306 = tpu.matmul %300, %0, %cst_183 {dimension_numbers = #tpu.dot_dimension_numbers<[1], [0], [0], [1], [0, 0, 1, 1], [], []>} : vector<128x128xf32>, vector<128x1xf32>, vector<128x1xf32> -> vector<128x1xf32>
        %307 = arith.subf %279, %306 : vector<128x1xf32>
        %cst_184 = arith.constant 0.000000e+00 : f32
        %308 = vector.broadcast %cst_184 : f32 to vector<128x1xf32>
        %309 = arith.maximumf %307, %308 : vector<128x1xf32>
        %c0_185 = arith.constant 0 : index
        %c0_186 = arith.constant 0 : index
        %310 = vector.load %arg4[%c0_185, %c0_186] : memref<128x1xf32, #tpu.memory_space<vmem>>, vector<128x1xf32>
        tpu.vector_store %arg4[%c0_185, %c0_186], %309 {strides = array<i32>} : memref<128x1xf32, #tpu.memory_space<vmem>>, vector<128x1xf32>,
        %311 = arith.mulf %293, %298 : vector<1x128xf32>
        %312 = arith.subf %280, %311 : vector<1x128xf32>
        %cst_187 = arith.constant 0.000000e+00 : f32
        %313 = vector.broadcast %cst_187 : f32 to vector<1x128xf32>
        %314 = arith.maximumf %312, %313 : vector<1x128xf32>
        %c0_188 = arith.constant 0 : index
        %c0_189 = arith.constant 0 : index
        %315 = vector.load %arg5[%c0_188, %c0_189] : memref<1x128xf32, #tpu.memory_space<vmem>>, vector<1x128xf32>
        tpu.vector_store %arg5[%c0_188, %c0_189], %314 {strides = array<i32>} : memref<1x128xf32, #tpu.memory_space<vmem>>, vector<1x128xf32>,
      } else {
      }
      %cst_29 = arith.constant 2.560000e+02 : f32
      %47 = arith.mulf %cst_29, %28 : f32
      %cst_30 = arith.constant 1.040000e+02 : f32
      %48 = arith.cmpf ole, %47, %cst_30 : f32
      %49 = arith.extui %48 : i1 to i32
      %c0_i32_31 = arith.constant 0 : i32
      %50 = arith.cmpi ne, %49, %c0_i32_31 : i32
      scf.if %50 {
        %c0_168 = arith.constant 0 : index
        %c0_169 = arith.constant 0 : index
        %279 = vector.load %arg4[%c0_168, %c0_169] : memref<128x1xf32, #tpu.memory_space<vmem>>, vector<128x1xf32>
        %c0_170 = arith.constant 0 : index
        %c0_171 = arith.constant 0 : index
        %280 = vector.load %arg5[%c0_170, %c0_171] : memref<1x128xf32, #tpu.memory_space<vmem>>, vector<1x128xf32>
        %281 = arith.mulf %24, %24 : vector<128x128xf32>
        %cst_172 = arith.constant -2.560000e+02 : f32
        %282 = vector.broadcast %cst_172 : f32 to vector<128x128xf32>
        %283 = arith.mulf %282, %281 : vector<128x128xf32>
        %284 = math.exp %283 : vector<128x128xf32>
        %285 = vector.broadcast %280 : vector<1x128xf32> to vector<128x128xf32>
        %286 = arith.mulf %284, %285 : vector<128x128xf32>
        %cst_173 = arith.constant dense<0.000000e+00> : vector<128x1xf32>
        %287 = tpu.matmul %286, %0, %cst_173 {dimension_numbers = #tpu.dot_dimension_numbers<[1], [0], [0], [1], [0, 0, 1, 1], [], []>} : vector<128x128xf32>, vector<128x1xf32>, vector<128x1xf32> -> vector<128x1xf32>
        %cst_174 = arith.constant 9.99999971E-10 : f32
        %288 = vector.broadcast %cst_174 : f32 to vector<128x1xf32>
        %289 = arith.addf %287, %288 : vector<128x1xf32>
        %290 = arith.divf %279, %289 : vector<128x1xf32>
        %291 = vector.broadcast %290 : vector<128x1xf32> to vector<128x128xf32>
        %292 = arith.mulf %286, %291 : vector<128x128xf32>
        %cst_175 = arith.constant dense<0.000000e+00> : vector<1x128xf32>
        %293 = tpu.matmul %1, %292, %cst_175 {dimension_numbers = #tpu.dot_dimension_numbers<[1], [0], [0], [1], [0, 0, 1, 1], [], []>} : vector<1x128xf32>, vector<128x128xf32>, vector<1x128xf32> -> vector<1x128xf32>
        %cst_176 = arith.constant 9.99999971E-10 : f32
        %294 = vector.broadcast %cst_176 : f32 to vector<1x128xf32>
        %295 = arith.addf %293, %294 : vector<1x128xf32>
        %296 = arith.divf %280, %295 : vector<1x128xf32>
        %cst_177 = arith.constant 1.000000e+00 : f32
        %297 = vector.broadcast %cst_177 : f32 to vector<1x128xf32>
        %298 = arith.minimumf %296, %297 : vector<1x128xf32>
        %299 = vector.broadcast %298 : vector<1x128xf32> to vector<128x128xf32>
        %300 = arith.mulf %292, %299 : vector<128x128xf32>
        %c0_178 = arith.constant 0 : index
        %c0_179 = arith.constant 0 : index
        %301 = vector.load %arg6[%c0_178, %c0_179] : memref<1x128xf32, #tpu.memory_space<vmem>>, vector<1x128xf32>
        %302 = arith.mulf %24, %300 : vector<128x128xf32>
        %cst_180 = arith.constant dense<0.000000e+00> : vector<1x128xf32>
        %303 = tpu.matmul %1, %302, %cst_180 {dimension_numbers = #tpu.dot_dimension_numbers<[1], [0], [0], [1], [0, 0, 1, 1], [], []>} : vector<1x128xf32>, vector<128x128xf32>, vector<1x128xf32> -> vector<1x128xf32>
        %304 = arith.addf %301, %303 : vector<1x128xf32>
        %c0_181 = arith.constant 0 : index
        %c0_182 = arith.constant 0 : index
        %305 = vector.load %arg6[%c0_181, %c0_182] : memref<1x128xf32, #tpu.memory_space<vmem>>, vector<1x128xf32>
        tpu.vector_store %arg6[%c0_181, %c0_182], %304 {strides = array<i32>} : memref<1x128xf32, #tpu.memory_space<vmem>>, vector<1x128xf32>,
        %cst_183 = arith.constant dense<0.000000e+00> : vector<128x1xf32>
        %306 = tpu.matmul %300, %0, %cst_183 {dimension_numbers = #tpu.dot_dimension_numbers<[1], [0], [0], [1], [0, 0, 1, 1], [], []>} : vector<128x128xf32>, vector<128x1xf32>, vector<128x1xf32> -> vector<128x1xf32>
        %307 = arith.subf %279, %306 : vector<128x1xf32>
        %cst_184 = arith.constant 0.000000e+00 : f32
        %308 = vector.broadcast %cst_184 : f32 to vector<128x1xf32>
        %309 = arith.maximumf %307, %308 : vector<128x1xf32>
        %c0_185 = arith.constant 0 : index
        %c0_186 = arith.constant 0 : index
        %310 = vector.load %arg4[%c0_185, %c0_186] : memref<128x1xf32, #tpu.memory_space<vmem>>, vector<128x1xf32>
        tpu.vector_store %arg4[%c0_185, %c0_186], %309 {strides = array<i32>} : memref<128x1xf32, #tpu.memory_space<vmem>>, vector<128x1xf32>,
        %311 = arith.mulf %293, %298 : vector<1x128xf32>
        %312 = arith.subf %280, %311 : vector<1x128xf32>
        %cst_187 = arith.constant 0.000000e+00 : f32
        %313 = vector.broadcast %cst_187 : f32 to vector<1x128xf32>
        %314 = arith.maximumf %312, %313 : vector<1x128xf32>
        %c0_188 = arith.constant 0 : index
        %c0_189 = arith.constant 0 : index
        %315 = vector.load %arg5[%c0_188, %c0_189] : memref<1x128xf32, #tpu.memory_space<vmem>>, vector<1x128xf32>
        tpu.vector_store %arg5[%c0_188, %c0_189], %314 {strides = array<i32>} : memref<1x128xf32, #tpu.memory_space<vmem>>, vector<1x128xf32>,
      } else {
      }
      %c0_32 = arith.constant 0 : index
      %c0_33 = arith.constant 0 : index
      %51 = vector.load %arg4[%c0_32, %c0_33] : memref<128x1xf32, #tpu.memory_space<vmem>>, vector<128x1xf32>
      %c0_34 = arith.constant 0 : index
      %c0_35 = arith.constant 0 : index
      %52 = vector.load %arg5[%c0_34, %c0_35] : memref<1x128xf32, #tpu.memory_space<vmem>>, vector<1x128xf32>
      %53 = arith.mulf %24, %24 : vector<128x128xf32>
      %cst_36 = arith.constant -6.400000e+01 : f32
      %54 = vector.broadcast %cst_36 : f32 to vector<128x128xf32>
      %55 = arith.mulf %54, %53 : vector<128x128xf32>
      %56 = math.exp %55 : vector<128x128xf32>
      %57 = vector.broadcast %52 : vector<1x128xf32> to vector<128x128xf32>
      %58 = arith.mulf %56, %57 : vector<128x128xf32>
      %cst_37 = arith.constant dense<0.000000e+00> : vector<128x1xf32>
      %59 = tpu.matmul %58, %0, %cst_37 {dimension_numbers = #tpu.dot_dimension_numbers<[1], [0], [0], [1], [0, 0, 1, 1], [], []>} : vector<128x128xf32>, vector<128x1xf32>, vector<128x1xf32> -> vector<128x1xf32>
      %cst_38 = arith.constant 9.99999971E-10 : f32
      %60 = vector.broadcast %cst_38 : f32 to vector<128x1xf32>
      %61 = arith.addf %59, %60 : vector<128x1xf32>
      %62 = arith.divf %51, %61 : vector<128x1xf32>
      %63 = vector.broadcast %62 : vector<128x1xf32> to vector<128x128xf32>
      %64 = arith.mulf %58, %63 : vector<128x128xf32>
      %cst_39 = arith.constant dense<0.000000e+00> : vector<1x128xf32>
      %65 = tpu.matmul %1, %64, %cst_39 {dimension_numbers = #tpu.dot_dimension_numbers<[1], [0], [0], [1], [0, 0, 1, 1], [], []>} : vector<1x128xf32>, vector<128x128xf32>, vector<1x128xf32> -> vector<1x128xf32>
      %cst_40 = arith.constant 9.99999971E-10 : f32
      %66 = vector.broadcast %cst_40 : f32 to vector<1x128xf32>
      %67 = arith.addf %65, %66 : vector<1x128xf32>
      %68 = arith.divf %52, %67 : vector<1x128xf32>
      %cst_41 = arith.constant 1.000000e+00 : f32
      %69 = vector.broadcast %cst_41 : f32 to vector<1x128xf32>
      %70 = arith.minimumf %68, %69 : vector<1x128xf32>
      %71 = vector.broadcast %70 : vector<1x128xf32> to vector<128x128xf32>
      %72 = arith.mulf %64, %71 : vector<128x128xf32>
      %c0_42 = arith.constant 0 : index
      %c0_43 = arith.constant 0 : index
      %73 = vector.load %arg6[%c0_42, %c0_43] : memref<1x128xf32, #tpu.memory_space<vmem>>, vector<1x128xf32>
      %74 = arith.mulf %24, %72 : vector<128x128xf32>
      %cst_44 = arith.constant dense<0.000000e+00> : vector<1x128xf32>
      %75 = tpu.matmul %1, %74, %cst_44 {dimension_numbers = #tpu.dot_dimension_numbers<[1], [0], [0], [1], [0, 0, 1, 1], [], []>} : vector<1x128xf32>, vector<128x128xf32>, vector<1x128xf32> -> vector<1x128xf32>
      %76 = arith.addf %73, %75 : vector<1x128xf32>
      %c0_45 = arith.constant 0 : index
      %c0_46 = arith.constant 0 : index
      %77 = vector.load %arg6[%c0_45, %c0_46] : memref<1x128xf32, #tpu.memory_space<vmem>>, vector<1x128xf32>
      tpu.vector_store %arg6[%c0_45, %c0_46], %76 {strides = array<i32>} : memref<1x128xf32, #tpu.memory_space<vmem>>, vector<1x128xf32>,
      %cst_47 = arith.constant dense<0.000000e+00> : vector<128x1xf32>
      %78 = tpu.matmul %72, %0, %cst_47 {dimension_numbers = #tpu.dot_dimension_numbers<[1], [0], [0], [1], [0, 0, 1, 1], [], []>} : vector<128x128xf32>, vector<128x1xf32>, vector<128x1xf32> -> vector<128x1xf32>
      %79 = arith.subf %51, %78 : vector<128x1xf32>
      %cst_48 = arith.constant 0.000000e+00 : f32
      %80 = vector.broadcast %cst_48 : f32 to vector<128x1xf32>
      %81 = arith.maximumf %79, %80 : vector<128x1xf32>
      %c0_49 = arith.constant 0 : index
      %c0_50 = arith.constant 0 : index
      %82 = vector.load %arg4[%c0_49, %c0_50] : memref<128x1xf32, #tpu.memory_space<vmem>>, vector<128x1xf32>
      tpu.vector_store %arg4[%c0_49, %c0_50], %81 {strides = array<i32>} : memref<128x1xf32, #tpu.memory_space<vmem>>, vector<128x1xf32>,
      %83 = arith.mulf %65, %70 : vector<1x128xf32>
      %84 = arith.subf %52, %83 : vector<1x128xf32>
      %cst_51 = arith.constant 0.000000e+00 : f32
      %85 = vector.broadcast %cst_51 : f32 to vector<1x128xf32>
      %86 = arith.maximumf %84, %85 : vector<1x128xf32>
      %c0_52 = arith.constant 0 : index
      %c0_53 = arith.constant 0 : index
      %87 = vector.load %arg5[%c0_52, %c0_53] : memref<1x128xf32, #tpu.memory_space<vmem>>, vector<1x128xf32>
      tpu.vector_store %arg5[%c0_52, %c0_53], %86 {strides = array<i32>} : memref<1x128xf32, #tpu.memory_space<vmem>>, vector<1x128xf32>,
      %c0_54 = arith.constant 0 : index
      %c0_55 = arith.constant 0 : index
      %88 = vector.load %arg4[%c0_54, %c0_55] : memref<128x1xf32, #tpu.memory_space<vmem>>, vector<128x1xf32>
      %c0_56 = arith.constant 0 : index
      %c0_57 = arith.constant 0 : index
      %89 = vector.load %arg5[%c0_56, %c0_57] : memref<1x128xf32, #tpu.memory_space<vmem>>, vector<1x128xf32>
      %90 = arith.mulf %24, %24 : vector<128x128xf32>
      %cst_58 = arith.constant -1.600000e+01 : f32
      %91 = vector.broadcast %cst_58 : f32 to vector<128x128xf32>
      %92 = arith.mulf %91, %90 : vector<128x128xf32>
      %93 = math.exp %92 : vector<128x128xf32>
      %94 = vector.broadcast %89 : vector<1x128xf32> to vector<128x128xf32>
      %95 = arith.mulf %93, %94 : vector<128x128xf32>
      %cst_59 = arith.constant dense<0.000000e+00> : vector<128x1xf32>
      %96 = tpu.matmul %95, %0, %cst_59 {dimension_numbers = #tpu.dot_dimension_numbers<[1], [0], [0], [1], [0, 0, 1, 1], [], []>} : vector<128x128xf32>, vector<128x1xf32>, vector<128x1xf32> -> vector<128x1xf32>
      %cst_60 = arith.constant 9.99999971E-10 : f32
      %97 = vector.broadcast %cst_60 : f32 to vector<128x1xf32>
      %98 = arith.addf %96, %97 : vector<128x1xf32>
      %99 = arith.divf %88, %98 : vector<128x1xf32>
      %100 = vector.broadcast %99 : vector<128x1xf32> to vector<128x128xf32>
      %101 = arith.mulf %95, %100 : vector<128x128xf32>
      %cst_61 = arith.constant dense<0.000000e+00> : vector<1x128xf32>
      %102 = tpu.matmul %1, %101, %cst_61 {dimension_numbers = #tpu.dot_dimension_numbers<[1], [0], [0], [1], [0, 0, 1, 1], [], []>} : vector<1x128xf32>, vector<128x128xf32>, vector<1x128xf32> -> vector<1x128xf32>
      %cst_62 = arith.constant 9.99999971E-10 : f32
      %103 = vector.broadcast %cst_62 : f32 to vector<1x128xf32>
      %104 = arith.addf %102, %103 : vector<1x128xf32>
      %105 = arith.divf %89, %104 : vector<1x128xf32>
      %cst_63 = arith.constant 1.000000e+00 : f32
      %106 = vector.broadcast %cst_63 : f32 to vector<1x128xf32>
      %107 = arith.minimumf %105, %106 : vector<1x128xf32>
      %108 = vector.broadcast %107 : vector<1x128xf32> to vector<128x128xf32>
      %109 = arith.mulf %101, %108 : vector<128x128xf32>
      %c0_64 = arith.constant 0 : index
      %c0_65 = arith.constant 0 : index
      %110 = vector.load %arg6[%c0_64, %c0_65] : memref<1x128xf32, #tpu.memory_space<vmem>>, vector<1x128xf32>
      %111 = arith.mulf %24, %109 : vector<128x128xf32>
      %cst_66 = arith.constant dense<0.000000e+00> : vector<1x128xf32>
      %112 = tpu.matmul %1, %111, %cst_66 {dimension_numbers = #tpu.dot_dimension_numbers<[1], [0], [0], [1], [0, 0, 1, 1], [], []>} : vector<1x128xf32>, vector<128x128xf32>, vector<1x128xf32> -> vector<1x128xf32>
      %113 = arith.addf %110, %112 : vector<1x128xf32>
      %c0_67 = arith.constant 0 : index
      %c0_68 = arith.constant 0 : index
      %114 = vector.load %arg6[%c0_67, %c0_68] : memref<1x128xf32, #tpu.memory_space<vmem>>, vector<1x128xf32>
      tpu.vector_store %arg6[%c0_67, %c0_68], %113 {strides = array<i32>} : memref<1x128xf32, #tpu.memory_space<vmem>>, vector<1x128xf32>,
      %cst_69 = arith.constant dense<0.000000e+00> : vector<128x1xf32>
      %115 = tpu.matmul %109, %0, %cst_69 {dimension_numbers = #tpu.dot_dimension_numbers<[1], [0], [0], [1], [0, 0, 1, 1], [], []>} : vector<128x128xf32>, vector<128x1xf32>, vector<128x1xf32> -> vector<128x1xf32>
      %116 = arith.subf %88, %115 : vector<128x1xf32>
      %cst_70 = arith.constant 0.000000e+00 : f32
      %117 = vector.broadcast %cst_70 : f32 to vector<128x1xf32>
      %118 = arith.maximumf %116, %117 : vector<128x1xf32>
      %c0_71 = arith.constant 0 : index
      %c0_72 = arith.constant 0 : index
      %119 = vector.load %arg4[%c0_71, %c0_72] : memref<128x1xf32, #tpu.memory_space<vmem>>, vector<128x1xf32>
      tpu.vector_store %arg4[%c0_71, %c0_72], %118 {strides = array<i32>} : memref<128x1xf32, #tpu.memory_space<vmem>>, vector<128x1xf32>,
      %120 = arith.mulf %102, %107 : vector<1x128xf32>
      %121 = arith.subf %89, %120 : vector<1x128xf32>
      %cst_73 = arith.constant 0.000000e+00 : f32
      %122 = vector.broadcast %cst_73 : f32 to vector<1x128xf32>
      %123 = arith.maximumf %121, %122 : vector<1x128xf32>
      %c0_74 = arith.constant 0 : index
      %c0_75 = arith.constant 0 : index
      %124 = vector.load %arg5[%c0_74, %c0_75] : memref<1x128xf32, #tpu.memory_space<vmem>>, vector<1x128xf32>
      tpu.vector_store %arg5[%c0_74, %c0_75], %123 {strides = array<i32>} : memref<1x128xf32, #tpu.memory_space<vmem>>, vector<1x128xf32>,
      %c0_76 = arith.constant 0 : index
      %c0_77 = arith.constant 0 : index
      %125 = vector.load %arg4[%c0_76, %c0_77] : memref<128x1xf32, #tpu.memory_space<vmem>>, vector<128x1xf32>
      %c0_78 = arith.constant 0 : index
      %c0_79 = arith.constant 0 : index
      %126 = vector.load %arg5[%c0_78, %c0_79] : memref<1x128xf32, #tpu.memory_space<vmem>>, vector<1x128xf32>
      %127 = arith.mulf %24, %24 : vector<128x128xf32>
      %cst_80 = arith.constant -4.000000e+00 : f32
      %128 = vector.broadcast %cst_80 : f32 to vector<128x128xf32>
      %129 = arith.mulf %128, %127 : vector<128x128xf32>
      %130 = math.exp %129 : vector<128x128xf32>
      %131 = vector.broadcast %126 : vector<1x128xf32> to vector<128x128xf32>
      %132 = arith.mulf %130, %131 : vector<128x128xf32>
      %cst_81 = arith.constant dense<0.000000e+00> : vector<128x1xf32>
      %133 = tpu.matmul %132, %0, %cst_81 {dimension_numbers = #tpu.dot_dimension_numbers<[1], [0], [0], [1], [0, 0, 1, 1], [], []>} : vector<128x128xf32>, vector<128x1xf32>, vector<128x1xf32> -> vector<128x1xf32>
      %cst_82 = arith.constant 9.99999971E-10 : f32
      %134 = vector.broadcast %cst_82 : f32 to vector<128x1xf32>
      %135 = arith.addf %133, %134 : vector<128x1xf32>
      %136 = arith.divf %125, %135 : vector<128x1xf32>
      %137 = vector.broadcast %136 : vector<128x1xf32> to vector<128x128xf32>
      %138 = arith.mulf %132, %137 : vector<128x128xf32>
      %cst_83 = arith.constant dense<0.000000e+00> : vector<1x128xf32>
      %139 = tpu.matmul %1, %138, %cst_83 {dimension_numbers = #tpu.dot_dimension_numbers<[1], [0], [0], [1], [0, 0, 1, 1], [], []>} : vector<1x128xf32>, vector<128x128xf32>, vector<1x128xf32> -> vector<1x128xf32>
      %cst_84 = arith.constant 9.99999971E-10 : f32
      %140 = vector.broadcast %cst_84 : f32 to vector<1x128xf32>
      %141 = arith.addf %139, %140 : vector<1x128xf32>
      %142 = arith.divf %126, %141 : vector<1x128xf32>
      %cst_85 = arith.constant 1.000000e+00 : f32
      %143 = vector.broadcast %cst_85 : f32 to vector<1x128xf32>
      %144 = arith.minimumf %142, %143 : vector<1x128xf32>
      %145 = vector.broadcast %144 : vector<1x128xf32> to vector<128x128xf32>
      %146 = arith.mulf %138, %145 : vector<128x128xf32>
      %c0_86 = arith.constant 0 : index
      %c0_87 = arith.constant 0 : index
      %147 = vector.load %arg6[%c0_86, %c0_87] : memref<1x128xf32, #tpu.memory_space<vmem>>, vector<1x128xf32>
      %148 = arith.mulf %24, %146 : vector<128x128xf32>
      %cst_88 = arith.constant dense<0.000000e+00> : vector<1x128xf32>
      %149 = tpu.matmul %1, %148, %cst_88 {dimension_numbers = #tpu.dot_dimension_numbers<[1], [0], [0], [1], [0, 0, 1, 1], [], []>} : vector<1x128xf32>, vector<128x128xf32>, vector<1x128xf32> -> vector<1x128xf32>
      %150 = arith.addf %147, %149 : vector<1x128xf32>
      %c0_89 = arith.constant 0 : index
      %c0_90 = arith.constant 0 : index
      %151 = vector.load %arg6[%c0_89, %c0_90] : memref<1x128xf32, #tpu.memory_space<vmem>>, vector<1x128xf32>
      tpu.vector_store %arg6[%c0_89, %c0_90], %150 {strides = array<i32>} : memref<1x128xf32, #tpu.memory_space<vmem>>, vector<1x128xf32>,
      %cst_91 = arith.constant dense<0.000000e+00> : vector<128x1xf32>
      %152 = tpu.matmul %146, %0, %cst_91 {dimension_numbers = #tpu.dot_dimension_numbers<[1], [0], [0], [1], [0, 0, 1, 1], [], []>} : vector<128x128xf32>, vector<128x1xf32>, vector<128x1xf32> -> vector<128x1xf32>
      %153 = arith.subf %125, %152 : vector<128x1xf32>
      %cst_92 = arith.constant 0.000000e+00 : f32
      %154 = vector.broadcast %cst_92 : f32 to vector<128x1xf32>
      %155 = arith.maximumf %153, %154 : vector<128x1xf32>
      %c0_93 = arith.constant 0 : index
      %c0_94 = arith.constant 0 : index
      %156 = vector.load %arg4[%c0_93, %c0_94] : memref<128x1xf32, #tpu.memory_space<vmem>>, vector<128x1xf32>
      tpu.vector_store %arg4[%c0_93, %c0_94], %155 {strides = array<i32>} : memref<128x1xf32, #tpu.memory_space<vmem>>, vector<128x1xf32>,
      %157 = arith.mulf %139, %144 : vector<1x128xf32>
      %158 = arith.subf %126, %157 : vector<1x128xf32>
      %cst_95 = arith.constant 0.000000e+00 : f32
      %159 = vector.broadcast %cst_95 : f32 to vector<1x128xf32>
      %160 = arith.maximumf %158, %159 : vector<1x128xf32>
      %c0_96 = arith.constant 0 : index
      %c0_97 = arith.constant 0 : index
      %161 = vector.load %arg5[%c0_96, %c0_97] : memref<1x128xf32, #tpu.memory_space<vmem>>, vector<1x128xf32>
      tpu.vector_store %arg5[%c0_96, %c0_97], %160 {strides = array<i32>} : memref<1x128xf32, #tpu.memory_space<vmem>>, vector<1x128xf32>,
      %c0_98 = arith.constant 0 : index
      %c0_99 = arith.constant 0 : index
      %162 = vector.load %arg4[%c0_98, %c0_99] : memref<128x1xf32, #tpu.memory_space<vmem>>, vector<128x1xf32>
      %c0_100 = arith.constant 0 : index
      %c0_101 = arith.constant 0 : index
      %163 = vector.load %arg5[%c0_100, %c0_101] : memref<1x128xf32, #tpu.memory_space<vmem>>, vector<1x128xf32>
      %164 = arith.mulf %24, %24 : vector<128x128xf32>
      %cst_102 = arith.constant -1.000000e+00 : f32
      %165 = vector.broadcast %cst_102 : f32 to vector<128x128xf32>
      %166 = arith.mulf %165, %164 : vector<128x128xf32>
      %167 = math.exp %166 : vector<128x128xf32>
      %168 = vector.broadcast %163 : vector<1x128xf32> to vector<128x128xf32>
      %169 = arith.mulf %167, %168 : vector<128x128xf32>
      %cst_103 = arith.constant dense<0.000000e+00> : vector<128x1xf32>
      %170 = tpu.matmul %169, %0, %cst_103 {dimension_numbers = #tpu.dot_dimension_numbers<[1], [0], [0], [1], [0, 0, 1, 1], [], []>} : vector<128x128xf32>, vector<128x1xf32>, vector<128x1xf32> -> vector<128x1xf32>
      %cst_104 = arith.constant 9.99999971E-10 : f32
      %171 = vector.broadcast %cst_104 : f32 to vector<128x1xf32>
      %172 = arith.addf %170, %171 : vector<128x1xf32>
      %173 = arith.divf %162, %172 : vector<128x1xf32>
      %174 = vector.broadcast %173 : vector<128x1xf32> to vector<128x128xf32>
      %175 = arith.mulf %169, %174 : vector<128x128xf32>
      %cst_105 = arith.constant dense<0.000000e+00> : vector<1x128xf32>
      %176 = tpu.matmul %1, %175, %cst_105 {dimension_numbers = #tpu.dot_dimension_numbers<[1], [0], [0], [1], [0, 0, 1, 1], [], []>} : vector<1x128xf32>, vector<128x128xf32>, vector<1x128xf32> -> vector<1x128xf32>
      %cst_106 = arith.constant 9.99999971E-10 : f32
      %177 = vector.broadcast %cst_106 : f32 to vector<1x128xf32>
      %178 = arith.addf %176, %177 : vector<1x128xf32>
      %179 = arith.divf %163, %178 : vector<1x128xf32>
      %cst_107 = arith.constant 1.000000e+00 : f32
      %180 = vector.broadcast %cst_107 : f32 to vector<1x128xf32>
      %181 = arith.minimumf %179, %180 : vector<1x128xf32>
      %182 = vector.broadcast %181 : vector<1x128xf32> to vector<128x128xf32>
      %183 = arith.mulf %175, %182 : vector<128x128xf32>
      %c0_108 = arith.constant 0 : index
      %c0_109 = arith.constant 0 : index
      %184 = vector.load %arg6[%c0_108, %c0_109] : memref<1x128xf32, #tpu.memory_space<vmem>>, vector<1x128xf32>
      %185 = arith.mulf %24, %183 : vector<128x128xf32>
      %cst_110 = arith.constant dense<0.000000e+00> : vector<1x128xf32>
      %186 = tpu.matmul %1, %185, %cst_110 {dimension_numbers = #tpu.dot_dimension_numbers<[1], [0], [0], [1], [0, 0, 1, 1], [], []>} : vector<1x128xf32>, vector<128x128xf32>, vector<1x128xf32> -> vector<1x128xf32>
      %187 = arith.addf %184, %186 : vector<1x128xf32>
      %c0_111 = arith.constant 0 : index
      %c0_112 = arith.constant 0 : index
      %188 = vector.load %arg6[%c0_111, %c0_112] : memref<1x128xf32, #tpu.memory_space<vmem>>, vector<1x128xf32>
      tpu.vector_store %arg6[%c0_111, %c0_112], %187 {strides = array<i32>} : memref<1x128xf32, #tpu.memory_space<vmem>>, vector<1x128xf32>,
      %cst_113 = arith.constant dense<0.000000e+00> : vector<128x1xf32>
      %189 = tpu.matmul %183, %0, %cst_113 {dimension_numbers = #tpu.dot_dimension_numbers<[1], [0], [0], [1], [0, 0, 1, 1], [], []>} : vector<128x128xf32>, vector<128x1xf32>, vector<128x1xf32> -> vector<128x1xf32>
      %190 = arith.subf %162, %189 : vector<128x1xf32>
      %cst_114 = arith.constant 0.000000e+00 : f32
      %191 = vector.broadcast %cst_114 : f32 to vector<128x1xf32>
      %192 = arith.maximumf %190, %191 : vector<128x1xf32>
      %c0_115 = arith.constant 0 : index
      %c0_116 = arith.constant 0 : index
      %193 = vector.load %arg4[%c0_115, %c0_116] : memref<128x1xf32, #tpu.memory_space<vmem>>, vector<128x1xf32>
      tpu.vector_store %arg4[%c0_115, %c0_116], %192 {strides = array<i32>} : memref<128x1xf32, #tpu.memory_space<vmem>>, vector<128x1xf32>,
      %194 = arith.mulf %176, %181 : vector<1x128xf32>
      %195 = arith.subf %163, %194 : vector<1x128xf32>
      %cst_117 = arith.constant 0.000000e+00 : f32
      %196 = vector.broadcast %cst_117 : f32 to vector<1x128xf32>
      %197 = arith.maximumf %195, %196 : vector<1x128xf32>
      %c0_118 = arith.constant 0 : index
      %c0_119 = arith.constant 0 : index
      %198 = vector.load %arg5[%c0_118, %c0_119] : memref<1x128xf32, #tpu.memory_space<vmem>>, vector<1x128xf32>
      tpu.vector_store %arg5[%c0_118, %c0_119], %197 {strides = array<i32>} : memref<1x128xf32, #tpu.memory_space<vmem>>, vector<1x128xf32>,
      %c0_120 = arith.constant 0 : index
      %c0_121 = arith.constant 0 : index
      %199 = vector.load %arg4[%c0_120, %c0_121] : memref<128x1xf32, #tpu.memory_space<vmem>>, vector<128x1xf32>
      %c0_122 = arith.constant 0 : index
      %c0_123 = arith.constant 0 : index
      %200 = vector.load %arg5[%c0_122, %c0_123] : memref<1x128xf32, #tpu.memory_space<vmem>>, vector<1x128xf32>
      %201 = arith.mulf %24, %24 : vector<128x128xf32>
      %cst_124 = arith.constant -2.500000e-01 : f32
      %202 = vector.broadcast %cst_124 : f32 to vector<128x128xf32>
      %203 = arith.mulf %202, %201 : vector<128x128xf32>
      %204 = math.exp %203 : vector<128x128xf32>
      %205 = vector.broadcast %200 : vector<1x128xf32> to vector<128x128xf32>
      %206 = arith.mulf %204, %205 : vector<128x128xf32>
      %cst_125 = arith.constant dense<0.000000e+00> : vector<128x1xf32>
      %207 = tpu.matmul %206, %0, %cst_125 {dimension_numbers = #tpu.dot_dimension_numbers<[1], [0], [0], [1], [0, 0, 1, 1], [], []>} : vector<128x128xf32>, vector<128x1xf32>, vector<128x1xf32> -> vector<128x1xf32>
      %cst_126 = arith.constant 9.99999971E-10 : f32
      %208 = vector.broadcast %cst_126 : f32 to vector<128x1xf32>
      %209 = arith.addf %207, %208 : vector<128x1xf32>
      %210 = arith.divf %199, %209 : vector<128x1xf32>
      %211 = vector.broadcast %210 : vector<128x1xf32> to vector<128x128xf32>
      %212 = arith.mulf %206, %211 : vector<128x128xf32>
      %cst_127 = arith.constant dense<0.000000e+00> : vector<1x128xf32>
      %213 = tpu.matmul %1, %212, %cst_127 {dimension_numbers = #tpu.dot_dimension_numbers<[1], [0], [0], [1], [0, 0, 1, 1], [], []>} : vector<1x128xf32>, vector<128x128xf32>, vector<1x128xf32> -> vector<1x128xf32>
      %cst_128 = arith.constant 9.99999971E-10 : f32
      %214 = vector.broadcast %cst_128 : f32 to vector<1x128xf32>
      %215 = arith.addf %213, %214 : vector<1x128xf32>
      %216 = arith.divf %200, %215 : vector<1x128xf32>
      %cst_129 = arith.constant 1.000000e+00 : f32
      %217 = vector.broadcast %cst_129 : f32 to vector<1x128xf32>
      %218 = arith.minimumf %216, %217 : vector<1x128xf32>
      %219 = vector.broadcast %218 : vector<1x128xf32> to vector<128x128xf32>
      %220 = arith.mulf %212, %219 : vector<128x128xf32>
      %c0_130 = arith.constant 0 : index
      %c0_131 = arith.constant 0 : index
      %221 = vector.load %arg6[%c0_130, %c0_131] : memref<1x128xf32, #tpu.memory_space<vmem>>, vector<1x128xf32>
      %222 = arith.mulf %24, %220 : vector<128x128xf32>
      %cst_132 = arith.constant dense<0.000000e+00> : vector<1x128xf32>
      %223 = tpu.matmul %1, %222, %cst_132 {dimension_numbers = #tpu.dot_dimension_numbers<[1], [0], [0], [1], [0, 0, 1, 1], [], []>} : vector<1x128xf32>, vector<128x128xf32>, vector<1x128xf32> -> vector<1x128xf32>
      %224 = arith.addf %221, %223 : vector<1x128xf32>
      %c0_133 = arith.constant 0 : index
      %c0_134 = arith.constant 0 : index
      %225 = vector.load %arg6[%c0_133, %c0_134] : memref<1x128xf32, #tpu.memory_space<vmem>>, vector<1x128xf32>
      tpu.vector_store %arg6[%c0_133, %c0_134], %224 {strides = array<i32>} : memref<1x128xf32, #tpu.memory_space<vmem>>, vector<1x128xf32>,
      %cst_135 = arith.constant dense<0.000000e+00> : vector<128x1xf32>
      %226 = tpu.matmul %220, %0, %cst_135 {dimension_numbers = #tpu.dot_dimension_numbers<[1], [0], [0], [1], [0, 0, 1, 1], [], []>} : vector<128x128xf32>, vector<128x1xf32>, vector<128x1xf32> -> vector<128x1xf32>
      %227 = arith.subf %199, %226 : vector<128x1xf32>
      %cst_136 = arith.constant 0.000000e+00 : f32
      %228 = vector.broadcast %cst_136 : f32 to vector<128x1xf32>
      %229 = arith.maximumf %227, %228 : vector<128x1xf32>
      %c0_137 = arith.constant 0 : index
      %c0_138 = arith.constant 0 : index
      %230 = vector.load %arg4[%c0_137, %c0_138] : memref<128x1xf32, #tpu.memory_space<vmem>>, vector<128x1xf32>
      tpu.vector_store %arg4[%c0_137, %c0_138], %229 {strides = array<i32>} : memref<128x1xf32, #tpu.memory_space<vmem>>, vector<128x1xf32>,
      %231 = arith.mulf %213, %218 : vector<1x128xf32>
      %232 = arith.subf %200, %231 : vector<1x128xf32>
      %cst_139 = arith.constant 0.000000e+00 : f32
      %233 = vector.broadcast %cst_139 : f32 to vector<1x128xf32>
      %234 = arith.maximumf %232, %233 : vector<1x128xf32>
      %c0_140 = arith.constant 0 : index
      %c0_141 = arith.constant 0 : index
      %235 = vector.load %arg5[%c0_140, %c0_141] : memref<1x128xf32, #tpu.memory_space<vmem>>, vector<1x128xf32>
      tpu.vector_store %arg5[%c0_140, %c0_141], %234 {strides = array<i32>} : memref<1x128xf32, #tpu.memory_space<vmem>>, vector<1x128xf32>,
      %c0_142 = arith.constant 0 : index
      %c0_143 = arith.constant 0 : index
      %236 = vector.load %arg4[%c0_142, %c0_143] : memref<128x1xf32, #tpu.memory_space<vmem>>, vector<128x1xf32>
      %c0_144 = arith.constant 0 : index
      %c0_145 = arith.constant 0 : index
      %237 = vector.load %arg5[%c0_144, %c0_145] : memref<1x128xf32, #tpu.memory_space<vmem>>, vector<1x128xf32>
      %238 = vector.shape_cast %237 : vector<1x128xf32> to vector<1x128xf32>
      %239 = vector.broadcast %238 : vector<1x128xf32> to vector<128x128xf32>
      %cst_146 = arith.constant dense<0.000000e+00> : vector<128x1xf32>
      %240 = tpu.matmul %239, %0, %cst_146 {dimension_numbers = #tpu.dot_dimension_numbers<[1], [0], [0], [1], [0, 0, 1, 1], [], []>} : vector<128x128xf32>, vector<128x1xf32>, vector<128x1xf32> -> vector<128x1xf32>
      %cst_147 = arith.constant 9.99999971E-10 : f32
      %241 = vector.broadcast %cst_147 : f32 to vector<128x1xf32>
      %242 = arith.addf %240, %241 : vector<128x1xf32>
      %243 = arith.divf %236, %242 : vector<128x1xf32>
      %244 = vector.broadcast %243 : vector<128x1xf32> to vector<128x128xf32>
      %245 = arith.mulf %239, %244 : vector<128x128xf32>
      %cst_148 = arith.constant dense<0.000000e+00> : vector<1x128xf32>
      %246 = tpu.matmul %1, %245, %cst_148 {dimension_numbers = #tpu.dot_dimension_numbers<[1], [0], [0], [1], [0, 0, 1, 1], [], []>} : vector<1x128xf32>, vector<128x128xf32>, vector<1x128xf32> -> vector<1x128xf32>
      %cst_149 = arith.constant 9.99999971E-10 : f32
      %247 = vector.broadcast %cst_149 : f32 to vector<1x128xf32>
      %248 = arith.addf %246, %247 : vector<1x128xf32>
      %249 = arith.divf %237, %248 : vector<1x128xf32>
      %cst_150 = arith.constant 1.000000e+00 : f32
      %250 = vector.broadcast %cst_150 : f32 to vector<1x128xf32>
      %251 = arith.minimumf %249, %250 : vector<1x128xf32>
      %252 = vector.broadcast %251 : vector<1x128xf32> to vector<128x128xf32>
      %253 = arith.mulf %245, %252 : vector<128x128xf32>
      %c0_151 = arith.constant 0 : index
      %c0_152 = arith.constant 0 : index
      %254 = vector.load %arg6[%c0_151, %c0_152] : memref<1x128xf32, #tpu.memory_space<vmem>>, vector<1x128xf32>
      %255 = arith.mulf %24, %253 : vector<128x128xf32>
      %cst_153 = arith.constant dense<0.000000e+00> : vector<1x128xf32>
      %256 = tpu.matmul %1, %255, %cst_153 {dimension_numbers = #tpu.dot_dimension_numbers<[1], [0], [0], [1], [0, 0, 1, 1], [], []>} : vector<1x128xf32>, vector<128x128xf32>, vector<1x128xf32> -> vector<1x128xf32>
      %257 = arith.addf %254, %256 : vector<1x128xf32>
      %c0_154 = arith.constant 0 : index
      %c0_155 = arith.constant 0 : index
      %258 = vector.load %arg6[%c0_154, %c0_155] : memref<1x128xf32, #tpu.memory_space<vmem>>, vector<1x128xf32>
      tpu.vector_store %arg6[%c0_154, %c0_155], %257 {strides = array<i32>} : memref<1x128xf32, #tpu.memory_space<vmem>>, vector<1x128xf32>,
      %cst_156 = arith.constant dense<0.000000e+00> : vector<128x1xf32>
      %259 = tpu.matmul %253, %0, %cst_156 {dimension_numbers = #tpu.dot_dimension_numbers<[1], [0], [0], [1], [0, 0, 1, 1], [], []>} : vector<128x128xf32>, vector<128x1xf32>, vector<128x1xf32> -> vector<128x1xf32>
      %260 = arith.subf %236, %259 : vector<128x1xf32>
      %cst_157 = arith.constant 0.000000e+00 : f32
      %261 = vector.broadcast %cst_157 : f32 to vector<128x1xf32>
      %262 = arith.maximumf %260, %261 : vector<128x1xf32>
      %c0_158 = arith.constant 0 : index
      %c0_159 = arith.constant 0 : index
      %263 = vector.load %arg4[%c0_158, %c0_159] : memref<128x1xf32, #tpu.memory_space<vmem>>, vector<128x1xf32>
      tpu.vector_store %arg4[%c0_158, %c0_159], %262 {strides = array<i32>} : memref<128x1xf32, #tpu.memory_space<vmem>>, vector<128x1xf32>,
      %264 = arith.mulf %246, %251 : vector<1x128xf32>
      %265 = arith.subf %237, %264 : vector<1x128xf32>
      %cst_160 = arith.constant 0.000000e+00 : f32
      %266 = vector.broadcast %cst_160 : f32 to vector<1x128xf32>
      %267 = arith.maximumf %265, %266 : vector<1x128xf32>
      %c0_161 = arith.constant 0 : index
      %c0_162 = arith.constant 0 : index
      %268 = vector.load %arg5[%c0_161, %c0_162] : memref<1x128xf32, #tpu.memory_space<vmem>>, vector<1x128xf32>
      tpu.vector_store %arg5[%c0_161, %c0_162], %267 {strides = array<i32>} : memref<1x128xf32, #tpu.memory_space<vmem>>, vector<1x128xf32>,
      %c0_163 = arith.constant 0 : index
      %c0_164 = arith.constant 0 : index
      %269 = vector.load %arg6[%c0_163, %c0_164] : memref<1x128xf32, #tpu.memory_space<vmem>>, vector<1x128xf32>
      %270 = vector.shape_cast %269 : vector<1x128xf32> to vector<1x1x128xf32>
      %cst_165 = arith.constant dense<0.000000e+00> : vector<1xf32>
      %271 = vector.multi_reduction <add>, %270, %cst_165 [1, 2] : vector<1x1x128xf32> to vector<1xf32>
      %272 = vector.shape_cast %271 : vector<1xf32> to vector<1x1x1xf32>
      %273 = vector.extract %272[0, 0, 0] : f32 from vector<1x1x1xf32>
      %274 = vector.broadcast %273 : f32 to vector<8x128xf32>
      %275 = arith.index_cast %arg7 : i32 to index
      %c0_166 = arith.constant 0 : index
      %c0_167 = arith.constant 0 : index
      %276 = vector.load %arg3[%275, %c0_166, %c0_167] : memref<2x8x128xf32, #tpu.memory_space<vmem>>, vector<1x8x128xf32>
      %277 = vector.shape_cast %276 : vector<1x8x128xf32> to vector<8x128xf32>
      %278 = vector.shape_cast %274 : vector<8x128xf32> to vector<1x8x128xf32>
      tpu.vector_store %arg3[%275, %c0_166, %c0_167], %278 {strides = array<i32>} : memref<2x8x128xf32, #tpu.memory_space<vmem>>, vector<1x8x128xf32>,
    }
    %c2_i32_1 = arith.constant 2 : i32
    return
  }
  func.func @transform_0(%arg0: i32) -> (i32, i32, i32) {
    %c0_i32 = arith.constant 0 : i32
    %c0_i32_0 = arith.constant 0 : i32
    %c0_i32_1 = arith.constant 0 : i32
    return %arg0, %c0_i32, %c0_i32_0 : i32, i32, i32
  }
  func.func @transform_1(%arg0: i32) -> (i32, i32, i32) {
    %c0_i32 = arith.constant 0 : i32
    %c0_i32_0 = arith.constant 0 : i32
    %c0_i32_1 = arith.constant 0 : i32
    return %arg0, %c0_i32, %c0_i32_0 : i32, i32, i32
  }
  func.func @transform_2(%arg0: i32) -> (i32, i32, i32) {
    %c0_i32 = arith.constant 0 : i32
    %c0_i32_0 = arith.constant 0 : i32
    %c0_i32_1 = arith.constant 0 : i32
    return %arg0, %c0_i32, %c0_i32_0 : i32, i32, i32
  }
}

</mosaic_0001>

<llo_original>
// kernel: emd_loss.1
$region0: #{emd_loss.1}
  #allocation0 [shape = 'u32[]', space=smem, size = 0x4, offset = 0x4, fixed_abs, tag = 'smem constant byte address 0x4 - core index']
  #allocation1 [shape = 'u32[144,128]{1,0:T(1,128)}', space=vmem, size = 0x12000, scoped, tag = 'internal scratch']
  #allocation2 [shape = 'f32[128,1]{1,0:T(8,128)}', space=vmem, size = 0x10000, scoped, tag = 'scratch operand']
  #allocation3 [shape = 'f32[1,128]{1,0:T(1,128)}', space=vmem, size = 0x200, scoped, tag = 'scratch operand']
  #allocation4 [shape = 'f32[1,128]{1,0:T(1,128)}', space=vmem, size = 0x200, scoped, tag = 'scratch operand']
  %s0 = inlined_call_operand.vmem [shape: f32[2,128,3], index: 0, kind: input, shape index: {}]
  %s1 = inlined_call_operand.vmem [shape: f32[2,3,128], index: 1, kind: input, shape index: {}]
  %s2 = inlined_call_operand.vmem [shape: f32[2,8,128], index: 2, kind: output, shape index: {}]
  %s3 = sld [smem:[#allocation0]]
  $region41: #{emd_loss.1} parent=0
    _
  %s5 = ssub.s32 1, %s3
  %s6 = scalar_select 0, %s5, %s3
  // Predicated region
  $region2: #{emd_loss.1} parent=0 // pred_check
    _
  $region3: #{emd_loss.1} parent=0 // pred_check_branch
    %8 = sbr.rel (0) target = $region5
  $region4: #{emd_loss.1} parent=0 // pred_region
    _
  $region5: #{emd_loss.1} parent=0 // pred_fallthru
    _
  // Predicated region
  $region6: #{emd_loss.1} parent=0 // pred_check
    _
  $region7: #{emd_loss.1} parent=0 // pred_check_branch
    %10 = sbr.rel (0) target = $region9
  $region8: #{emd_loss.1} parent=0 // pred_region
    _
  $region9: #{emd_loss.1} parent=0 // pred_fallthru
    _
  loop: start=0, step=1, limit=2
  $region10: #{emd_loss.1} parent=0 // loop_pre_header
    _
  $region11: #{emd_loss.1} parent=0 // loop_header
    %s12 = sphi 0, %s16
    %p13 = scmp.ge.s32.totalorder %s12, 2
  $region12: #{emd_loss.1} parent=0 // loop_header_branch
    %15 = sbr.rel (%p13) target = $region16
  $region13: #{emd_loss.1} parent=0 // loop_body
    %s17 = smul.u32 %s12, 128
    %s18 = scalar_lea.vmem %s0, %s17
    %v19 = vld [vmem:[%s18] sm:$0xff]
    %v20 = vld [vmem:[%s18 + $0x8] sm:$0xff]
    %v21 = vld [vmem:[%s18 + $0x10] sm:$0xff]
    %v22 = vld [vmem:[%s18 + $0x18] sm:$0xff]
    %v23 = vld [vmem:[%s18 + $0x20] sm:$0xff]
    %v24 = vld [vmem:[%s18 + $0x28] sm:$0xff]
    %v25 = vld [vmem:[%s18 + $0x30] sm:$0xff]
    %v26 = vld [vmem:[%s18 + $0x38] sm:$0xff]
    %v27 = vld [vmem:[%s18 + $0x40] sm:$0xff]
    %v28 = vld [vmem:[%s18 + $0x48] sm:$0xff]
    %v29 = vld [vmem:[%s18 + $0x50] sm:$0xff]
    %v30 = vld [vmem:[%s18 + $0x58] sm:$0xff]
    %v31 = vld [vmem:[%s18 + $0x60] sm:$0xff]
    %v32 = vld [vmem:[%s18 + $0x68] sm:$0xff]
    %v33 = vld [vmem:[%s18 + $0x70] sm:$0xff]
    %v34 = vld [vmem:[%s18 + $0x78] sm:$0xff]
    %s35 = smul.u32 %s12, 4
    %s36 = scalar_lea.vmem %s1, %s35
    %v37 = vld [vmem:[%s36] sm:$0x7]
    %v38 = vmul.f32 %v19, %v19
    %v39 = vmul.f32 %v20, %v20
    %v40 = vmul.f32 %v21, %v21
    %v41 = vmul.f32 %v22, %v22
    %v42 = vmul.f32 %v23, %v23
    %v43 = vmul.f32 %v24, %v24
    %v44 = vmul.f32 %v25, %v25
    %v45 = vmul.f32 %v26, %v26
    %v46 = vmul.f32 %v27, %v27
    %v47 = vmul.f32 %v28, %v28
    %v48 = vmul.f32 %v29, %v29
    %v49 = vmul.f32 %v30, %v30
    %v50 = vmul.f32 %v31, %v31
    %v51 = vmul.f32 %v32, %v32
    %v52 = vmul.f32 %v33, %v33
    %v53 = vmul.f32 %v34, %v34
    %vm54 = vcmask 23552
    %v55 = vsel %vm54, %v38, 0.0
    %56 = vadd.xlane.f32.xlu0 %v55
    %v57 = vpop.xlane.xlu0 %56
    %v58 = vsel %vm54, %v39, 0.0
    %59 = vadd.xlane.f32.xlu0 %v58
    %v60 = vpop.xlane.xlu0 %59
    %v61 = vsel %vm54, %v40, 0.0
    %62 = vadd.xlane.f32.xlu0 %v61
    %v63 = vpop.xlane.xlu0 %62
    %v64 = vsel %vm54, %v41, 0.0
    %65 = vadd.xlane.f32.xlu0 %v64
    %v66 = vpop.xlane.xlu0 %65
    %v67 = vsel %vm54, %v42, 0.0
    %68 = vadd.xlane.f32.xlu0 %v67
    %v69 = vpop.xlane.xlu0 %68
    %v70 = vsel %vm54, %v43, 0.0
    %71 = vadd.xlane.f32.xlu0 %v70
    %v72 = vpop.xlane.xlu0 %71
    %v73 = vsel %vm54, %v44, 0.0
    %74 = vadd.xlane.f32.xlu0 %v73
    %v75 = vpop.xlane.xlu0 %74
    %v76 = vsel %vm54, %v45, 0.0
    %77 = vadd.xlane.f32.xlu0 %v76
    %v78 = vpop.xlane.xlu0 %77
    %v79 = vsel %vm54, %v46, 0.0
    %80 = vadd.xlane.f32.xlu0 %v79
    %v81 = vpop.xlane.xlu0 %80
    %v82 = vsel %vm54, %v47, 0.0
    %83 = vadd.xlane.f32.xlu0 %v82
    %v84 = vpop.xlane.xlu0 %83
    %v85 = vsel %vm54, %v48, 0.0
    %86 = vadd.xlane.f32.xlu0 %v85
    %v87 = vpop.xlane.xlu0 %86
    %v88 = vsel %vm54, %v49, 0.0
    %89 = vadd.xlane.f32.xlu0 %v88
    %v90 = vpop.xlane.xlu0 %89
    %v91 = vsel %vm54, %v50, 0.0
    %92 = vadd.xlane.f32.xlu0 %v91
    %v93 = vpop.xlane.xlu0 %92
    %v94 = vsel %vm54, %v51, 0.0
    %95 = vadd.xlane.f32.xlu0 %v94
    %v96 = vpop.xlane.xlu0 %95
    %v97 = vsel %vm54, %v52, 0.0
    %98 = vadd.xlane.f32.xlu0 %v97
    %v99 = vpop.xlane.xlu0 %98
    %v100 = vsel %vm54, %v53, 0.0
    %101 = vadd.xlane.f32.xlu0 %v100
    %v102 = vpop.xlane.xlu0 %101
    %v103 = vmul.f32 %v37, %v37
    %vm104 = vcmask 1042432
    %v105 = vsel %vm104, %v103, 0.0
    %v106 = vrot.slane %v105, 4
    %v107 = vadd.f32 %v105, %v106
    %v108 = vrot.slane %v107, 2
    %v109 = vadd.f32 %v107, %v108
    %v110 = vrot.slane %v109, 1
    %v111 = vadd.f32 %v109, %v110
    %v113 = vsel %vm54, %v19, 0
    %v116 = vsel %vm54, %v20, 0
    %v119 = vsel %vm54, %v21, 0
    %v122 = vsel %vm54, %v22, 0
    %v125 = vsel %vm54, %v23, 0
    %v128 = vsel %vm54, %v24, 0
    %v131 = vsel %vm54, %v25, 0
    %v134 = vsel %vm54, %v26, 0
    %v137 = vsel %vm54, %v27, 0
    %v140 = vsel %vm54, %v28, 0
    %v143 = vsel %vm54, %v29, 0
    %v146 = vsel %vm54, %v30, 0
    %v149 = vsel %vm54, %v31, 0
    %v152 = vsel %vm54, %v32, 0
    %v155 = vsel %vm54, %v33, 0
    %v158 = vsel %vm54, %v34, 0
    %v161 = vsel %vm104, %v37, 0
    %163 = vmatprep.subr.mxu0 0.0
    %164 = vmatpush1.msra.mxu0 %v161
    %165 = vmatprep.subr.mxu0 0.0
    %166 = vmatpush1.msra.mxu0 0.0
    %167 = vmatprep.subr.mxu0 0.0
    %168 = vmatpush1.msra.mxu0 0.0
    %169 = vmatprep.subr.mxu0 0.0
    %170 = vmatpush1.msra.mxu0 0.0
    %171 = vmatprep.subr.mxu0 0.0
    %172 = vmatpush1.msra.mxu0 0.0
    %173 = vmatprep.subr.mxu0 0.0
    %174 = vmatpush1.msra.mxu0 0.0
    %175 = vmatprep.subr.mxu0 0.0
    %176 = vmatpush1.msra.mxu0 0.0
    %177 = vmatprep.subr.mxu0 0.0
    %178 = vmatpush1.msra.mxu0 0.0
    %179 = vmatprep.subr.mxu0 0.0
    %180 = vmatpush1.msra.mxu0 0.0
    %181 = vmatprep.subr.mxu0 0.0
    %182 = vmatpush1.msra.mxu0 0.0
    %183 = vmatprep.subr.mxu0 0.0
    %184 = vmatpush1.msra.mxu0 0.0
    %185 = vmatprep.subr.mxu0 0.0
    %186 = vmatpush1.msra.mxu0 0.0
    %187 = vmatprep.subr.mxu0 0.0
    %188 = vmatpush1.msra.mxu0 0.0
    %189 = vmatprep.subr.mxu0 0.0
    %190 = vmatpush1.msra.mxu0 0.0
    %191 = vmatprep.subr.mxu0 0.0
    %192 = vmatpush1.msra.mxu0 0.0
    %193 = vmatprep.subr.mxu0 0.0
    %194 = vmatpush1.msra.mxu0 0.0
    %195 = vmatprep.subr.mxu0 0.0
    %196 = vmatpush1.msra.mxu0 0.0
    %197 = vmatprep.subr.mxu0 0.0
    %198 = vmatpush1.msra.mxu0 0.0
    %199 = vmatprep.subr.mxu0 0.0
    %200 = vmatpush1.msra.mxu0 0.0
    %201 = vmatprep.subr.mxu0 0.0
    %202 = vmatpush1.msra.mxu0 0.0
    %203 = vmatprep.subr.mxu0 0.0
    %204 = vmatpush1.msra.mxu0 0.0
    %205 = vmatprep.subr.mxu0 0.0
    %206 = vmatpush1.msra.mxu0 0.0
    %207 = vmatprep.subr.mxu0 0.0
    %208 = vmatpush1.msra.mxu0 0.0
    %209 = vmatprep.subr.mxu0 0.0
    %210 = vmatpush1.msra.mxu0 0.0
    %211 = vmatprep.subr.mxu0 0.0
    %212 = vmatpush1.msra.mxu0 0.0
    %213 = vmatprep.subr.mxu0 0.0
    %214 = vmatpush1.msra.mxu0 0.0
    %215 = vmatprep.subr.mxu0 0.0
    %216 = vmatpush1.msra.mxu0 0.0
    %217 = vmatprep.subr.mxu0 0.0
    %218 = vmatpush1.msra.mxu0 0.0
    %219 = vmatprep.subr.mxu0 0.0
    %220 = vmatpush1.msra.mxu0 0.0
    %221 = vmatprep.subr.mxu0 0.0
    %222 = vmatpush1.msra.mxu0 0.0
    %223 = vmatprep.subr.mxu0 0.0
    %224 = vmatpush1.msra.mxu0 0.0
    %225 = vmatprep.subr.mxu0 0.0
    %226 = vmatpush1.msra.mxu0 0.0
    %227 = vmatprep.mubr.f32.mxu0 0.0
    %228 = vmatmul.mubr.f32.gmra.mrb[0].mxu0 %v113
    %v229 = vpop.f32.mrb[0].mxu0
    %v230 = vadd.f32 0.0, %v229
    %v231 = vpop.f32.mrb[0].mxu0
    %232 = vmatprep.mubr.f32.mxu0 0.0
    %233 = vmatmul.mubr.f32.gmra.mrb[0].mxu0 %v116
    %v234 = vpop.f32.mrb[0].mxu0
    %v235 = vadd.f32 0.0, %v234
    %v236 = vpop.f32.mrb[0].mxu0
    %237 = vmatprep.mubr.f32.mxu0 0.0
    %238 = vmatmul.mubr.f32.gmra.mrb[0].mxu0 %v119
    %v239 = vpop.f32.mrb[0].mxu0
    %v240 = vadd.f32 0.0, %v239
    %v241 = vpop.f32.mrb[0].mxu0
    %242 = vmatprep.mubr.f32.mxu0 0.0
    %243 = vmatmul.mubr.f32.gmra.mrb[0].mxu0 %v122
    %v244 = vpop.f32.mrb[0].mxu0
    %v245 = vadd.f32 0.0, %v244
    %v246 = vpop.f32.mrb[0].mxu0
    %247 = vmatprep.mubr.f32.mxu0 0.0
    %248 = vmatmul.mubr.f32.gmra.mrb[0].mxu0 %v125
    %v249 = vpop.f32.mrb[0].mxu0
    %v250 = vadd.f32 0.0, %v249
    %v251 = vpop.f32.mrb[0].mxu0
    %252 = vmatprep.mubr.f32.mxu0 0.0
    %253 = vmatmul.mubr.f32.gmra.mrb[0].mxu0 %v128
    %v254 = vpop.f32.mrb[0].mxu0
    %v255 = vadd.f32 0.0, %v254
    %v256 = vpop.f32.mrb[0].mxu0
    %257 = vmatprep.mubr.f32.mxu0 0.0
    %258 = vmatmul.mubr.f32.gmra.mrb[0].mxu0 %v131
    %v259 = vpop.f32.mrb[0].mxu0
    %v260 = vadd.f32 0.0, %v259
    %v261 = vpop.f32.mrb[0].mxu0
    %262 = vmatprep.mubr.f32.mxu0 0.0
    %263 = vmatmul.mubr.f32.gmra.mrb[0].mxu0 %v134
    %v264 = vpop.f32.mrb[0].mxu0
    %v265 = vadd.f32 0.0, %v264
    %v266 = vpop.f32.mrb[0].mxu0
    %267 = vmatprep.mubr.f32.mxu0 0.0
    %268 = vmatmul.mubr.f32.gmra.mrb[0].mxu0 %v137
    %v269 = vpop.f32.mrb[0].mxu0
    %v270 = vadd.f32 0.0, %v269
    %v271 = vpop.f32.mrb[0].mxu0
    %272 = vmatprep.mubr.f32.mxu0 0.0
    %273 = vmatmul.mubr.f32.gmra.mrb[0].mxu0 %v140
    %v274 = vpop.f32.mrb[0].mxu0
    %v275 = vadd.f32 0.0, %v274
    %v276 = vpop.f32.mrb[0].mxu0
    %277 = vmatprep.mubr.f32.mxu0 0.0
    %278 = vmatmul.mubr.f32.gmra.mrb[0].mxu0 %v143
    %v279 = vpop.f32.mrb[0].mxu0
    %v280 = vadd.f32 0.0, %v279
    %v281 = vpop.f32.mrb[0].mxu0
    %282 = vmatprep.mubr.f32.mxu0 0.0
    %283 = vmatmul.mubr.f32.gmra.mrb[0].mxu0 %v146
    %v284 = vpop.f32.mrb[0].mxu0
    %v285 = vadd.f32 0.0, %v284
    %v286 = vpop.f32.mrb[0].mxu0
    %287 = vmatprep.mubr.f32.mxu0 0.0
    %288 = vmatmul.mubr.f32.gmra.mrb[0].mxu0 %v149
    %v289 = vpop.f32.mrb[0].mxu0
    %v290 = vadd.f32 0.0, %v289
    %v291 = vpop.f32.mrb[0].mxu0
    %292 = vmatprep.mubr.f32.mxu0 0.0
    %293 = vmatmul.mubr.f32.gmra.mrb[0].mxu0 %v152
    %v294 = vpop.f32.mrb[0].mxu0
    %v295 = vadd.f32 0.0, %v294
    %v296 = vpop.f32.mrb[0].mxu0
    %297 = vmatprep.mubr.f32.mxu0 0.0
    %298 = vmatmul.mubr.f32.gmra.mrb[0].mxu0 %v155
    %v299 = vpop.f32.mrb[0].mxu0
    %v300 = vadd.f32 0.0, %v299
    %v301 = vpop.f32.mrb[0].mxu0
    %302 = vmatprep.mubr.f32.mxu0 0.0
    %303 = vmatmul.mubr.f32.gmra.mrb[0].mxu0 %v158
    %v304 = vpop.f32.mrb[0].mxu0
    %v305 = vadd.f32 0.0, %v304
    %v306 = vpop.f32.mrb[0].mxu0
    %307 = vdwg.mxu0
    %v308 = vadd.f32 %v57, %v111
    %v309 = vadd.f32 %v60, %v111
    %v310 = vadd.f32 %v63, %v111
    %v311 = vadd.f32 %v66, %v111
    %v312 = vadd.f32 %v69, %v111
    %v313 = vadd.f32 %v72, %v111
    %v314 = vadd.f32 %v75, %v111
    %v315 = vadd.f32 %v78, %v111
    %v316 = vadd.f32 %v81, %v111
    %v317 = vadd.f32 %v84, %v111
    %v318 = vadd.f32 %v87, %v111
    %v319 = vadd.f32 %v90, %v111
    %v320 = vadd.f32 %v93, %v111
    %v321 = vadd.f32 %v96, %v111
    %v322 = vadd.f32 %v99, %v111
    %v323 = vadd.f32 %v102, %v111
    %v324 = vmul.f32 %v230, 2.0
    %v325 = vmul.f32 %v235, 2.0
    %v326 = vmul.f32 %v240, 2.0
    %v327 = vmul.f32 %v245, 2.0
    %v328 = vmul.f32 %v250, 2.0
    %v329 = vmul.f32 %v255, 2.0
    %v330 = vmul.f32 %v260, 2.0
    %v331 = vmul.f32 %v265, 2.0
    %v332 = vmul.f32 %v270, 2.0
    %v333 = vmul.f32 %v275, 2.0
    %v334 = vmul.f32 %v280, 2.0
    %v335 = vmul.f32 %v285, 2.0
    %v336 = vmul.f32 %v290, 2.0
    %v337 = vmul.f32 %v295, 2.0
    %v338 = vmul.f32 %v300, 2.0
    %v339 = vmul.f32 %v305, 2.0
    %v340 = vsub.f32 %v308, %v324
    %v341 = vsub.f32 %v309, %v325
    %v342 = vsub.f32 %v310, %v326
    %v343 = vsub.f32 %v311, %v327
    %v344 = vsub.f32 %v312, %v328
    %v345 = vsub.f32 %v313, %v329
    %v346 = vsub.f32 %v314, %v330
    %v347 = vsub.f32 %v315, %v331
    %v348 = vsub.f32 %v316, %v332
    %v349 = vsub.f32 %v317, %v333
    %v350 = vsub.f32 %v318, %v334
    %v351 = vsub.f32 %v319, %v335
    %v352 = vsub.f32 %v320, %v336
    %v353 = vsub.f32 %v321, %v337
    %v354 = vsub.f32 %v322, %v338
    %v355 = vsub.f32 %v323, %v339
    %v356 = vmax.f32 %v340, 0.0
    %v357 = vmax.f32 %v341, 0.0
    %v358 = vmax.f32 %v342, 0.0
    %v359 = vmax.f32 %v343, 0.0
    %v360 = vmax.f32 %v344, 0.0
    %v361 = vmax.f32 %v345, 0.0
    %v362 = vmax.f32 %v346, 0.0
    %v363 = vmax.f32 %v347, 0.0
    %v364 = vmax.f32 %v348, 0.0
    %v365 = vmax.f32 %v349, 0.0
    %v366 = vmax.f32 %v350, 0.0
    %v367 = vmax.f32 %v351, 0.0
    %v368 = vmax.f32 %v352, 0.0
    %v369 = vmax.f32 %v353, 0.0
    %v370 = vmax.f32 %v354, 0.0
    %v371 = vmax.f32 %v355, 0.0
    %v372 = vrsqrt.pop %v356
    %v373 = vmul.f32 %v356, %v372
    %vm374 = vcmp.eq.f32.partialorder %v356, inf
    %v375 = vsel %vm374, %v356, %v373
    %vm376 = vcmp.eq.f32.partialorder %v356, 0.0
    %v377 = vand.u32 %v356, 2147483648
    %v378 = vsel %vm376, %v377, %v375
    %v379 = vrsqrt.pop %v357
    %v380 = vmul.f32 %v357, %v379
    %vm381 = vcmp.eq.f32.partialorder %v357, inf
    %v382 = vsel %vm381, %v357, %v380
    %vm383 = vcmp.eq.f32.partialorder %v357, 0.0
    %v384 = vand.u32 %v357, 2147483648
    %v385 = vsel %vm383, %v384, %v382
    %v386 = vrsqrt.pop %v358
    %v387 = vmul.f32 %v358, %v386
    %vm388 = vcmp.eq.f32.partialorder %v358, inf
    %v389 = vsel %vm388, %v358, %v387
    %vm390 = vcmp.eq.f32.partialorder %v358, 0.0
    %v391 = vand.u32 %v358, 2147483648
    %v392 = vsel %vm390, %v391, %v389
    %v393 = vrsqrt.pop %v359
    %v394 = vmul.f32 %v359, %v393
    %vm395 = vcmp.eq.f32.partialorder %v359, inf
    %v396 = vsel %vm395, %v359, %v394
    %vm397 = vcmp.eq.f32.partialorder %v359, 0.0
    %v398 = vand.u32 %v359, 2147483648
    %v399 = vsel %vm397, %v398, %v396
    %v400 = vrsqrt.pop %v360
    %v401 = vmul.f32 %v360, %v400
    %vm402 = vcmp.eq.f32.partialorder %v360, inf
    %v403 = vsel %vm402, %v360, %v401
    %vm404 = vcmp.eq.f32.partialorder %v360, 0.0
    %v405 = vand.u32 %v360, 2147483648
    %v406 = vsel %vm404, %v405, %v403
    %v407 = vrsqrt.pop %v361
    %v408 = vmul.f32 %v361, %v407
    %vm409 = vcmp.eq.f32.partialorder %v361, inf
    %v410 = vsel %vm409, %v361, %v408
    %vm411 = vcmp.eq.f32.partialorder %v361, 0.0
    %v412 = vand.u32 %v361, 2147483648
    %v413 = vsel %vm411, %v412, %v410
    %v414 = vrsqrt.pop %v362
    %v415 = vmul.f32 %v362, %v414
    %vm416 = vcmp.eq.f32.partialorder %v362, inf
    %v417 = vsel %vm416, %v362, %v415
    %vm418 = vcmp.eq.f32.partialorder %v362, 0.0
    %v419 = vand.u32 %v362, 2147483648
    %v420 = vsel %vm418, %v419, %v417
    %v421 = vrsqrt.pop %v363
    %v422 = vmul.f32 %v363, %v421
    %vm423 = vcmp.eq.f32.partialorder %v363, inf
    %v424 = vsel %vm423, %v363, %v422
    %vm425 = vcmp.eq.f32.partialorder %v363, 0.0
    %v426 = vand.u32 %v363, 2147483648
    %v427 = vsel %vm425, %v426, %v424
    %v428 = vrsqrt.pop %v364
    %v429 = vmul.f32 %v364, %v428
    %vm430 = vcmp.eq.f32.partialorder %v364, inf
    %v431 = vsel %vm430, %v364, %v429
    %vm432 = vcmp.eq.f32.partialorder %v364, 0.0
    %v433 = vand.u32 %v364, 2147483648
    %v434 = vsel %vm432, %v433, %v431
    %v435 = vrsqrt.pop %v365
    %v436 = vmul.f32 %v365, %v435
    %vm437 = vcmp.eq.f32.partialorder %v365, inf
    %v438 = vsel %vm437, %v365, %v436
    %vm439 = vcmp.eq.f32.partialorder %v365, 0.0
    %v440 = vand.u32 %v365, 2147483648
    %v441 = vsel %vm439, %v440, %v438
    %v442 = vrsqrt.pop %v366
    %v443 = vmul.f32 %v366, %v442
    %vm444 = vcmp.eq.f32.partialorder %v366, inf
    %v445 = vsel %vm444, %v366, %v443
    %vm446 = vcmp.eq.f32.partialorder %v366, 0.0
    %v447 = vand.u32 %v366, 2147483648
    %v448 = vsel %vm446, %v447, %v445
    %v449 = vrsqrt.pop %v367
    %v450 = vmul.f32 %v367, %v449
    %vm451 = vcmp.eq.f32.partialorder %v367, inf
    %v452 = vsel %vm451, %v367, %v450
    %vm453 = vcmp.eq.f32.partialorder %v367, 0.0
    %v454 = vand.u32 %v367, 2147483648
    %v455 = vsel %vm453, %v454, %v452
    %v456 = vrsqrt.pop %v368
    %v457 = vmul.f32 %v368, %v456
    %vm458 = vcmp.eq.f32.partialorder %v368, inf
    %v459 = vsel %vm458, %v368, %v457
    %vm460 = vcmp.eq.f32.partialorder %v368, 0.0
    %v461 = vand.u32 %v368, 2147483648
    %v462 = vsel %vm460, %v461, %v459
    %v463 = vrsqrt.pop %v369
    %v464 = vmul.f32 %v369, %v463
    %vm465 = vcmp.eq.f32.partialorder %v369, inf
    %v466 = vsel %vm465, %v369, %v464
    %vm467 = vcmp.eq.f32.partialorder %v369, 0.0
    %v468 = vand.u32 %v369, 2147483648
    %v469 = vsel %vm467, %v468, %v466
    %v470 = vrsqrt.pop %v370
    %v471 = vmul.f32 %v370, %v470
    %vm472 = vcmp.eq.f32.partialorder %v370, inf
    %v473 = vsel %vm472, %v370, %v471
    %vm474 = vcmp.eq.f32.partialorder %v370, 0.0
    %v475 = vand.u32 %v370, 2147483648
    %v476 = vsel %vm474, %v475, %v473
    %v477 = vrsqrt.pop %v371
    %v478 = vmul.f32 %v371, %v477
    %vm479 = vcmp.eq.f32.partialorder %v371, inf
    %v480 = vsel %vm479, %v371, %v478
    %vm481 = vcmp.eq.f32.partialorder %v371, 0.0
    %v482 = vand.u32 %v371, 2147483648
    %v483 = vsel %vm481, %v482, %v480
    %v484 = vmin.f32 %v356, %v360
    %v485 = vmin.f32 %v357, %v361
    %v486 = vmin.f32 %v358, %v362
    %v487 = vmin.f32 %v359, %v363
    %v488 = vmin.f32 %v484, %v364
    %v489 = vmin.f32 %v485, %v365
    %v490 = vmin.f32 %v486, %v366
    %v491 = vmin.f32 %v487, %v367
    %v492 = vmin.f32 %v488, %v368
    %v493 = vmin.f32 %v489, %v369
    %v494 = vmin.f32 %v490, %v370
    %v495 = vmin.f32 %v491, %v371
    %v496 = vmin.f32 %v492, %v493
    %v497 = vmin.f32 %v494, %v495
    %v498 = vmin.f32 %v496, %v497
    %499 = vmin.xlane.f32.xlu0 %v498
    %v500 = vpop.xlane.xlu0 %499
    %v501 = vrot.slane %v500, 4
    %v502 = vmin.f32 %v500, %v501
    %v503 = vrot.slane %v502, 2
    %v504 = vmin.f32 %v502, %v503
    %v505 = vrot.slane %v504, 1
    %v506 = vmin.f32 %v504, %v505
    %s507 = vtos %v506
    %vm508 = vcmask 7168
    %509 = vst.msk [vmem:[#allocation2] sm:$0xff] %vm508, 1.0
    %510 = vst.msk [vmem:[#allocation2 + $0x8] sm:$0xff] %vm508, 1.0
    %511 = vst.msk [vmem:[#allocation2 + $0x10] sm:$0xff] %vm508, 1.0
    %512 = vst.msk [vmem:[#allocation2 + $0x18] sm:$0xff] %vm508, 1.0
    %513 = vst.msk [vmem:[#allocation2 + $0x20] sm:$0xff] %vm508, 1.0
    %514 = vst.msk [vmem:[#allocation2 + $0x28] sm:$0xff] %vm508, 1.0
    %515 = vst.msk [vmem:[#allocation2 + $0x30] sm:$0xff] %vm508, 1.0
    %516 = vst.msk [vmem:[#allocation2 + $0x38] sm:$0xff] %vm508, 1.0
    %517 = vst.msk [vmem:[#allocation2 + $0x40] sm:$0xff] %vm508, 1.0
    %518 = vst.msk [vmem:[#allocation2 + $0x48] sm:$0xff] %vm508, 1.0
    %519 = vst.msk [vmem:[#allocation2 + $0x50] sm:$0xff] %vm508, 1.0
    %520 = vst.msk [vmem:[#allocation2 + $0x58] sm:$0xff] %vm508, 1.0
    %521 = vst.msk [vmem:[#allocation2 + $0x60] sm:$0xff] %vm508, 1.0
    %522 = vst.msk [vmem:[#allocation2 + $0x68] sm:$0xff] %vm508, 1.0
    %523 = vst.msk [vmem:[#allocation2 + $0x70] sm:$0xff] %vm508, 1.0
    %524 = vst.msk [vmem:[#allocation2 + $0x78] sm:$0xff] %vm508, 1.0
    %525 = vst [vmem:[#allocation3] sm:$0x1] 1.0
    %526 = vst [vmem:[#allocation4] sm:$0x1] 0.0
    %s527 = smul.f32 %s507, 16384.0
    %p528 = scmp.le.f32.partialorder %s527, 104.0
    // Predicated region
    $region17: #{emd_loss.1} parent=13 // pred_check
      %p529 = pneg %p528
    $region18: #{emd_loss.1} parent=13 // pred_check_branch
      %531 = sbr.rel (%p529) target = $region20
    $region19: #{emd_loss.1} parent=13 // pred_region
      %v532 = vld [vmem:[#allocation2] sm:$0xff]
      %v533 = vld [vmem:[#allocation2 + $0x8] sm:$0xff]
      %v534 = vld [vmem:[#allocation2 + $0x10] sm:$0xff]
      %v535 = vld [vmem:[#allocation2 + $0x18] sm:$0xff]
      %v536 = vld [vmem:[#allocation2 + $0x20] sm:$0xff]
      %v537 = vld [vmem:[#allocation2 + $0x28] sm:$0xff]
      %v538 = vld [vmem:[#allocation2 + $0x30] sm:$0xff]
      %v539 = vld [vmem:[#allocation2 + $0x38] sm:$0xff]
      %v540 = vld [vmem:[#allocation2 + $0x40] sm:$0xff]
      %v541 = vld [vmem:[#allocation2 + $0x48] sm:$0xff]
      %v542 = vld [vmem:[#allocation2 + $0x50] sm:$0xff]
      %v543 = vld [vmem:[#allocation2 + $0x58] sm:$0xff]
      %v544 = vld [vmem:[#allocation2 + $0x60] sm:$0xff]
      %v545 = vld [vmem:[#allocation2 + $0x68] sm:$0xff]
      %v546 = vld [vmem:[#allocation2 + $0x70] sm:$0xff]
      %v547 = vld [vmem:[#allocation2 + $0x78] sm:$0xff]
      %v548 = vld [vmem:[#allocation3] sm:$0x1]
      %v549 = vmul.f32 %v378, %v378
      %v550 = vmul.f32 %v385, %v385
      %v551 = vmul.f32 %v392, %v392
      %v552 = vmul.f32 %v399, %v399
      %v553 = vmul.f32 %v406, %v406
      %v554 = vmul.f32 %v413, %v413
      %v555 = vmul.f32 %v420, %v420
      %v556 = vmul.f32 %v427, %v427
      %v557 = vmul.f32 %v434, %v434
      %v558 = vmul.f32 %v441, %v441
      %v559 = vmul.f32 %v448, %v448
      %v560 = vmul.f32 %v455, %v455
      %v561 = vmul.f32 %v462, %v462
      %v562 = vmul.f32 %v469, %v469
      %v563 = vmul.f32 %v476, %v476
      %v564 = vmul.f32 %v483, %v483
      %v565 = vmul.f32 %v549, -16384.0
      %v566 = vmul.f32 %v550, -16384.0
      %v567 = vmul.f32 %v551, -16384.0
      %v568 = vmul.f32 %v552, -16384.0
      %v569 = vmul.f32 %v553, -16384.0
      %v570 = vmul.f32 %v554, -16384.0
      %v571 = vmul.f32 %v555, -16384.0
      %v572 = vmul.f32 %v556, -16384.0
      %v573 = vmul.f32 %v557, -16384.0
      %v574 = vmul.f32 %v558, -16384.0
      %v575 = vmul.f32 %v559, -16384.0
      %v576 = vmul.f32 %v560, -16384.0
      %v577 = vmul.f32 %v561, -16384.0
      %v578 = vmul.f32 %v562, -16384.0
      %v579 = vmul.f32 %v563, -16384.0
      %v580 = vmul.f32 %v564, -16384.0
      %v581 = vmul.f32 %v565, 1.442695
      %v582 = vpow.pop %v581
      %v583 = vmul.f32 %v566, 1.442695
      %v584 = vpow.pop %v583
      %v585 = vmul.f32 %v567, 1.442695
      %v586 = vpow.pop %v585
      %v587 = vmul.f32 %v568, 1.442695
      %v588 = vpow.pop %v587
      %v589 = vmul.f32 %v569, 1.442695
      %v590 = vpow.pop %v589
      %v591 = vmul.f32 %v570, 1.442695
      %v592 = vpow.pop %v591
      %v593 = vmul.f32 %v571, 1.442695
      %v594 = vpow.pop %v593
      %v595 = vmul.f32 %v572, 1.442695
      %v596 = vpow.pop %v595
      %v597 = vmul.f32 %v573, 1.442695
      %v598 = vpow.pop %v597
      %v599 = vmul.f32 %v574, 1.442695
      %v600 = vpow.pop %v599
      %v601 = vmul.f32 %v575, 1.442695
      %v602 = vpow.pop %v601
      %v603 = vmul.f32 %v576, 1.442695
      %v604 = vpow.pop %v603
      %v605 = vmul.f32 %v577, 1.442695
      %v606 = vpow.pop %v605
      %v607 = vmul.f32 %v578, 1.442695
      %v608 = vpow.pop %v607
      %v609 = vmul.f32 %v579, 1.442695
      %v610 = vpow.pop %v609
      %v611 = vmul.f32 %v580, 1.442695
      %v612 = vpow.pop %v611
      %v614 = vlaneseq
      %v615 = vshrl.u32 %v614, 7
      %v616 = vsub.s32 0, %v615
      %v617 = vrot.slane %v548, %v616
      %v619 = vmul.f32 %v582, %v617
      %v620 = vmul.f32 %v584, %v617
      %v621 = vmul.f32 %v586, %v617
      %v622 = vmul.f32 %v588, %v617
      %v623 = vmul.f32 %v590, %v617
      %v624 = vmul.f32 %v592, %v617
      %v625 = vmul.f32 %v594, %v617
      %v626 = vmul.f32 %v596, %v617
      %v627 = vmul.f32 %v598, %v617
      %v628 = vmul.f32 %v600, %v617
      %v629 = vmul.f32 %v602, %v617
      %v630 = vmul.f32 %v604, %v617
      %v631 = vmul.f32 %v606, %v617
      %v632 = vmul.f32 %v608, %v617
      %v633 = vmul.f32 %v610, %v617
      %v634 = vmul.f32 %v612, %v617
      %635 = vmatprep.subr.mxu0 0.0
      %636 = vmatpush1.msra.mxu0 1.0
      %637 = vmatprep.subr.mxu0 0.0
      %638 = vmatpush1.msra.mxu0 1.0
      %639 = vmatprep.subr.mxu0 0.0
      %640 = vmatpush1.msra.mxu0 1.0
      %641 = vmatprep.subr.mxu0 0.0
      %642 = vmatpush1.msra.mxu0 1.0
      %643 = vmatprep.subr.mxu0 0.0
      %644 = vmatpush1.msra.mxu0 1.0
      %645 = vmatprep.subr.mxu0 0.0
      %646 = vmatpush1.msra.mxu0 1.0
      %647 = vmatprep.subr.mxu0 0.0
      %648 = vmatpush1.msra.mxu0 1.0
      %649 = vmatprep.subr.mxu0 0.0
      %650 = vmatpush1.msra.mxu0 1.0
      %651 = vmatprep.subr.mxu0 0.0
      %652 = vmatpush1.msra.mxu0 1.0
      %653 = vmatprep.subr.mxu0 0.0
      %654 = vmatpush1.msra.mxu0 1.0
      %655 = vmatprep.subr.mxu0 0.0
      %656 = vmatpush1.msra.mxu0 1.0
      %657 = vmatprep.subr.mxu0 0.0
      %658 = vmatpush1.msra.mxu0 1.0
      %659 = vmatprep.subr.mxu0 0.0
      %660 = vmatpush1.msra.mxu0 1.0
      %661 = vmatprep.subr.mxu0 0.0
      %662 = vmatpush1.msra.mxu0 1.0
      %663 = vmatprep.subr.mxu0 0.0
      %664 = vmatpush1.msra.mxu0 1.0
      %665 = vmatprep.subr.mxu0 0.0
      %666 = vmatpush1.msra.mxu0 1.0
      %667 = vmatprep.subr.mxu0 0.0
      %668 = vmatpush1.msra.mxu0 0.0
      %669 = vmatprep.subr.mxu0 0.0
      %670 = vmatpush1.msra.mxu0 0.0
      %671 = vmatprep.subr.mxu0 0.0
      %672 = vmatpush1.msra.mxu0 0.0
      %673 = vmatprep.subr.mxu0 0.0
      %674 = vmatpush1.msra.mxu0 0.0
      %675 = vmatprep.subr.mxu0 0.0
      %676 = vmatpush1.msra.mxu0 0.0
      %677 = vmatprep.subr.mxu0 0.0
      %678 = vmatpush1.msra.mxu0 0.0
      %679 = vmatprep.subr.mxu0 0.0
      %680 = vmatpush1.msra.mxu0 0.0
      %681 = vmatprep.subr.mxu0 0.0
      %682 = vmatpush1.msra.mxu0 0.0
      %683 = vmatprep.subr.mxu0 0.0
      %684 = vmatpush1.msra.mxu0 0.0
      %685 = vmatprep.subr.mxu0 0.0
      %686 = vmatpush1.msra.mxu0 0.0
      %687 = vmatprep.subr.mxu0 0.0
      %688 = vmatpush1.msra.mxu0 0.0
      %689 = vmatprep.subr.mxu0 0.0
      %690 = vmatpush1.msra.mxu0 0.0
      %691 = vmatprep.subr.mxu0 0.0
      %692 = vmatpush1.msra.mxu0 0.0
      %693 = vmatprep.subr.mxu0 0.0
      %694 = vmatpush1.msra.mxu0 0.0
      %695 = vmatprep.subr.mxu0 0.0
      %696 = vmatpush1.msra.mxu0 0.0
      %697 = vmatprep.subr.mxu0 0.0
      %698 = vmatpush1.msra.mxu0 0.0
      %699 = vmatprep.mubr.f32.mxu0 0.0
      %700 = vmatmul.mubr.f32.gmra.mrb[0].mxu0 %v619
      %v701 = vpop.f32.mrb[0].mxu0
      %v702 = vadd.f32 1e-09, %v701
      %v703 = vpop.f32.mrb[0].mxu0
      %704 = vmatprep.mubr.f32.mxu0 0.0
      %705 = vmatmul.mubr.f32.gmra.mrb[0].mxu0 %v620
      %v706 = vpop.f32.mrb[0].mxu0
      %v707 = vadd.f32 1e-09, %v706
      %v708 = vpop.f32.mrb[0].mxu0
      %709 = vmatprep.mubr.f32.mxu0 0.0
      %710 = vmatmul.mubr.f32.gmra.mrb[0].mxu0 %v621
      %v711 = vpop.f32.mrb[0].mxu0
      %v712 = vadd.f32 1e-09, %v711
      %v713 = vpop.f32.mrb[0].mxu0
      %714 = vmatprep.mubr.f32.mxu0 0.0
      %715 = vmatmul.mubr.f32.gmra.mrb[0].mxu0 %v622
      %v716 = vpop.f32.mrb[0].mxu0
      %v717 = vadd.f32 1e-09, %v716
      %v718 = vpop.f32.mrb[0].mxu0
      %719 = vmatprep.mubr.f32.mxu0 0.0
      %720 = vmatmul.mubr.f32.gmra.mrb[0].mxu0 %v623
      %v721 = vpop.f32.mrb[0].mxu0
      %v722 = vadd.f32 1e-09, %v721
      %v723 = vpop.f32.mrb[0].mxu0
      %724 = vmatprep.mubr.f32.mxu0 0.0
      %725 = vmatmul.mubr.f32.gmra.mrb[0].mxu0 %v624
      %v726 = vpop.f32.mrb[0].mxu0
      %v727 = vadd.f32 1e-09, %v726
      %v728 = vpop.f32.mrb[0].mxu0
      %729 = vmatprep.mubr.f32.mxu0 0.0
      %730 = vmatmul.mubr.f32.gmra.mrb[0].mxu0 %v625
      %v731 = vpop.f32.mrb[0].mxu0
      %v732 = vadd.f32 1e-09, %v731
      %v733 = vpop.f32.mrb[0].mxu0
      %734 = vmatprep.mubr.f32.mxu0 0.0
      %735 = vmatmul.mubr.f32.gmra.mrb[0].mxu0 %v626
      %v736 = vpop.f32.mrb[0].mxu0
      %v737 = vadd.f32 1e-09, %v736
      %v738 = vpop.f32.mrb[0].mxu0
      %739 = vmatprep.mubr.f32.mxu0 0.0
      %740 = vmatmul.mubr.f32.gmra.mrb[0].mxu0 %v627
      %v741 = vpop.f32.mrb[0].mxu0
      %v742 = vadd.f32 1e-09, %v741
      %v743 = vpop.f32.mrb[0].mxu0
      %744 = vmatprep.mubr.f32.mxu0 0.0
      %745 = vmatmul.mubr.f32.gmra.mrb[0].mxu0 %v628
      %v746 = vpop.f32.mrb[0].mxu0
      %v747 = vadd.f32 1e-09, %v746
      %v748 = vpop.f32.mrb[0].mxu0
      %749 = vmatprep.mubr.f32.mxu0 0.0
      %750 = vmatmul.mubr.f32.gmra.mrb[0].mxu0 %v629
      %v751 = vpop.f32.mrb[0].mxu0
      %v752 = vadd.f32 1e-09, %v751
      %v753 = vpop.f32.mrb[0].mxu0
      %754 = vmatprep.mubr.f32.mxu0 0.0
      %755 = vmatmul.mubr.f32.gmra.mrb[0].mxu0 %v630
      %v756 = vpop.f32.mrb[0].mxu0
      %v757 = vadd.f32 1e-09, %v756
      %v758 = vpop.f32.mrb[0].mxu0
      %759 = vmatprep.mubr.f32.mxu0 0.0
      %760 = vmatmul.mubr.f32.gmra.mrb[0].mxu0 %v631
      %v761 = vpop.f32.mrb[0].mxu0
      %v762 = vadd.f32 1e-09, %v761
      %v763 = vpop.f32.mrb[0].mxu0
      %764 = vmatprep.mubr.f32.mxu0 0.0
      %765 = vmatmul.mubr.f32.gmra.mrb[0].mxu0 %v632
      %v766 = vpop.f32.mrb[0].mxu0
      %v767 = vadd.f32 1e-09, %v766
      %v768 = vpop.f32.mrb[0].mxu0
      %769 = vmatprep.mubr.f32.mxu0 0.0
      %770 = vmatmul.mubr.f32.gmra.mrb[0].mxu0 %v633
      %v771 = vpop.f32.mrb[0].mxu0
      %v772 = vadd.f32 1e-09, %v771
      %v773 = vpop.f32.mrb[0].mxu0
      %774 = vmatprep.mubr.f32.mxu0 0.0
      %775 = vmatmul.mubr.f32.gmra.mrb[0].mxu0 %v634
      %v776 = vpop.f32.mrb[0].mxu0
      %v777 = vadd.f32 1e-09, %v776
      %v778 = vpop.f32.mrb[0].mxu0
      %779 = vdwg.mxu0
      %v780 = vrcp.pop %v702
      %v781 = vmul.f32 %v532, %v780
      %v782 = vrcp.pop %v707
      %v783 = vmul.f32 %v533, %v782
      %v784 = vrcp.pop %v712
      %v785 = vmul.f32 %v534, %v784
      %v786 = vrcp.pop %v717
      %v787 = vmul.f32 %v535, %v786
      %v788 = vrcp.pop %v722
      %v789 = vmul.f32 %v536, %v788
      %v790 = vrcp.pop %v727
      %v791 = vmul.f32 %v537, %v790
      %v792 = vrcp.pop %v732
      %v793 = vmul.f32 %v538, %v792
      %v794 = vrcp.pop %v737
      %v795 = vmul.f32 %v539, %v794
      %v796 = vrcp.pop %v742
      %v797 = vmul.f32 %v540, %v796
      %v798 = vrcp.pop %v747
      %v799 = vmul.f32 %v541, %v798
      %v800 = vrcp.pop %v752
      %v801 = vmul.f32 %v542, %v800
      %v802 = vrcp.pop %v757
      %v803 = vmul.f32 %v543, %v802
      %v804 = vrcp.pop %v762
      %v805 = vmul.f32 %v544, %v804
      %v806 = vrcp.pop %v767
      %v807 = vmul.f32 %v545, %v806
      %v808 = vrcp.pop %v772
      %v809 = vmul.f32 %v546, %v808
      %v810 = vrcp.pop %v777
      %v811 = vmul.f32 %v547, %v810
      %813 = vset.pattern.permute.xlu0 0
      %814 = vperm.xlu0 %813, %v781
      %v815 = vpop.permute.xlu0 %814
      %818 = vset.pattern.permute.xlu0 0
      %819 = vperm.xlu0 %818, %v783
      %v820 = vpop.permute.xlu0 %819
      %823 = vset.pattern.permute.xlu0 0
      %824 = vperm.xlu0 %823, %v785
      %v825 = vpop.permute.xlu0 %824
      %828 = vset.pattern.permute.xlu0 0
      %829 = vperm.xlu0 %828, %v787
      %v830 = vpop.permute.xlu0 %829
      %833 = vset.pattern.permute.xlu0 0
      %834 = vperm.xlu0 %833, %v789
      %v835 = vpop.permute.xlu0 %834
      %838 = vset.pattern.permute.xlu0 0
      %839 = vperm.xlu0 %838, %v791
      %v840 = vpop.permute.xlu0 %839
      %843 = vset.pattern.permute.xlu0 0
      %844 = vperm.xlu0 %843, %v793
      %v845 = vpop.permute.xlu0 %844
      %848 = vset.pattern.permute.xlu0 0
      %849 = vperm.xlu0 %848, %v795
      %v850 = vpop.permute.xlu0 %849
      %853 = vset.pattern.permute.xlu0 0
      %854 = vperm.xlu0 %853, %v797
      %v855 = vpop.permute.xlu0 %854
      %858 = vset.pattern.permute.xlu0 0
      %859 = vperm.xlu0 %858, %v799
      %v860 = vpop.permute.xlu0 %859
      %863 = vset.pattern.permute.xlu0 0
      %864 = vperm.xlu0 %863, %v801
      %v865 = vpop.permute.xlu0 %864
      %868 = vset.pattern.permute.xlu0 0
      %869 = vperm.xlu0 %868, %v803
      %v870 = vpop.permute.xlu0 %869
      %873 = vset.pattern.permute.xlu0 0
      %874 = vperm.xlu0 %873, %v805
      %v875 = vpop.permute.xlu0 %874
      %878 = vset.pattern.permute.xlu0 0
      %879 = vperm.xlu0 %878, %v807
      %v880 = vpop.permute.xlu0 %879
      %883 = vset.pattern.permute.xlu0 0
      %884 = vperm.xlu0 %883, %v809
      %v885 = vpop.permute.xlu0 %884
      %888 = vset.pattern.permute.xlu0 0
      %889 = vperm.xlu0 %888, %v811
      %v890 = vpop.permute.xlu0 %889
      %v892 = vmul.f32 %v619, %v815
      %v893 = vmul.f32 %v620, %v820
      %v894 = vmul.f32 %v621, %v825
      %v895 = vmul.f32 %v622, %v830
      %v896 = vmul.f32 %v623, %v835
      %v897 = vmul.f32 %v624, %v840
      %v898 = vmul.f32 %v625, %v845
      %v899 = vmul.f32 %v626, %v850
      %v900 = vmul.f32 %v627, %v855
      %v901 = vmul.f32 %v628, %v860
      %v902 = vmul.f32 %v629, %v865
      %v903 = vmul.f32 %v630, %v870
      %v904 = vmul.f32 %v631, %v875
      %v905 = vmul.f32 %v632, %v880
      %v906 = vmul.f32 %v633, %v885
      %v907 = vmul.f32 %v634, %v890
      %908 = vmatprep.subr.mxu0 0.0
      %909 = vmatpush1.msra.mxu0 %v892
      %910 = vmatprep.subr.mxu0 0.0
      %911 = vmatpush1.msra.mxu0 %v893
      %912 = vmatprep.subr.mxu0 0.0
      %913 = vmatpush1.msra.mxu0 %v894
      %914 = vmatprep.subr.mxu0 0.0
      %915 = vmatpush1.msra.mxu0 %v895
      %916 = vmatprep.subr.mxu0 0.0
      %917 = vmatpush1.msra.mxu0 %v896
      %918 = vmatprep.subr.mxu0 0.0
      %919 = vmatpush1.msra.mxu0 %v897
      %920 = vmatprep.subr.mxu0 0.0
      %921 = vmatpush1.msra.mxu0 %v898
      %922 = vmatprep.subr.mxu0 0.0
      %923 = vmatpush1.msra.mxu0 %v899
      %924 = vmatprep.subr.mxu0 0.0
      %925 = vmatpush1.msra.mxu0 %v900
      %926 = vmatprep.subr.mxu0 0.0
      %927 = vmatpush1.msra.mxu0 %v901
      %928 = vmatprep.subr.mxu0 0.0
      %929 = vmatpush1.msra.mxu0 %v902
      %930 = vmatprep.subr.mxu0 0.0
      %931 = vmatpush1.msra.mxu0 %v903
      %932 = vmatprep.subr.mxu0 0.0
      %933 = vmatpush1.msra.mxu0 %v904
      %934 = vmatprep.subr.mxu0 0.0
      %935 = vmatpush1.msra.mxu0 %v905
      %936 = vmatprep.subr.mxu0 0.0
      %937 = vmatpush1.msra.mxu0 %v906
      %938 = vmatprep.subr.mxu0 0.0
      %939 = vmatpush1.msra.mxu0 %v907
      %940 = vmatprep.subr.mxu0 0.0
      %941 = vmatpush1.msra.mxu0 0.0
      %942 = vmatprep.subr.mxu0 0.0
      %943 = vmatpush1.msra.mxu0 0.0
      %944 = vmatprep.subr.mxu0 0.0
      %945 = vmatpush1.msra.mxu0 0.0
      %946 = vmatprep.subr.mxu0 0.0
      %947 = vmatpush1.msra.mxu0 0.0
      %948 = vmatprep.subr.mxu0 0.0
      %949 = vmatpush1.msra.mxu0 0.0
      %950 = vmatprep.subr.mxu0 0.0
      %951 = vmatpush1.msra.mxu0 0.0
      %952 = vmatprep.subr.mxu0 0.0
      %953 = vmatpush1.msra.mxu0 0.0
      %954 = vmatprep.subr.mxu0 0.0
      %955 = vmatpush1.msra.mxu0 0.0
      %956 = vmatprep.subr.mxu0 0.0
      %957 = vmatpush1.msra.mxu0 0.0
      %958 = vmatprep.subr.mxu0 0.0
      %959 = vmatpush1.msra.mxu0 0.0
      %960 = vmatprep.subr.mxu0 0.0
      %961 = vmatpush1.msra.mxu0 0.0
      %962 = vmatprep.subr.mxu0 0.0
      %963 = vmatpush1.msra.mxu0 0.0
      %964 = vmatprep.subr.mxu0 0.0
      %965 = vmatpush1.msra.mxu0 0.0
      %966 = vmatprep.subr.mxu0 0.0
      %967 = vmatpush1.msra.mxu0 0.0
      %968 = vmatprep.subr.mxu0 0.0
      %969 = vmatpush1.msra.mxu0 0.0
      %970 = vmatprep.subr.mxu0 0.0
      %971 = vmatpush1.msra.mxu0 0.0
      %972 = vmatprep.mubr.f32.mxu0 0.0
      %973 = vmatmul.mubr.f32.gmra.mrb[0].mxu0 1.0
      %v974 = vpop.f32.mrb[0].mxu0
      %v975 = vadd.f32 0.0, %v974
      %v976 = vpop.f32.mrb[0].mxu0
      %977 = vdwg.mxu0
      %v978 = vadd.f32 %v975, 1e-09
      %v979 = vrcp.pop %v978
      %v980 = vmul.f32 %v548, %v979
      %v981 = vmin.f32 %v980, 1.0
      %v983 = vlaneseq
      %v984 = vshrl.u32 %v983, 7
      %v985 = vsub.s32 0, %v984
      %v986 = vrot.slane %v981, %v985
      %v988 = vmul.f32 %v892, %v986
      %v989 = vmul.f32 %v893, %v986
      %v990 = vmul.f32 %v894, %v986
      %v991 = vmul.f32 %v895, %v986
      %v992 = vmul.f32 %v896, %v986
      %v993 = vmul.f32 %v897, %v986
      %v994 = vmul.f32 %v898, %v986
      %v995 = vmul.f32 %v899, %v986
      %v996 = vmul.f32 %v900, %v986
      %v997 = vmul.f32 %v901, %v986
      %v998 = vmul.f32 %v902, %v986
      %v999 = vmul.f32 %v903, %v986
      %v1000 = vmul.f32 %v904, %v986
      %v1001 = vmul.f32 %v905, %v986
      %v1002 = vmul.f32 %v906, %v986
      %v1003 = vmul.f32 %v907, %v986
      %v1004 = vld [vmem:[#allocation4] sm:$0x1]
      %v1005 = vmul.f32 %v378, %v988
      %v1006 = vmul.f32 %v385, %v989
      %v1007 = vmul.f32 %v392, %v990
      %v1008 = vmul.f32 %v399, %v991
      %v1009 = vmul.f32 %v406, %v992
      %v1010 = vmul.f32 %v413, %v993
      %v1011 = vmul.f32 %v420, %v994
      %v1012 = vmul.f32 %v427, %v995
      %v1013 = vmul.f32 %v434, %v996
      %v1014 = vmul.f32 %v441, %v997
      %v1015 = vmul.f32 %v448, %v998
      %v1016 = vmul.f32 %v455, %v999
      %v1017 = vmul.f32 %v462, %v1000
      %v1018 = vmul.f32 %v469, %v1001
      %v1019 = vmul.f32 %v476, %v1002
      %v1020 = vmul.f32 %v483, %v1003
      %1021 = vmatprep.subr.mxu0 0.0
      %1022 = vmatpush1.msra.mxu0 %v1005
      %1023 = vmatprep.subr.mxu0 0.0
      %1024 = vmatpush1.msra.mxu0 %v1006
      %1025 = vmatprep.subr.mxu0 0.0
      %1026 = vmatpush1.msra.mxu0 %v1007
      %1027 = vmatprep.subr.mxu0 0.0
      %1028 = vmatpush1.msra.mxu0 %v1008
      %1029 = vmatprep.subr.mxu0 0.0
      %1030 = vmatpush1.msra.mxu0 %v1009
      %1031 = vmatprep.subr.mxu0 0.0
      %1032 = vmatpush1.msra.mxu0 %v1010
      %1033 = vmatprep.subr.mxu0 0.0
      %1034 = vmatpush1.msra.mxu0 %v1011
      %1035 = vmatprep.subr.mxu0 0.0
      %1036 = vmatpush1.msra.mxu0 %v1012
      %1037 = vmatprep.subr.mxu0 0.0
      %1038 = vmatpush1.msra.mxu0 %v1013
      %1039 = vmatprep.subr.mxu0 0.0
      %1040 = vmatpush1.msra.mxu0 %v1014
      %1041 = vmatprep.subr.mxu0 0.0
      %1042 = vmatpush1.msra.mxu0 %v1015
      %1043 = vmatprep.subr.mxu0 0.0
      %1044 = vmatpush1.msra.mxu0 %v1016
      %1045 = vmatprep.subr.mxu0 0.0
      %1046 = vmatpush1.msra.mxu0 %v1017
      %1047 = vmatprep.subr.mxu0 0.0
      %1048 = vmatpush1.msra.mxu0 %v1018
      %1049 = vmatprep.subr.mxu0 0.0
      %1050 = vmatpush1.msra.mxu0 %v1019
      %1051 = vmatprep.subr.mxu0 0.0
      %1052 = vmatpush1.msra.mxu0 %v1020
      %1053 = vmatprep.subr.mxu0 0.0
      %1054 = vmatpush1.msra.mxu0 0.0
      %1055 = vmatprep.subr.mxu0 0.0
      %1056 = vmatpush1.msra.mxu0 0.0
      %1057 = vmatprep.subr.mxu0 0.0
      %1058 = vmatpush1.msra.mxu0 0.0
      %1059 = vmatprep.subr.mxu0 0.0
      %1060 = vmatpush1.msra.mxu0 0.0
      %1061 = vmatprep.subr.mxu0 0.0
      %1062 = vmatpush1.msra.mxu0 0.0
      %1063 = vmatprep.subr.mxu0 0.0
      %1064 = vmatpush1.msra.mxu0 0.0
      %1065 = vmatprep.subr.mxu0 0.0
      %1066 = vmatpush1.msra.mxu0 0.0
      %1067 = vmatprep.subr.mxu0 0.0
      %1068 = vmatpush1.msra.mxu0 0.0
      %1069 = vmatprep.subr.mxu0 0.0
      %1070 = vmatpush1.msra.mxu0 0.0
      %1071 = vmatprep.subr.mxu0 0.0
      %1072 = vmatpush1.msra.mxu0 0.0
      %1073 = vmatprep.subr.mxu0 0.0
      %1074 = vmatpush1.msra.mxu0 0.0
      %1075 = vmatprep.subr.mxu0 0.0
      %1076 = vmatpush1.msra.mxu0 0.0
      %1077 = vmatprep.subr.mxu0 0.0
      %1078 = vmatpush1.msra.mxu0 0.0
      %1079 = vmatprep.subr.mxu0 0.0
      %1080 = vmatpush1.msra.mxu0 0.0
      %1081 = vmatprep.subr.mxu0 0.0
      %1082 = vmatpush1.msra.mxu0 0.0
      %1083 = vmatprep.subr.mxu0 0.0
      %1084 = vmatpush1.msra.mxu0 0.0
      %1085 = vmatprep.mubr.f32.mxu0 0.0
      %1086 = vmatmul.mubr.f32.gmra.mrb[0].mxu0 1.0
      %v1087 = vpop.f32.mrb[0].mxu0
      %v1088 = vadd.f32 0.0, %v1087
      %v1089 = vpop.f32.mrb[0].mxu0
      %1090 = vdwg.mxu0
      %v1091 = vadd.f32 %v1004, %v1088
      %1092 = vst [vmem:[#allocation4] sm:$0x1] %v1091
      %1093 = vmatprep.subr.mxu0 0.0
      %1094 = vmatpush1.msra.mxu0 1.0
      %1095 = vmatprep.subr.mxu0 0.0
      %1096 = vmatpush1.msra.mxu0 1.0
      %1097 = vmatprep.subr.mxu0 0.0
      %1098 = vmatpush1.msra.mxu0 1.0
      %1099 = vmatprep.subr.mxu0 0.0
      %1100 = vmatpush1.msra.mxu0 1.0
      %1101 = vmatprep.subr.mxu0 0.0
      %1102 = vmatpush1.msra.mxu0 1.0
      %1103 = vmatprep.subr.mxu0 0.0
      %1104 = vmatpush1.msra.mxu0 1.0
      %1105 = vmatprep.subr.mxu0 0.0
      %1106 = vmatpush1.msra.mxu0 1.0
      %1107 = vmatprep.subr.mxu0 0.0
      %1108 = vmatpush1.msra.mxu0 1.0
      %1109 = vmatprep.subr.mxu0 0.0
      %1110 = vmatpush1.msra.mxu0 1.0
      %1111 = vmatprep.subr.mxu0 0.0
      %1112 = vmatpush1.msra.mxu0 1.0
      %1113 = vmatprep.subr.mxu0 0.0
      %1114 = vmatpush1.msra.mxu0 1.0
      %1115 = vmatprep.subr.mxu0 0.0
      %1116 = vmatpush1.msra.mxu0 1.0
      %1117 = vmatprep.subr.mxu0 0.0
      %1118 = vmatpush1.msra.mxu0 1.0
      %1119 = vmatprep.subr.mxu0 0.0
      %1120 = vmatpush1.msra.mxu0 1.0
      %1121 = vmatprep.subr.mxu0 0.0
      %1122 = vmatpush1.msra.mxu0 1.0
      %1123 = vmatprep.subr.mxu0 0.0
      %1124 = vmatpush1.msra.mxu0 1.0
      %1125 = vmatprep.subr.mxu0 0.0
      %1126 = vmatpush1.msra.mxu0 0.0
      %1127 = vmatprep.subr.mxu0 0.0
      %1128 = vmatpush1.msra.mxu0 0.0
      %1129 = vmatprep.subr.mxu0 0.0
      %1130 = vmatpush1.msra.mxu0 0.0
      %1131 = vmatprep.subr.mxu0 0.0
      %1132 = vmatpush1.msra.mxu0 0.0
      %1133 = vmatprep.subr.mxu0 0.0
      %1134 = vmatpush1.msra.mxu0 0.0
      %1135 = vmatprep.subr.mxu0 0.0
      %1136 = vmatpush1.msra.mxu0 0.0
      %1137 = vmatprep.subr.mxu0 0.0
      %1138 = vmatpush1.msra.mxu0 0.0
      %1139 = vmatprep.subr.mxu0 0.0
      %1140 = vmatpush1.msra.mxu0 0.0
      %1141 = vmatprep.subr.mxu0 0.0
      %1142 = vmatpush1.msra.mxu0 0.0
      %1143 = vmatprep.subr.mxu0 0.0
      %1144 = vmatpush1.msra.mxu0 0.0
      %1145 = vmatprep.subr.mxu0 0.0
      %1146 = vmatpush1.msra.mxu0 0.0
      %1147 = vmatprep.subr.mxu0 0.0
      %1148 = vmatpush1.msra.mxu0 0.0
      %1149 = vmatprep.subr.mxu0 0.0
      %1150 = vmatpush1.msra.mxu0 0.0
      %1151 = vmatprep.subr.mxu0 0.0
      %1152 = vmatpush1.msra.mxu0 0.0
      %1153 = vmatprep.subr.mxu0 0.0
      %1154 = vmatpush1.msra.mxu0 0.0
      %1155 = vmatprep.subr.mxu0 0.0
      %1156 = vmatpush1.msra.mxu0 0.0
      %1157 = vmatprep.mubr.f32.mxu0 0.0
      %1158 = vmatmul.mubr.f32.gmra.mrb[0].mxu0 %v988
      %v1159 = vpop.f32.mrb[0].mxu0
      %v1160 = vadd.f32 0.0, %v1159
      %v1161 = vpop.f32.mrb[0].mxu0
      %1162 = vmatprep.mubr.f32.mxu0 0.0
      %1163 = vmatmul.mubr.f32.gmra.mrb[0].mxu0 %v989
      %v1164 = vpop.f32.mrb[0].mxu0
      %v1165 = vadd.f32 0.0, %v1164
      %v1166 = vpop.f32.mrb[0].mxu0
      %1167 = vmatprep.mubr.f32.mxu0 0.0
      %1168 = vmatmul.mubr.f32.gmra.mrb[0].mxu0 %v990
      %v1169 = vpop.f32.mrb[0].mxu0
      %v1170 = vadd.f32 0.0, %v1169
      %v1171 = vpop.f32.mrb[0].mxu0
      %1172 = vmatprep.mubr.f32.mxu0 0.0
      %1173 = vmatmul.mubr.f32.gmra.mrb[0].mxu0 %v991
      %v1174 = vpop.f32.mrb[0].mxu0
      %v1175 = vadd.f32 0.0, %v1174
      %v1176 = vpop.f32.mrb[0].mxu0
      %1177 = vmatprep.mubr.f32.mxu0 0.0
      %1178 = vmatmul.mubr.f32.gmra.mrb[0].mxu0 %v992
      %v1179 = vpop.f32.mrb[0].mxu0
      %v1180 = vadd.f32 0.0, %v1179
      %v1181 = vpop.f32.mrb[0].mxu0
      %1182 = vmatprep.mubr.f32.mxu0 0.0
      %1183 = vmatmul.mubr.f32.gmra.mrb[0].mxu0 %v993
      %v1184 = vpop.f32.mrb[0].mxu0
      %v1185 = vadd.f32 0.0, %v1184
      %v1186 = vpop.f32.mrb[0].mxu0
      %1187 = vmatprep.mubr.f32.mxu0 0.0
      %1188 = vmatmul.mubr.f32.gmra.mrb[0].mxu0 %v994
      %v1189 = vpop.f32.mrb[0].mxu0
      %v1190 = vadd.f32 0.0, %v1189
      %v1191 = vpop.f32.mrb[0].mxu0
      %1192 = vmatprep.mubr.f32.mxu0 0.0
      %1193 = vmatmul.mubr.f32.gmra.mrb[0].mxu0 %v995
      %v1194 = vpop.f32.mrb[0].mxu0
      %v1195 = vadd.f32 0.0, %v1194
      %v1196 = vpop.f32.mrb[0].mxu0
      %1197 = vmatprep.mubr.f32.mxu0 0.0
      %1198 = vmatmul.mubr.f32.gmra.mrb[0].mxu0 %v996
      %v1199 = vpop.f32.mrb[0].mxu0
      %v1200 = vadd.f32 0.0, %v1199
      %v1201 = vpop.f32.mrb[0].mxu0
      %1202 = vmatprep.mubr.f32.mxu0 0.0
      %1203 = vmatmul.mubr.f32.gmra.mrb[0].mxu0 %v997
      %v1204 = vpop.f32.mrb[0].mxu0
      %v1205 = vadd.f32 0.0, %v1204
      %v1206 = vpop.f32.mrb[0].mxu0
      %1207 = vmatprep.mubr.f32.mxu0 0.0
      %1208 = vmatmul.mubr.f32.gmra.mrb[0].mxu0 %v998
      %v1209 = vpop.f32.mrb[0].mxu0
      %v1210 = vadd.f32 0.0, %v1209
      %v1211 = vpop.f32.mrb[0].mxu0
      %1212 = vmatprep.mubr.f32.mxu0 0.0
      %1213 = vmatmul.mubr.f32.gmra.mrb[0].mxu0 %v999
      %v1214 = vpop.f32.mrb[0].mxu0
      %v1215 = vadd.f32 0.0, %v1214
      %v1216 = vpop.f32.mrb[0].mxu0
      %1217 = vmatprep.mubr.f32.mxu0 0.0
      %1218 = vmatmul.mubr.f32.gmra.mrb[0].mxu0 %v1000
      %v1219 = vpop.f32.mrb[0].mxu0
      %v1220 = vadd.f32 0.0, %v1219
      %v1221 = vpop.f32.mrb[0].mxu0
      %1222 = vmatprep.mubr.f32.mxu0 0.0
      %1223 = vmatmul.mubr.f32.gmra.mrb[0].mxu0 %v1001
      %v1224 = vpop.f32.mrb[0].mxu0
      %v1225 = vadd.f32 0.0, %v1224
      %v1226 = vpop.f32.mrb[0].mxu0
      %1227 = vmatprep.mubr.f32.mxu0 0.0
      %1228 = vmatmul.mubr.f32.gmra.mrb[0].mxu0 %v1002
      %v1229 = vpop.f32.mrb[0].mxu0
      %v1230 = vadd.f32 0.0, %v1229
      %v1231 = vpop.f32.mrb[0].mxu0
      %1232 = vmatprep.mubr.f32.mxu0 0.0
      %1233 = vmatmul.mubr.f32.gmra.mrb[0].mxu0 %v1003
      %v1234 = vpop.f32.mrb[0].mxu0
      %v1235 = vadd.f32 0.0, %v1234
      %v1236 = vpop.f32.mrb[0].mxu0
      %1237 = vdwg.mxu0
      %v1238 = vsub.f32 %v532, %v1160
      %v1239 = vsub.f32 %v533, %v1165
      %v1240 = vsub.f32 %v534, %v1170
      %v1241 = vsub.f32 %v535, %v1175
      %v1242 = vsub.f32 %v536, %v1180
      %v1243 = vsub.f32 %v537, %v1185
      %v1244 = vsub.f32 %v538, %v1190
      %v1245 = vsub.f32 %v539, %v1195
      %v1246 = vsub.f32 %v540, %v1200
      %v1247 = vsub.f32 %v541, %v1205
      %v1248 = vsub.f32 %v542, %v1210
      %v1249 = vsub.f32 %v543, %v1215
      %v1250 = vsub.f32 %v544, %v1220
      %v1251 = vsub.f32 %v545, %v1225
      %v1252 = vsub.f32 %v546, %v1230
      %v1253 = vsub.f32 %v547, %v1235
      %v1254 = vmax.f32 %v1238, 0.0
      %v1255 = vmax.f32 %v1239, 0.0
      %v1256 = vmax.f32 %v1240, 0.0
      %v1257 = vmax.f32 %v1241, 0.0
      %v1258 = vmax.f32 %v1242, 0.0
      %v1259 = vmax.f32 %v1243, 0.0
      %v1260 = vmax.f32 %v1244, 0.0
      %v1261 = vmax.f32 %v1245, 0.0
      %v1262 = vmax.f32 %v1246, 0.0
      %v1263 = vmax.f32 %v1247, 0.0
      %v1264 = vmax.f32 %v1248, 0.0
      %v1265 = vmax.f32 %v1249, 0.0
      %v1266 = vmax.f32 %v1250, 0.0
      %v1267 = vmax.f32 %v1251, 0.0
      %v1268 = vmax.f32 %v1252, 0.0
      %v1269 = vmax.f32 %v1253, 0.0
      %1270 = vst.msk [vmem:[#allocation2] sm:$0xff] %vm508, %v1254
      %1271 = vst.msk [vmem:[#allocation2 + $0x8] sm:$0xff] %vm508, %v1255
      %1272 = vst.msk [vmem:[#allocation2 + $0x10] sm:$0xff] %vm508, %v1256
      %1273 = vst.msk [vmem:[#allocation2 + $0x18] sm:$0xff] %vm508, %v1257
      %1274 = vst.msk [vmem:[#allocation2 + $0x20] sm:$0xff] %vm508, %v1258
      %1275 = vst.msk [vmem:[#allocation2 + $0x28] sm:$0xff] %vm508, %v1259
      %1276 = vst.msk [vmem:[#allocation2 + $0x30] sm:$0xff] %vm508, %v1260
      %1277 = vst.msk [vmem:[#allocation2 + $0x38] sm:$0xff] %vm508, %v1261
      %1278 = vst.msk [vmem:[#allocation2 + $0x40] sm:$0xff] %vm508, %v1262
      %1279 = vst.msk [vmem:[#allocation2 + $0x48] sm:$0xff] %vm508, %v1263
      %1280 = vst.msk [vmem:[#allocation2 + $0x50] sm:$0xff] %vm508, %v1264
      %1281 = vst.msk [vmem:[#allocation2 + $0x58] sm:$0xff] %vm508, %v1265
      %1282 = vst.msk [vmem:[#allocation2 + $0x60] sm:$0xff] %vm508, %v1266
      %1283 = vst.msk [vmem:[#allocation2 + $0x68] sm:$0xff] %vm508, %v1267
      %1284 = vst.msk [vmem:[#allocation2 + $0x70] sm:$0xff] %vm508, %v1268
      %1285 = vst.msk [vmem:[#allocation2 + $0x78] sm:$0xff] %vm508, %v1269
      %v1286 = vmul.f32 %v975, %v981
      %v1287 = vsub.f32 %v548, %v1286
      %v1288 = vmax.f32 %v1287, 0.0
      %1289 = vst [vmem:[#allocation3] sm:$0x1] %v1288
    $region20: #{emd_loss.1} parent=13 // pred_fallthru
      _
    %s1290 = smul.f32 %s507, 4096.0
    %p1291 = scmp.le.f32.partialorder %s1290, 104.0
    // Predicated region
    $region21: #{emd_loss.1} parent=13 // pred_check
      %p1292 = pneg %p1291
    $region22: #{emd_loss.1} parent=13 // pred_check_branch
      %1294 = sbr.rel (%p1292) target = $region24
    $region23: #{emd_loss.1} parent=13 // pred_region
      %v1295 = vld [vmem:[#allocation2] sm:$0xff]
      %v1296 = vld [vmem:[#allocation2 + $0x8] sm:$0xff]
      %v1297 = vld [vmem:[#allocation2 + $0x10] sm:$0xff]
      %v1298 = vld [vmem:[#allocation2 + $0x18] sm:$0xff]
      %v1299 = vld [vmem:[#allocation2 + $0x20] sm:$0xff]
      %v1300 = vld [vmem:[#allocation2 + $0x28] sm:$0xff]
      %v1301 = vld [vmem:[#allocation2 + $0x30] sm:$0xff]
      %v1302 = vld [vmem:[#allocation2 + $0x38] sm:$0xff]
      %v1303 = vld [vmem:[#allocation2 + $0x40] sm:$0xff]
      %v1304 = vld [vmem:[#allocation2 + $0x48] sm:$0xff]
      %v1305 = vld [vmem:[#allocation2 + $0x50] sm:$0xff]
      %v1306 = vld [vmem:[#allocation2 + $0x58] sm:$0xff]
      %v1307 = vld [vmem:[#allocation2 + $0x60] sm:$0xff]
      %v1308 = vld [vmem:[#allocation2 + $0x68] sm:$0xff]
      %v1309 = vld [vmem:[#allocation2 + $0x70] sm:$0xff]
      %v1310 = vld [vmem:[#allocation2 + $0x78] sm:$0xff]
      %v1311 = vld [vmem:[#allocation3] sm:$0x1]
      %v1312 = vmul.f32 %v378, %v378
      %v1313 = vmul.f32 %v385, %v385
      %v1314 = vmul.f32 %v392, %v392
      %v1315 = vmul.f32 %v399, %v399
      %v1316 = vmul.f32 %v406, %v406
      %v1317 = vmul.f32 %v413, %v413
      %v1318 = vmul.f32 %v420, %v420
      %v1319 = vmul.f32 %v427, %v427
      %v1320 = vmul.f32 %v434, %v434
      %v1321 = vmul.f32 %v441, %v441
      %v1322 = vmul.f32 %v448, %v448
      %v1323 = vmul.f32 %v455, %v455
      %v1324 = vmul.f32 %v462, %v462
      %v1325 = vmul.f32 %v469, %v469
      %v1326 = vmul.f32 %v476, %v476
      %v1327 = vmul.f32 %v483, %v483
      %v1328 = vmul.f32 %v1312, -4096.0
      %v1329 = vmul.f32 %v1313, -4096.0
      %v1330 = vmul.f32 %v1314, -4096.0
      %v1331 = vmul.f32 %v1315, -4096.0
      %v1332 = vmul.f32 %v1316, -4096.0
      %v1333 = vmul.f32 %v1317, -4096.0
      %v1334 = vmul.f32 %v1318, -4096.0
      %v1335 = vmul.f32 %v1319, -4096.0
      %v1336 = vmul.f32 %v1320, -4096.0
      %v1337 = vmul.f32 %v1321, -4096.0
      %v1338 = vmul.f32 %v1322, -4096.0
      %v1339 = vmul.f32 %v1323, -4096.0
      %v1340 = vmul.f32 %v1324, -4096.0
      %v1341 = vmul.f32 %v1325, -4096.0
      %v1342 = vmul.f32 %v1326, -4096.0
      %v1343 = vmul.f32 %v1327, -4096.0
      %v1344 = vmul.f32 %v1328, 1.442695
      %v1345 = vpow.pop %v1344
      %v1346 = vmul.f32 %v1329, 1.442695
      %v1347 = vpow.pop %v1346
      %v1348 = vmul.f32 %v1330, 1.442695
      %v1349 = vpow.pop %v1348
      %v1350 = vmul.f32 %v1331, 1.442695
      %v1351 = vpow.pop %v1350
      %v1352 = vmul.f32 %v1332, 1.442695
      %v1353 = vpow.pop %v1352
      %v1354 = vmul.f32 %v1333, 1.442695
      %v1355 = vpow.pop %v1354
      %v1356 = vmul.f32 %v1334, 1.442695
      %v1357 = vpow.pop %v1356
      %v1358 = vmul.f32 %v1335, 1.442695
      %v1359 = vpow.pop %v1358
      %v1360 = vmul.f32 %v1336, 1.442695
      %v1361 = vpow.pop %v1360
      %v1362 = vmul.f32 %v1337, 1.442695
      %v1363 = vpow.pop %v1362
      %v1364 = vmul.f32 %v1338, 1.442695
      %v1365 = vpow.pop %v1364
      %v1366 = vmul.f32 %v1339, 1.442695
      %v1367 = vpow.pop %v1366
      %v1368 = vmul.f32 %v1340, 1.442695
      %v1369 = vpow.pop %v1368
      %v1370 = vmul.f32 %v1341, 1.442695
      %v1371 = vpow.pop %v1370
      %v1372 = vmul.f32 %v1342, 1.442695
      %v1373 = vpow.pop %v1372
      %v1374 = vmul.f32 %v1343, 1.442695
      %v1375 = vpow.pop %v1374
      %v1377 = vlaneseq
      %v1378 = vshrl.u32 %v1377, 7
      %v1379 = vsub.s32 0, %v1378
      %v1380 = vrot.slane %v1311, %v1379
      %v1382 = vmul.f32 %v1345, %v1380
      %v1383 = vmul.f32 %v1347, %v1380
      %v1384 = vmul.f32 %v1349, %v1380
      %v1385 = vmul.f32 %v1351, %v1380
      %v1386 = vmul.f32 %v1353, %v1380
      %v1387 = vmul.f32 %v1355, %v1380
      %v1388 = vmul.f32 %v1357, %v1380
      %v1389 = vmul.f32 %v1359, %v1380
      %v1390 = vmul.f32 %v1361, %v1380
      %v1391 = vmul.f32 %v1363, %v1380
      %v1392 = vmul.f32 %v1365, %v1380
      %v1393 = vmul.f32 %v1367, %v1380
      %v1394 = vmul.f32 %v1369, %v1380
      %v1395 = vmul.f32 %v1371, %v1380
      %v1396 = vmul.f32 %v1373, %v1380
      %v1397 = vmul.f32 %v1375, %v1380
      %1398 = vmatprep.subr.mxu0 0.0
      %1399 = vmatpush1.msra.mxu0 1.0
      %1400 = vmatprep.subr.mxu0 0.0
      %1401 = vmatpush1.msra.mxu0 1.0
      %1402 = vmatprep.subr.mxu0 0.0
      %1403 = vmatpush1.msra.mxu0 1.0
      %1404 = vmatprep.subr.mxu0 0.0
      %1405 = vmatpush1.msra.mxu0 1.0
      %1406 = vmatprep.subr.mxu0 0.0
      %1407 = vmatpush1.msra.mxu0 1.0
      %1408 = vmatprep.subr.mxu0 0.0
      %1409 = vmatpush1.msra.mxu0 1.0
      %1410 = vmatprep.subr.mxu0 0.0
      %1411 = vmatpush1.msra.mxu0 1.0
      %1412 = vmatprep.subr.mxu0 0.0
      %1413 = vmatpush1.msra.mxu0 1.0
      %1414 = vmatprep.subr.mxu0 0.0
      %1415 = vmatpush1.msra.mxu0 1.0
      %1416 = vmatprep.subr.mxu0 0.0
      %1417 = vmatpush1.msra.mxu0 1.0
      %1418 = vmatprep.subr.mxu0 0.0
      %1419 = vmatpush1.msra.mxu0 1.0
      %1420 = vmatprep.subr.mxu0 0.0
      %1421 = vmatpush1.msra.mxu0 1.0
      %1422 = vmatprep.subr.mxu0 0.0
      %1423 = vmatpush1.msra.mxu0 1.0
      %1424 = vmatprep.subr.mxu0 0.0
      %1425 = vmatpush1.msra.mxu0 1.0
      %1426 = vmatprep.subr.mxu0 0.0
      %1427 = vmatpush1.msra.mxu0 1.0
      %1428 = vmatprep.subr.mxu0 0.0
      %1429 = vmatpush1.msra.mxu0 1.0
      %1430 = vmatprep.subr.mxu0 0.0
      %1431 = vmatpush1.msra.mxu0 0.0
      %1432 = vmatprep.subr.mxu0 0.0
      %1433 = vmatpush1.msra.mxu0 0.0
      %1434 = vmatprep.subr.mxu0 0.0
      %1435 = vmatpush1.msra.mxu0 0.0
      %1436 = vmatprep.subr.mxu0 0.0
      %1437 = vmatpush1.msra.mxu0 0.0
      %1438 = vmatprep.subr.mxu0 0.0
      %1439 = vmatpush1.msra.mxu0 0.0
      %1440 = vmatprep.subr.mxu0 0.0
      %1441 = vmatpush1.msra.mxu0 0.0
      %1442 = vmatprep.subr.mxu0 0.0
      %1443 = vmatpush1.msra.mxu0 0.0
      %1444 = vmatprep.subr.mxu0 0.0
      %1445 = vmatpush1.msra.mxu0 0.0
      %1446 = vmatprep.subr.mxu0 0.0
      %1447 = vmatpush1.msra.mxu0 0.0
      %1448 = vmatprep.subr.mxu0 0.0
      %1449 = vmatpush1.msra.mxu0 0.0
      %1450 = vmatprep.subr.mxu0 0.0
      %1451 = vmatpush1.msra.mxu0 0.0
      %1452 = vmatprep.subr.mxu0 0.0
      %1453 = vmatpush1.msra.mxu0 0.0
      %1454 = vmatprep.subr.mxu0 0.0
      %1455 = vmatpush1.msra.mxu0 0.0
      %1456 = vmatprep.subr.mxu0 0.0
      %1457 = vmatpush1.msra.mxu0 0.0
      %1458 = vmatprep.subr.mxu0 0.0
      %1459 = vmatpush1.msra.mxu0 0.0
      %1460 = vmatprep.subr.mxu0 0.0
      %1461 = vmatpush1.msra.mxu0 0.0
      %1462 = vmatprep.mubr.f32.mxu0 0.0
      %1463 = vmatmul.mubr.f32.gmra.mrb[0].mxu0 %v1382
      %v1464 = vpop.f32.mrb[0].mxu0
      %v1465 = vadd.f32 1e-09, %v1464
      %v1466 = vpop.f32.mrb[0].mxu0
      %1467 = vmatprep.mubr.f32.mxu0 0.0
      %1468 = vmatmul.mubr.f32.gmra.mrb[0].mxu0 %v1383
      %v1469 = vpop.f32.mrb[0].mxu0
      %v1470 = vadd.f32 1e-09, %v1469
      %v1471 = vpop.f32.mrb[0].mxu0
      %1472 = vmatprep.mubr.f32.mxu0 0.0
      %1473 = vmatmul.mubr.f32.gmra.mrb[0].mxu0 %v1384
      %v1474 = vpop.f32.mrb[0].mxu0
      %v1475 = vadd.f32 1e-09, %v1474
      %v1476 = vpop.f32.mrb[0].mxu0
      %1477 = vmatprep.mubr.f32.mxu0 0.0
      %1478 = vmatmul.mubr.f32.gmra.mrb[0].mxu0 %v1385
      %v1479 = vpop.f32.mrb[0].mxu0
      %v1480 = vadd.f32 1e-09, %v1479
      %v1481 = vpop.f32.mrb[0].mxu0
      %1482 = vmatprep.mubr.f32.mxu0 0.0
      %1483 = vmatmul.mubr.f32.gmra.mrb[0].mxu0 %v1386
      %v1484 = vpop.f32.mrb[0].mxu0
      %v1485 = vadd.f32 1e-09, %v1484
      %v1486 = vpop.f32.mrb[0].mxu0
      %1487 = vmatprep.mubr.f32.mxu0 0.0
      %1488 = vmatmul.mubr.f32.gmra.mrb[0].mxu0 %v1387
      %v1489 = vpop.f32.mrb[0].mxu0
      %v1490 = vadd.f32 1e-09, %v1489
      %v1491 = vpop.f32.mrb[0].mxu0
      %1492 = vmatprep.mubr.f32.mxu0 0.0
      %1493 = vmatmul.mubr.f32.gmra.mrb[0].mxu0 %v1388
      %v1494 = vpop.f32.mrb[0].mxu0
      %v1495 = vadd.f32 1e-09, %v1494
      %v1496 = vpop.f32.mrb[0].mxu0
      %1497 = vmatprep.mubr.f32.mxu0 0.0
      %1498 = vmatmul.mubr.f32.gmra.mrb[0].mxu0 %v1389
      %v1499 = vpop.f32.mrb[0].mxu0
      %v1500 = vadd.f32 1e-09, %v1499
      %v1501 = vpop.f32.mrb[0].mxu0
      %1502 = vmatprep.mubr.f32.mxu0 0.0
      %1503 = vmatmul.mubr.f32.gmra.mrb[0].mxu0 %v1390
      %v1504 = vpop.f32.mrb[0].mxu0
      %v1505 = vadd.f32 1e-09, %v1504
      %v1506 = vpop.f32.mrb[0].mxu0
      %1507 = vmatprep.mubr.f32.mxu0 0.0
      %1508 = vmatmul.mubr.f32.gmra.mrb[0].mxu0 %v1391
      %v1509 = vpop.f32.mrb[0].mxu0
      %v1510 = vadd.f32 1e-09, %v1509
      %v1511 = vpop.f32.mrb[0].mxu0
      %1512 = vmatprep.mubr.f32.mxu0 0.0
      %1513 = vmatmul.mubr.f32.gmra.mrb[0].mxu0 %v1392
      %v1514 = vpop.f32.mrb[0].mxu0
      %v1515 = vadd.f32 1e-09, %v1514
      %v1516 = vpop.f32.mrb[0].mxu0
      %1517 = vmatprep.mubr.f32.mxu0 0.0
      %1518 = vmatmul.mubr.f32.gmra.mrb[0].mxu0 %v1393
      %v1519 = vpop.f32.mrb[0].mxu0
      %v1520 = vadd.f32 1e-09, %v1519
      %v1521 = vpop.f32.mrb[0].mxu0
      %1522 = vmatprep.mubr.f32.mxu0 0.0
      %1523 = vmatmul.mubr.f32.gmra.mrb[0].mxu0 %v1394
      %v1524 = vpop.f32.mrb[0].mxu0
      %v1525 = vadd.f32 1e-09, %v1524
      %v1526 = vpop.f32.mrb[0].mxu0
      %1527 = vmatprep.mubr.f32.mxu0 0.0
      %1528 = vmatmul.mubr.f32.gmra.mrb[0].mxu0 %v1395
      %v1529 = vpop.f32.mrb[0].mxu0
      %v1530 = vadd.f32 1e-09, %v1529
      %v1531 = vpop.f32.mrb[0].mxu0
      %1532 = vmatprep.mubr.f32.mxu0 0.0
      %1533 = vmatmul.mubr.f32.gmra.mrb[0].mxu0 %v1396
      %v1534 = vpop.f32.mrb[0].mxu0
      %v1535 = vadd.f32 1e-09, %v1534
      %v1536 = vpop.f32.mrb[0].mxu0
      %1537 = vmatprep.mubr.f32.mxu0 0.0
      %1538 = vmatmul.mubr.f32.gmra.mrb[0].mxu0 %v1397
      %v1539 = vpop.f32.mrb[0].mxu0
      %v1540 = vadd.f32 1e-09, %v1539
      %v1541 = vpop.f32.mrb[0].mxu0
      %1542 = vdwg.mxu0
      %v1543 = vrcp.pop %v1465
      %v1544 = vmul.f32 %v1295, %v1543
      %v1545 = vrcp.pop %v1470
      %v1546 = vmul.f32 %v1296, %v1545
      %v1547 = vrcp.pop %v1475
      %v1548 = vmul.f32 %v1297, %v1547
      %v1549 = vrcp.pop %v1480
      %v1550 = vmul.f32 %v1298, %v1549
      %v1551 = vrcp.pop %v1485
      %v1552 = vmul.f32 %v1299, %v1551
      %v1553 = vrcp.pop %v1490
      %v1554 = vmul.f32 %v1300, %v1553
      %v1555 = vrcp.pop %v1495
      %v1556 = vmul.f32 %v1301, %v1555
      %v1557 = vrcp.pop %v1500
      %v1558 = vmul.f32 %v1302, %v1557
      %v1559 = vrcp.pop %v1505
      %v1560 = vmul.f32 %v1303, %v1559
      %v1561 = vrcp.pop %v1510
      %v1562 = vmul.f32 %v1304, %v1561
      %v1563 = vrcp.pop %v1515
      %v1564 = vmul.f32 %v1305, %v1563
      %v1565 = vrcp.pop %v1520
      %v1566 = vmul.f32 %v1306, %v1565
      %v1567 = vrcp.pop %v1525
      %v1568 = vmul.f32 %v1307, %v1567
      %v1569 = vrcp.pop %v1530
      %v1570 = vmul.f32 %v1308, %v1569
      %v1571 = vrcp.pop %v1535
      %v1572 = vmul.f32 %v1309, %v1571
      %v1573 = vrcp.pop %v1540
      %v1574 = vmul.f32 %v1310, %v1573
      %1576 = vset.pattern.permute.xlu0 0
      %1577 = vperm.xlu0 %1576, %v1544
      %v1578 = vpop.permute.xlu0 %1577
      %1581 = vset.pattern.permute.xlu0 0
      %1582 = vperm.xlu0 %1581, %v1546
      %v1583 = vpop.permute.xlu0 %1582
      %1586 = vset.pattern.permute.xlu0 0
      %1587 = vperm.xlu0 %1586, %v1548
      %v1588 = vpop.permute.xlu0 %1587
      %1591 = vset.pattern.permute.xlu0 0
      %1592 = vperm.xlu0 %1591, %v1550
      %v1593 = vpop.permute.xlu0 %1592
      %1596 = vset.pattern.permute.xlu0 0
      %1597 = vperm.xlu0 %1596, %v1552
      %v1598 = vpop.permute.xlu0 %1597
      %1601 = vset.pattern.permute.xlu0 0
      %1602 = vperm.xlu0 %1601, %v1554
      %v1603 = vpop.permute.xlu0 %1602
      %1606 = vset.pattern.permute.xlu0 0
      %1607 = vperm.xlu0 %1606, %v1556
      %v1608 = vpop.permute.xlu0 %1607
      %1611 = vset.pattern.permute.xlu0 0
      %1612 = vperm.xlu0 %1611, %v1558
      %v1613 = vpop.permute.xlu0 %1612
      %1616 = vset.pattern.permute.xlu0 0
      %1617 = vperm.xlu0 %1616, %v1560
      %v1618 = vpop.permute.xlu0 %1617
      %1621 = vset.pattern.permute.xlu0 0
      %1622 = vperm.xlu0 %1621, %v1562
      %v1623 = vpop.permute.xlu0 %1622
      %1626 = vset.pattern.permute.xlu0 0
      %1627 = vperm.xlu0 %1626, %v1564
      %v1628 = vpop.permute.xlu0 %1627
      %1631 = vset.pattern.permute.xlu0 0
      %1632 = vperm.xlu0 %1631, %v1566
      %v1633 = vpop.permute.xlu0 %1632
      %1636 = vset.pattern.permute.xlu0 0
      %1637 = vperm.xlu0 %1636, %v1568
      %v1638 = vpop.permute.xlu0 %1637
      %1641 = vset.pattern.permute.xlu0 0
      %1642 = vperm.xlu0 %1641, %v1570
      %v1643 = vpop.permute.xlu0 %1642
      %1646 = vset.pattern.permute.xlu0 0
      %1647 = vperm.xlu0 %1646, %v1572
      %v1648 = vpop.permute.xlu0 %1647
      %1651 = vset.pattern.permute.xlu0 0
      %1652 = vperm.xlu0 %1651, %v1574
      %v1653 = vpop.permute.xlu0 %1652
      %v1655 = vmul.f32 %v1382, %v1578
      %v1656 = vmul.f32 %v1383, %v1583
      %v1657 = vmul.f32 %v1384, %v1588
      %v1658 = vmul.f32 %v1385, %v1593
      %v1659 = vmul.f32 %v1386, %v1598
      %v1660 = vmul.f32 %v1387, %v1603
      %v1661 = vmul.f32 %v1388, %v1608
      %v1662 = vmul.f32 %v1389, %v1613
      %v1663 = vmul.f32 %v1390, %v1618
      %v1664 = vmul.f32 %v1391, %v1623
      %v1665 = vmul.f32 %v1392, %v1628
      %v1666 = vmul.f32 %v1393, %v1633
      %v1667 = vmul.f32 %v1394, %v1638
      %v1668 = vmul.f32 %v1395, %v1643
      %v1669 = vmul.f32 %v1396, %v1648
      %v1670 = vmul.f32 %v1397, %v1653
      %1671 = vmatprep.subr.mxu0 0.0
      %1672 = vmatpush1.msra.mxu0 %v1655
      %1673 = vmatprep.subr.mxu0 0.0
      %1674 = vmatpush1.msra.mxu0 %v1656
      %1675 = vmatprep.subr.mxu0 0.0
      %1676 = vmatpush1.msra.mxu0 %v1657
      %1677 = vmatprep.subr.mxu0 0.0
      %1678 = vmatpush1.msra.mxu0 %v1658
      %1679 = vmatprep.subr.mxu0 0.0
      %1680 = vmatpush1.msra.mxu0 %v1659
      %1681 = vmatprep.subr.mxu0 0.0
      %1682 = vmatpush1.msra.mxu0 %v1660
      %1683 = vmatprep.subr.mxu0 0.0
      %1684 = vmatpush1.msra.mxu0 %v1661
      %1685 = vmatprep.subr.mxu0 0.0
      %1686 = vmatpush1.msra.mxu0 %v1662
      %1687 = vmatprep.subr.mxu0 0.0
      %1688 = vmatpush1.msra.mxu0 %v1663
      %1689 = vmatprep.subr.mxu0 0.0
      %1690 = vmatpush1.msra.mxu0 %v1664
      %1691 = vmatprep.subr.mxu0 0.0
      %1692 = vmatpush1.msra.mxu0 %v1665
      %1693 = vmatprep.subr.mxu0 0.0
      %1694 = vmatpush1.msra.mxu0 %v1666
      %1695 = vmatprep.subr.mxu0 0.0
      %1696 = vmatpush1.msra.mxu0 %v1667
      %1697 = vmatprep.subr.mxu0 0.0
      %1698 = vmatpush1.msra.mxu0 %v1668
      %1699 = vmatprep.subr.mxu0 0.0
      %1700 = vmatpush1.msra.mxu0 %v1669
      %1701 = vmatprep.subr.mxu0 0.0
      %1702 = vmatpush1.msra.mxu0 %v1670
      %1703 = vmatprep.subr.mxu0 0.0
      %1704 = vmatpush1.msra.mxu0 0.0
      %1705 = vmatprep.subr.mxu0 0.0
      %1706 = vmatpush1.msra.mxu0 0.0
      %1707 = vmatprep.subr.mxu0 0.0
      %1708 = vmatpush1.msra.mxu0 0.0
      %1709 = vmatprep.subr.mxu0 0.0
      %1710 = vmatpush1.msra.mxu0 0.0
      %1711 = vmatprep.subr.mxu0 0.0
      %1712 = vmatpush1.msra.mxu0 0.0
      %1713 = vmatprep.subr.mxu0 0.0
      %1714 = vmatpush1.msra.mxu0 0.0
      %1715 = vmatprep.subr.mxu0 0.0
      %1716 = vmatpush1.msra.mxu0 0.0
      %1717 = vmatprep.subr.mxu0 0.0
      %1718 = vmatpush1.msra.mxu0 0.0
      %1719 = vmatprep.subr.mxu0 0.0
      %1720 = vmatpush1.msra.mxu0 0.0
      %1721 = vmatprep.subr.mxu0 0.0
      %1722 = vmatpush1.msra.mxu0 0.0
      %1723 = vmatprep.subr.mxu0 0.0
      %1724 = vmatpush1.msra.mxu0 0.0
      %1725 = vmatprep.subr.mxu0 0.0
      %1726 = vmatpush1.msra.mxu0 0.0
      %1727 = vmatprep.subr.mxu0 0.0
      %1728 = vmatpush1.msra.mxu0 0.0
      %1729 = vmatprep.subr.mxu0 0.0
      %1730 = vmatpush1.msra.mxu0 0.0
      %1731 = vmatprep.subr.mxu0 0.0
      %1732 = vmatpush1.msra.mxu0 0.0
      %1733 = vmatprep.subr.mxu0 0.0
      %1734 = vmatpush1.msra.mxu0 0.0
      %1735 = vmatprep.mubr.f32.mxu0 0.0
      %1736 = vmatmul.mubr.f32.gmra.mrb[0].mxu0 1.0
      %v1737 = vpop.f32.mrb[0].mxu0
      %v1738 = vadd.f32 0.0, %v1737
      %v1739 = vpop.f32.mrb[0].mxu0
      %1740 = vdwg.mxu0
      %v1741 = vadd.f32 %v1738, 1e-09
      %v1742 = vrcp.pop %v1741
      %v1743 = vmul.f32 %v1311, %v1742
      %v1744 = vmin.f32 %v1743, 1.0
      %v1746 = vlaneseq
      %v1747 = vshrl.u32 %v1746, 7
      %v1748 = vsub.s32 0, %v1747
      %v1749 = vrot.slane %v1744, %v1748
      %v1751 = vmul.f32 %v1655, %v1749
      %v1752 = vmul.f32 %v1656, %v1749
      %v1753 = vmul.f32 %v1657, %v1749
      %v1754 = vmul.f32 %v1658, %v1749
      %v1755 = vmul.f32 %v1659, %v1749
      %v1756 = vmul.f32 %v1660, %v1749
      %v1757 = vmul.f32 %v1661, %v1749
      %v1758 = vmul.f32 %v1662, %v1749
      %v1759 = vmul.f32 %v1663, %v1749
      %v1760 = vmul.f32 %v1664, %v1749
      %v1761 = vmul.f32 %v1665, %v1749
      %v1762 = vmul.f32 %v1666, %v1749
      %v1763 = vmul.f32 %v1667, %v1749
      %v1764 = vmul.f32 %v1668, %v1749
      %v1765 = vmul.f32 %v1669, %v1749
      %v1766 = vmul.f32 %v1670, %v1749
      %v1767 = vld [vmem:[#allocation4] sm:$0x1]
      %v1768 = vmul.f32 %v378, %v1751
      %v1769 = vmul.f32 %v385, %v1752
      %v1770 = vmul.f32 %v392, %v1753
      %v1771 = vmul.f32 %v399, %v1754
      %v1772 = vmul.f32 %v406, %v1755
      %v1773 = vmul.f32 %v413, %v1756
      %v1774 = vmul.f32 %v420, %v1757
      %v1775 = vmul.f32 %v427, %v1758
      %v1776 = vmul.f32 %v434, %v1759
      %v1777 = vmul.f32 %v441, %v1760
      %v1778 = vmul.f32 %v448, %v1761
      %v1779 = vmul.f32 %v455, %v1762
      %v1780 = vmul.f32 %v462, %v1763
      %v1781 = vmul.f32 %v469, %v1764
      %v1782 = vmul.f32 %v476, %v1765
      %v1783 = vmul.f32 %v483, %v1766
      %1784 = vmatprep.subr.mxu0 0.0
      %1785 = vmatpush1.msra.mxu0 %v1768
      %1786 = vmatprep.subr.mxu0 0.0
      %1787 = vmatpush1.msra.mxu0 %v1769
      %1788 = vmatprep.subr.mxu0 0.0
      %1789 = vmatpush1.msra.mxu0 %v1770
      %1790 = vmatprep.subr.mxu0 0.0
      %1791 = vmatpush1.msra.mxu0 %v1771
      %1792 = vmatprep.subr.mxu0 0.0
      %1793 = vmatpush1.msra.mxu0 %v1772
      %1794 = vmatprep.subr.mxu0 0.0
      %1795 = vmatpush1.msra.mxu0 %v1773
      %1796 = vmatprep.subr.mxu0 0.0
      %1797 = vmatpush1.msra.mxu0 %v1774
      %1798 = vmatprep.subr.mxu0 0.0
      %1799 = vmatpush1.msra.mxu0 %v1775
      %1800 = vmatprep.subr.mxu0 0.0
      %1801 = vmatpush1.msra.mxu0 %v1776
      %1802 = vmatprep.subr.mxu0 0.0
      %1803 = vmatpush1.msra.mxu0 %v1777
      %1804 = vmatprep.subr.mxu0 0.0
      %1805 = vmatpush1.msra.mxu0 %v1778
      %1806 = vmatprep.subr.mxu0 0.0
      %1807 = vmatpush1.msra.mxu0 %v1779
      %1808 = vmatprep.subr.mxu0 0.0
      %1809 = vmatpush1.msra.mxu0 %v1780
      %1810 = vmatprep.subr.mxu0 0.0
      %1811 = vmatpush1.msra.mxu0 %v1781
      %1812 = vmatprep.subr.mxu0 0.0
      %1813 = vmatpush1.msra.mxu0 %v1782
      %1814 = vmatprep.subr.mxu0 0.0
      %1815 = vmatpush1.msra.mxu0 %v1783
      %1816 = vmatprep.subr.mxu0 0.0
      %1817 = vmatpush1.msra.mxu0 0.0
      %1818 = vmatprep.subr.mxu0 0.0
      %1819 = vmatpush1.msra.mxu0 0.0
      %1820 = vmatprep.subr.mxu0 0.0
      %1821 = vmatpush1.msra.mxu0 0.0
      %1822 = vmatprep.subr.mxu0 0.0
      %1823 = vmatpush1.msra.mxu0 0.0
      %1824 = vmatprep.subr.mxu0 0.0
      %1825 = vmatpush1.msra.mxu0 0.0
      %1826 = vmatprep.subr.mxu0 0.0
      %1827 = vmatpush1.msra.mxu0 0.0
      %1828 = vmatprep.subr.mxu0 0.0
      %1829 = vmatpush1.msra.mxu0 0.0
      %1830 = vmatprep.subr.mxu0 0.0
      %1831 = vmatpush1.msra.mxu0 0.0
      %1832 = vmatprep.subr.mxu0 0.0
      %1833 = vmatpush1.msra.mxu0 0.0
      %1834 = vmatprep.subr.mxu0 0.0
      %1835 = vmatpush1.msra.mxu0 0.0
      %1836 = vmatprep.subr.mxu0 0.0
      %1837 = vmatpush1.msra.mxu0 0.0
      %1838 = vmatprep.subr.mxu0 0.0
      %1839 = vmatpush1.msra.mxu0 0.0
      %1840 = vmatprep.subr.mxu0 0.0
      %1841 = vmatpush1.msra.mxu0 0.0
      %1842 = vmatprep.subr.mxu0 0.0
      %1843 = vmatpush1.msra.mxu0 0.0
      %1844 = vmatprep.subr.mxu0 0.0
      %1845 = vmatpush1.msra.mxu0 0.0
      %1846 = vmatprep.subr.mxu0 0.0
      %1847 = vmatpush1.msra.mxu0 0.0
      %1848 = vmatprep.mubr.f32.mxu0 0.0
      %1849 = vmatmul.mubr.f32.gmra.mrb[0].mxu0 1.0
      %v1850 = vpop.f32.mrb[0].mxu0
      %v1851 = vadd.f32 0.0, %v1850
      %v1852 = vpop.f32.mrb[0].mxu0
      %1853 = vdwg.mxu0
      %v1854 = vadd.f32 %v1767, %v1851
      %1855 = vst [vmem:[#allocation4] sm:$0x1] %v1854
      %1856 = vmatprep.subr.mxu0 0.0
      %1857 = vmatpush1.msra.mxu0 1.0
      %1858 = vmatprep.subr.mxu0 0.0
      %1859 = vmatpush1.msra.mxu0 1.0
      %1860 = vmatprep.subr.mxu0 0.0
      %1861 = vmatpush1.msra.mxu0 1.0
      %1862 = vmatprep.subr.mxu0 0.0
      %1863 = vmatpush1.msra.mxu0 1.0
      %1864 = vmatprep.subr.mxu0 0.0
      %1865 = vmatpush1.msra.mxu0 1.0
      %1866 = vmatprep.subr.mxu0 0.0
      %1867 = vmatpush1.msra.mxu0 1.0
      %1868 = vmatprep.subr.mxu0 0.0
      %1869 = vmatpush1.msra.mxu0 1.0
      %1870 = vmatprep.subr.mxu0 0.0
      %1871 = vmatpush1.msra.mxu0 1.0
      %1872 = vmatprep.subr.mxu0 0.0
      %1873 = vmatpush1.msra.mxu0 1.0
      %1874 = vmatprep.subr.mxu0 0.0
      %1875 = vmatpush1.msra.mxu0 1.0
      %1876 = vmatprep.subr.mxu0 0.0
      %1877 = vmatpush1.msra.mxu0 1.0
      %1878 = vmatprep.subr.mxu0 0.0
      %1879 = vmatpush1.msra.mxu0 1.0
      %1880 = vmatprep.subr.mxu0 0.0
      %1881 = vmatpush1.msra.mxu0 1.0
      %1882 = vmatprep.subr.mxu0 0.0
      %1883 = vmatpush1.msra.mxu0 1.0
      %1884 = vmatprep.subr.mxu0 0.0
      %1885 = vmatpush1.msra.mxu0 1.0
      %1886 = vmatprep.subr.mxu0 0.0
      %1887 = vmatpush1.msra.mxu0 1.0
      %1888 = vmatprep.subr.mxu0 0.0
      %1889 = vmatpush1.msra.mxu0 0.0
      %1890 = vmatprep.subr.mxu0 0.0
      %1891 = vmatpush1.msra.mxu0 0.0
      %1892 = vmatprep.subr.mxu0 0.0
      %1893 = vmatpush1.msra.mxu0 0.0
      %1894 = vmatprep.subr.mxu0 0.0
      %1895 = vmatpush1.msra.mxu0 0.0
      %1896 = vmatprep.subr.mxu0 0.0
      %1897 = vmatpush1.msra.mxu0 0.0
      %1898 = vmatprep.subr.mxu0 0.0
      %1899 = vmatpush1.msra.mxu0 0.0
      %1900 = vmatprep.subr.mxu0 0.0
      %1901 = vmatpush1.msra.mxu0 0.0
      %1902 = vmatprep.subr.mxu0 0.0
      %1903 = vmatpush1.msra.mxu0 0.0
      %1904 = vmatprep.subr.mxu0 0.0
      %1905 = vmatpush1.msra.mxu0 0.0
      %1906 = vmatprep.subr.mxu0 0.0
      %1907 = vmatpush1.msra.mxu0 0.0
      %1908 = vmatprep.subr.mxu0 0.0
      %1909 = vmatpush1.msra.mxu0 0.0
      %1910 = vmatprep.subr.mxu0 0.0
      %1911 = vmatpush1.msra.mxu0 0.0
      %1912 = vmatprep.subr.mxu0 0.0
      %1913 = vmatpush1.msra.mxu0 0.0
      %1914 = vmatprep.subr.mxu0 0.0
      %1915 = vmatpush1.msra.mxu0 0.0
      %1916 = vmatprep.subr.mxu0 0.0
      %1917 = vmatpush1.msra.mxu0 0.0
      %1918 = vmatprep.subr.mxu0 0.0
      %1919 = vmatpush1.msra.mxu0 0.0
      %1920 = vmatprep.mubr.f32.mxu0 0.0
      %1921 = vmatmul.mubr.f32.gmra.mrb[0].mxu0 %v1751
      %v1922 = vpop.f32.mrb[0].mxu0
      %v1923 = vadd.f32 0.0, %v1922
      %v1924 = vpop.f32.mrb[0].mxu0
      %1925 = vmatprep.mubr.f32.mxu0 0.0
      %1926 = vmatmul.mubr.f32.gmra.mrb[0].mxu0 %v1752
      %v1927 = vpop.f32.mrb[0].mxu0
      %v1928 = vadd.f32 0.0, %v1927
      %v1929 = vpop.f32.mrb[0].mxu0
      %1930 = vmatprep.mubr.f32.mxu0 0.0
      %1931 = vmatmul.mubr.f32.gmra.mrb[0].mxu0 %v1753
      %v1932 = vpop.f32.mrb[0].mxu0
      %v1933 = vadd.f32 0.0, %v1932
      %v1934 = vpop.f32.mrb[0].mxu0
      %1935 = vmatprep.mubr.f32.mxu0 0.0
      %1936 = vmatmul.mubr.f32.gmra.mrb[0].mxu0 %v1754
      %v1937 = vpop.f32.mrb[0].mxu0
      %v1938 = vadd.f32 0.0, %v1937
      %v1939 = vpop.f32.mrb[0].mxu0
      %1940 = vmatprep.mubr.f32.mxu0 0.0
      %1941 = vmatmul.mubr.f32.gmra.mrb[0].mxu0 %v1755
      %v1942 = vpop.f32.mrb[0].mxu0
      %v1943 = vadd.f32 0.0, %v1942
      %v1944 = vpop.f32.mrb[0].mxu0
      %1945 = vmatprep.mubr.f32.mxu0 0.0
      %1946 = vmatmul.mubr.f32.gmra.mrb[0].mxu0 %v1756
      %v1947 = vpop.f32.mrb[0].mxu0
      %v1948 = vadd.f32 0.0, %v1947
      %v1949 = vpop.f32.mrb[0].mxu0
      %1950 = vmatprep.mubr.f32.mxu0 0.0
      %1951 = vmatmul.mubr.f32.gmra.mrb[0].mxu0 %v1757
      %v1952 = vpop.f32.mrb[0].mxu0
      %v1953 = vadd.f32 0.0, %v1952
      %v1954 = vpop.f32.mrb[0].mxu0
      %1955 = vmatprep.mubr.f32.mxu0 0.0
      %1956 = vmatmul.mubr.f32.gmra.mrb[0].mxu0 %v1758
      %v1957 = vpop.f32.mrb[0].mxu0
      %v1958 = vadd.f32 0.0, %v1957
      %v1959 = vpop.f32.mrb[0].mxu0
      %1960 = vmatprep.mubr.f32.mxu0 0.0
      %1961 = vmatmul.mubr.f32.gmra.mrb[0].mxu0 %v1759
      %v1962 = vpop.f32.mrb[0].mxu0
      %v1963 = vadd.f32 0.0, %v1962
      %v1964 = vpop.f32.mrb[0].mxu0
      %1965 = vmatprep.mubr.f32.mxu0 0.0
      %1966 = vmatmul.mubr.f32.gmra.mrb[0].mxu0 %v1760
      %v1967 = vpop.f32.mrb[0].mxu0
      %v1968 = vadd.f32 0.0, %v1967
      %v1969 = vpop.f32.mrb[0].mxu0
      %1970 = vmatprep.mubr.f32.mxu0 0.0
      %1971 = vmatmul.mubr.f32.gmra.mrb[0].mxu0 %v1761
      %v1972 = vpop.f32.mrb[0].mxu0
      %v1973 = vadd.f32 0.0, %v1972
      %v1974 = vpop.f32.mrb[0].mxu0
      %1975 = vmatprep.mubr.f32.mxu0 0.0
      %1976 = vmatmul.mubr.f32.gmra.mrb[0].mxu0 %v1762
      %v1977 = vpop.f32.mrb[0].mxu0
      %v1978 = vadd.f32 0.0, %v1977
      %v1979 = vpop.f32.mrb[0].mxu0
      %1980 = vmatprep.mubr.f32.mxu0 0.0
      %1981 = vmatmul.mubr.f32.gmra.mrb[0].mxu0 %v1763
      %v1982 = vpop.f32.mrb[0].mxu0
      %v1983 = vadd.f32 0.0, %v1982
      %v1984 = vpop.f32.mrb[0].mxu0
      %1985 = vmatprep.mubr.f32.mxu0 0.0
      %1986 = vmatmul.mubr.f32.gmra.mrb[0].mxu0 %v1764
      %v1987 = vpop.f32.mrb[0].mxu0
      %v1988 = vadd.f32 0.0, %v1987
      %v1989 = vpop.f32.mrb[0].mxu0
      %1990 = vmatprep.mubr.f32.mxu0 0.0
      %1991 = vmatmul.mubr.f32.gmra.mrb[0].mxu0 %v1765
      %v1992 = vpop.f32.mrb[0].mxu0
      %v1993 = vadd.f32 0.0, %v1992
      %v1994 = vpop.f32.mrb[0].mxu0
      %1995 = vmatprep.mubr.f32.mxu0 0.0
      %1996 = vmatmul.mubr.f32.gmra.mrb[0].mxu0 %v1766
      %v1997 = vpop.f32.mrb[0].mxu0
      %v1998 = vadd.f32 0.0, %v1997
      %v1999 = vpop.f32.mrb[0].mxu0
      %2000 = vdwg.mxu0
      %v2001 = vsub.f32 %v1295, %v1923
      %v2002 = vsub.f32 %v1296, %v1928
      %v2003 = vsub.f32 %v1297, %v1933
      %v2004 = vsub.f32 %v1298, %v1938
      %v2005 = vsub.f32 %v1299, %v1943
      %v2006 = vsub.f32 %v1300, %v1948
      %v2007 = vsub.f32 %v1301, %v1953
      %v2008 = vsub.f32 %v1302, %v1958
      %v2009 = vsub.f32 %v1303, %v1963
      %v2010 = vsub.f32 %v1304, %v1968
      %v2011 = vsub.f32 %v1305, %v1973
      %v2012 = vsub.f32 %v1306, %v1978
      %v2013 = vsub.f32 %v1307, %v1983
      %v2014 = vsub.f32 %v1308, %v1988
      %v2015 = vsub.f32 %v1309, %v1993
      %v2016 = vsub.f32 %v1310, %v1998
      %v2017 = vmax.f32 %v2001, 0.0
      %v2018 = vmax.f32 %v2002, 0.0
      %v2019 = vmax.f32 %v2003, 0.0
      %v2020 = vmax.f32 %v2004, 0.0
      %v2021 = vmax.f32 %v2005, 0.0
      %v2022 = vmax.f32 %v2006, 0.0
      %v2023 = vmax.f32 %v2007, 0.0
      %v2024 = vmax.f32 %v2008, 0.0
      %v2025 = vmax.f32 %v2009, 0.0
      %v2026 = vmax.f32 %v2010, 0.0
      %v2027 = vmax.f32 %v2011, 0.0
      %v2028 = vmax.f32 %v2012, 0.0
      %v2029 = vmax.f32 %v2013, 0.0
      %v2030 = vmax.f32 %v2014, 0.0
      %v2031 = vmax.f32 %v2015, 0.0
      %v2032 = vmax.f32 %v2016, 0.0
      %2033 = vst.msk [vmem:[#allocation2] sm:$0xff] %vm508, %v2017
      %2034 = vst.msk [vmem:[#allocation2 + $0x8] sm:$0xff] %vm508, %v2018
      %2035 = vst.msk [vmem:[#allocation2 + $0x10] sm:$0xff] %vm508, %v2019
      %2036 = vst.msk [vmem:[#allocation2 + $0x18] sm:$0xff] %vm508, %v2020
      %2037 = vst.msk [vmem:[#allocation2 + $0x20] sm:$0xff] %vm508, %v2021
      %2038 = vst.msk [vmem:[#allocation2 + $0x28] sm:$0xff] %vm508, %v2022
      %2039 = vst.msk [vmem:[#allocation2 + $0x30] sm:$0xff] %vm508, %v2023
      %2040 = vst.msk [vmem:[#allocation2 + $0x38] sm:$0xff] %vm508, %v2024
      %2041 = vst.msk [vmem:[#allocation2 + $0x40] sm:$0xff] %vm508, %v2025
      %2042 = vst.msk [vmem:[#allocation2 + $0x48] sm:$0xff] %vm508, %v2026
      %2043 = vst.msk [vmem:[#allocation2 + $0x50] sm:$0xff] %vm508, %v2027
      %2044 = vst.msk [vmem:[#allocation2 + $0x58] sm:$0xff] %vm508, %v2028
      %2045 = vst.msk [vmem:[#allocation2 + $0x60] sm:$0xff] %vm508, %v2029
      %2046 = vst.msk [vmem:[#allocation2 + $0x68] sm:$0xff] %vm508, %v2030
      %2047 = vst.msk [vmem:[#allocation2 + $0x70] sm:$0xff] %vm508, %v2031
      %2048 = vst.msk [vmem:[#allocation2 + $0x78] sm:$0xff] %vm508, %v2032
      %v2049 = vmul.f32 %v1738, %v1744
      %v2050 = vsub.f32 %v1311, %v2049
      %v2051 = vmax.f32 %v2050, 0.0
      %2052 = vst [vmem:[#allocation3] sm:$0x1] %v2051
    $region24: #{emd_loss.1} parent=13 // pred_fallthru
      _
    %s2053 = smul.f32 %s507, 1024.0
    %p2054 = scmp.le.f32.partialorder %s2053, 104.0
    // Predicated region
    $region25: #{emd_loss.1} parent=13 // pred_check
      %p2055 = pneg %p2054
    $region26: #{emd_loss.1} parent=13 // pred_check_branch
      %2057 = sbr.rel (%p2055) target = $region28
    $region27: #{emd_loss.1} parent=13 // pred_region
      %v2058 = vld [vmem:[#allocation2] sm:$0xff]
      %v2059 = vld [vmem:[#allocation2 + $0x8] sm:$0xff]
      %v2060 = vld [vmem:[#allocation2 + $0x10] sm:$0xff]
      %v2061 = vld [vmem:[#allocation2 + $0x18] sm:$0xff]
      %v2062 = vld [vmem:[#allocation2 + $0x20] sm:$0xff]
      %v2063 = vld [vmem:[#allocation2 + $0x28] sm:$0xff]
      %v2064 = vld [vmem:[#allocation2 + $0x30] sm:$0xff]
      %v2065 = vld [vmem:[#allocation2 + $0x38] sm:$0xff]
      %v2066 = vld [vmem:[#allocation2 + $0x40] sm:$0xff]
      %v2067 = vld [vmem:[#allocation2 + $0x48] sm:$0xff]
      %v2068 = vld [vmem:[#allocation2 + $0x50] sm:$0xff]
      %v2069 = vld [vmem:[#allocation2 + $0x58] sm:$0xff]
      %v2070 = vld [vmem:[#allocation2 + $0x60] sm:$0xff]
      %v2071 = vld [vmem:[#allocation2 + $0x68] sm:$0xff]
      %v2072 = vld [vmem:[#allocation2 + $0x70] sm:$0xff]
      %v2073 = vld [vmem:[#allocation2 + $0x78] sm:$0xff]
      %v2074 = vld [vmem:[#allocation3] sm:$0x1]
      %v2075 = vmul.f32 %v378, %v378
      %v2076 = vmul.f32 %v385, %v385
      %v2077 = vmul.f32 %v392, %v392
      %v2078 = vmul.f32 %v399, %v399
      %v2079 = vmul.f32 %v406, %v406
      %v2080 = vmul.f32 %v413, %v413
      %v2081 = vmul.f32 %v420, %v420
      %v2082 = vmul.f32 %v427, %v427
      %v2083 = vmul.f32 %v434, %v434
      %v2084 = vmul.f32 %v441, %v441
      %v2085 = vmul.f32 %v448, %v448
      %v2086 = vmul.f32 %v455, %v455
      %v2087 = vmul.f32 %v462, %v462
      %v2088 = vmul.f32 %v469, %v469
      %v2089 = vmul.f32 %v476, %v476
      %v2090 = vmul.f32 %v483, %v483
      %v2091 = vmul.f32 %v2075, -1024.0
      %v2092 = vmul.f32 %v2076, -1024.0
      %v2093 = vmul.f32 %v2077, -1024.0
      %v2094 = vmul.f32 %v2078, -1024.0
      %v2095 = vmul.f32 %v2079, -1024.0
      %v2096 = vmul.f32 %v2080, -1024.0
      %v2097 = vmul.f32 %v2081, -1024.0
      %v2098 = vmul.f32 %v2082, -1024.0
      %v2099 = vmul.f32 %v2083, -1024.0
      %v2100 = vmul.f32 %v2084, -1024.0
      %v2101 = vmul.f32 %v2085, -1024.0
      %v2102 = vmul.f32 %v2086, -1024.0
      %v2103 = vmul.f32 %v2087, -1024.0
      %v2104 = vmul.f32 %v2088, -1024.0
      %v2105 = vmul.f32 %v2089, -1024.0
      %v2106 = vmul.f32 %v2090, -1024.0
      %v2107 = vmul.f32 %v2091, 1.442695
      %v2108 = vpow.pop %v2107
      %v2109 = vmul.f32 %v2092, 1.442695
      %v2110 = vpow.pop %v2109
      %v2111 = vmul.f32 %v2093, 1.442695
      %v2112 = vpow.pop %v2111
      %v2113 = vmul.f32 %v2094, 1.442695
      %v2114 = vpow.pop %v2113
      %v2115 = vmul.f32 %v2095, 1.442695
      %v2116 = vpow.pop %v2115
      %v2117 = vmul.f32 %v2096, 1.442695
      %v2118 = vpow.pop %v2117
      %v2119 = vmul.f32 %v2097, 1.442695
      %v2120 = vpow.pop %v2119
      %v2121 = vmul.f32 %v2098, 1.442695
      %v2122 = vpow.pop %v2121
      %v2123 = vmul.f32 %v2099, 1.442695
      %v2124 = vpow.pop %v2123
      %v2125 = vmul.f32 %v2100, 1.442695
      %v2126 = vpow.pop %v2125
      %v2127 = vmul.f32 %v2101, 1.442695
      %v2128 = vpow.pop %v2127
      %v2129 = vmul.f32 %v2102, 1.442695
      %v2130 = vpow.pop %v2129
      %v2131 = vmul.f32 %v2103, 1.442695
      %v2132 = vpow.pop %v2131
      %v2133 = vmul.f32 %v2104, 1.442695
      %v2134 = vpow.pop %v2133
      %v2135 = vmul.f32 %v2105, 1.442695
      %v2136 = vpow.pop %v2135
      %v2137 = vmul.f32 %v2106, 1.442695
      %v2138 = vpow.pop %v2137
      %v2140 = vlaneseq
      %v2141 = vshrl.u32 %v2140, 7
      %v2142 = vsub.s32 0, %v2141
      %v2143 = vrot.slane %v2074, %v2142
      %v2145 = vmul.f32 %v2108, %v2143
      %v2146 = vmul.f32 %v2110, %v2143
      %v2147 = vmul.f32 %v2112, %v2143
      %v2148 = vmul.f32 %v2114, %v2143
      %v2149 = vmul.f32 %v2116, %v2143
      %v2150 = vmul.f32 %v2118, %v2143
      %v2151 = vmul.f32 %v2120, %v2143
      %v2152 = vmul.f32 %v2122, %v2143
      %v2153 = vmul.f32 %v2124, %v2143
      %v2154 = vmul.f32 %v2126, %v2143
      %v2155 = vmul.f32 %v2128, %v2143
      %v2156 = vmul.f32 %v2130, %v2143
      %v2157 = vmul.f32 %v2132, %v2143
      %v2158 = vmul.f32 %v2134, %v2143
      %v2159 = vmul.f32 %v2136, %v2143
      %v2160 = vmul.f32 %v2138, %v2143
      %2161 = vmatprep.subr.mxu0 0.0
      %2162 = vmatpush1.msra.mxu0 1.0
      %2163 = vmatprep.subr.mxu0 0.0
      %2164 = vmatpush1.msra.mxu0 1.0
      %2165 = vmatprep.subr.mxu0 0.0
      %2166 = vmatpush1.msra.mxu0 1.0
      %2167 = vmatprep.subr.mxu0 0.0
      %2168 = vmatpush1.msra.mxu0 1.0
      %2169 = vmatprep.subr.mxu0 0.0
      %2170 = vmatpush1.msra.mxu0 1.0
      %2171 = vmatprep.subr.mxu0 0.0
      %2172 = vmatpush1.msra.mxu0 1.0
      %2173 = vmatprep.subr.mxu0 0.0
      %2174 = vmatpush1.msra.mxu0 1.0
      %2175 = vmatprep.subr.mxu0 0.0
      %2176 = vmatpush1.msra.mxu0 1.0
      %2177 = vmatprep.subr.mxu0 0.0
      %2178 = vmatpush1.msra.mxu0 1.0
      %2179 = vmatprep.subr.mxu0 0.0
      %2180 = vmatpush1.msra.mxu0 1.0
      %2181 = vmatprep.subr.mxu0 0.0
      %2182 = vmatpush1.msra.mxu0 1.0
      %2183 = vmatprep.subr.mxu0 0.0
      %2184 = vmatpush1.msra.mxu0 1.0
      %2185 = vmatprep.subr.mxu0 0.0
      %2186 = vmatpush1.msra.mxu0 1.0
      %2187 = vmatprep.subr.mxu0 0.0
      %2188 = vmatpush1.msra.mxu0 1.0
      %2189 = vmatprep.subr.mxu0 0.0
      %2190 = vmatpush1.msra.mxu0 1.0
      %2191 = vmatprep.subr.mxu0 0.0
      %2192 = vmatpush1.msra.mxu0 1.0
      %2193 = vmatprep.subr.mxu0 0.0
      %2194 = vmatpush1.msra.mxu0 0.0
      %2195 = vmatprep.subr.mxu0 0.0
      %2196 = vmatpush1.msra.mxu0 0.0
      %2197 = vmatprep.subr.mxu0 0.0
      %2198 = vmatpush1.msra.mxu0 0.0
      %2199 = vmatprep.subr.mxu0 0.0
      %2200 = vmatpush1.msra.mxu0 0.0
      %2201 = vmatprep.subr.mxu0 0.0
      %2202 = vmatpush1.msra.mxu0 0.0
      %2203 = vmatprep.subr.mxu0 0.0
      %2204 = vmatpush1.msra.mxu0 0.0
      %2205 = vmatprep.subr.mxu0 0.0
      %2206 = vmatpush1.msra.mxu0 0.0
      %2207 = vmatprep.subr.mxu0 0.0
      %2208 = vmatpush1.msra.mxu0 0.0
      %2209 = vmatprep.subr.mxu0 0.0
      %2210 = vmatpush1.msra.mxu0 0.0
      %2211 = vmatprep.subr.mxu0 0.0
      %2212 = vmatpush1.msra.mxu0 0.0
      %2213 = vmatprep.subr.mxu0 0.0
      %2214 = vmatpush1.msra.mxu0 0.0
      %2215 = vmatprep.subr.mxu0 0.0
      %2216 = vmatpush1.msra.mxu0 0.0
      %2217 = vmatprep.subr.mxu0 0.0
      %2218 = vmatpush1.msra.mxu0 0.0
      %2219 = vmatprep.subr.mxu0 0.0
      %2220 = vmatpush1.msra.mxu0 0.0
      %2221 = vmatprep.subr.mxu0 0.0
      %2222 = vmatpush1.msra.mxu0 0.0
      %2223 = vmatprep.subr.mxu0 0.0
      %2224 = vmatpush1.msra.mxu0 0.0
      %2225 = vmatprep.mubr.f32.mxu0 0.0
      %2226 = vmatmul.mubr.f32.gmra.mrb[0].mxu0 %v2145
      %v2227 = vpop.f32.mrb[0].mxu0
      %v2228 = vadd.f32 1e-09, %v2227
      %v2229 = vpop.f32.mrb[0].mxu0
      %2230 = vmatprep.mubr.f32.mxu0 0.0
      %2231 = vmatmul.mubr.f32.gmra.mrb[0].mxu0 %v2146
      %v2232 = vpop.f32.mrb[0].mxu0
      %v2233 = vadd.f32 1e-09, %v2232
      %v2234 = vpop.f32.mrb[0].mxu0
      %2235 = vmatprep.mubr.f32.mxu0 0.0
      %2236 = vmatmul.mubr.f32.gmra.mrb[0].mxu0 %v2147
      %v2237 = vpop.f32.mrb[0].mxu0
      %v2238 = vadd.f32 1e-09, %v2237
      %v2239 = vpop.f32.mrb[0].mxu0
      %2240 = vmatprep.mubr.f32.mxu0 0.0
      %2241 = vmatmul.mubr.f32.gmra.mrb[0].mxu0 %v2148
      %v2242 = vpop.f32.mrb[0].mxu0
      %v2243 = vadd.f32 1e-09, %v2242
      %v2244 = vpop.f32.mrb[0].mxu0
      %2245 = vmatprep.mubr.f32.mxu0 0.0
      %2246 = vmatmul.mubr.f32.gmra.mrb[0].mxu0 %v2149
      %v2247 = vpop.f32.mrb[0].mxu0
      %v2248 = vadd.f32 1e-09, %v2247
      %v2249 = vpop.f32.mrb[0].mxu0
      %2250 = vmatprep.mubr.f32.mxu0 0.0
      %2251 = vmatmul.mubr.f32.gmra.mrb[0].mxu0 %v2150
      %v2252 = vpop.f32.mrb[0].mxu0
      %v2253 = vadd.f32 1e-09, %v2252
      %v2254 = vpop.f32.mrb[0].mxu0
      %2255 = vmatprep.mubr.f32.mxu0 0.0
      %2256 = vmatmul.mubr.f32.gmra.mrb[0].mxu0 %v2151
      %v2257 = vpop.f32.mrb[0].mxu0
      %v2258 = vadd.f32 1e-09, %v2257
      %v2259 = vpop.f32.mrb[0].mxu0
      %2260 = vmatprep.mubr.f32.mxu0 0.0
      %2261 = vmatmul.mubr.f32.gmra.mrb[0].mxu0 %v2152
      %v2262 = vpop.f32.mrb[0].mxu0
      %v2263 = vadd.f32 1e-09, %v2262
      %v2264 = vpop.f32.mrb[0].mxu0
      %2265 = vmatprep.mubr.f32.mxu0 0.0
      %2266 = vmatmul.mubr.f32.gmra.mrb[0].mxu0 %v2153
      %v2267 = vpop.f32.mrb[0].mxu0
      %v2268 = vadd.f32 1e-09, %v2267
      %v2269 = vpop.f32.mrb[0].mxu0
      %2270 = vmatprep.mubr.f32.mxu0 0.0
      %2271 = vmatmul.mubr.f32.gmra.mrb[0].mxu0 %v2154
      %v2272 = vpop.f32.mrb[0].mxu0
      %v2273 = vadd.f32 1e-09, %v2272
      %v2274 = vpop.f32.mrb[0].mxu0
      %2275 = vmatprep.mubr.f32.mxu0 0.0
      %2276 = vmatmul.mubr.f32.gmra.mrb[0].mxu0 %v2155
      %v2277 = vpop.f32.mrb[0].mxu0
      %v2278 = vadd.f32 1e-09, %v2277
      %v2279 = vpop.f32.mrb[0].mxu0
      %2280 = vmatprep.mubr.f32.mxu0 0.0
      %2281 = vmatmul.mubr.f32.gmra.mrb[0].mxu0 %v2156
      %v2282 = vpop.f32.mrb[0].mxu0
      %v2283 = vadd.f32 1e-09, %v2282
      %v2284 = vpop.f32.mrb[0].mxu0
      %2285 = vmatprep.mubr.f32.mxu0 0.0
      %2286 = vmatmul.mubr.f32.gmra.mrb[0].mxu0 %v2157
      %v2287 = vpop.f32.mrb[0].mxu0
      %v2288 = vadd.f32 1e-09, %v2287
      %v2289 = vpop.f32.mrb[0].mxu0
      %2290 = vmatprep.mubr.f32.mxu0 0.0
      %2291 = vmatmul.mubr.f32.gmra.mrb[0].mxu0 %v2158
      %v2292 = vpop.f32.mrb[0].mxu0
      %v2293 = vadd.f32 1e-09, %v2292
      %v2294 = vpop.f32.mrb[0].mxu0
      %2295 = vmatprep.mubr.f32.mxu0 0.0
      %2296 = vmatmul.mubr.f32.gmra.mrb[0].mxu0 %v2159
      %v2297 = vpop.f32.mrb[0].mxu0
      %v2298 = vadd.f32 1e-09, %v2297
      %v2299 = vpop.f32.mrb[0].mxu0
      %2300 = vmatprep.mubr.f32.mxu0 0.0
      %2301 = vmatmul.mubr.f32.gmra.mrb[0].mxu0 %v2160
      %v2302 = vpop.f32.mrb[0].mxu0
      %v2303 = vadd.f32 1e-09, %v2302
      %v2304 = vpop.f32.mrb[0].mxu0
      %2305 = vdwg.mxu0
      %v2306 = vrcp.pop %v2228
      %v2307 = vmul.f32 %v2058, %v2306
      %v2308 = vrcp.pop %v2233
      %v2309 = vmul.f32 %v2059, %v2308
      %v2310 = vrcp.pop %v2238
      %v2311 = vmul.f32 %v2060, %v2310
      %v2312 = vrcp.pop %v2243
      %v2313 = vmul.f32 %v2061, %v2312
      %v2314 = vrcp.pop %v2248
      %v2315 = vmul.f32 %v2062, %v2314
      %v2316 = vrcp.pop %v2253
      %v2317 = vmul.f32 %v2063, %v2316
      %v2318 = vrcp.pop %v2258
      %v2319 = vmul.f32 %v2064, %v2318
      %v2320 = vrcp.pop %v2263
      %v2321 = vmul.f32 %v2065, %v2320
      %v2322 = vrcp.pop %v2268
      %v2323 = vmul.f32 %v2066, %v2322
      %v2324 = vrcp.pop %v2273
      %v2325 = vmul.f32 %v2067, %v2324
      %v2326 = vrcp.pop %v2278
      %v2327 = vmul.f32 %v2068, %v2326
      %v2328 = vrcp.pop %v2283
      %v2329 = vmul.f32 %v2069, %v2328
      %v2330 = vrcp.pop %v2288
      %v2331 = vmul.f32 %v2070, %v2330
      %v2332 = vrcp.pop %v2293
      %v2333 = vmul.f32 %v2071, %v2332
      %v2334 = vrcp.pop %v2298
      %v2335 = vmul.f32 %v2072, %v2334
      %v2336 = vrcp.pop %v2303
      %v2337 = vmul.f32 %v2073, %v2336
      %2339 = vset.pattern.permute.xlu0 0
      %2340 = vperm.xlu0 %2339, %v2307
      %v2341 = vpop.permute.xlu0 %2340
      %2344 = vset.pattern.permute.xlu0 0
      %2345 = vperm.xlu0 %2344, %v2309
      %v2346 = vpop.permute.xlu0 %2345
      %2349 = vset.pattern.permute.xlu0 0
      %2350 = vperm.xlu0 %2349, %v2311
      %v2351 = vpop.permute.xlu0 %2350
      %2354 = vset.pattern.permute.xlu0 0
      %2355 = vperm.xlu0 %2354, %v2313
      %v2356 = vpop.permute.xlu0 %2355
      %2359 = vset.pattern.permute.xlu0 0
      %2360 = vperm.xlu0 %2359, %v2315
      %v2361 = vpop.permute.xlu0 %2360
      %2364 = vset.pattern.permute.xlu0 0
      %2365 = vperm.xlu0 %2364, %v2317
      %v2366 = vpop.permute.xlu0 %2365
      %2369 = vset.pattern.permute.xlu0 0
      %2370 = vperm.xlu0 %2369, %v2319
      %v2371 = vpop.permute.xlu0 %2370
      %2374 = vset.pattern.permute.xlu0 0
      %2375 = vperm.xlu0 %2374, %v2321
      %v2376 = vpop.permute.xlu0 %2375
      %2379 = vset.pattern.permute.xlu0 0
      %2380 = vperm.xlu0 %2379, %v2323
      %v2381 = vpop.permute.xlu0 %2380
      %2384 = vset.pattern.permute.xlu0 0
      %2385 = vperm.xlu0 %2384, %v2325
      %v2386 = vpop.permute.xlu0 %2385
      %2389 = vset.pattern.permute.xlu0 0
      %2390 = vperm.xlu0 %2389, %v2327
      %v2391 = vpop.permute.xlu0 %2390
      %2394 = vset.pattern.permute.xlu0 0
      %2395 = vperm.xlu0 %2394, %v2329
      %v2396 = vpop.permute.xlu0 %2395
      %2399 = vset.pattern.permute.xlu0 0
      %2400 = vperm.xlu0 %2399, %v2331
      %v2401 = vpop.permute.xlu0 %2400
      %2404 = vset.pattern.permute.xlu0 0
      %2405 = vperm.xlu0 %2404, %v2333
      %v2406 = vpop.permute.xlu0 %2405
      %2409 = vset.pattern.permute.xlu0 0
      %2410 = vperm.xlu0 %2409, %v2335
      %v2411 = vpop.permute.xlu0 %2410
      %2414 = vset.pattern.permute.xlu0 0
      %2415 = vperm.xlu0 %2414, %v2337
      %v2416 = vpop.permute.xlu0 %2415
      %v2418 = vmul.f32 %v2145, %v2341
      %v2419 = vmul.f32 %v2146, %v2346
      %v2420 = vmul.f32 %v2147, %v2351
      %v2421 = vmul.f32 %v2148, %v2356
      %v2422 = vmul.f32 %v2149, %v2361
      %v2423 = vmul.f32 %v2150, %v2366
      %v2424 = vmul.f32 %v2151, %v2371
      %v2425 = vmul.f32 %v2152, %v2376
      %v2426 = vmul.f32 %v2153, %v2381
      %v2427 = vmul.f32 %v2154, %v2386
      %v2428 = vmul.f32 %v2155, %v2391
      %v2429 = vmul.f32 %v2156, %v2396
      %v2430 = vmul.f32 %v2157, %v2401
      %v2431 = vmul.f32 %v2158, %v2406
      %v2432 = vmul.f32 %v2159, %v2411
      %v2433 = vmul.f32 %v2160, %v2416
      %2434 = vmatprep.subr.mxu0 0.0
      %2435 = vmatpush1.msra.mxu0 %v2418
      %2436 = vmatprep.subr.mxu0 0.0
      %2437 = vmatpush1.msra.mxu0 %v2419
      %2438 = vmatprep.subr.mxu0 0.0
      %2439 = vmatpush1.msra.mxu0 %v2420
      %2440 = vmatprep.subr.mxu0 0.0
      %2441 = vmatpush1.msra.mxu0 %v2421
      %2442 = vmatprep.subr.mxu0 0.0
      %2443 = vmatpush1.msra.mxu0 %v2422
      %2444 = vmatprep.subr.mxu0 0.0
      %2445 = vmatpush1.msra.mxu0 %v2423
      %2446 = vmatprep.subr.mxu0 0.0
      %2447 = vmatpush1.msra.mxu0 %v2424
      %2448 = vmatprep.subr.mxu0 0.0
      %2449 = vmatpush1.msra.mxu0 %v2425
      %2450 = vmatprep.subr.mxu0 0.0
      %2451 = vmatpush1.msra.mxu0 %v2426
      %2452 = vmatprep.subr.mxu0 0.0
      %2453 = vmatpush1.msra.mxu0 %v2427
      %2454 = vmatprep.subr.mxu0 0.0
      %2455 = vmatpush1.msra.mxu0 %v2428
      %2456 = vmatprep.subr.mxu0 0.0
      %2457 = vmatpush1.msra.mxu0 %v2429
      %2458 = vmatprep.subr.mxu0 0.0
      %2459 = vmatpush1.msra.mxu0 %v2430
      %2460 = vmatprep.subr.mxu0 0.0
      %2461 = vmatpush1.msra.mxu0 %v2431
      %2462 = vmatprep.subr.mxu0 0.0
      %2463 = vmatpush1.msra.mxu0 %v2432
      %2464 = vmatprep.subr.mxu0 0.0
      %2465 = vmatpush1.msra.mxu0 %v2433
      %2466 = vmatprep.subr.mxu0 0.0
      %2467 = vmatpush1.msra.mxu0 0.0
      %2468 = vmatprep.subr.mxu0 0.0
      %2469 = vmatpush1.msra.mxu0 0.0
      %2470 = vmatprep.subr.mxu0 0.0
      %2471 = vmatpush1.msra.mxu0 0.0
      %2472 = vmatprep.subr.mxu0 0.0
      %2473 = vmatpush1.msra.mxu0 0.0
      %2474 = vmatprep.subr.mxu0 0.0
      %2475 = vmatpush1.msra.mxu0 0.0
      %2476 = vmatprep.subr.mxu0 0.0
      %2477 = vmatpush1.msra.mxu0 0.0
      %2478 = vmatprep.subr.mxu0 0.0
      %2479 = vmatpush1.msra.mxu0 0.0
      %2480 = vmatprep.subr.mxu0 0.0
      %2481 = vmatpush1.msra.mxu0 0.0
      %2482 = vmatprep.subr.mxu0 0.0
      %2483 = vmatpush1.msra.mxu0 0.0
      %2484 = vmatprep.subr.mxu0 0.0
      %2485 = vmatpush1.msra.mxu0 0.0
      %2486 = vmatprep.subr.mxu0 0.0
      %2487 = vmatpush1.msra.mxu0 0.0
      %2488 = vmatprep.subr.mxu0 0.0
      %2489 = vmatpush1.msra.mxu0 0.0
      %2490 = vmatprep.subr.mxu0 0.0
      %2491 = vmatpush1.msra.mxu0 0.0
      %2492 = vmatprep.subr.mxu0 0.0
      %2493 = vmatpush1.msra.mxu0 0.0
      %2494 = vmatprep.subr.mxu0 0.0
      %2495 = vmatpush1.msra.mxu0 0.0
      %2496 = vmatprep.subr.mxu0 0.0
      %2497 = vmatpush1.msra.mxu0 0.0
      %2498 = vmatprep.mubr.f32.mxu0 0.0
      %2499 = vmatmul.mubr.f32.gmra.mrb[0].mxu0 1.0
      %v2500 = vpop.f32.mrb[0].mxu0
      %v2501 = vadd.f32 0.0, %v2500
      %v2502 = vpop.f32.mrb[0].mxu0
      %2503 = vdwg.mxu0
      %v2504 = vadd.f32 %v2501, 1e-09
      %v2505 = vrcp.pop %v2504
      %v2506 = vmul.f32 %v2074, %v2505
      %v2507 = vmin.f32 %v2506, 1.0
      %v2509 = vlaneseq
      %v2510 = vshrl.u32 %v2509, 7
      %v2511 = vsub.s32 0, %v2510
      %v2512 = vrot.slane %v2507, %v2511
      %v2514 = vmul.f32 %v2418, %v2512
      %v2515 = vmul.f32 %v2419, %v2512
      %v2516 = vmul.f32 %v2420, %v2512
      %v2517 = vmul.f32 %v2421, %v2512
      %v2518 = vmul.f32 %v2422, %v2512
      %v2519 = vmul.f32 %v2423, %v2512
      %v2520 = vmul.f32 %v2424, %v2512
      %v2521 = vmul.f32 %v2425, %v2512
      %v2522 = vmul.f32 %v2426, %v2512
      %v2523 = vmul.f32 %v2427, %v2512
      %v2524 = vmul.f32 %v2428, %v2512
      %v2525 = vmul.f32 %v2429, %v2512
      %v2526 = vmul.f32 %v2430, %v2512
      %v2527 = vmul.f32 %v2431, %v2512
      %v2528 = vmul.f32 %v2432, %v2512
      %v2529 = vmul.f32 %v2433, %v2512
      %v2530 = vld [vmem:[#allocation4] sm:$0x1]
      %v2531 = vmul.f32 %v378, %v2514
      %v2532 = vmul.f32 %v385, %v2515
      %v2533 = vmul.f32 %v392, %v2516
      %v2534 = vmul.f32 %v399, %v2517
      %v2535 = vmul.f32 %v406, %v2518
      %v2536 = vmul.f32 %v413, %v2519
      %v2537 = vmul.f32 %v420, %v2520
      %v2538 = vmul.f32 %v427, %v2521
      %v2539 = vmul.f32 %v434, %v2522
      %v2540 = vmul.f32 %v441, %v2523
      %v2541 = vmul.f32 %v448, %v2524
      %v2542 = vmul.f32 %v455, %v2525
      %v2543 = vmul.f32 %v462, %v2526
      %v2544 = vmul.f32 %v469, %v2527
      %v2545 = vmul.f32 %v476, %v2528
      %v2546 = vmul.f32 %v483, %v2529
      %2547 = vmatprep.subr.mxu0 0.0
      %2548 = vmatpush1.msra.mxu0 %v2531
      %2549 = vmatprep.subr.mxu0 0.0
      %2550 = vmatpush1.msra.mxu0 %v2532
      %2551 = vmatprep.subr.mxu0 0.0
      %2552 = vmatpush1.msra.mxu0 %v2533
      %2553 = vmatprep.subr.mxu0 0.0
      %2554 = vmatpush1.msra.mxu0 %v2534
      %2555 = vmatprep.subr.mxu0 0.0
      %2556 = vmatpush1.msra.mxu0 %v2535
      %2557 = vmatprep.subr.mxu0 0.0
      %2558 = vmatpush1.msra.mxu0 %v2536
      %2559 = vmatprep.subr.mxu0 0.0
      %2560 = vmatpush1.msra.mxu0 %v2537
      %2561 = vmatprep.subr.mxu0 0.0
      %2562 = vmatpush1.msra.mxu0 %v2538
      %2563 = vmatprep.subr.mxu0 0.0
      %2564 = vmatpush1.msra.mxu0 %v2539
      %2565 = vmatprep.subr.mxu0 0.0
      %2566 = vmatpush1.msra.mxu0 %v2540
      %2567 = vmatprep.subr.mxu0 0.0
      %2568 = vmatpush1.msra.mxu0 %v2541
      %2569 = vmatprep.subr.mxu0 0.0
      %2570 = vmatpush1.msra.mxu0 %v2542
      %2571 = vmatprep.subr.mxu0 0.0
      %2572 = vmatpush1.msra.mxu0 %v2543
      %2573 = vmatprep.subr.mxu0 0.0
      %2574 = vmatpush1.msra.mxu0 %v2544
      %2575 = vmatprep.subr.mxu0 0.0
      %2576 = vmatpush1.msra.mxu0 %v2545
      %2577 = vmatprep.subr.mxu0 0.0
      %2578 = vmatpush1.msra.mxu0 %v2546
      %2579 = vmatprep.subr.mxu0 0.0
      %2580 = vmatpush1.msra.mxu0 0.0
      %2581 = vmatprep.subr.mxu0 0.0
      %2582 = vmatpush1.msra.mxu0 0.0
      %2583 = vmatprep.subr.mxu0 0.0
      %2584 = vmatpush1.msra.mxu0 0.0
      %2585 = vmatprep.subr.mxu0 0.0
      %2586 = vmatpush1.msra.mxu0 0.0
      %2587 = vmatprep.subr.mxu0 0.0
      %2588 = vmatpush1.msra.mxu0 0.0
      %2589 = vmatprep.subr.mxu0 0.0
      %2590 = vmatpush1.msra.mxu0 0.0
      %2591 = vmatprep.subr.mxu0 0.0
      %2592 = vmatpush1.msra.mxu0 0.0
      %2593 = vmatprep.subr.mxu0 0.0
      %2594 = vmatpush1.msra.mxu0 0.0
      %2595 = vmatprep.subr.mxu0 0.0
      %2596 = vmatpush1.msra.mxu0 0.0
      %2597 = vmatprep.subr.mxu0 0.0
      %2598 = vmatpush1.msra.mxu0 0.0
      %2599 = vmatprep.subr.mxu0 0.0
      %2600 = vmatpush1.msra.mxu0 0.0
      %2601 = vmatprep.subr.mxu0 0.0
      %2602 = vmatpush1.msra.mxu0 0.0
      %2603 = vmatprep.subr.mxu0 0.0
      %2604 = vmatpush1.msra.mxu0 0.0
      %2605 = vmatprep.subr.mxu0 0.0
      %2606 = vmatpush1.msra.mxu0 0.0
      %2607 = vmatprep.subr.mxu0 0.0
      %2608 = vmatpush1.msra.mxu0 0.0
      %2609 = vmatprep.subr.mxu0 0.0
      %2610 = vmatpush1.msra.mxu0 0.0
      %2611 = vmatprep.mubr.f32.mxu0 0.0
      %2612 = vmatmul.mubr.f32.gmra.mrb[0].mxu0 1.0
      %v2613 = vpop.f32.mrb[0].mxu0
      %v2614 = vadd.f32 0.0, %v2613
      %v2615 = vpop.f32.mrb[0].mxu0
      %2616 = vdwg.mxu0
      %v2617 = vadd.f32 %v2530, %v2614
      %2618 = vst [vmem:[#allocation4] sm:$0x1] %v2617
      %2619 = vmatprep.subr.mxu0 0.0
      %2620 = vmatpush1.msra.mxu0 1.0
      %2621 = vmatprep.subr.mxu0 0.0
      %2622 = vmatpush1.msra.mxu0 1.0
      %2623 = vmatprep.subr.mxu0 0.0
      %2624 = vmatpush1.msra.mxu0 1.0
      %2625 = vmatprep.subr.mxu0 0.0
      %2626 = vmatpush1.msra.mxu0 1.0
      %2627 = vmatprep.subr.mxu0 0.0
      %2628 = vmatpush1.msra.mxu0 1.0
      %2629 = vmatprep.subr.mxu0 0.0
      %2630 = vmatpush1.msra.mxu0 1.0
      %2631 = vmatprep.subr.mxu0 0.0
      %2632 = vmatpush1.msra.mxu0 1.0
      %2633 = vmatprep.subr.mxu0 0.0
      %2634 = vmatpush1.msra.mxu0 1.0
      %2635 = vmatprep.subr.mxu0 0.0
      %2636 = vmatpush1.msra.mxu0 1.0
      %2637 = vmatprep.subr.mxu0 0.0
      %2638 = vmatpush1.msra.mxu0 1.0
      %2639 = vmatprep.subr.mxu0 0.0
      %2640 = vmatpush1.msra.mxu0 1.0
      %2641 = vmatprep.subr.mxu0 0.0
      %2642 = vmatpush1.msra.mxu0 1.0
      %2643 = vmatprep.subr.mxu0 0.0
      %2644 = vmatpush1.msra.mxu0 1.0
      %2645 = vmatprep.subr.mxu0 0.0
      %2646 = vmatpush1.msra.mxu0 1.0
      %2647 = vmatprep.subr.mxu0 0.0
      %2648 = vmatpush1.msra.mxu0 1.0
      %2649 = vmatprep.subr.mxu0 0.0
      %2650 = vmatpush1.msra.mxu0 1.0
      %2651 = vmatprep.subr.mxu0 0.0
      %2652 = vmatpush1.msra.mxu0 0.0
      %2653 = vmatprep.subr.mxu0 0.0
      %2654 = vmatpush1.msra.mxu0 0.0
      %2655 = vmatprep.subr.mxu0 0.0
      %2656 = vmatpush1.msra.mxu0 0.0
      %2657 = vmatprep.subr.mxu0 0.0
      %2658 = vmatpush1.msra.mxu0 0.0
      %2659 = vmatprep.subr.mxu0 0.0
      %2660 = vmatpush1.msra.mxu0 0.0
      %2661 = vmatprep.subr.mxu0 0.0
      %2662 = vmatpush1.msra.mxu0 0.0
      %2663 = vmatprep.subr.mxu0 0.0
      %2664 = vmatpush1.msra.mxu0 0.0
      %2665 = vmatprep.subr.mxu0 0.0
      %2666 = vmatpush1.msra.mxu0 0.0
      %2667 = vmatprep.subr.mxu0 0.0
      %2668 = vmatpush1.msra.mxu0 0.0
      %2669 = vmatprep.subr.mxu0 0.0
      %2670 = vmatpush1.msra.mxu0 0.0
      %2671 = vmatprep.subr.mxu0 0.0
      %2672 = vmatpush1.msra.mxu0 0.0
      %2673 = vmatprep.subr.mxu0 0.0
      %2674 = vmatpush1.msra.mxu0 0.0
      %2675 = vmatprep.subr.mxu0 0.0
      %2676 = vmatpush1.msra.mxu0 0.0
      %2677 = vmatprep.subr.mxu0 0.0
      %2678 = vmatpush1.msra.mxu0 0.0
      %2679 = vmatprep.subr.mxu0 0.0
      %2680 = vmatpush1.msra.mxu0 0.0
      %2681 = vmatprep.subr.mxu0 0.0
      %2682 = vmatpush1.msra.mxu0 0.0
      %2683 = vmatprep.mubr.f32.mxu0 0.0
      %2684 = vmatmul.mubr.f32.gmra.mrb[0].mxu0 %v2514
      %v2685 = vpop.f32.mrb[0].mxu0
      %v2686 = vadd.f32 0.0, %v2685
      %v2687 = vpop.f32.mrb[0].mxu0
      %2688 = vmatprep.mubr.f32.mxu0 0.0
      %2689 = vmatmul.mubr.f32.gmra.mrb[0].mxu0 %v2515
      %v2690 = vpop.f32.mrb[0].mxu0
      %v2691 = vadd.f32 0.0, %v2690
      %v2692 = vpop.f32.mrb[0].mxu0
      %2693 = vmatprep.mubr.f32.mxu0 0.0
      %2694 = vmatmul.mubr.f32.gmra.mrb[0].mxu0 %v2516
      %v2695 = vpop.f32.mrb[0].mxu0
      %v2696 = vadd.f32 0.0, %v2695
      %v2697 = vpop.f32.mrb[0].mxu0
      %2698 = vmatprep.mubr.f32.mxu0 0.0
      %2699 = vmatmul.mubr.f32.gmra.mrb[0].mxu0 %v2517
      %v2700 = vpop.f32.mrb[0].mxu0
      %v2701 = vadd.f32 0.0, %v2700
      %v2702 = vpop.f32.mrb[0].mxu0
      %2703 = vmatprep.mubr.f32.mxu0 0.0
      %2704 = vmatmul.mubr.f32.gmra.mrb[0].mxu0 %v2518
      %v2705 = vpop.f32.mrb[0].mxu0
      %v2706 = vadd.f32 0.0, %v2705
      %v2707 = vpop.f32.mrb[0].mxu0
      %2708 = vmatprep.mubr.f32.mxu0 0.0
      %2709 = vmatmul.mubr.f32.gmra.mrb[0].mxu0 %v2519
      %v2710 = vpop.f32.mrb[0].mxu0
      %v2711 = vadd.f32 0.0, %v2710
      %v2712 = vpop.f32.mrb[0].mxu0
      %2713 = vmatprep.mubr.f32.mxu0 0.0
      %2714 = vmatmul.mubr.f32.gmra.mrb[0].mxu0 %v2520
      %v2715 = vpop.f32.mrb[0].mxu0
      %v2716 = vadd.f32 0.0, %v2715
      %v2717 = vpop.f32.mrb[0].mxu0
      %2718 = vmatprep.mubr.f32.mxu0 0.0
      %2719 = vmatmul.mubr.f32.gmra.mrb[0].mxu0 %v2521
      %v2720 = vpop.f32.mrb[0].mxu0
      %v2721 = vadd.f32 0.0, %v2720
      %v2722 = vpop.f32.mrb[0].mxu0
      %2723 = vmatprep.mubr.f32.mxu0 0.0
      %2724 = vmatmul.mubr.f32.gmra.mrb[0].mxu0 %v2522
      %v2725 = vpop.f32.mrb[0].mxu0
      %v2726 = vadd.f32 0.0, %v2725
      %v2727 = vpop.f32.mrb[0].mxu0
      %2728 = vmatprep.mubr.f32.mxu0 0.0
      %2729 = vmatmul.mubr.f32.gmra.mrb[0].mxu0 %v2523
      %v2730 = vpop.f32.mrb[0].mxu0
      %v2731 = vadd.f32 0.0, %v2730
      %v2732 = vpop.f32.mrb[0].mxu0
      %2733 = vmatprep.mubr.f32.mxu0 0.0
      %2734 = vmatmul.mubr.f32.gmra.mrb[0].mxu0 %v2524
      %v2735 = vpop.f32.mrb[0].mxu0
      %v2736 = vadd.f32 0.0, %v2735
      %v2737 = vpop.f32.mrb[0].mxu0
      %2738 = vmatprep.mubr.f32.mxu0 0.0
      %2739 = vmatmul.mubr.f32.gmra.mrb[0].mxu0 %v2525
      %v2740 = vpop.f32.mrb[0].mxu0
      %v2741 = vadd.f32 0.0, %v2740
      %v2742 = vpop.f32.mrb[0].mxu0
      %2743 = vmatprep.mubr.f32.mxu0 0.0
      %2744 = vmatmul.mubr.f32.gmra.mrb[0].mxu0 %v2526
      %v2745 = vpop.f32.mrb[0].mxu0
      %v2746 = vadd.f32 0.0, %v2745
      %v2747 = vpop.f32.mrb[0].mxu0
      %2748 = vmatprep.mubr.f32.mxu0 0.0
      %2749 = vmatmul.mubr.f32.gmra.mrb[0].mxu0 %v2527
      %v2750 = vpop.f32.mrb[0].mxu0
      %v2751 = vadd.f32 0.0, %v2750
      %v2752 = vpop.f32.mrb[0].mxu0
      %2753 = vmatprep.mubr.f32.mxu0 0.0
      %2754 = vmatmul.mubr.f32.gmra.mrb[0].mxu0 %v2528
      %v2755 = vpop.f32.mrb[0].mxu0
      %v2756 = vadd.f32 0.0, %v2755
      %v2757 = vpop.f32.mrb[0].mxu0
      %2758 = vmatprep.mubr.f32.mxu0 0.0
      %2759 = vmatmul.mubr.f32.gmra.mrb[0].mxu0 %v2529
      %v2760 = vpop.f32.mrb[0].mxu0
      %v2761 = vadd.f32 0.0, %v2760
      %v2762 = vpop.f32.mrb[0].mxu0
      %2763 = vdwg.mxu0
      %v2764 = vsub.f32 %v2058, %v2686
      %v2765 = vsub.f32 %v2059, %v2691
      %v2766 = vsub.f32 %v2060, %v2696
      %v2767 = vsub.f32 %v2061, %v2701
      %v2768 = vsub.f32 %v2062, %v2706
      %v2769 = vsub.f32 %v2063, %v2711
      %v2770 = vsub.f32 %v2064, %v2716
      %v2771 = vsub.f32 %v2065, %v2721
      %v2772 = vsub.f32 %v2066, %v2726
      %v2773 = vsub.f32 %v2067, %v2731
      %v2774 = vsub.f32 %v2068, %v2736
      %v2775 = vsub.f32 %v2069, %v2741
      %v2776 = vsub.f32 %v2070, %v2746
      %v2777 = vsub.f32 %v2071, %v2751
      %v2778 = vsub.f32 %v2072, %v2756
      %v2779 = vsub.f32 %v2073, %v2761
      %v2780 = vmax.f32 %v2764, 0.0
      %v2781 = vmax.f32 %v2765, 0.0
      %v2782 = vmax.f32 %v2766, 0.0
      %v2783 = vmax.f32 %v2767, 0.0
      %v2784 = vmax.f32 %v2768, 0.0
      %v2785 = vmax.f32 %v2769, 0.0
      %v2786 = vmax.f32 %v2770, 0.0
      %v2787 = vmax.f32 %v2771, 0.0
      %v2788 = vmax.f32 %v2772, 0.0
      %v2789 = vmax.f32 %v2773, 0.0
      %v2790 = vmax.f32 %v2774, 0.0
      %v2791 = vmax.f32 %v2775, 0.0
      %v2792 = vmax.f32 %v2776, 0.0
      %v2793 = vmax.f32 %v2777, 0.0
      %v2794 = vmax.f32 %v2778, 0.0
      %v2795 = vmax.f32 %v2779, 0.0
      %2796 = vst.msk [vmem:[#allocation2] sm:$0xff] %vm508, %v2780
      %2797 = vst.msk [vmem:[#allocation2 + $0x8] sm:$0xff] %vm508, %v2781
      %2798 = vst.msk [vmem:[#allocation2 + $0x10] sm:$0xff] %vm508, %v2782
      %2799 = vst.msk [vmem:[#allocation2 + $0x18] sm:$0xff] %vm508, %v2783
      %2800 = vst.msk [vmem:[#allocation2 + $0x20] sm:$0xff] %vm508, %v2784
      %2801 = vst.msk [vmem:[#allocation2 + $0x28] sm:$0xff] %vm508, %v2785
      %2802 = vst.msk [vmem:[#allocation2 + $0x30] sm:$0xff] %vm508, %v2786
      %2803 = vst.msk [vmem:[#allocation2 + $0x38] sm:$0xff] %vm508, %v2787
      %2804 = vst.msk [vmem:[#allocation2 + $0x40] sm:$0xff] %vm508, %v2788
      %2805 = vst.msk [vmem:[#allocation2 + $0x48] sm:$0xff] %vm508, %v2789
      %2806 = vst.msk [vmem:[#allocation2 + $0x50] sm:$0xff] %vm508, %v2790
      %2807 = vst.msk [vmem:[#allocation2 + $0x58] sm:$0xff] %vm508, %v2791
      %2808 = vst.msk [vmem:[#allocation2 + $0x60] sm:$0xff] %vm508, %v2792
      %2809 = vst.msk [vmem:[#allocation2 + $0x68] sm:$0xff] %vm508, %v2793
      %2810 = vst.msk [vmem:[#allocation2 + $0x70] sm:$0xff] %vm508, %v2794
      %2811 = vst.msk [vmem:[#allocation2 + $0x78] sm:$0xff] %vm508, %v2795
      %v2812 = vmul.f32 %v2501, %v2507
      %v2813 = vsub.f32 %v2074, %v2812
      %v2814 = vmax.f32 %v2813, 0.0
      %2815 = vst [vmem:[#allocation3] sm:$0x1] %v2814
    $region28: #{emd_loss.1} parent=13 // pred_fallthru
      _
    %s2816 = smul.f32 %s507, 256.0
    %p2817 = scmp.le.f32.partialorder %s2816, 104.0
    // Predicated region
    $region29: #{emd_loss.1} parent=13 // pred_check
      %p2818 = pneg %p2817
    $region30: #{emd_loss.1} parent=13 // pred_check_branch
      %2820 = sbr.rel (%p2818) target = $region32
    $region31: #{emd_loss.1} parent=13 // pred_region
      %v2821 = vld [vmem:[#allocation2] sm:$0xff]
      %v2822 = vld [vmem:[#allocation2 + $0x8] sm:$0xff]
      %v2823 = vld [vmem:[#allocation2 + $0x10] sm:$0xff]
      %v2824 = vld [vmem:[#allocation2 + $0x18] sm:$0xff]
      %v2825 = vld [vmem:[#allocation2 + $0x20] sm:$0xff]
      %v2826 = vld [vmem:[#allocation2 + $0x28] sm:$0xff]
      %v2827 = vld [vmem:[#allocation2 + $0x30] sm:$0xff]
      %v2828 = vld [vmem:[#allocation2 + $0x38] sm:$0xff]
      %v2829 = vld [vmem:[#allocation2 + $0x40] sm:$0xff]
      %v2830 = vld [vmem:[#allocation2 + $0x48] sm:$0xff]
      %v2831 = vld [vmem:[#allocation2 + $0x50] sm:$0xff]
      %v2832 = vld [vmem:[#allocation2 + $0x58] sm:$0xff]
      %v2833 = vld [vmem:[#allocation2 + $0x60] sm:$0xff]
      %v2834 = vld [vmem:[#allocation2 + $0x68] sm:$0xff]
      %v2835 = vld [vmem:[#allocation2 + $0x70] sm:$0xff]
      %v2836 = vld [vmem:[#allocation2 + $0x78] sm:$0xff]
      %v2837 = vld [vmem:[#allocation3] sm:$0x1]
      %v2838 = vmul.f32 %v378, %v378
      %v2839 = vmul.f32 %v385, %v385
      %v2840 = vmul.f32 %v392, %v392
      %v2841 = vmul.f32 %v399, %v399
      %v2842 = vmul.f32 %v406, %v406
      %v2843 = vmul.f32 %v413, %v413
      %v2844 = vmul.f32 %v420, %v420
      %v2845 = vmul.f32 %v427, %v427
      %v2846 = vmul.f32 %v434, %v434
      %v2847 = vmul.f32 %v441, %v441
      %v2848 = vmul.f32 %v448, %v448
      %v2849 = vmul.f32 %v455, %v455
      %v2850 = vmul.f32 %v462, %v462
      %v2851 = vmul.f32 %v469, %v469
      %v2852 = vmul.f32 %v476, %v476
      %v2853 = vmul.f32 %v483, %v483
      %v2854 = vmul.f32 %v2838, -256.0
      %v2855 = vmul.f32 %v2839, -256.0
      %v2856 = vmul.f32 %v2840, -256.0
      %v2857 = vmul.f32 %v2841, -256.0
      %v2858 = vmul.f32 %v2842, -256.0
      %v2859 = vmul.f32 %v2843, -256.0
      %v2860 = vmul.f32 %v2844, -256.0
      %v2861 = vmul.f32 %v2845, -256.0
      %v2862 = vmul.f32 %v2846, -256.0
      %v2863 = vmul.f32 %v2847, -256.0
      %v2864 = vmul.f32 %v2848, -256.0
      %v2865 = vmul.f32 %v2849, -256.0
      %v2866 = vmul.f32 %v2850, -256.0
      %v2867 = vmul.f32 %v2851, -256.0
      %v2868 = vmul.f32 %v2852, -256.0
      %v2869 = vmul.f32 %v2853, -256.0
      %v2870 = vmul.f32 %v2854, 1.442695
      %v2871 = vpow.pop %v2870
      %v2872 = vmul.f32 %v2855, 1.442695
      %v2873 = vpow.pop %v2872
      %v2874 = vmul.f32 %v2856, 1.442695
      %v2875 = vpow.pop %v2874
      %v2876 = vmul.f32 %v2857, 1.442695
      %v2877 = vpow.pop %v2876
      %v2878 = vmul.f32 %v2858, 1.442695
      %v2879 = vpow.pop %v2878
      %v2880 = vmul.f32 %v2859, 1.442695
      %v2881 = vpow.pop %v2880
      %v2882 = vmul.f32 %v2860, 1.442695
      %v2883 = vpow.pop %v2882
      %v2884 = vmul.f32 %v2861, 1.442695
      %v2885 = vpow.pop %v2884
      %v2886 = vmul.f32 %v2862, 1.442695
      %v2887 = vpow.pop %v2886
      %v2888 = vmul.f32 %v2863, 1.442695
      %v2889 = vpow.pop %v2888
      %v2890 = vmul.f32 %v2864, 1.442695
      %v2891 = vpow.pop %v2890
      %v2892 = vmul.f32 %v2865, 1.442695
      %v2893 = vpow.pop %v2892
      %v2894 = vmul.f32 %v2866, 1.442695
      %v2895 = vpow.pop %v2894
      %v2896 = vmul.f32 %v2867, 1.442695
      %v2897 = vpow.pop %v2896
      %v2898 = vmul.f32 %v2868, 1.442695
      %v2899 = vpow.pop %v2898
      %v2900 = vmul.f32 %v2869, 1.442695
      %v2901 = vpow.pop %v2900
      %v2903 = vlaneseq
      %v2904 = vshrl.u32 %v2903, 7
      %v2905 = vsub.s32 0, %v2904
      %v2906 = vrot.slane %v2837, %v2905
      %v2908 = vmul.f32 %v2871, %v2906
      %v2909 = vmul.f32 %v2873, %v2906
      %v2910 = vmul.f32 %v2875, %v2906
      %v2911 = vmul.f32 %v2877, %v2906
      %v2912 = vmul.f32 %v2879, %v2906
      %v2913 = vmul.f32 %v2881, %v2906
      %v2914 = vmul.f32 %v2883, %v2906
      %v2915 = vmul.f32 %v2885, %v2906
      %v2916 = vmul.f32 %v2887, %v2906
      %v2917 = vmul.f32 %v2889, %v2906
      %v2918 = vmul.f32 %v2891, %v2906
      %v2919 = vmul.f32 %v2893, %v2906
      %v2920 = vmul.f32 %v2895, %v2906
      %v2921 = vmul.f32 %v2897, %v2906
      %v2922 = vmul.f32 %v2899, %v2906
      %v2923 = vmul.f32 %v2901, %v2906
      %2924 = vmatprep.subr.mxu0 0.0
      %2925 = vmatpush1.msra.mxu0 1.0
      %2926 = vmatprep.subr.mxu0 0.0
      %2927 = vmatpush1.msra.mxu0 1.0
      %2928 = vmatprep.subr.mxu0 0.0
      %2929 = vmatpush1.msra.mxu0 1.0
      %2930 = vmatprep.subr.mxu0 0.0
      %2931 = vmatpush1.msra.mxu0 1.0
      %2932 = vmatprep.subr.mxu0 0.0
      %2933 = vmatpush1.msra.mxu0 1.0
      %2934 = vmatprep.subr.mxu0 0.0
      %2935 = vmatpush1.msra.mxu0 1.0
      %2936 = vmatprep.subr.mxu0 0.0
      %2937 = vmatpush1.msra.mxu0 1.0
      %2938 = vmatprep.subr.mxu0 0.0
      %2939 = vmatpush1.msra.mxu0 1.0
      %2940 = vmatprep.subr.mxu0 0.0
      %2941 = vmatpush1.msra.mxu0 1.0
      %2942 = vmatprep.subr.mxu0 0.0
      %2943 = vmatpush1.msra.mxu0 1.0
      %2944 = vmatprep.subr.mxu0 0.0
      %2945 = vmatpush1.msra.mxu0 1.0
      %2946 = vmatprep.subr.mxu0 0.0
      %2947 = vmatpush1.msra.mxu0 1.0
      %2948 = vmatprep.subr.mxu0 0.0
      %2949 = vmatpush1.msra.mxu0 1.0
      %2950 = vmatprep.subr.mxu0 0.0
      %2951 = vmatpush1.msra.mxu0 1.0
      %2952 = vmatprep.subr.mxu0 0.0
      %2953 = vmatpush1.msra.mxu0 1.0
      %2954 = vmatprep.subr.mxu0 0.0
      %2955 = vmatpush1.msra.mxu0 1.0
      %2956 = vmatprep.subr.mxu0 0.0
      %2957 = vmatpush1.msra.mxu0 0.0
      %2958 = vmatprep.subr.mxu0 0.0
      %2959 = vmatpush1.msra.mxu0 0.0
      %2960 = vmatprep.subr.mxu0 0.0
      %2961 = vmatpush1.msra.mxu0 0.0
      %2962 = vmatprep.subr.mxu0 0.0
      %2963 = vmatpush1.msra.mxu0 0.0
      %2964 = vmatprep.subr.mxu0 0.0
      %2965 = vmatpush1.msra.mxu0 0.0
      %2966 = vmatprep.subr.mxu0 0.0
      %2967 = vmatpush1.msra.mxu0 0.0
      %2968 = vmatprep.subr.mxu0 0.0
      %2969 = vmatpush1.msra.mxu0 0.0
      %2970 = vmatprep.subr.mxu0 0.0
      %2971 = vmatpush1.msra.mxu0 0.0
      %2972 = vmatprep.subr.mxu0 0.0
      %2973 = vmatpush1.msra.mxu0 0.0
      %2974 = vmatprep.subr.mxu0 0.0
      %2975 = vmatpush1.msra.mxu0 0.0
      %2976 = vmatprep.subr.mxu0 0.0
      %2977 = vmatpush1.msra.mxu0 0.0
      %2978 = vmatprep.subr.mxu0 0.0
      %2979 = vmatpush1.msra.mxu0 0.0
      %2980 = vmatprep.subr.mxu0 0.0
      %2981 = vmatpush1.msra.mxu0 0.0
      %2982 = vmatprep.subr.mxu0 0.0
      %2983 = vmatpush1.msra.mxu0 0.0
      %2984 = vmatprep.subr.mxu0 0.0
      %2985 = vmatpush1.msra.mxu0 0.0
      %2986 = vmatprep.subr.mxu0 0.0
      %2987 = vmatpush1.msra.mxu0 0.0
      %2988 = vmatprep.mubr.f32.mxu0 0.0
      %2989 = vmatmul.mubr.f32.gmra.mrb[0].mxu0 %v2908
      %v2990 = vpop.f32.mrb[0].mxu0
      %v2991 = vadd.f32 1e-09, %v2990
      %v2992 = vpop.f32.mrb[0].mxu0
      %2993 = vmatprep.mubr.f32.mxu0 0.0
      %2994 = vmatmul.mubr.f32.gmra.mrb[0].mxu0 %v2909
      %v2995 = vpop.f32.mrb[0].mxu0
      %v2996 = vadd.f32 1e-09, %v2995
      %v2997 = vpop.f32.mrb[0].mxu0
      %2998 = vmatprep.mubr.f32.mxu0 0.0
      %2999 = vmatmul.mubr.f32.gmra.mrb[0].mxu0 %v2910
      %v3000 = vpop.f32.mrb[0].mxu0
      %v3001 = vadd.f32 1e-09, %v3000
      %v3002 = vpop.f32.mrb[0].mxu0
      %3003 = vmatprep.mubr.f32.mxu0 0.0
      %3004 = vmatmul.mubr.f32.gmra.mrb[0].mxu0 %v2911
      %v3005 = vpop.f32.mrb[0].mxu0
      %v3006 = vadd.f32 1e-09, %v3005
      %v3007 = vpop.f32.mrb[0].mxu0
      %3008 = vmatprep.mubr.f32.mxu0 0.0
      %3009 = vmatmul.mubr.f32.gmra.mrb[0].mxu0 %v2912
      %v3010 = vpop.f32.mrb[0].mxu0
      %v3011 = vadd.f32 1e-09, %v3010
      %v3012 = vpop.f32.mrb[0].mxu0
      %3013 = vmatprep.mubr.f32.mxu0 0.0
      %3014 = vmatmul.mubr.f32.gmra.mrb[0].mxu0 %v2913
      %v3015 = vpop.f32.mrb[0].mxu0
      %v3016 = vadd.f32 1e-09, %v3015
      %v3017 = vpop.f32.mrb[0].mxu0
      %3018 = vmatprep.mubr.f32.mxu0 0.0
      %3019 = vmatmul.mubr.f32.gmra.mrb[0].mxu0 %v2914
      %v3020 = vpop.f32.mrb[0].mxu0
      %v3021 = vadd.f32 1e-09, %v3020
      %v3022 = vpop.f32.mrb[0].mxu0
      %3023 = vmatprep.mubr.f32.mxu0 0.0
      %3024 = vmatmul.mubr.f32.gmra.mrb[0].mxu0 %v2915
      %v3025 = vpop.f32.mrb[0].mxu0
      %v3026 = vadd.f32 1e-09, %v3025
      %v3027 = vpop.f32.mrb[0].mxu0
      %3028 = vmatprep.mubr.f32.mxu0 0.0
      %3029 = vmatmul.mubr.f32.gmra.mrb[0].mxu0 %v2916
      %v3030 = vpop.f32.mrb[0].mxu0
      %v3031 = vadd.f32 1e-09, %v3030
      %v3032 = vpop.f32.mrb[0].mxu0
      %3033 = vmatprep.mubr.f32.mxu0 0.0
      %3034 = vmatmul.mubr.f32.gmra.mrb[0].mxu0 %v2917
      %v3035 = vpop.f32.mrb[0].mxu0
      %v3036 = vadd.f32 1e-09, %v3035
      %v3037 = vpop.f32.mrb[0].mxu0
      %3038 = vmatprep.mubr.f32.mxu0 0.0
      %3039 = vmatmul.mubr.f32.gmra.mrb[0].mxu0 %v2918
      %v3040 = vpop.f32.mrb[0].mxu0
      %v3041 = vadd.f32 1e-09, %v3040
      %v3042 = vpop.f32.mrb[0].mxu0
      %3043 = vmatprep.mubr.f32.mxu0 0.0
      %3044 = vmatmul.mubr.f32.gmra.mrb[0].mxu0 %v2919
      %v3045 = vpop.f32.mrb[0].mxu0
      %v3046 = vadd.f32 1e-09, %v3045
      %v3047 = vpop.f32.mrb[0].mxu0
      %3048 = vmatprep.mubr.f32.mxu0 0.0
      %3049 = vmatmul.mubr.f32.gmra.mrb[0].mxu0 %v2920
      %v3050 = vpop.f32.mrb[0].mxu0
      %v3051 = vadd.f32 1e-09, %v3050
      %v3052 = vpop.f32.mrb[0].mxu0
      %3053 = vmatprep.mubr.f32.mxu0 0.0
      %3054 = vmatmul.mubr.f32.gmra.mrb[0].mxu0 %v2921
      %v3055 = vpop.f32.mrb[0].mxu0
      %v3056 = vadd.f32 1e-09, %v3055
      %v3057 = vpop.f32.mrb[0].mxu0
      %3058 = vmatprep.mubr.f32.mxu0 0.0
      %3059 = vmatmul.mubr.f32.gmra.mrb[0].mxu0 %v2922
      %v3060 = vpop.f32.mrb[0].mxu0
      %v3061 = vadd.f32 1e-09, %v3060
      %v3062 = vpop.f32.mrb[0].mxu0
      %3063 = vmatprep.mubr.f32.mxu0 0.0
      %3064 = vmatmul.mubr.f32.gmra.mrb[0].mxu0 %v2923
      %v3065 = vpop.f32.mrb[0].mxu0
      %v3066 = vadd.f32 1e-09, %v3065
      %v3067 = vpop.f32.mrb[0].mxu0
      %3068 = vdwg.mxu0
      %v3069 = vrcp.pop %v2991
      %v3070 = vmul.f32 %v2821, %v3069
      %v3071 = vrcp.pop %v2996
      %v3072 = vmul.f32 %v2822, %v3071
      %v3073 = vrcp.pop %v3001
      %v3074 = vmul.f32 %v2823, %v3073
      %v3075 = vrcp.pop %v3006
      %v3076 = vmul.f32 %v2824, %v3075
      %v3077 = vrcp.pop %v3011
      %v3078 = vmul.f32 %v2825, %v3077
      %v3079 = vrcp.pop %v3016
      %v3080 = vmul.f32 %v2826, %v3079
      %v3081 = vrcp.pop %v3021
      %v3082 = vmul.f32 %v2827, %v3081
      %v3083 = vrcp.pop %v3026
      %v3084 = vmul.f32 %v2828, %v3083
      %v3085 = vrcp.pop %v3031
      %v3086 = vmul.f32 %v2829, %v3085
      %v3087 = vrcp.pop %v3036
      %v3088 = vmul.f32 %v2830, %v3087
      %v3089 = vrcp.pop %v3041
      %v3090 = vmul.f32 %v2831, %v3089
      %v3091 = vrcp.pop %v3046
      %v3092 = vmul.f32 %v2832, %v3091
      %v3093 = vrcp.pop %v3051
      %v3094 = vmul.f32 %v2833, %v3093
      %v3095 = vrcp.pop %v3056
      %v3096 = vmul.f32 %v2834, %v3095
      %v3097 = vrcp.pop %v3061
      %v3098 = vmul.f32 %v2835, %v3097
      %v3099 = vrcp.pop %v3066
      %v3100 = vmul.f32 %v2836, %v3099
      %3102 = vset.pattern.permute.xlu0 0
      %3103 = vperm.xlu0 %3102, %v3070
      %v3104 = vpop.permute.xlu0 %3103
      %3107 = vset.pattern.permute.xlu0 0
      %3108 = vperm.xlu0 %3107, %v3072
      %v3109 = vpop.permute.xlu0 %3108
      %3112 = vset.pattern.permute.xlu0 0
      %3113 = vperm.xlu0 %3112, %v3074
      %v3114 = vpop.permute.xlu0 %3113
      %3117 = vset.pattern.permute.xlu0 0
      %3118 = vperm.xlu0 %3117, %v3076
      %v3119 = vpop.permute.xlu0 %3118
      %3122 = vset.pattern.permute.xlu0 0
      %3123 = vperm.xlu0 %3122, %v3078
      %v3124 = vpop.permute.xlu0 %3123
      %3127 = vset.pattern.permute.xlu0 0
      %3128 = vperm.xlu0 %3127, %v3080
      %v3129 = vpop.permute.xlu0 %3128
      %3132 = vset.pattern.permute.xlu0 0
      %3133 = vperm.xlu0 %3132, %v3082
      %v3134 = vpop.permute.xlu0 %3133
      %3137 = vset.pattern.permute.xlu0 0
      %3138 = vperm.xlu0 %3137, %v3084
      %v3139 = vpop.permute.xlu0 %3138
      %3142 = vset.pattern.permute.xlu0 0
      %3143 = vperm.xlu0 %3142, %v3086
      %v3144 = vpop.permute.xlu0 %3143
      %3147 = vset.pattern.permute.xlu0 0
      %3148 = vperm.xlu0 %3147, %v3088
      %v3149 = vpop.permute.xlu0 %3148
      %3152 = vset.pattern.permute.xlu0 0
      %3153 = vperm.xlu0 %3152, %v3090
      %v3154 = vpop.permute.xlu0 %3153
      %3157 = vset.pattern.permute.xlu0 0
      %3158 = vperm.xlu0 %3157, %v3092
      %v3159 = vpop.permute.xlu0 %3158
      %3162 = vset.pattern.permute.xlu0 0
      %3163 = vperm.xlu0 %3162, %v3094
      %v3164 = vpop.permute.xlu0 %3163
      %3167 = vset.pattern.permute.xlu0 0
      %3168 = vperm.xlu0 %3167, %v3096
      %v3169 = vpop.permute.xlu0 %3168
      %3172 = vset.pattern.permute.xlu0 0
      %3173 = vperm.xlu0 %3172, %v3098
      %v3174 = vpop.permute.xlu0 %3173
      %3177 = vset.pattern.permute.xlu0 0
      %3178 = vperm.xlu0 %3177, %v3100
      %v3179 = vpop.permute.xlu0 %3178
      %v3181 = vmul.f32 %v2908, %v3104
      %v3182 = vmul.f32 %v2909, %v3109
      %v3183 = vmul.f32 %v2910, %v3114
      %v3184 = vmul.f32 %v2911, %v3119
      %v3185 = vmul.f32 %v2912, %v3124
      %v3186 = vmul.f32 %v2913, %v3129
      %v3187 = vmul.f32 %v2914, %v3134
      %v3188 = vmul.f32 %v2915, %v3139
      %v3189 = vmul.f32 %v2916, %v3144
      %v3190 = vmul.f32 %v2917, %v3149
      %v3191 = vmul.f32 %v2918, %v3154
      %v3192 = vmul.f32 %v2919, %v3159
      %v3193 = vmul.f32 %v2920, %v3164
      %v3194 = vmul.f32 %v2921, %v3169
      %v3195 = vmul.f32 %v2922, %v3174
      %v3196 = vmul.f32 %v2923, %v3179
      %3197 = vmatprep.subr.mxu0 0.0
      %3198 = vmatpush1.msra.mxu0 %v3181
      %3199 = vmatprep.subr.mxu0 0.0
      %3200 = vmatpush1.msra.mxu0 %v3182
      %3201 = vmatprep.subr.mxu0 0.0
      %3202 = vmatpush1.msra.mxu0 %v3183
      %3203 = vmatprep.subr.mxu0 0.0
      %3204 = vmatpush1.msra.mxu0 %v3184
      %3205 = vmatprep.subr.mxu0 0.0
      %3206 = vmatpush1.msra.mxu0 %v3185
      %3207 = vmatprep.subr.mxu0 0.0
      %3208 = vmatpush1.msra.mxu0 %v3186
      %3209 = vmatprep.subr.mxu0 0.0
      %3210 = vmatpush1.msra.mxu0 %v3187
      %3211 = vmatprep.subr.mxu0 0.0
      %3212 = vmatpush1.msra.mxu0 %v3188
      %3213 = vmatprep.subr.mxu0 0.0
      %3214 = vmatpush1.msra.mxu0 %v3189
      %3215 = vmatprep.subr.mxu0 0.0
      %3216 = vmatpush1.msra.mxu0 %v3190
      %3217 = vmatprep.subr.mxu0 0.0
      %3218 = vmatpush1.msra.mxu0 %v3191
      %3219 = vmatprep.subr.mxu0 0.0
      %3220 = vmatpush1.msra.mxu0 %v3192
      %3221 = vmatprep.subr.mxu0 0.0
      %3222 = vmatpush1.msra.mxu0 %v3193
      %3223 = vmatprep.subr.mxu0 0.0
      %3224 = vmatpush1.msra.mxu0 %v3194
      %3225 = vmatprep.subr.mxu0 0.0
      %3226 = vmatpush1.msra.mxu0 %v3195
      %3227 = vmatprep.subr.mxu0 0.0
      %3228 = vmatpush1.msra.mxu0 %v3196
      %3229 = vmatprep.subr.mxu0 0.0
      %3230 = vmatpush1.msra.mxu0 0.0
      %3231 = vmatprep.subr.mxu0 0.0
      %3232 = vmatpush1.msra.mxu0 0.0
      %3233 = vmatprep.subr.mxu0 0.0
      %3234 = vmatpush1.msra.mxu0 0.0
      %3235 = vmatprep.subr.mxu0 0.0
      %3236 = vmatpush1.msra.mxu0 0.0
      %3237 = vmatprep.subr.mxu0 0.0
      %3238 = vmatpush1.msra.mxu0 0.0
      %3239 = vmatprep.subr.mxu0 0.0
      %3240 = vmatpush1.msra.mxu0 0.0
      %3241 = vmatprep.subr.mxu0 0.0
      %3242 = vmatpush1.msra.mxu0 0.0
      %3243 = vmatprep.subr.mxu0 0.0
      %3244 = vmatpush1.msra.mxu0 0.0
      %3245 = vmatprep.subr.mxu0 0.0
      %3246 = vmatpush1.msra.mxu0 0.0
      %3247 = vmatprep.subr.mxu0 0.0
      %3248 = vmatpush1.msra.mxu0 0.0
      %3249 = vmatprep.subr.mxu0 0.0
      %3250 = vmatpush1.msra.mxu0 0.0
      %3251 = vmatprep.subr.mxu0 0.0
      %3252 = vmatpush1.msra.mxu0 0.0
      %3253 = vmatprep.subr.mxu0 0.0
      %3254 = vmatpush1.msra.mxu0 0.0
      %3255 = vmatprep.subr.mxu0 0.0
      %3256 = vmatpush1.msra.mxu0 0.0
      %3257 = vmatprep.subr.mxu0 0.0
      %3258 = vmatpush1.msra.mxu0 0.0
      %3259 = vmatprep.subr.mxu0 0.0
      %3260 = vmatpush1.msra.mxu0 0.0
      %3261 = vmatprep.mubr.f32.mxu0 0.0
      %3262 = vmatmul.mubr.f32.gmra.mrb[0].mxu0 1.0
      %v3263 = vpop.f32.mrb[0].mxu0
      %v3264 = vadd.f32 0.0, %v3263
      %v3265 = vpop.f32.mrb[0].mxu0
      %3266 = vdwg.mxu0
      %v3267 = vadd.f32 %v3264, 1e-09
      %v3268 = vrcp.pop %v3267
      %v3269 = vmul.f32 %v2837, %v3268
      %v3270 = vmin.f32 %v3269, 1.0
      %v3272 = vlaneseq
      %v3273 = vshrl.u32 %v3272, 7
      %v3274 = vsub.s32 0, %v3273
      %v3275 = vrot.slane %v3270, %v3274
      %v3277 = vmul.f32 %v3181, %v3275
      %v3278 = vmul.f32 %v3182, %v3275
      %v3279 = vmul.f32 %v3183, %v3275
      %v3280 = vmul.f32 %v3184, %v3275
      %v3281 = vmul.f32 %v3185, %v3275
      %v3282 = vmul.f32 %v3186, %v3275
      %v3283 = vmul.f32 %v3187, %v3275
      %v3284 = vmul.f32 %v3188, %v3275
      %v3285 = vmul.f32 %v3189, %v3275
      %v3286 = vmul.f32 %v3190, %v3275
      %v3287 = vmul.f32 %v3191, %v3275
      %v3288 = vmul.f32 %v3192, %v3275
      %v3289 = vmul.f32 %v3193, %v3275
      %v3290 = vmul.f32 %v3194, %v3275
      %v3291 = vmul.f32 %v3195, %v3275
      %v3292 = vmul.f32 %v3196, %v3275
      %v3293 = vld [vmem:[#allocation4] sm:$0x1]
      %v3294 = vmul.f32 %v378, %v3277
      %v3295 = vmul.f32 %v385, %v3278
      %v3296 = vmul.f32 %v392, %v3279
      %v3297 = vmul.f32 %v399, %v3280
      %v3298 = vmul.f32 %v406, %v3281
      %v3299 = vmul.f32 %v413, %v3282
      %v3300 = vmul.f32 %v420, %v3283
      %v3301 = vmul.f32 %v427, %v3284
      %v3302 = vmul.f32 %v434, %v3285
      %v3303 = vmul.f32 %v441, %v3286
      %v3304 = vmul.f32 %v448, %v3287
      %v3305 = vmul.f32 %v455, %v3288
      %v3306 = vmul.f32 %v462, %v3289
      %v3307 = vmul.f32 %v469, %v3290
      %v3308 = vmul.f32 %v476, %v3291
      %v3309 = vmul.f32 %v483, %v3292
      %3310 = vmatprep.subr.mxu0 0.0
      %3311 = vmatpush1.msra.mxu0 %v3294
      %3312 = vmatprep.subr.mxu0 0.0
      %3313 = vmatpush1.msra.mxu0 %v3295
      %3314 = vmatprep.subr.mxu0 0.0
      %3315 = vmatpush1.msra.mxu0 %v3296
      %3316 = vmatprep.subr.mxu0 0.0
      %3317 = vmatpush1.msra.mxu0 %v3297
      %3318 = vmatprep.subr.mxu0 0.0
      %3319 = vmatpush1.msra.mxu0 %v3298
      %3320 = vmatprep.subr.mxu0 0.0
      %3321 = vmatpush1.msra.mxu0 %v3299
      %3322 = vmatprep.subr.mxu0 0.0
      %3323 = vmatpush1.msra.mxu0 %v3300
      %3324 = vmatprep.subr.mxu0 0.0
      %3325 = vmatpush1.msra.mxu0 %v3301
      %3326 = vmatprep.subr.mxu0 0.0
      %3327 = vmatpush1.msra.mxu0 %v3302
      %3328 = vmatprep.subr.mxu0 0.0
      %3329 = vmatpush1.msra.mxu0 %v3303
      %3330 = vmatprep.subr.mxu0 0.0
      %3331 = vmatpush1.msra.mxu0 %v3304
      %3332 = vmatprep.subr.mxu0 0.0
      %3333 = vmatpush1.msra.mxu0 %v3305
      %3334 = vmatprep.subr.mxu0 0.0
      %3335 = vmatpush1.msra.mxu0 %v3306
      %3336 = vmatprep.subr.mxu0 0.0
      %3337 = vmatpush1.msra.mxu0 %v3307
      %3338 = vmatprep.subr.mxu0 0.0
      %3339 = vmatpush1.msra.mxu0 %v3308
      %3340 = vmatprep.subr.mxu0 0.0
      %3341 = vmatpush1.msra.mxu0 %v3309
      %3342 = vmatprep.subr.mxu0 0.0
      %3343 = vmatpush1.msra.mxu0 0.0
      %3344 = vmatprep.subr.mxu0 0.0
      %3345 = vmatpush1.msra.mxu0 0.0
      %3346 = vmatprep.subr.mxu0 0.0
      %3347 = vmatpush1.msra.mxu0 0.0
      %3348 = vmatprep.subr.mxu0 0.0
      %3349 = vmatpush1.msra.mxu0 0.0
      %3350 = vmatprep.subr.mxu0 0.0
      %3351 = vmatpush1.msra.mxu0 0.0
      %3352 = vmatprep.subr.mxu0 0.0
      %3353 = vmatpush1.msra.mxu0 0.0
      %3354 = vmatprep.subr.mxu0 0.0
      %3355 = vmatpush1.msra.mxu0 0.0
      %3356 = vmatprep.subr.mxu0 0.0
      %3357 = vmatpush1.msra.mxu0 0.0
      %3358 = vmatprep.subr.mxu0 0.0
      %3359 = vmatpush1.msra.mxu0 0.0
      %3360 = vmatprep.subr.mxu0 0.0
      %3361 = vmatpush1.msra.mxu0 0.0
      %3362 = vmatprep.subr.mxu0 0.0
      %3363 = vmatpush1.msra.mxu0 0.0
      %3364 = vmatprep.subr.mxu0 0.0
      %3365 = vmatpush1.msra.mxu0 0.0
      %3366 = vmatprep.subr.mxu0 0.0
      %3367 = vmatpush1.msra.mxu0 0.0
      %3368 = vmatprep.subr.mxu0 0.0
      %3369 = vmatpush1.msra.mxu0 0.0
      %3370 = vmatprep.subr.mxu0 0.0
      %3371 = vmatpush1.msra.mxu0 0.0
      %3372 = vmatprep.subr.mxu0 0.0
      %3373 = vmatpush1.msra.mxu0 0.0
      %3374 = vmatprep.mubr.f32.mxu0 0.0
      %3375 = vmatmul.mubr.f32.gmra.mrb[0].mxu0 1.0
      %v3376 = vpop.f32.mrb[0].mxu0
      %v3377 = vadd.f32 0.0, %v3376
      %v3378 = vpop.f32.mrb[0].mxu0
      %3379 = vdwg.mxu0
      %v3380 = vadd.f32 %v3293, %v3377
      %3381 = vst [vmem:[#allocation4] sm:$0x1] %v3380
      %3382 = vmatprep.subr.mxu0 0.0
      %3383 = vmatpush1.msra.mxu0 1.0
      %3384 = vmatprep.subr.mxu0 0.0
      %3385 = vmatpush1.msra.mxu0 1.0
      %3386 = vmatprep.subr.mxu0 0.0
      %3387 = vmatpush1.msra.mxu0 1.0
      %3388 = vmatprep.subr.mxu0 0.0
      %3389 = vmatpush1.msra.mxu0 1.0
      %3390 = vmatprep.subr.mxu0 0.0
      %3391 = vmatpush1.msra.mxu0 1.0
      %3392 = vmatprep.subr.mxu0 0.0
      %3393 = vmatpush1.msra.mxu0 1.0
      %3394 = vmatprep.subr.mxu0 0.0
      %3395 = vmatpush1.msra.mxu0 1.0
      %3396 = vmatprep.subr.mxu0 0.0
      %3397 = vmatpush1.msra.mxu0 1.0
      %3398 = vmatprep.subr.mxu0 0.0
      %3399 = vmatpush1.msra.mxu0 1.0
      %3400 = vmatprep.subr.mxu0 0.0
      %3401 = vmatpush1.msra.mxu0 1.0
      %3402 = vmatprep.subr.mxu0 0.0
      %3403 = vmatpush1.msra.mxu0 1.0
      %3404 = vmatprep.subr.mxu0 0.0
      %3405 = vmatpush1.msra.mxu0 1.0
      %3406 = vmatprep.subr.mxu0 0.0
      %3407 = vmatpush1.msra.mxu0 1.0
      %3408 = vmatprep.subr.mxu0 0.0
      %3409 = vmatpush1.msra.mxu0 1.0
      %3410 = vmatprep.subr.mxu0 0.0
      %3411 = vmatpush1.msra.mxu0 1.0
      %3412 = vmatprep.subr.mxu0 0.0
      %3413 = vmatpush1.msra.mxu0 1.0
      %3414 = vmatprep.subr.mxu0 0.0
      %3415 = vmatpush1.msra.mxu0 0.0
      %3416 = vmatprep.subr.mxu0 0.0
      %3417 = vmatpush1.msra.mxu0 0.0
      %3418 = vmatprep.subr.mxu0 0.0
      %3419 = vmatpush1.msra.mxu0 0.0
      %3420 = vmatprep.subr.mxu0 0.0
      %3421 = vmatpush1.msra.mxu0 0.0
      %3422 = vmatprep.subr.mxu0 0.0
      %3423 = vmatpush1.msra.mxu0 0.0
      %3424 = vmatprep.subr.mxu0 0.0
      %3425 = vmatpush1.msra.mxu0 0.0
      %3426 = vmatprep.subr.mxu0 0.0
      %3427 = vmatpush1.msra.mxu0 0.0
      %3428 = vmatprep.subr.mxu0 0.0
      %3429 = vmatpush1.msra.mxu0 0.0
      %3430 = vmatprep.subr.mxu0 0.0
      %3431 = vmatpush1.msra.mxu0 0.0
      %3432 = vmatprep.subr.mxu0 0.0
      %3433 = vmatpush1.msra.mxu0 0.0
      %3434 = vmatprep.subr.mxu0 0.0
      %3435 = vmatpush1.msra.mxu0 0.0
      %3436 = vmatprep.subr.mxu0 0.0
      %3437 = vmatpush1.msra.mxu0 0.0
      %3438 = vmatprep.subr.mxu0 0.0
      %3439 = vmatpush1.msra.mxu0 0.0
      %3440 = vmatprep.subr.mxu0 0.0
      %3441 = vmatpush1.msra.mxu0 0.0
      %3442 = vmatprep.subr.mxu0 0.0
      %3443 = vmatpush1.msra.mxu0 0.0
      %3444 = vmatprep.subr.mxu0 0.0
      %3445 = vmatpush1.msra.mxu0 0.0
      %3446 = vmatprep.mubr.f32.mxu0 0.0
      %3447 = vmatmul.mubr.f32.gmra.mrb[0].mxu0 %v3277
      %v3448 = vpop.f32.mrb[0].mxu0
      %v3449 = vadd.f32 0.0, %v3448
      %v3450 = vpop.f32.mrb[0].mxu0
      %3451 = vmatprep.mubr.f32.mxu0 0.0
      %3452 = vmatmul.mubr.f32.gmra.mrb[0].mxu0 %v3278
      %v3453 = vpop.f32.mrb[0].mxu0
      %v3454 = vadd.f32 0.0, %v3453
      %v3455 = vpop.f32.mrb[0].mxu0
      %3456 = vmatprep.mubr.f32.mxu0 0.0
      %3457 = vmatmul.mubr.f32.gmra.mrb[0].mxu0 %v3279
      %v3458 = vpop.f32.mrb[0].mxu0
      %v3459 = vadd.f32 0.0, %v3458
      %v3460 = vpop.f32.mrb[0].mxu0
      %3461 = vmatprep.mubr.f32.mxu0 0.0
      %3462 = vmatmul.mubr.f32.gmra.mrb[0].mxu0 %v3280
      %v3463 = vpop.f32.mrb[0].mxu0
      %v3464 = vadd.f32 0.0, %v3463
      %v3465 = vpop.f32.mrb[0].mxu0
      %3466 = vmatprep.mubr.f32.mxu0 0.0
      %3467 = vmatmul.mubr.f32.gmra.mrb[0].mxu0 %v3281
      %v3468 = vpop.f32.mrb[0].mxu0
      %v3469 = vadd.f32 0.0, %v3468
      %v3470 = vpop.f32.mrb[0].mxu0
      %3471 = vmatprep.mubr.f32.mxu0 0.0
      %3472 = vmatmul.mubr.f32.gmra.mrb[0].mxu0 %v3282
      %v3473 = vpop.f32.mrb[0].mxu0
      %v3474 = vadd.f32 0.0, %v3473
      %v3475 = vpop.f32.mrb[0].mxu0
      %3476 = vmatprep.mubr.f32.mxu0 0.0
      %3477 = vmatmul.mubr.f32.gmra.mrb[0].mxu0 %v3283
      %v3478 = vpop.f32.mrb[0].mxu0
      %v3479 = vadd.f32 0.0, %v3478
      %v3480 = vpop.f32.mrb[0].mxu0
      %3481 = vmatprep.mubr.f32.mxu0 0.0
      %3482 = vmatmul.mubr.f32.gmra.mrb[0].mxu0 %v3284
      %v3483 = vpop.f32.mrb[0].mxu0
      %v3484 = vadd.f32 0.0, %v3483
      %v3485 = vpop.f32.mrb[0].mxu0
      %3486 = vmatprep.mubr.f32.mxu0 0.0
      %3487 = vmatmul.mubr.f32.gmra.mrb[0].mxu0 %v3285
      %v3488 = vpop.f32.mrb[0].mxu0
      %v3489 = vadd.f32 0.0, %v3488
      %v3490 = vpop.f32.mrb[0].mxu0
      %3491 = vmatprep.mubr.f32.mxu0 0.0
      %3492 = vmatmul.mubr.f32.gmra.mrb[0].mxu0 %v3286
      %v3493 = vpop.f32.mrb[0].mxu0
      %v3494 = vadd.f32 0.0, %v3493
      %v3495 = vpop.f32.mrb[0].mxu0
      %3496 = vmatprep.mubr.f32.mxu0 0.0
      %3497 = vmatmul.mubr.f32.gmra.mrb[0].mxu0 %v3287
      %v3498 = vpop.f32.mrb[0].mxu0
      %v3499 = vadd.f32 0.0, %v3498
      %v3500 = vpop.f32.mrb[0].mxu0
      %3501 = vmatprep.mubr.f32.mxu0 0.0
      %3502 = vmatmul.mubr.f32.gmra.mrb[0].mxu0 %v3288
      %v3503 = vpop.f32.mrb[0].mxu0
      %v3504 = vadd.f32 0.0, %v3503
      %v3505 = vpop.f32.mrb[0].mxu0
      %3506 = vmatprep.mubr.f32.mxu0 0.0
      %3507 = vmatmul.mubr.f32.gmra.mrb[0].mxu0 %v3289
      %v3508 = vpop.f32.mrb[0].mxu0
      %v3509 = vadd.f32 0.0, %v3508
      %v3510 = vpop.f32.mrb[0].mxu0
      %3511 = vmatprep.mubr.f32.mxu0 0.0
      %3512 = vmatmul.mubr.f32.gmra.mrb[0].mxu0 %v3290
      %v3513 = vpop.f32.mrb[0].mxu0
      %v3514 = vadd.f32 0.0, %v3513
      %v3515 = vpop.f32.mrb[0].mxu0
      %3516 = vmatprep.mubr.f32.mxu0 0.0
      %3517 = vmatmul.mubr.f32.gmra.mrb[0].mxu0 %v3291
      %v3518 = vpop.f32.mrb[0].mxu0
      %v3519 = vadd.f32 0.0, %v3518
      %v3520 = vpop.f32.mrb[0].mxu0
      %3521 = vmatprep.mubr.f32.mxu0 0.0
      %3522 = vmatmul.mubr.f32.gmra.mrb[0].mxu0 %v3292
      %v3523 = vpop.f32.mrb[0].mxu0
      %v3524 = vadd.f32 0.0, %v3523
      %v3525 = vpop.f32.mrb[0].mxu0
      %3526 = vdwg.mxu0
      %v3527 = vsub.f32 %v2821, %v3449
      %v3528 = vsub.f32 %v2822, %v3454
      %v3529 = vsub.f32 %v2823, %v3459
      %v3530 = vsub.f32 %v2824, %v3464
      %v3531 = vsub.f32 %v2825, %v3469
      %v3532 = vsub.f32 %v2826, %v3474
      %v3533 = vsub.f32 %v2827, %v3479
      %v3534 = vsub.f32 %v2828, %v3484
      %v3535 = vsub.f32 %v2829, %v3489
      %v3536 = vsub.f32 %v2830, %v3494
      %v3537 = vsub.f32 %v2831, %v3499
      %v3538 = vsub.f32 %v2832, %v3504
      %v3539 = vsub.f32 %v2833, %v3509
      %v3540 = vsub.f32 %v2834, %v3514
      %v3541 = vsub.f32 %v2835, %v3519
      %v3542 = vsub.f32 %v2836, %v3524
      %v3543 = vmax.f32 %v3527, 0.0
      %v3544 = vmax.f32 %v3528, 0.0
      %v3545 = vmax.f32 %v3529, 0.0
      %v3546 = vmax.f32 %v3530, 0.0
      %v3547 = vmax.f32 %v3531, 0.0
      %v3548 = vmax.f32 %v3532, 0.0
      %v3549 = vmax.f32 %v3533, 0.0
      %v3550 = vmax.f32 %v3534, 0.0
      %v3551 = vmax.f32 %v3535, 0.0
      %v3552 = vmax.f32 %v3536, 0.0
      %v3553 = vmax.f32 %v3537, 0.0
      %v3554 = vmax.f32 %v3538, 0.0
      %v3555 = vmax.f32 %v3539, 0.0
      %v3556 = vmax.f32 %v3540, 0.0
      %v3557 = vmax.f32 %v3541, 0.0
      %v3558 = vmax.f32 %v3542, 0.0
      %3559 = vst.msk [vmem:[#allocation2] sm:$0xff] %vm508, %v3543
      %3560 = vst.msk [vmem:[#allocation2 + $0x8] sm:$0xff] %vm508, %v3544
      %3561 = vst.msk [vmem:[#allocation2 + $0x10] sm:$0xff] %vm508, %v3545
      %3562 = vst.msk [vmem:[#allocation2 + $0x18] sm:$0xff] %vm508, %v3546
      %3563 = vst.msk [vmem:[#allocation2 + $0x20] sm:$0xff] %vm508, %v3547
      %3564 = vst.msk [vmem:[#allocation2 + $0x28] sm:$0xff] %vm508, %v3548
      %3565 = vst.msk [vmem:[#allocation2 + $0x30] sm:$0xff] %vm508, %v3549
      %3566 = vst.msk [vmem:[#allocation2 + $0x38] sm:$0xff] %vm508, %v3550
      %3567 = vst.msk [vmem:[#allocation2 + $0x40] sm:$0xff] %vm508, %v3551
      %3568 = vst.msk [vmem:[#allocation2 + $0x48] sm:$0xff] %vm508, %v3552
      %3569 = vst.msk [vmem:[#allocation2 + $0x50] sm:$0xff] %vm508, %v3553
      %3570 = vst.msk [vmem:[#allocation2 + $0x58] sm:$0xff] %vm508, %v3554
      %3571 = vst.msk [vmem:[#allocation2 + $0x60] sm:$0xff] %vm508, %v3555
      %3572 = vst.msk [vmem:[#allocation2 + $0x68] sm:$0xff] %vm508, %v3556
      %3573 = vst.msk [vmem:[#allocation2 + $0x70] sm:$0xff] %vm508, %v3557
      %3574 = vst.msk [vmem:[#allocation2 + $0x78] sm:$0xff] %vm508, %v3558
      %v3575 = vmul.f32 %v3264, %v3270
      %v3576 = vsub.f32 %v2837, %v3575
      %v3577 = vmax.f32 %v3576, 0.0
      %3578 = vst [vmem:[#allocation3] sm:$0x1] %v3577
    $region32: #{emd_loss.1} parent=13 // pred_fallthru
      _
    %v3579 = vld [vmem:[#allocation2] sm:$0xff]
    %v3580 = vld [vmem:[#allocation2 + $0x8] sm:$0xff]
    %v3581 = vld [vmem:[#allocation2 + $0x10] sm:$0xff]
    %v3582 = vld [vmem:[#allocation2 + $0x18] sm:$0xff]
    %v3583 = vld [vmem:[#allocation2 + $0x20] sm:$0xff]
    %v3584 = vld [vmem:[#allocation2 + $0x28] sm:$0xff]
    %v3585 = vld [vmem:[#allocation2 + $0x30] sm:$0xff]
    %v3586 = vld [vmem:[#allocation2 + $0x38] sm:$0xff]
    %v3587 = vld [vmem:[#allocation2 + $0x40] sm:$0xff]
    %v3588 = vld [vmem:[#allocation2 + $0x48] sm:$0xff]
    %v3589 = vld [vmem:[#allocation2 + $0x50] sm:$0xff]
    %v3590 = vld [vmem:[#allocation2 + $0x58] sm:$0xff]
    %v3591 = vld [vmem:[#allocation2 + $0x60] sm:$0xff]
    %v3592 = vld [vmem:[#allocation2 + $0x68] sm:$0xff]
    %v3593 = vld [vmem:[#allocation2 + $0x70] sm:$0xff]
    %v3594 = vld [vmem:[#allocation2 + $0x78] sm:$0xff]
    %v3595 = vld [vmem:[#allocation3] sm:$0x1]
    %v3596 = vmul.f32 %v378, %v378
    %v3597 = vmul.f32 %v385, %v385
    %v3598 = vmul.f32 %v392, %v392
    %v3599 = vmul.f32 %v399, %v399
    %v3600 = vmul.f32 %v406, %v406
    %v3601 = vmul.f32 %v413, %v413
    %v3602 = vmul.f32 %v420, %v420
    %v3603 = vmul.f32 %v427, %v427
    %v3604 = vmul.f32 %v434, %v434
    %v3605 = vmul.f32 %v441, %v441
    %v3606 = vmul.f32 %v448, %v448
    %v3607 = vmul.f32 %v455, %v455
    %v3608 = vmul.f32 %v462, %v462
    %v3609 = vmul.f32 %v469, %v469
    %v3610 = vmul.f32 %v476, %v476
    %v3611 = vmul.f32 %v483, %v483
    %v3612 = vmul.f32 %v3596, -64.0
    %v3613 = vmul.f32 %v3597, -64.0
    %v3614 = vmul.f32 %v3598, -64.0
    %v3615 = vmul.f32 %v3599, -64.0
    %v3616 = vmul.f32 %v3600, -64.0
    %v3617 = vmul.f32 %v3601, -64.0
    %v3618 = vmul.f32 %v3602, -64.0
    %v3619 = vmul.f32 %v3603, -64.0
    %v3620 = vmul.f32 %v3604, -64.0
    %v3621 = vmul.f32 %v3605, -64.0
    %v3622 = vmul.f32 %v3606, -64.0
    %v3623 = vmul.f32 %v3607, -64.0
    %v3624 = vmul.f32 %v3608, -64.0
    %v3625 = vmul.f32 %v3609, -64.0
    %v3626 = vmul.f32 %v3610, -64.0
    %v3627 = vmul.f32 %v3611, -64.0
    %v3628 = vmul.f32 %v3612, 1.442695
    %v3629 = vpow.pop %v3628
    %v3630 = vmul.f32 %v3613, 1.442695
    %v3631 = vpow.pop %v3630
    %v3632 = vmul.f32 %v3614, 1.442695
    %v3633 = vpow.pop %v3632
    %v3634 = vmul.f32 %v3615, 1.442695
    %v3635 = vpow.pop %v3634
    %v3636 = vmul.f32 %v3616, 1.442695
    %v3637 = vpow.pop %v3636
    %v3638 = vmul.f32 %v3617, 1.442695
    %v3639 = vpow.pop %v3638
    %v3640 = vmul.f32 %v3618, 1.442695
    %v3641 = vpow.pop %v3640
    %v3642 = vmul.f32 %v3619, 1.442695
    %v3643 = vpow.pop %v3642
    %v3644 = vmul.f32 %v3620, 1.442695
    %v3645 = vpow.pop %v3644
    %v3646 = vmul.f32 %v3621, 1.442695
    %v3647 = vpow.pop %v3646
    %v3648 = vmul.f32 %v3622, 1.442695
    %v3649 = vpow.pop %v3648
    %v3650 = vmul.f32 %v3623, 1.442695
    %v3651 = vpow.pop %v3650
    %v3652 = vmul.f32 %v3624, 1.442695
    %v3653 = vpow.pop %v3652
    %v3654 = vmul.f32 %v3625, 1.442695
    %v3655 = vpow.pop %v3654
    %v3656 = vmul.f32 %v3626, 1.442695
    %v3657 = vpow.pop %v3656
    %v3658 = vmul.f32 %v3627, 1.442695
    %v3659 = vpow.pop %v3658
    %v3661 = vlaneseq
    %v3662 = vshrl.u32 %v3661, 7
    %v3663 = vsub.s32 0, %v3662
    %v3664 = vrot.slane %v3595, %v3663
    %v3666 = vmul.f32 %v3629, %v3664
    %v3667 = vmul.f32 %v3631, %v3664
    %v3668 = vmul.f32 %v3633, %v3664
    %v3669 = vmul.f32 %v3635, %v3664
    %v3670 = vmul.f32 %v3637, %v3664
    %v3671 = vmul.f32 %v3639, %v3664
    %v3672 = vmul.f32 %v3641, %v3664
    %v3673 = vmul.f32 %v3643, %v3664
    %v3674 = vmul.f32 %v3645, %v3664
    %v3675 = vmul.f32 %v3647, %v3664
    %v3676 = vmul.f32 %v3649, %v3664
    %v3677 = vmul.f32 %v3651, %v3664
    %v3678 = vmul.f32 %v3653, %v3664
    %v3679 = vmul.f32 %v3655, %v3664
    %v3680 = vmul.f32 %v3657, %v3664
    %v3681 = vmul.f32 %v3659, %v3664
    %3682 = vmatprep.subr.mxu0 0.0
    %3683 = vmatpush1.msra.mxu0 1.0
    %3684 = vmatprep.subr.mxu0 0.0
    %3685 = vmatpush1.msra.mxu0 1.0
    %3686 = vmatprep.subr.mxu0 0.0
    %3687 = vmatpush1.msra.mxu0 1.0
    %3688 = vmatprep.subr.mxu0 0.0
    %3689 = vmatpush1.msra.mxu0 1.0
    %3690 = vmatprep.subr.mxu0 0.0
    %3691 = vmatpush1.msra.mxu0 1.0
    %3692 = vmatprep.subr.mxu0 0.0
    %3693 = vmatpush1.msra.mxu0 1.0
    %3694 = vmatprep.subr.mxu0 0.0
    %3695 = vmatpush1.msra.mxu0 1.0
    %3696 = vmatprep.subr.mxu0 0.0
    %3697 = vmatpush1.msra.mxu0 1.0
    %3698 = vmatprep.subr.mxu0 0.0
    %3699 = vmatpush1.msra.mxu0 1.0
    %3700 = vmatprep.subr.mxu0 0.0
    %3701 = vmatpush1.msra.mxu0 1.0
    %3702 = vmatprep.subr.mxu0 0.0
    %3703 = vmatpush1.msra.mxu0 1.0
    %3704 = vmatprep.subr.mxu0 0.0
    %3705 = vmatpush1.msra.mxu0 1.0
    %3706 = vmatprep.subr.mxu0 0.0
    %3707 = vmatpush1.msra.mxu0 1.0
    %3708 = vmatprep.subr.mxu0 0.0
    %3709 = vmatpush1.msra.mxu0 1.0
    %3710 = vmatprep.subr.mxu0 0.0
    %3711 = vmatpush1.msra.mxu0 1.0
    %3712 = vmatprep.subr.mxu0 0.0
    %3713 = vmatpush1.msra.mxu0 1.0
    %3714 = vmatprep.subr.mxu0 0.0
    %3715 = vmatpush1.msra.mxu0 0.0
    %3716 = vmatprep.subr.mxu0 0.0
    %3717 = vmatpush1.msra.mxu0 0.0
    %3718 = vmatprep.subr.mxu0 0.0
    %3719 = vmatpush1.msra.mxu0 0.0
    %3720 = vmatprep.subr.mxu0 0.0
    %3721 = vmatpush1.msra.mxu0 0.0
    %3722 = vmatprep.subr.mxu0 0.0
    %3723 = vmatpush1.msra.mxu0 0.0
    %3724 = vmatprep.subr.mxu0 0.0
    %3725 = vmatpush1.msra.mxu0 0.0
    %3726 = vmatprep.subr.mxu0 0.0
    %3727 = vmatpush1.msra.mxu0 0.0
    %3728 = vmatprep.subr.mxu0 0.0
    %3729 = vmatpush1.msra.mxu0 0.0
    %3730 = vmatprep.subr.mxu0 0.0
    %3731 = vmatpush1.msra.mxu0 0.0
    %3732 = vmatprep.subr.mxu0 0.0
    %3733 = vmatpush1.msra.mxu0 0.0
    %3734 = vmatprep.subr.mxu0 0.0
    %3735 = vmatpush1.msra.mxu0 0.0
    %3736 = vmatprep.subr.mxu0 0.0
    %3737 = vmatpush1.msra.mxu0 0.0
    %3738 = vmatprep.subr.mxu0 0.0
    %3739 = vmatpush1.msra.mxu0 0.0
    %3740 = vmatprep.subr.mxu0 0.0
    %3741 = vmatpush1.msra.mxu0 0.0
    %3742 = vmatprep.subr.mxu0 0.0
    %3743 = vmatpush1.msra.mxu0 0.0
    %3744 = vmatprep.subr.mxu0 0.0
    %3745 = vmatpush1.msra.mxu0 0.0
    %3746 = vmatprep.mubr.f32.mxu0 0.0
    %3747 = vmatmul.mubr.f32.gmra.mrb[0].mxu0 %v3666
    %v3748 = vpop.f32.mrb[0].mxu0
    %v3749 = vadd.f32 1e-09, %v3748
    %v3750 = vpop.f32.mrb[0].mxu0
    %3751 = vmatprep.mubr.f32.mxu0 0.0
    %3752 = vmatmul.mubr.f32.gmra.mrb[0].mxu0 %v3667
    %v3753 = vpop.f32.mrb[0].mxu0
    %v3754 = vadd.f32 1e-09, %v3753
    %v3755 = vpop.f32.mrb[0].mxu0
    %3756 = vmatprep.mubr.f32.mxu0 0.0
    %3757 = vmatmul.mubr.f32.gmra.mrb[0].mxu0 %v3668
    %v3758 = vpop.f32.mrb[0].mxu0
    %v3759 = vadd.f32 1e-09, %v3758
    %v3760 = vpop.f32.mrb[0].mxu0
    %3761 = vmatprep.mubr.f32.mxu0 0.0
    %3762 = vmatmul.mubr.f32.gmra.mrb[0].mxu0 %v3669
    %v3763 = vpop.f32.mrb[0].mxu0
    %v3764 = vadd.f32 1e-09, %v3763
    %v3765 = vpop.f32.mrb[0].mxu0
    %3766 = vmatprep.mubr.f32.mxu0 0.0
    %3767 = vmatmul.mubr.f32.gmra.mrb[0].mxu0 %v3670
    %v3768 = vpop.f32.mrb[0].mxu0
    %v3769 = vadd.f32 1e-09, %v3768
    %v3770 = vpop.f32.mrb[0].mxu0
    %3771 = vmatprep.mubr.f32.mxu0 0.0
    %3772 = vmatmul.mubr.f32.gmra.mrb[0].mxu0 %v3671
    %v3773 = vpop.f32.mrb[0].mxu0
    %v3774 = vadd.f32 1e-09, %v3773
    %v3775 = vpop.f32.mrb[0].mxu0
    %3776 = vmatprep.mubr.f32.mxu0 0.0
    %3777 = vmatmul.mubr.f32.gmra.mrb[0].mxu0 %v3672
    %v3778 = vpop.f32.mrb[0].mxu0
    %v3779 = vadd.f32 1e-09, %v3778
    %v3780 = vpop.f32.mrb[0].mxu0
    %3781 = vmatprep.mubr.f32.mxu0 0.0
    %3782 = vmatmul.mubr.f32.gmra.mrb[0].mxu0 %v3673
    %v3783 = vpop.f32.mrb[0].mxu0
    %v3784 = vadd.f32 1e-09, %v3783
    %v3785 = vpop.f32.mrb[0].mxu0
    %3786 = vmatprep.mubr.f32.mxu0 0.0
    %3787 = vmatmul.mubr.f32.gmra.mrb[0].mxu0 %v3674
    %v3788 = vpop.f32.mrb[0].mxu0
    %v3789 = vadd.f32 1e-09, %v3788
    %v3790 = vpop.f32.mrb[0].mxu0
    %3791 = vmatprep.mubr.f32.mxu0 0.0
    %3792 = vmatmul.mubr.f32.gmra.mrb[0].mxu0 %v3675
    %v3793 = vpop.f32.mrb[0].mxu0
    %v3794 = vadd.f32 1e-09, %v3793
    %v3795 = vpop.f32.mrb[0].mxu0
    %3796 = vmatprep.mubr.f32.mxu0 0.0
    %3797 = vmatmul.mubr.f32.gmra.mrb[0].mxu0 %v3676
    %v3798 = vpop.f32.mrb[0].mxu0
    %v3799 = vadd.f32 1e-09, %v3798
    %v3800 = vpop.f32.mrb[0].mxu0
    %3801 = vmatprep.mubr.f32.mxu0 0.0
    %3802 = vmatmul.mubr.f32.gmra.mrb[0].mxu0 %v3677
    %v3803 = vpop.f32.mrb[0].mxu0
    %v3804 = vadd.f32 1e-09, %v3803
    %v3805 = vpop.f32.mrb[0].mxu0
    %3806 = vmatprep.mubr.f32.mxu0 0.0
    %3807 = vmatmul.mubr.f32.gmra.mrb[0].mxu0 %v3678
    %v3808 = vpop.f32.mrb[0].mxu0
    %v3809 = vadd.f32 1e-09, %v3808
    %v3810 = vpop.f32.mrb[0].mxu0
    %3811 = vmatprep.mubr.f32.mxu0 0.0
    %3812 = vmatmul.mubr.f32.gmra.mrb[0].mxu0 %v3679
    %v3813 = vpop.f32.mrb[0].mxu0
    %v3814 = vadd.f32 1e-09, %v3813
    %v3815 = vpop.f32.mrb[0].mxu0
    %3816 = vmatprep.mubr.f32.mxu0 0.0
    %3817 = vmatmul.mubr.f32.gmra.mrb[0].mxu0 %v3680
    %v3818 = vpop.f32.mrb[0].mxu0
    %v3819 = vadd.f32 1e-09, %v3818
    %v3820 = vpop.f32.mrb[0].mxu0
    %3821 = vmatprep.mubr.f32.mxu0 0.0
    %3822 = vmatmul.mubr.f32.gmra.mrb[0].mxu0 %v3681
    %v3823 = vpop.f32.mrb[0].mxu0
    %v3824 = vadd.f32 1e-09, %v3823
    %v3825 = vpop.f32.mrb[0].mxu0
    %3826 = vdwg.mxu0
    %v3827 = vrcp.pop %v3749
    %v3828 = vmul.f32 %v3579, %v3827
    %v3829 = vrcp.pop %v3754
    %v3830 = vmul.f32 %v3580, %v3829
    %v3831 = vrcp.pop %v3759
    %v3832 = vmul.f32 %v3581, %v3831
    %v3833 = vrcp.pop %v3764
    %v3834 = vmul.f32 %v3582, %v3833
    %v3835 = vrcp.pop %v3769
    %v3836 = vmul.f32 %v3583, %v3835
    %v3837 = vrcp.pop %v3774
    %v3838 = vmul.f32 %v3584, %v3837
    %v3839 = vrcp.pop %v3779
    %v3840 = vmul.f32 %v3585, %v3839
    %v3841 = vrcp.pop %v3784
    %v3842 = vmul.f32 %v3586, %v3841
    %v3843 = vrcp.pop %v3789
    %v3844 = vmul.f32 %v3587, %v3843
    %v3845 = vrcp.pop %v3794
    %v3846 = vmul.f32 %v3588, %v3845
    %v3847 = vrcp.pop %v3799
    %v3848 = vmul.f32 %v3589, %v3847
    %v3849 = vrcp.pop %v3804
    %v3850 = vmul.f32 %v3590, %v3849
    %v3851 = vrcp.pop %v3809
    %v3852 = vmul.f32 %v3591, %v3851
    %v3853 = vrcp.pop %v3814
    %v3854 = vmul.f32 %v3592, %v3853
    %v3855 = vrcp.pop %v3819
    %v3856 = vmul.f32 %v3593, %v3855
    %v3857 = vrcp.pop %v3824
    %v3858 = vmul.f32 %v3594, %v3857
    %3860 = vset.pattern.permute.xlu0 0
    %3861 = vperm.xlu0 %3860, %v3828
    %v3862 = vpop.permute.xlu0 %3861
    %3865 = vset.pattern.permute.xlu0 0
    %3866 = vperm.xlu0 %3865, %v3830
    %v3867 = vpop.permute.xlu0 %3866
    %3870 = vset.pattern.permute.xlu0 0
    %3871 = vperm.xlu0 %3870, %v3832
    %v3872 = vpop.permute.xlu0 %3871
    %3875 = vset.pattern.permute.xlu0 0
    %3876 = vperm.xlu0 %3875, %v3834
    %v3877 = vpop.permute.xlu0 %3876
    %3880 = vset.pattern.permute.xlu0 0
    %3881 = vperm.xlu0 %3880, %v3836
    %v3882 = vpop.permute.xlu0 %3881
    %3885 = vset.pattern.permute.xlu0 0
    %3886 = vperm.xlu0 %3885, %v3838
    %v3887 = vpop.permute.xlu0 %3886
    %3890 = vset.pattern.permute.xlu0 0
    %3891 = vperm.xlu0 %3890, %v3840
    %v3892 = vpop.permute.xlu0 %3891
    %3895 = vset.pattern.permute.xlu0 0
    %3896 = vperm.xlu0 %3895, %v3842
    %v3897 = vpop.permute.xlu0 %3896
    %3900 = vset.pattern.permute.xlu0 0
    %3901 = vperm.xlu0 %3900, %v3844
    %v3902 = vpop.permute.xlu0 %3901
    %3905 = vset.pattern.permute.xlu0 0
    %3906 = vperm.xlu0 %3905, %v3846
    %v3907 = vpop.permute.xlu0 %3906
    %3910 = vset.pattern.permute.xlu0 0
    %3911 = vperm.xlu0 %3910, %v3848
    %v3912 = vpop.permute.xlu0 %3911
    %3915 = vset.pattern.permute.xlu0 0
    %3916 = vperm.xlu0 %3915, %v3850
    %v3917 = vpop.permute.xlu0 %3916
    %3920 = vset.pattern.permute.xlu0 0
    %3921 = vperm.xlu0 %3920, %v3852
    %v3922 = vpop.permute.xlu0 %3921
    %3925 = vset.pattern.permute.xlu0 0
    %3926 = vperm.xlu0 %3925, %v3854
    %v3927 = vpop.permute.xlu0 %3926
    %3930 = vset.pattern.permute.xlu0 0
    %3931 = vperm.xlu0 %3930, %v3856
    %v3932 = vpop.permute.xlu0 %3931
    %3935 = vset.pattern.permute.xlu0 0
    %3936 = vperm.xlu0 %3935, %v3858
    %v3937 = vpop.permute.xlu0 %3936
    %v3939 = vmul.f32 %v3666, %v3862
    %v3940 = vmul.f32 %v3667, %v3867
    %v3941 = vmul.f32 %v3668, %v3872
    %v3942 = vmul.f32 %v3669, %v3877
    %v3943 = vmul.f32 %v3670, %v3882
    %v3944 = vmul.f32 %v3671, %v3887
    %v3945 = vmul.f32 %v3672, %v3892
    %v3946 = vmul.f32 %v3673, %v3897
    %v3947 = vmul.f32 %v3674, %v3902
    %v3948 = vmul.f32 %v3675, %v3907
    %v3949 = vmul.f32 %v3676, %v3912
    %v3950 = vmul.f32 %v3677, %v3917
    %v3951 = vmul.f32 %v3678, %v3922
    %v3952 = vmul.f32 %v3679, %v3927
    %v3953 = vmul.f32 %v3680, %v3932
    %v3954 = vmul.f32 %v3681, %v3937
    %3955 = vmatprep.subr.mxu0 0.0
    %3956 = vmatpush1.msra.mxu0 %v3939
    %3957 = vmatprep.subr.mxu0 0.0
    %3958 = vmatpush1.msra.mxu0 %v3940
    %3959 = vmatprep.subr.mxu0 0.0
    %3960 = vmatpush1.msra.mxu0 %v3941
    %3961 = vmatprep.subr.mxu0 0.0
    %3962 = vmatpush1.msra.mxu0 %v3942
    %3963 = vmatprep.subr.mxu0 0.0
    %3964 = vmatpush1.msra.mxu0 %v3943
    %3965 = vmatprep.subr.mxu0 0.0
    %3966 = vmatpush1.msra.mxu0 %v3944
    %3967 = vmatprep.subr.mxu0 0.0
    %3968 = vmatpush1.msra.mxu0 %v3945
    %3969 = vmatprep.subr.mxu0 0.0
    %3970 = vmatpush1.msra.mxu0 %v3946
    %3971 = vmatprep.subr.mxu0 0.0
    %3972 = vmatpush1.msra.mxu0 %v3947
    %3973 = vmatprep.subr.mxu0 0.0
    %3974 = vmatpush1.msra.mxu0 %v3948
    %3975 = vmatprep.subr.mxu0 0.0
    %3976 = vmatpush1.msra.mxu0 %v3949
    %3977 = vmatprep.subr.mxu0 0.0
    %3978 = vmatpush1.msra.mxu0 %v3950
    %3979 = vmatprep.subr.mxu0 0.0
    %3980 = vmatpush1.msra.mxu0 %v3951
    %3981 = vmatprep.subr.mxu0 0.0
    %3982 = vmatpush1.msra.mxu0 %v3952
    %3983 = vmatprep.subr.mxu0 0.0
    %3984 = vmatpush1.msra.mxu0 %v3953
    %3985 = vmatprep.subr.mxu0 0.0
    %3986 = vmatpush1.msra.mxu0 %v3954
    %3987 = vmatprep.subr.mxu0 0.0
    %3988 = vmatpush1.msra.mxu0 0.0
    %3989 = vmatprep.subr.mxu0 0.0
    %3990 = vmatpush1.msra.mxu0 0.0
    %3991 = vmatprep.subr.mxu0 0.0
    %3992 = vmatpush1.msra.mxu0 0.0
    %3993 = vmatprep.subr.mxu0 0.0
    %3994 = vmatpush1.msra.mxu0 0.0
    %3995 = vmatprep.subr.mxu0 0.0
    %3996 = vmatpush1.msra.mxu0 0.0
    %3997 = vmatprep.subr.mxu0 0.0
    %3998 = vmatpush1.msra.mxu0 0.0
    %3999 = vmatprep.subr.mxu0 0.0
    %4000 = vmatpush1.msra.mxu0 0.0
    %4001 = vmatprep.subr.mxu0 0.0
    %4002 = vmatpush1.msra.mxu0 0.0
    %4003 = vmatprep.subr.mxu0 0.0
    %4004 = vmatpush1.msra.mxu0 0.0
    %4005 = vmatprep.subr.mxu0 0.0
    %4006 = vmatpush1.msra.mxu0 0.0
    %4007 = vmatprep.subr.mxu0 0.0
    %4008 = vmatpush1.msra.mxu0 0.0
    %4009 = vmatprep.subr.mxu0 0.0
    %4010 = vmatpush1.msra.mxu0 0.0
    %4011 = vmatprep.subr.mxu0 0.0
    %4012 = vmatpush1.msra.mxu0 0.0
    %4013 = vmatprep.subr.mxu0 0.0
    %4014 = vmatpush1.msra.mxu0 0.0
    %4015 = vmatprep.subr.mxu0 0.0
    %4016 = vmatpush1.msra.mxu0 0.0
    %4017 = vmatprep.subr.mxu0 0.0
    %4018 = vmatpush1.msra.mxu0 0.0
    %4019 = vmatprep.mubr.f32.mxu0 0.0
    %4020 = vmatmul.mubr.f32.gmra.mrb[0].mxu0 1.0
    %v4021 = vpop.f32.mrb[0].mxu0
    %v4022 = vadd.f32 0.0, %v4021
    %v4023 = vpop.f32.mrb[0].mxu0
    %4024 = vdwg.mxu0
    %v4025 = vadd.f32 %v4022, 1e-09
    %v4026 = vrcp.pop %v4025
    %v4027 = vmul.f32 %v3595, %v4026
    %v4028 = vmin.f32 %v4027, 1.0
    %v4030 = vlaneseq
    %v4031 = vshrl.u32 %v4030, 7
    %v4032 = vsub.s32 0, %v4031
    %v4033 = vrot.slane %v4028, %v4032
    %v4035 = vmul.f32 %v3939, %v4033
    %v4036 = vmul.f32 %v3940, %v4033
    %v4037 = vmul.f32 %v3941, %v4033
    %v4038 = vmul.f32 %v3942, %v4033
    %v4039 = vmul.f32 %v3943, %v4033
    %v4040 = vmul.f32 %v3944, %v4033
    %v4041 = vmul.f32 %v3945, %v4033
    %v4042 = vmul.f32 %v3946, %v4033
    %v4043 = vmul.f32 %v3947, %v4033
    %v4044 = vmul.f32 %v3948, %v4033
    %v4045 = vmul.f32 %v3949, %v4033
    %v4046 = vmul.f32 %v3950, %v4033
    %v4047 = vmul.f32 %v3951, %v4033
    %v4048 = vmul.f32 %v3952, %v4033
    %v4049 = vmul.f32 %v3953, %v4033
    %v4050 = vmul.f32 %v3954, %v4033
    %v4051 = vld [vmem:[#allocation4] sm:$0x1]
    %v4052 = vmul.f32 %v378, %v4035
    %v4053 = vmul.f32 %v385, %v4036
    %v4054 = vmul.f32 %v392, %v4037
    %v4055 = vmul.f32 %v399, %v4038
    %v4056 = vmul.f32 %v406, %v4039
    %v4057 = vmul.f32 %v413, %v4040
    %v4058 = vmul.f32 %v420, %v4041
    %v4059 = vmul.f32 %v427, %v4042
    %v4060 = vmul.f32 %v434, %v4043
    %v4061 = vmul.f32 %v441, %v4044
    %v4062 = vmul.f32 %v448, %v4045
    %v4063 = vmul.f32 %v455, %v4046
    %v4064 = vmul.f32 %v462, %v4047
    %v4065 = vmul.f32 %v469, %v4048
    %v4066 = vmul.f32 %v476, %v4049
    %v4067 = vmul.f32 %v483, %v4050
    %4068 = vmatprep.subr.mxu0 0.0
    %4069 = vmatpush1.msra.mxu0 %v4052
    %4070 = vmatprep.subr.mxu0 0.0
    %4071 = vmatpush1.msra.mxu0 %v4053
    %4072 = vmatprep.subr.mxu0 0.0
    %4073 = vmatpush1.msra.mxu0 %v4054
    %4074 = vmatprep.subr.mxu0 0.0
    %4075 = vmatpush1.msra.mxu0 %v4055
    %4076 = vmatprep.subr.mxu0 0.0
    %4077 = vmatpush1.msra.mxu0 %v4056
    %4078 = vmatprep.subr.mxu0 0.0
    %4079 = vmatpush1.msra.mxu0 %v4057
    %4080 = vmatprep.subr.mxu0 0.0
    %4081 = vmatpush1.msra.mxu0 %v4058
    %4082 = vmatprep.subr.mxu0 0.0
    %4083 = vmatpush1.msra.mxu0 %v4059
    %4084 = vmatprep.subr.mxu0 0.0
    %4085 = vmatpush1.msra.mxu0 %v4060
    %4086 = vmatprep.subr.mxu0 0.0
    %4087 = vmatpush1.msra.mxu0 %v4061
    %4088 = vmatprep.subr.mxu0 0.0
    %4089 = vmatpush1.msra.mxu0 %v4062
    %4090 = vmatprep.subr.mxu0 0.0
    %4091 = vmatpush1.msra.mxu0 %v4063
    %4092 = vmatprep.subr.mxu0 0.0
    %4093 = vmatpush1.msra.mxu0 %v4064
    %4094 = vmatprep.subr.mxu0 0.0
    %4095 = vmatpush1.msra.mxu0 %v4065
    %4096 = vmatprep.subr.mxu0 0.0
    %4097 = vmatpush1.msra.mxu0 %v4066
    %4098 = vmatprep.subr.mxu0 0.0
    %4099 = vmatpush1.msra.mxu0 %v4067
    %4100 = vmatprep.subr.mxu0 0.0
    %4101 = vmatpush1.msra.mxu0 0.0
    %4102 = vmatprep.subr.mxu0 0.0
    %4103 = vmatpush1.msra.mxu0 0.0
    %4104 = vmatprep.subr.mxu0 0.0
    %4105 = vmatpush1.msra.mxu0 0.0
    %4106 = vmatprep.subr.mxu0 0.0
    %4107 = vmatpush1.msra.mxu0 0.0
    %4108 = vmatprep.subr.mxu0 0.0
    %4109 = vmatpush1.msra.mxu0 0.0
    %4110 = vmatprep.subr.mxu0 0.0
    %4111 = vmatpush1.msra.mxu0 0.0
    %4112 = vmatprep.subr.mxu0 0.0
    %4113 = vmatpush1.msra.mxu0 0.0
    %4114 = vmatprep.subr.mxu0 0.0
    %4115 = vmatpush1.msra.mxu0 0.0
    %4116 = vmatprep.subr.mxu0 0.0
    %4117 = vmatpush1.msra.mxu0 0.0
    %4118 = vmatprep.subr.mxu0 0.0
    %4119 = vmatpush1.msra.mxu0 0.0
    %4120 = vmatprep.subr.mxu0 0.0
    %4121 = vmatpush1.msra.mxu0 0.0
    %4122 = vmatprep.subr.mxu0 0.0
    %4123 = vmatpush1.msra.mxu0 0.0
    %4124 = vmatprep.subr.mxu0 0.0
    %4125 = vmatpush1.msra.mxu0 0.0
    %4126 = vmatprep.subr.mxu0 0.0
    %4127 = vmatpush1.msra.mxu0 0.0
    %4128 = vmatprep.subr.mxu0 0.0
    %4129 = vmatpush1.msra.mxu0 0.0
    %4130 = vmatprep.subr.mxu0 0.0
    %4131 = vmatpush1.msra.mxu0 0.0
    %4132 = vmatprep.mubr.f32.mxu0 0.0
    %4133 = vmatmul.mubr.f32.gmra.mrb[0].mxu0 1.0
    %v4134 = vpop.f32.mrb[0].mxu0
    %v4135 = vadd.f32 0.0, %v4134
    %v4136 = vpop.f32.mrb[0].mxu0
    %4137 = vdwg.mxu0
    %v4138 = vadd.f32 %v4051, %v4135
    %4139 = vst [vmem:[#allocation4] sm:$0x1] %v4138
    %4140 = vmatprep.subr.mxu0 0.0
    %4141 = vmatpush1.msra.mxu0 1.0
    %4142 = vmatprep.subr.mxu0 0.0
    %4143 = vmatpush1.msra.mxu0 1.0
    %4144 = vmatprep.subr.mxu0 0.0
    %4145 = vmatpush1.msra.mxu0 1.0
    %4146 = vmatprep.subr.mxu0 0.0
    %4147 = vmatpush1.msra.mxu0 1.0
    %4148 = vmatprep.subr.mxu0 0.0
    %4149 = vmatpush1.msra.mxu0 1.0
    %4150 = vmatprep.subr.mxu0 0.0
    %4151 = vmatpush1.msra.mxu0 1.0
    %4152 = vmatprep.subr.mxu0 0.0
    %4153 = vmatpush1.msra.mxu0 1.0
    %4154 = vmatprep.subr.mxu0 0.0
    %4155 = vmatpush1.msra.mxu0 1.0
    %4156 = vmatprep.subr.mxu0 0.0
    %4157 = vmatpush1.msra.mxu0 1.0
    %4158 = vmatprep.subr.mxu0 0.0
    %4159 = vmatpush1.msra.mxu0 1.0
    %4160 = vmatprep.subr.mxu0 0.0
    %4161 = vmatpush1.msra.mxu0 1.0
    %4162 = vmatprep.subr.mxu0 0.0
    %4163 = vmatpush1.msra.mxu0 1.0
    %4164 = vmatprep.subr.mxu0 0.0
    %4165 = vmatpush1.msra.mxu0 1.0
    %4166 = vmatprep.subr.mxu0 0.0
    %4167 = vmatpush1.msra.mxu0 1.0
    %4168 = vmatprep.subr.mxu0 0.0
    %4169 = vmatpush1.msra.mxu0 1.0
    %4170 = vmatprep.subr.mxu0 0.0
    %4171 = vmatpush1.msra.mxu0 1.0
    %4172 = vmatprep.subr.mxu0 0.0
    %4173 = vmatpush1.msra.mxu0 0.0
    %4174 = vmatprep.subr.mxu0 0.0
    %4175 = vmatpush1.msra.mxu0 0.0
    %4176 = vmatprep.subr.mxu0 0.0
    %4177 = vmatpush1.msra.mxu0 0.0
    %4178 = vmatprep.subr.mxu0 0.0
    %4179 = vmatpush1.msra.mxu0 0.0
    %4180 = vmatprep.subr.mxu0 0.0
    %4181 = vmatpush1.msra.mxu0 0.0
    %4182 = vmatprep.subr.mxu0 0.0
    %4183 = vmatpush1.msra.mxu0 0.0
    %4184 = vmatprep.subr.mxu0 0.0
    %4185 = vmatpush1.msra.mxu0 0.0
    %4186 = vmatprep.subr.mxu0 0.0
    %4187 = vmatpush1.msra.mxu0 0.0
    %4188 = vmatprep.subr.mxu0 0.0
    %4189 = vmatpush1.msra.mxu0 0.0
    %4190 = vmatprep.subr.mxu0 0.0
    %4191 = vmatpush1.msra.mxu0 0.0
    %4192 = vmatprep.subr.mxu0 0.0
    %4193 = vmatpush1.msra.mxu0 0.0
    %4194 = vmatprep.subr.mxu0 0.0
    %4195 = vmatpush1.msra.mxu0 0.0
    %4196 = vmatprep.subr.mxu0 0.0
    %4197 = vmatpush1.msra.mxu0 0.0
    %4198 = vmatprep.subr.mxu0 0.0
    %4199 = vmatpush1.msra.mxu0 0.0
    %4200 = vmatprep.subr.mxu0 0.0
    %4201 = vmatpush1.msra.mxu0 0.0
    %4202 = vmatprep.subr.mxu0 0.0
    %4203 = vmatpush1.msra.mxu0 0.0
    %4204 = vmatprep.mubr.f32.mxu0 0.0
    %4205 = vmatmul.mubr.f32.gmra.mrb[0].mxu0 %v4035
    %v4206 = vpop.f32.mrb[0].mxu0
    %v4207 = vadd.f32 0.0, %v4206
    %v4208 = vpop.f32.mrb[0].mxu0
    %4209 = vmatprep.mubr.f32.mxu0 0.0
    %4210 = vmatmul.mubr.f32.gmra.mrb[0].mxu0 %v4036
    %v4211 = vpop.f32.mrb[0].mxu0
    %v4212 = vadd.f32 0.0, %v4211
    %v4213 = vpop.f32.mrb[0].mxu0
    %4214 = vmatprep.mubr.f32.mxu0 0.0
    %4215 = vmatmul.mubr.f32.gmra.mrb[0].mxu0 %v4037
    %v4216 = vpop.f32.mrb[0].mxu0
    %v4217 = vadd.f32 0.0, %v4216
    %v4218 = vpop.f32.mrb[0].mxu0
    %4219 = vmatprep.mubr.f32.mxu0 0.0
    %4220 = vmatmul.mubr.f32.gmra.mrb[0].mxu0 %v4038
    %v4221 = vpop.f32.mrb[0].mxu0
    %v4222 = vadd.f32 0.0, %v4221
    %v4223 = vpop.f32.mrb[0].mxu0
    %4224 = vmatprep.mubr.f32.mxu0 0.0
    %4225 = vmatmul.mubr.f32.gmra.mrb[0].mxu0 %v4039
    %v4226 = vpop.f32.mrb[0].mxu0
    %v4227 = vadd.f32 0.0, %v4226
    %v4228 = vpop.f32.mrb[0].mxu0
    %4229 = vmatprep.mubr.f32.mxu0 0.0
    %4230 = vmatmul.mubr.f32.gmra.mrb[0].mxu0 %v4040
    %v4231 = vpop.f32.mrb[0].mxu0
    %v4232 = vadd.f32 0.0, %v4231
    %v4233 = vpop.f32.mrb[0].mxu0
    %4234 = vmatprep.mubr.f32.mxu0 0.0
    %4235 = vmatmul.mubr.f32.gmra.mrb[0].mxu0 %v4041
    %v4236 = vpop.f32.mrb[0].mxu0
    %v4237 = vadd.f32 0.0, %v4236
    %v4238 = vpop.f32.mrb[0].mxu0
    %4239 = vmatprep.mubr.f32.mxu0 0.0
    %4240 = vmatmul.mubr.f32.gmra.mrb[0].mxu0 %v4042
    %v4241 = vpop.f32.mrb[0].mxu0
    %v4242 = vadd.f32 0.0, %v4241
    %v4243 = vpop.f32.mrb[0].mxu0
    %4244 = vmatprep.mubr.f32.mxu0 0.0
    %4245 = vmatmul.mubr.f32.gmra.mrb[0].mxu0 %v4043
    %v4246 = vpop.f32.mrb[0].mxu0
    %v4247 = vadd.f32 0.0, %v4246
    %v4248 = vpop.f32.mrb[0].mxu0
    %4249 = vmatprep.mubr.f32.mxu0 0.0
    %4250 = vmatmul.mubr.f32.gmra.mrb[0].mxu0 %v4044
    %v4251 = vpop.f32.mrb[0].mxu0
    %v4252 = vadd.f32 0.0, %v4251
    %v4253 = vpop.f32.mrb[0].mxu0
    %4254 = vmatprep.mubr.f32.mxu0 0.0
    %4255 = vmatmul.mubr.f32.gmra.mrb[0].mxu0 %v4045
    %v4256 = vpop.f32.mrb[0].mxu0
    %v4257 = vadd.f32 0.0, %v4256
    %v4258 = vpop.f32.mrb[0].mxu0
    %4259 = vmatprep.mubr.f32.mxu0 0.0
    %4260 = vmatmul.mubr.f32.gmra.mrb[0].mxu0 %v4046
    %v4261 = vpop.f32.mrb[0].mxu0
    %v4262 = vadd.f32 0.0, %v4261
    %v4263 = vpop.f32.mrb[0].mxu0
    %4264 = vmatprep.mubr.f32.mxu0 0.0
    %4265 = vmatmul.mubr.f32.gmra.mrb[0].mxu0 %v4047
    %v4266 = vpop.f32.mrb[0].mxu0
    %v4267 = vadd.f32 0.0, %v4266
    %v4268 = vpop.f32.mrb[0].mxu0
    %4269 = vmatprep.mubr.f32.mxu0 0.0
    %4270 = vmatmul.mubr.f32.gmra.mrb[0].mxu0 %v4048
    %v4271 = vpop.f32.mrb[0].mxu0
    %v4272 = vadd.f32 0.0, %v4271
    %v4273 = vpop.f32.mrb[0].mxu0
    %4274 = vmatprep.mubr.f32.mxu0 0.0
    %4275 = vmatmul.mubr.f32.gmra.mrb[0].mxu0 %v4049
    %v4276 = vpop.f32.mrb[0].mxu0
    %v4277 = vadd.f32 0.0, %v4276
    %v4278 = vpop.f32.mrb[0].mxu0
    %4279 = vmatprep.mubr.f32.mxu0 0.0
    %4280 = vmatmul.mubr.f32.gmra.mrb[0].mxu0 %v4050
    %v4281 = vpop.f32.mrb[0].mxu0
    %v4282 = vadd.f32 0.0, %v4281
    %v4283 = vpop.f32.mrb[0].mxu0
    %4284 = vdwg.mxu0
    %v4285 = vsub.f32 %v3579, %v4207
    %v4286 = vsub.f32 %v3580, %v4212
    %v4287 = vsub.f32 %v3581, %v4217
    %v4288 = vsub.f32 %v3582, %v4222
    %v4289 = vsub.f32 %v3583, %v4227
    %v4290 = vsub.f32 %v3584, %v4232
    %v4291 = vsub.f32 %v3585, %v4237
    %v4292 = vsub.f32 %v3586, %v4242
    %v4293 = vsub.f32 %v3587, %v4247
    %v4294 = vsub.f32 %v3588, %v4252
    %v4295 = vsub.f32 %v3589, %v4257
    %v4296 = vsub.f32 %v3590, %v4262
    %v4297 = vsub.f32 %v3591, %v4267
    %v4298 = vsub.f32 %v3592, %v4272
    %v4299 = vsub.f32 %v3593, %v4277
    %v4300 = vsub.f32 %v3594, %v4282
    %v4301 = vmax.f32 %v4285, 0.0
    %v4302 = vmax.f32 %v4286, 0.0
    %v4303 = vmax.f32 %v4287, 0.0
    %v4304 = vmax.f32 %v4288, 0.0
    %v4305 = vmax.f32 %v4289, 0.0
    %v4306 = vmax.f32 %v4290, 0.0
    %v4307 = vmax.f32 %v4291, 0.0
    %v4308 = vmax.f32 %v4292, 0.0
    %v4309 = vmax.f32 %v4293, 0.0
    %v4310 = vmax.f32 %v4294, 0.0
    %v4311 = vmax.f32 %v4295, 0.0
    %v4312 = vmax.f32 %v4296, 0.0
    %v4313 = vmax.f32 %v4297, 0.0
    %v4314 = vmax.f32 %v4298, 0.0
    %v4315 = vmax.f32 %v4299, 0.0
    %v4316 = vmax.f32 %v4300, 0.0
    %4317 = vst.msk [vmem:[#allocation2] sm:$0xff] %vm508, %v4301
    %4318 = vst.msk [vmem:[#allocation2 + $0x8] sm:$0xff] %vm508, %v4302
    %4319 = vst.msk [vmem:[#allocation2 + $0x10] sm:$0xff] %vm508, %v4303
    %4320 = vst.msk [vmem:[#allocation2 + $0x18] sm:$0xff] %vm508, %v4304
    %4321 = vst.msk [vmem:[#allocation2 + $0x20] sm:$0xff] %vm508, %v4305
    %4322 = vst.msk [vmem:[#allocation2 + $0x28] sm:$0xff] %vm508, %v4306
    %4323 = vst.msk [vmem:[#allocation2 + $0x30] sm:$0xff] %vm508, %v4307
    %4324 = vst.msk [vmem:[#allocation2 + $0x38] sm:$0xff] %vm508, %v4308
    %4325 = vst.msk [vmem:[#allocation2 + $0x40] sm:$0xff] %vm508, %v4309
    %4326 = vst.msk [vmem:[#allocation2 + $0x48] sm:$0xff] %vm508, %v4310
    %4327 = vst.msk [vmem:[#allocation2 + $0x50] sm:$0xff] %vm508, %v4311
    %4328 = vst.msk [vmem:[#allocation2 + $0x58] sm:$0xff] %vm508, %v4312
    %4329 = vst.msk [vmem:[#allocation2 + $0x60] sm:$0xff] %vm508, %v4313
    %4330 = vst.msk [vmem:[#allocation2 + $0x68] sm:$0xff] %vm508, %v4314
    %4331 = vst.msk [vmem:[#allocation2 + $0x70] sm:$0xff] %vm508, %v4315
    %4332 = vst.msk [vmem:[#allocation2 + $0x78] sm:$0xff] %vm508, %v4316
    %v4333 = vmul.f32 %v4022, %v4028
    %v4334 = vsub.f32 %v3595, %v4333
    %v4335 = vmax.f32 %v4334, 0.0
    %4336 = vst [vmem:[#allocation3] sm:$0x1] %v4335
    %v4337 = vld [vmem:[#allocation2] sm:$0xff]
    %v4338 = vld [vmem:[#allocation2 + $0x8] sm:$0xff]
    %v4339 = vld [vmem:[#allocation2 + $0x10] sm:$0xff]
    %v4340 = vld [vmem:[#allocation2 + $0x18] sm:$0xff]
    %v4341 = vld [vmem:[#allocation2 + $0x20] sm:$0xff]
    %v4342 = vld [vmem:[#allocation2 + $0x28] sm:$0xff]
    %v4343 = vld [vmem:[#allocation2 + $0x30] sm:$0xff]
    %v4344 = vld [vmem:[#allocation2 + $0x38] sm:$0xff]
    %v4345 = vld [vmem:[#allocation2 + $0x40] sm:$0xff]
    %v4346 = vld [vmem:[#allocation2 + $0x48] sm:$0xff]
    %v4347 = vld [vmem:[#allocation2 + $0x50] sm:$0xff]
    %v4348 = vld [vmem:[#allocation2 + $0x58] sm:$0xff]
    %v4349 = vld [vmem:[#allocation2 + $0x60] sm:$0xff]
    %v4350 = vld [vmem:[#allocation2 + $0x68] sm:$0xff]
    %v4351 = vld [vmem:[#allocation2 + $0x70] sm:$0xff]
    %v4352 = vld [vmem:[#allocation2 + $0x78] sm:$0xff]
    %v4353 = vld [vmem:[#allocation3] sm:$0x1]
    %v4354 = vmul.f32 %v3596, -16.0
    %v4355 = vmul.f32 %v3597, -16.0
    %v4356 = vmul.f32 %v3598, -16.0
    %v4357 = vmul.f32 %v3599, -16.0
    %v4358 = vmul.f32 %v3600, -16.0
    %v4359 = vmul.f32 %v3601, -16.0
    %v4360 = vmul.f32 %v3602, -16.0
    %v4361 = vmul.f32 %v3603, -16.0
    %v4362 = vmul.f32 %v3604, -16.0
    %v4363 = vmul.f32 %v3605, -16.0
    %v4364 = vmul.f32 %v3606, -16.0
    %v4365 = vmul.f32 %v3607, -16.0
    %v4366 = vmul.f32 %v3608, -16.0
    %v4367 = vmul.f32 %v3609, -16.0
    %v4368 = vmul.f32 %v3610, -16.0
    %v4369 = vmul.f32 %v3611, -16.0
    %v4370 = vmul.f32 %v4354, 1.442695
    %v4371 = vpow.pop %v4370
    %v4372 = vmul.f32 %v4355, 1.442695
    %v4373 = vpow.pop %v4372
    %v4374 = vmul.f32 %v4356, 1.442695
    %v4375 = vpow.pop %v4374
    %v4376 = vmul.f32 %v4357, 1.442695
    %v4377 = vpow.pop %v4376
    %v4378 = vmul.f32 %v4358, 1.442695
    %v4379 = vpow.pop %v4378
    %v4380 = vmul.f32 %v4359, 1.442695
    %v4381 = vpow.pop %v4380
    %v4382 = vmul.f32 %v4360, 1.442695
    %v4383 = vpow.pop %v4382
    %v4384 = vmul.f32 %v4361, 1.442695
    %v4385 = vpow.pop %v4384
    %v4386 = vmul.f32 %v4362, 1.442695
    %v4387 = vpow.pop %v4386
    %v4388 = vmul.f32 %v4363, 1.442695
    %v4389 = vpow.pop %v4388
    %v4390 = vmul.f32 %v4364, 1.442695
    %v4391 = vpow.pop %v4390
    %v4392 = vmul.f32 %v4365, 1.442695
    %v4393 = vpow.pop %v4392
    %v4394 = vmul.f32 %v4366, 1.442695
    %v4395 = vpow.pop %v4394
    %v4396 = vmul.f32 %v4367, 1.442695
    %v4397 = vpow.pop %v4396
    %v4398 = vmul.f32 %v4368, 1.442695
    %v4399 = vpow.pop %v4398
    %v4400 = vmul.f32 %v4369, 1.442695
    %v4401 = vpow.pop %v4400
    %v4403 = vlaneseq
    %v4404 = vshrl.u32 %v4403, 7
    %v4405 = vsub.s32 0, %v4404
    %v4406 = vrot.slane %v4353, %v4405
    %v4408 = vmul.f32 %v4371, %v4406
    %v4409 = vmul.f32 %v4373, %v4406
    %v4410 = vmul.f32 %v4375, %v4406
    %v4411 = vmul.f32 %v4377, %v4406
    %v4412 = vmul.f32 %v4379, %v4406
    %v4413 = vmul.f32 %v4381, %v4406
    %v4414 = vmul.f32 %v4383, %v4406
    %v4415 = vmul.f32 %v4385, %v4406
    %v4416 = vmul.f32 %v4387, %v4406
    %v4417 = vmul.f32 %v4389, %v4406
    %v4418 = vmul.f32 %v4391, %v4406
    %v4419 = vmul.f32 %v4393, %v4406
    %v4420 = vmul.f32 %v4395, %v4406
    %v4421 = vmul.f32 %v4397, %v4406
    %v4422 = vmul.f32 %v4399, %v4406
    %v4423 = vmul.f32 %v4401, %v4406
    %4424 = vmatprep.subr.mxu0 0.0
    %4425 = vmatpush1.msra.mxu0 1.0
    %4426 = vmatprep.subr.mxu0 0.0
    %4427 = vmatpush1.msra.mxu0 1.0
    %4428 = vmatprep.subr.mxu0 0.0
    %4429 = vmatpush1.msra.mxu0 1.0
    %4430 = vmatprep.subr.mxu0 0.0
    %4431 = vmatpush1.msra.mxu0 1.0
    %4432 = vmatprep.subr.mxu0 0.0
    %4433 = vmatpush1.msra.mxu0 1.0
    %4434 = vmatprep.subr.mxu0 0.0
    %4435 = vmatpush1.msra.mxu0 1.0
    %4436 = vmatprep.subr.mxu0 0.0
    %4437 = vmatpush1.msra.mxu0 1.0
    %4438 = vmatprep.subr.mxu0 0.0
    %4439 = vmatpush1.msra.mxu0 1.0
    %4440 = vmatprep.subr.mxu0 0.0
    %4441 = vmatpush1.msra.mxu0 1.0
    %4442 = vmatprep.subr.mxu0 0.0
    %4443 = vmatpush1.msra.mxu0 1.0
    %4444 = vmatprep.subr.mxu0 0.0
    %4445 = vmatpush1.msra.mxu0 1.0
    %4446 = vmatprep.subr.mxu0 0.0
    %4447 = vmatpush1.msra.mxu0 1.0
    %4448 = vmatprep.subr.mxu0 0.0
    %4449 = vmatpush1.msra.mxu0 1.0
    %4450 = vmatprep.subr.mxu0 0.0
    %4451 = vmatpush1.msra.mxu0 1.0
    %4452 = vmatprep.subr.mxu0 0.0
    %4453 = vmatpush1.msra.mxu0 1.0
    %4454 = vmatprep.subr.mxu0 0.0
    %4455 = vmatpush1.msra.mxu0 1.0
    %4456 = vmatprep.subr.mxu0 0.0
    %4457 = vmatpush1.msra.mxu0 0.0
    %4458 = vmatprep.subr.mxu0 0.0
    %4459 = vmatpush1.msra.mxu0 0.0
    %4460 = vmatprep.subr.mxu0 0.0
    %4461 = vmatpush1.msra.mxu0 0.0
    %4462 = vmatprep.subr.mxu0 0.0
    %4463 = vmatpush1.msra.mxu0 0.0
    %4464 = vmatprep.subr.mxu0 0.0
    %4465 = vmatpush1.msra.mxu0 0.0
    %4466 = vmatprep.subr.mxu0 0.0
    %4467 = vmatpush1.msra.mxu0 0.0
    %4468 = vmatprep.subr.mxu0 0.0
    %4469 = vmatpush1.msra.mxu0 0.0
    %4470 = vmatprep.subr.mxu0 0.0
    %4471 = vmatpush1.msra.mxu0 0.0
    %4472 = vmatprep.subr.mxu0 0.0
    %4473 = vmatpush1.msra.mxu0 0.0
    %4474 = vmatprep.subr.mxu0 0.0
    %4475 = vmatpush1.msra.mxu0 0.0
    %4476 = vmatprep.subr.mxu0 0.0
    %4477 = vmatpush1.msra.mxu0 0.0
    %4478 = vmatprep.subr.mxu0 0.0
    %4479 = vmatpush1.msra.mxu0 0.0
    %4480 = vmatprep.subr.mxu0 0.0
    %4481 = vmatpush1.msra.mxu0 0.0
    %4482 = vmatprep.subr.mxu0 0.0
    %4483 = vmatpush1.msra.mxu0 0.0
    %4484 = vmatprep.subr.mxu0 0.0
    %4485 = vmatpush1.msra.mxu0 0.0
    %4486 = vmatprep.subr.mxu0 0.0
    %4487 = vmatpush1.msra.mxu0 0.0
    %4488 = vmatprep.mubr.f32.mxu0 0.0
    %4489 = vmatmul.mubr.f32.gmra.mrb[0].mxu0 %v4408
    %v4490 = vpop.f32.mrb[0].mxu0
    %v4491 = vadd.f32 1e-09, %v4490
    %v4492 = vpop.f32.mrb[0].mxu0
    %4493 = vmatprep.mubr.f32.mxu0 0.0
    %4494 = vmatmul.mubr.f32.gmra.mrb[0].mxu0 %v4409
    %v4495 = vpop.f32.mrb[0].mxu0
    %v4496 = vadd.f32 1e-09, %v4495
    %v4497 = vpop.f32.mrb[0].mxu0
    %4498 = vmatprep.mubr.f32.mxu0 0.0
    %4499 = vmatmul.mubr.f32.gmra.mrb[0].mxu0 %v4410
    %v4500 = vpop.f32.mrb[0].mxu0
    %v4501 = vadd.f32 1e-09, %v4500
    %v4502 = vpop.f32.mrb[0].mxu0
    %4503 = vmatprep.mubr.f32.mxu0 0.0
    %4504 = vmatmul.mubr.f32.gmra.mrb[0].mxu0 %v4411
    %v4505 = vpop.f32.mrb[0].mxu0
    %v4506 = vadd.f32 1e-09, %v4505
    %v4507 = vpop.f32.mrb[0].mxu0
    %4508 = vmatprep.mubr.f32.mxu0 0.0
    %4509 = vmatmul.mubr.f32.gmra.mrb[0].mxu0 %v4412
    %v4510 = vpop.f32.mrb[0].mxu0
    %v4511 = vadd.f32 1e-09, %v4510
    %v4512 = vpop.f32.mrb[0].mxu0
    %4513 = vmatprep.mubr.f32.mxu0 0.0
    %4514 = vmatmul.mubr.f32.gmra.mrb[0].mxu0 %v4413
    %v4515 = vpop.f32.mrb[0].mxu0
    %v4516 = vadd.f32 1e-09, %v4515
    %v4517 = vpop.f32.mrb[0].mxu0
    %4518 = vmatprep.mubr.f32.mxu0 0.0
    %4519 = vmatmul.mubr.f32.gmra.mrb[0].mxu0 %v4414
    %v4520 = vpop.f32.mrb[0].mxu0
    %v4521 = vadd.f32 1e-09, %v4520
    %v4522 = vpop.f32.mrb[0].mxu0
    %4523 = vmatprep.mubr.f32.mxu0 0.0
    %4524 = vmatmul.mubr.f32.gmra.mrb[0].mxu0 %v4415
    %v4525 = vpop.f32.mrb[0].mxu0
    %v4526 = vadd.f32 1e-09, %v4525
    %v4527 = vpop.f32.mrb[0].mxu0
    %4528 = vmatprep.mubr.f32.mxu0 0.0
    %4529 = vmatmul.mubr.f32.gmra.mrb[0].mxu0 %v4416
    %v4530 = vpop.f32.mrb[0].mxu0
    %v4531 = vadd.f32 1e-09, %v4530
    %v4532 = vpop.f32.mrb[0].mxu0
    %4533 = vmatprep.mubr.f32.mxu0 0.0
    %4534 = vmatmul.mubr.f32.gmra.mrb[0].mxu0 %v4417
    %v4535 = vpop.f32.mrb[0].mxu0
    %v4536 = vadd.f32 1e-09, %v4535
    %v4537 = vpop.f32.mrb[0].mxu0
    %4538 = vmatprep.mubr.f32.mxu0 0.0
    %4539 = vmatmul.mubr.f32.gmra.mrb[0].mxu0 %v4418
    %v4540 = vpop.f32.mrb[0].mxu0
    %v4541 = vadd.f32 1e-09, %v4540
    %v4542 = vpop.f32.mrb[0].mxu0
    %4543 = vmatprep.mubr.f32.mxu0 0.0
    %4544 = vmatmul.mubr.f32.gmra.mrb[0].mxu0 %v4419
    %v4545 = vpop.f32.mrb[0].mxu0
    %v4546 = vadd.f32 1e-09, %v4545
    %v4547 = vpop.f32.mrb[0].mxu0
    %4548 = vmatprep.mubr.f32.mxu0 0.0
    %4549 = vmatmul.mubr.f32.gmra.mrb[0].mxu0 %v4420
    %v4550 = vpop.f32.mrb[0].mxu0
    %v4551 = vadd.f32 1e-09, %v4550
    %v4552 = vpop.f32.mrb[0].mxu0
    %4553 = vmatprep.mubr.f32.mxu0 0.0
    %4554 = vmatmul.mubr.f32.gmra.mrb[0].mxu0 %v4421
    %v4555 = vpop.f32.mrb[0].mxu0
    %v4556 = vadd.f32 1e-09, %v4555
    %v4557 = vpop.f32.mrb[0].mxu0
    %4558 = vmatprep.mubr.f32.mxu0 0.0
    %4559 = vmatmul.mubr.f32.gmra.mrb[0].mxu0 %v4422
    %v4560 = vpop.f32.mrb[0].mxu0
    %v4561 = vadd.f32 1e-09, %v4560
    %v4562 = vpop.f32.mrb[0].mxu0
    %4563 = vmatprep.mubr.f32.mxu0 0.0
    %4564 = vmatmul.mubr.f32.gmra.mrb[0].mxu0 %v4423
    %v4565 = vpop.f32.mrb[0].mxu0
    %v4566 = vadd.f32 1e-09, %v4565
    %v4567 = vpop.f32.mrb[0].mxu0
    %4568 = vdwg.mxu0
    %v4569 = vrcp.pop %v4491
    %v4570 = vmul.f32 %v4337, %v4569
    %v4571 = vrcp.pop %v4496
    %v4572 = vmul.f32 %v4338, %v4571
    %v4573 = vrcp.pop %v4501
    %v4574 = vmul.f32 %v4339, %v4573
    %v4575 = vrcp.pop %v4506
    %v4576 = vmul.f32 %v4340, %v4575
    %v4577 = vrcp.pop %v4511
    %v4578 = vmul.f32 %v4341, %v4577
    %v4579 = vrcp.pop %v4516
    %v4580 = vmul.f32 %v4342, %v4579
    %v4581 = vrcp.pop %v4521
    %v4582 = vmul.f32 %v4343, %v4581
    %v4583 = vrcp.pop %v4526
    %v4584 = vmul.f32 %v4344, %v4583
    %v4585 = vrcp.pop %v4531
    %v4586 = vmul.f32 %v4345, %v4585
    %v4587 = vrcp.pop %v4536
    %v4588 = vmul.f32 %v4346, %v4587
    %v4589 = vrcp.pop %v4541
    %v4590 = vmul.f32 %v4347, %v4589
    %v4591 = vrcp.pop %v4546
    %v4592 = vmul.f32 %v4348, %v4591
    %v4593 = vrcp.pop %v4551
    %v4594 = vmul.f32 %v4349, %v4593
    %v4595 = vrcp.pop %v4556
    %v4596 = vmul.f32 %v4350, %v4595
    %v4597 = vrcp.pop %v4561
    %v4598 = vmul.f32 %v4351, %v4597
    %v4599 = vrcp.pop %v4566
    %v4600 = vmul.f32 %v4352, %v4599
    %4602 = vset.pattern.permute.xlu0 0
    %4603 = vperm.xlu0 %4602, %v4570
    %v4604 = vpop.permute.xlu0 %4603
    %4607 = vset.pattern.permute.xlu0 0
    %4608 = vperm.xlu0 %4607, %v4572
    %v4609 = vpop.permute.xlu0 %4608
    %4612 = vset.pattern.permute.xlu0 0
    %4613 = vperm.xlu0 %4612, %v4574
    %v4614 = vpop.permute.xlu0 %4613
    %4617 = vset.pattern.permute.xlu0 0
    %4618 = vperm.xlu0 %4617, %v4576
    %v4619 = vpop.permute.xlu0 %4618
    %4622 = vset.pattern.permute.xlu0 0
    %4623 = vperm.xlu0 %4622, %v4578
    %v4624 = vpop.permute.xlu0 %4623
    %4627 = vset.pattern.permute.xlu0 0
    %4628 = vperm.xlu0 %4627, %v4580
    %v4629 = vpop.permute.xlu0 %4628
    %4632 = vset.pattern.permute.xlu0 0
    %4633 = vperm.xlu0 %4632, %v4582
    %v4634 = vpop.permute.xlu0 %4633
    %4637 = vset.pattern.permute.xlu0 0
    %4638 = vperm.xlu0 %4637, %v4584
    %v4639 = vpop.permute.xlu0 %4638
    %4642 = vset.pattern.permute.xlu0 0
    %4643 = vperm.xlu0 %4642, %v4586
    %v4644 = vpop.permute.xlu0 %4643
    %4647 = vset.pattern.permute.xlu0 0
    %4648 = vperm.xlu0 %4647, %v4588
    %v4649 = vpop.permute.xlu0 %4648
    %4652 = vset.pattern.permute.xlu0 0
    %4653 = vperm.xlu0 %4652, %v4590
    %v4654 = vpop.permute.xlu0 %4653
    %4657 = vset.pattern.permute.xlu0 0
    %4658 = vperm.xlu0 %4657, %v4592
    %v4659 = vpop.permute.xlu0 %4658
    %4662 = vset.pattern.permute.xlu0 0
    %4663 = vperm.xlu0 %4662, %v4594
    %v4664 = vpop.permute.xlu0 %4663
    %4667 = vset.pattern.permute.xlu0 0
    %4668 = vperm.xlu0 %4667, %v4596
    %v4669 = vpop.permute.xlu0 %4668
    %4672 = vset.pattern.permute.xlu0 0
    %4673 = vperm.xlu0 %4672, %v4598
    %v4674 = vpop.permute.xlu0 %4673
    %4677 = vset.pattern.permute.xlu0 0
    %4678 = vperm.xlu0 %4677, %v4600
    %v4679 = vpop.permute.xlu0 %4678
    %v4681 = vmul.f32 %v4408, %v4604
    %v4682 = vmul.f32 %v4409, %v4609
    %v4683 = vmul.f32 %v4410, %v4614
    %v4684 = vmul.f32 %v4411, %v4619
    %v4685 = vmul.f32 %v4412, %v4624
    %v4686 = vmul.f32 %v4413, %v4629
    %v4687 = vmul.f32 %v4414, %v4634
    %v4688 = vmul.f32 %v4415, %v4639
    %v4689 = vmul.f32 %v4416, %v4644
    %v4690 = vmul.f32 %v4417, %v4649
    %v4691 = vmul.f32 %v4418, %v4654
    %v4692 = vmul.f32 %v4419, %v4659
    %v4693 = vmul.f32 %v4420, %v4664
    %v4694 = vmul.f32 %v4421, %v4669
    %v4695 = vmul.f32 %v4422, %v4674
    %v4696 = vmul.f32 %v4423, %v4679
    %4697 = vmatprep.subr.mxu0 0.0
    %4698 = vmatpush1.msra.mxu0 %v4681
    %4699 = vmatprep.subr.mxu0 0.0
    %4700 = vmatpush1.msra.mxu0 %v4682
    %4701 = vmatprep.subr.mxu0 0.0
    %4702 = vmatpush1.msra.mxu0 %v4683
    %4703 = vmatprep.subr.mxu0 0.0
    %4704 = vmatpush1.msra.mxu0 %v4684
    %4705 = vmatprep.subr.mxu0 0.0
    %4706 = vmatpush1.msra.mxu0 %v4685
    %4707 = vmatprep.subr.mxu0 0.0
    %4708 = vmatpush1.msra.mxu0 %v4686
    %4709 = vmatprep.subr.mxu0 0.0
    %4710 = vmatpush1.msra.mxu0 %v4687
    %4711 = vmatprep.subr.mxu0 0.0
    %4712 = vmatpush1.msra.mxu0 %v4688
    %4713 = vmatprep.subr.mxu0 0.0
    %4714 = vmatpush1.msra.mxu0 %v4689
    %4715 = vmatprep.subr.mxu0 0.0
    %4716 = vmatpush1.msra.mxu0 %v4690
    %4717 = vmatprep.subr.mxu0 0.0
    %4718 = vmatpush1.msra.mxu0 %v4691
    %4719 = vmatprep.subr.mxu0 0.0
    %4720 = vmatpush1.msra.mxu0 %v4692
    %4721 = vmatprep.subr.mxu0 0.0
    %4722 = vmatpush1.msra.mxu0 %v4693
    %4723 = vmatprep.subr.mxu0 0.0
    %4724 = vmatpush1.msra.mxu0 %v4694
    %4725 = vmatprep.subr.mxu0 0.0
    %4726 = vmatpush1.msra.mxu0 %v4695
    %4727 = vmatprep.subr.mxu0 0.0
    %4728 = vmatpush1.msra.mxu0 %v4696
    %4729 = vmatprep.subr.mxu0 0.0
    %4730 = vmatpush1.msra.mxu0 0.0
    %4731 = vmatprep.subr.mxu0 0.0
    %4732 = vmatpush1.msra.mxu0 0.0
    %4733 = vmatprep.subr.mxu0 0.0
    %4734 = vmatpush1.msra.mxu0 0.0
    %4735 = vmatprep.subr.mxu0 0.0
    %4736 = vmatpush1.msra.mxu0 0.0
    %4737 = vmatprep.subr.mxu0 0.0
    %4738 = vmatpush1.msra.mxu0 0.0
    %4739 = vmatprep.subr.mxu0 0.0
    %4740 = vmatpush1.msra.mxu0 0.0
    %4741 = vmatprep.subr.mxu0 0.0
    %4742 = vmatpush1.msra.mxu0 0.0
    %4743 = vmatprep.subr.mxu0 0.0
    %4744 = vmatpush1.msra.mxu0 0.0
    %4745 = vmatprep.subr.mxu0 0.0
    %4746 = vmatpush1.msra.mxu0 0.0
    %4747 = vmatprep.subr.mxu0 0.0
    %4748 = vmatpush1.msra.mxu0 0.0
    %4749 = vmatprep.subr.mxu0 0.0
    %4750 = vmatpush1.msra.mxu0 0.0
    %4751 = vmatprep.subr.mxu0 0.0
    %4752 = vmatpush1.msra.mxu0 0.0
    %4753 = vmatprep.subr.mxu0 0.0
    %4754 = vmatpush1.msra.mxu0 0.0
    %4755 = vmatprep.subr.mxu0 0.0
    %4756 = vmatpush1.msra.mxu0 0.0
    %4757 = vmatprep.subr.mxu0 0.0
    %4758 = vmatpush1.msra.mxu0 0.0
    %4759 = vmatprep.subr.mxu0 0.0
    %4760 = vmatpush1.msra.mxu0 0.0
    %4761 = vmatprep.mubr.f32.mxu0 0.0
    %4762 = vmatmul.mubr.f32.gmra.mrb[0].mxu0 1.0
    %v4763 = vpop.f32.mrb[0].mxu0
    %v4764 = vadd.f32 0.0, %v4763
    %v4765 = vpop.f32.mrb[0].mxu0
    %4766 = vdwg.mxu0
    %v4767 = vadd.f32 %v4764, 1e-09
    %v4768 = vrcp.pop %v4767
    %v4769 = vmul.f32 %v4353, %v4768
    %v4770 = vmin.f32 %v4769, 1.0
    %v4772 = vlaneseq
    %v4773 = vshrl.u32 %v4772, 7
    %v4774 = vsub.s32 0, %v4773
    %v4775 = vrot.slane %v4770, %v4774
    %v4777 = vmul.f32 %v4681, %v4775
    %v4778 = vmul.f32 %v4682, %v4775
    %v4779 = vmul.f32 %v4683, %v4775
    %v4780 = vmul.f32 %v4684, %v4775
    %v4781 = vmul.f32 %v4685, %v4775
    %v4782 = vmul.f32 %v4686, %v4775
    %v4783 = vmul.f32 %v4687, %v4775
    %v4784 = vmul.f32 %v4688, %v4775
    %v4785 = vmul.f32 %v4689, %v4775
    %v4786 = vmul.f32 %v4690, %v4775
    %v4787 = vmul.f32 %v4691, %v4775
    %v4788 = vmul.f32 %v4692, %v4775
    %v4789 = vmul.f32 %v4693, %v4775
    %v4790 = vmul.f32 %v4694, %v4775
    %v4791 = vmul.f32 %v4695, %v4775
    %v4792 = vmul.f32 %v4696, %v4775
    %v4793 = vld [vmem:[#allocation4] sm:$0x1]
    %v4794 = vmul.f32 %v378, %v4777
    %v4795 = vmul.f32 %v385, %v4778
    %v4796 = vmul.f32 %v392, %v4779
    %v4797 = vmul.f32 %v399, %v4780
    %v4798 = vmul.f32 %v406, %v4781
    %v4799 = vmul.f32 %v413, %v4782
    %v4800 = vmul.f32 %v420, %v4783
    %v4801 = vmul.f32 %v427, %v4784
    %v4802 = vmul.f32 %v434, %v4785
    %v4803 = vmul.f32 %v441, %v4786
    %v4804 = vmul.f32 %v448, %v4787
    %v4805 = vmul.f32 %v455, %v4788
    %v4806 = vmul.f32 %v462, %v4789
    %v4807 = vmul.f32 %v469, %v4790
    %v4808 = vmul.f32 %v476, %v4791
    %v4809 = vmul.f32 %v483, %v4792
    %4810 = vmatprep.subr.mxu0 0.0
    %4811 = vmatpush1.msra.mxu0 %v4794
    %4812 = vmatprep.subr.mxu0 0.0
    %4813 = vmatpush1.msra.mxu0 %v4795
    %4814 = vmatprep.subr.mxu0 0.0
    %4815 = vmatpush1.msra.mxu0 %v4796
    %4816 = vmatprep.subr.mxu0 0.0
    %4817 = vmatpush1.msra.mxu0 %v4797
    %4818 = vmatprep.subr.mxu0 0.0
    %4819 = vmatpush1.msra.mxu0 %v4798
    %4820 = vmatprep.subr.mxu0 0.0
    %4821 = vmatpush1.msra.mxu0 %v4799
    %4822 = vmatprep.subr.mxu0 0.0
    %4823 = vmatpush1.msra.mxu0 %v4800
    %4824 = vmatprep.subr.mxu0 0.0
    %4825 = vmatpush1.msra.mxu0 %v4801
    %4826 = vmatprep.subr.mxu0 0.0
    %4827 = vmatpush1.msra.mxu0 %v4802
    %4828 = vmatprep.subr.mxu0 0.0
    %4829 = vmatpush1.msra.mxu0 %v4803
    %4830 = vmatprep.subr.mxu0 0.0
    %4831 = vmatpush1.msra.mxu0 %v4804
    %4832 = vmatprep.subr.mxu0 0.0
    %4833 = vmatpush1.msra.mxu0 %v4805
    %4834 = vmatprep.subr.mxu0 0.0
    %4835 = vmatpush1.msra.mxu0 %v4806
    %4836 = vmatprep.subr.mxu0 0.0
    %4837 = vmatpush1.msra.mxu0 %v4807
    %4838 = vmatprep.subr.mxu0 0.0
    %4839 = vmatpush1.msra.mxu0 %v4808
    %4840 = vmatprep.subr.mxu0 0.0
    %4841 = vmatpush1.msra.mxu0 %v4809
    %4842 = vmatprep.subr.mxu0 0.0
    %4843 = vmatpush1.msra.mxu0 0.0
    %4844 = vmatprep.subr.mxu0 0.0
    %4845 = vmatpush1.msra.mxu0 0.0
    %4846 = vmatprep.subr.mxu0 0.0
    %4847 = vmatpush1.msra.mxu0 0.0
    %4848 = vmatprep.subr.mxu0 0.0
    %4849 = vmatpush1.msra.mxu0 0.0
    %4850 = vmatprep.subr.mxu0 0.0
    %4851 = vmatpush1.msra.mxu0 0.0
    %4852 = vmatprep.subr.mxu0 0.0
    %4853 = vmatpush1.msra.mxu0 0.0
    %4854 = vmatprep.subr.mxu0 0.0
    %4855 = vmatpush1.msra.mxu0 0.0
    %4856 = vmatprep.subr.mxu0 0.0
    %4857 = vmatpush1.msra.mxu0 0.0
    %4858 = vmatprep.subr.mxu0 0.0
    %4859 = vmatpush1.msra.mxu0 0.0
    %4860 = vmatprep.subr.mxu0 0.0
    %4861 = vmatpush1.msra.mxu0 0.0
    %4862 = vmatprep.subr.mxu0 0.0
    %4863 = vmatpush1.msra.mxu0 0.0
    %4864 = vmatprep.subr.mxu0 0.0
    %4865 = vmatpush1.msra.mxu0 0.0
    %4866 = vmatprep.subr.mxu0 0.0
    %4867 = vmatpush1.msra.mxu0 0.0
    %4868 = vmatprep.subr.mxu0 0.0
    %4869 = vmatpush1.msra.mxu0 0.0
    %4870 = vmatprep.subr.mxu0 0.0
    %4871 = vmatpush1.msra.mxu0 0.0
    %4872 = vmatprep.subr.mxu0 0.0
    %4873 = vmatpush1.msra.mxu0 0.0
    %4874 = vmatprep.mubr.f32.mxu0 0.0
    %4875 = vmatmul.mubr.f32.gmra.mrb[0].mxu0 1.0
    %v4876 = vpop.f32.mrb[0].mxu0
    %v4877 = vadd.f32 0.0, %v4876
    %v4878 = vpop.f32.mrb[0].mxu0
    %4879 = vdwg.mxu0
    %v4880 = vadd.f32 %v4793, %v4877
    %4881 = vst [vmem:[#allocation4] sm:$0x1] %v4880
    %4882 = vmatprep.subr.mxu0 0.0
    %4883 = vmatpush1.msra.mxu0 1.0
    %4884 = vmatprep.subr.mxu0 0.0
    %4885 = vmatpush1.msra.mxu0 1.0
    %4886 = vmatprep.subr.mxu0 0.0
    %4887 = vmatpush1.msra.mxu0 1.0
    %4888 = vmatprep.subr.mxu0 0.0
    %4889 = vmatpush1.msra.mxu0 1.0
    %4890 = vmatprep.subr.mxu0 0.0
    %4891 = vmatpush1.msra.mxu0 1.0
    %4892 = vmatprep.subr.mxu0 0.0
    %4893 = vmatpush1.msra.mxu0 1.0
    %4894 = vmatprep.subr.mxu0 0.0
    %4895 = vmatpush1.msra.mxu0 1.0
    %4896 = vmatprep.subr.mxu0 0.0
    %4897 = vmatpush1.msra.mxu0 1.0
    %4898 = vmatprep.subr.mxu0 0.0
    %4899 = vmatpush1.msra.mxu0 1.0
    %4900 = vmatprep.subr.mxu0 0.0
    %4901 = vmatpush1.msra.mxu0 1.0
    %4902 = vmatprep.subr.mxu0 0.0
    %4903 = vmatpush1.msra.mxu0 1.0
    %4904 = vmatprep.subr.mxu0 0.0
    %4905 = vmatpush1.msra.mxu0 1.0
    %4906 = vmatprep.subr.mxu0 0.0
    %4907 = vmatpush1.msra.mxu0 1.0
    %4908 = vmatprep.subr.mxu0 0.0
    %4909 = vmatpush1.msra.mxu0 1.0
    %4910 = vmatprep.subr.mxu0 0.0
    %4911 = vmatpush1.msra.mxu0 1.0
    %4912 = vmatprep.subr.mxu0 0.0
    %4913 = vmatpush1.msra.mxu0 1.0
    %4914 = vmatprep.subr.mxu0 0.0
    %4915 = vmatpush1.msra.mxu0 0.0
    %4916 = vmatprep.subr.mxu0 0.0
    %4917 = vmatpush1.msra.mxu0 0.0
    %4918 = vmatprep.subr.mxu0 0.0
    %4919 = vmatpush1.msra.mxu0 0.0
    %4920 = vmatprep.subr.mxu0 0.0
    %4921 = vmatpush1.msra.mxu0 0.0
    %4922 = vmatprep.subr.mxu0 0.0
    %4923 = vmatpush1.msra.mxu0 0.0
    %4924 = vmatprep.subr.mxu0 0.0
    %4925 = vmatpush1.msra.mxu0 0.0
    %4926 = vmatprep.subr.mxu0 0.0
    %4927 = vmatpush1.msra.mxu0 0.0
    %4928 = vmatprep.subr.mxu0 0.0
    %4929 = vmatpush1.msra.mxu0 0.0
    %4930 = vmatprep.subr.mxu0 0.0
    %4931 = vmatpush1.msra.mxu0 0.0
    %4932 = vmatprep.subr.mxu0 0.0
    %4933 = vmatpush1.msra.mxu0 0.0
    %4934 = vmatprep.subr.mxu0 0.0
    %4935 = vmatpush1.msra.mxu0 0.0
    %4936 = vmatprep.subr.mxu0 0.0
    %4937 = vmatpush1.msra.mxu0 0.0
    %4938 = vmatprep.subr.mxu0 0.0
    %4939 = vmatpush1.msra.mxu0 0.0
    %4940 = vmatprep.subr.mxu0 0.0
    %4941 = vmatpush1.msra.mxu0 0.0
    %4942 = vmatprep.subr.mxu0 0.0
    %4943 = vmatpush1.msra.mxu0 0.0
    %4944 = vmatprep.subr.mxu0 0.0
    %4945 = vmatpush1.msra.mxu0 0.0
    %4946 = vmatprep.mubr.f32.mxu0 0.0
    %4947 = vmatmul.mubr.f32.gmra.mrb[0].mxu0 %v4777
    %v4948 = vpop.f32.mrb[0].mxu0
    %v4949 = vadd.f32 0.0, %v4948
    %v4950 = vpop.f32.mrb[0].mxu0
    %4951 = vmatprep.mubr.f32.mxu0 0.0
    %4952 = vmatmul.mubr.f32.gmra.mrb[0].mxu0 %v4778
    %v4953 = vpop.f32.mrb[0].mxu0
    %v4954 = vadd.f32 0.0, %v4953
    %v4955 = vpop.f32.mrb[0].mxu0
    %4956 = vmatprep.mubr.f32.mxu0 0.0
    %4957 = vmatmul.mubr.f32.gmra.mrb[0].mxu0 %v4779
    %v4958 = vpop.f32.mrb[0].mxu0
    %v4959 = vadd.f32 0.0, %v4958
    %v4960 = vpop.f32.mrb[0].mxu0
    %4961 = vmatprep.mubr.f32.mxu0 0.0
    %4962 = vmatmul.mubr.f32.gmra.mrb[0].mxu0 %v4780
    %v4963 = vpop.f32.mrb[0].mxu0
    %v4964 = vadd.f32 0.0, %v4963
    %v4965 = vpop.f32.mrb[0].mxu0
    %4966 = vmatprep.mubr.f32.mxu0 0.0
    %4967 = vmatmul.mubr.f32.gmra.mrb[0].mxu0 %v4781
    %v4968 = vpop.f32.mrb[0].mxu0
    %v4969 = vadd.f32 0.0, %v4968
    %v4970 = vpop.f32.mrb[0].mxu0
    %4971 = vmatprep.mubr.f32.mxu0 0.0
    %4972 = vmatmul.mubr.f32.gmra.mrb[0].mxu0 %v4782
    %v4973 = vpop.f32.mrb[0].mxu0
    %v4974 = vadd.f32 0.0, %v4973
    %v4975 = vpop.f32.mrb[0].mxu0
    %4976 = vmatprep.mubr.f32.mxu0 0.0
    %4977 = vmatmul.mubr.f32.gmra.mrb[0].mxu0 %v4783
    %v4978 = vpop.f32.mrb[0].mxu0
    %v4979 = vadd.f32 0.0, %v4978
    %v4980 = vpop.f32.mrb[0].mxu0
    %4981 = vmatprep.mubr.f32.mxu0 0.0
    %4982 = vmatmul.mubr.f32.gmra.mrb[0].mxu0 %v4784
    %v4983 = vpop.f32.mrb[0].mxu0
    %v4984 = vadd.f32 0.0, %v4983
    %v4985 = vpop.f32.mrb[0].mxu0
    %4986 = vmatprep.mubr.f32.mxu0 0.0
    %4987 = vmatmul.mubr.f32.gmra.mrb[0].mxu0 %v4785
    %v4988 = vpop.f32.mrb[0].mxu0
    %v4989 = vadd.f32 0.0, %v4988
    %v4990 = vpop.f32.mrb[0].mxu0
    %4991 = vmatprep.mubr.f32.mxu0 0.0
    %4992 = vmatmul.mubr.f32.gmra.mrb[0].mxu0 %v4786
    %v4993 = vpop.f32.mrb[0].mxu0
    %v4994 = vadd.f32 0.0, %v4993
    %v4995 = vpop.f32.mrb[0].mxu0
    %4996 = vmatprep.mubr.f32.mxu0 0.0
    %4997 = vmatmul.mubr.f32.gmra.mrb[0].mxu0 %v4787
    %v4998 = vpop.f32.mrb[0].mxu0
    %v4999 = vadd.f32 0.0, %v4998
    %v5000 = vpop.f32.mrb[0].mxu0
    %5001 = vmatprep.mubr.f32.mxu0 0.0
    %5002 = vmatmul.mubr.f32.gmra.mrb[0].mxu0 %v4788
    %v5003 = vpop.f32.mrb[0].mxu0
    %v5004 = vadd.f32 0.0, %v5003
    %v5005 = vpop.f32.mrb[0].mxu0
    %5006 = vmatprep.mubr.f32.mxu0 0.0
    %5007 = vmatmul.mubr.f32.gmra.mrb[0].mxu0 %v4789
    %v5008 = vpop.f32.mrb[0].mxu0
    %v5009 = vadd.f32 0.0, %v5008
    %v5010 = vpop.f32.mrb[0].mxu0
    %5011 = vmatprep.mubr.f32.mxu0 0.0
    %5012 = vmatmul.mubr.f32.gmra.mrb[0].mxu0 %v4790
    %v5013 = vpop.f32.mrb[0].mxu0
    %v5014 = vadd.f32 0.0, %v5013
    %v5015 = vpop.f32.mrb[0].mxu0
    %5016 = vmatprep.mubr.f32.mxu0 0.0
    %5017 = vmatmul.mubr.f32.gmra.mrb[0].mxu0 %v4791
    %v5018 = vpop.f32.mrb[0].mxu0
    %v5019 = vadd.f32 0.0, %v5018
    %v5020 = vpop.f32.mrb[0].mxu0
    %5021 = vmatprep.mubr.f32.mxu0 0.0
    %5022 = vmatmul.mubr.f32.gmra.mrb[0].mxu0 %v4792
    %v5023 = vpop.f32.mrb[0].mxu0
    %v5024 = vadd.f32 0.0, %v5023
    %v5025 = vpop.f32.mrb[0].mxu0
    %5026 = vdwg.mxu0
    %v5027 = vsub.f32 %v4337, %v4949
    %v5028 = vsub.f32 %v4338, %v4954
    %v5029 = vsub.f32 %v4339, %v4959
    %v5030 = vsub.f32 %v4340, %v4964
    %v5031 = vsub.f32 %v4341, %v4969
    %v5032 = vsub.f32 %v4342, %v4974
    %v5033 = vsub.f32 %v4343, %v4979
    %v5034 = vsub.f32 %v4344, %v4984
    %v5035 = vsub.f32 %v4345, %v4989
    %v5036 = vsub.f32 %v4346, %v4994
    %v5037 = vsub.f32 %v4347, %v4999
    %v5038 = vsub.f32 %v4348, %v5004
    %v5039 = vsub.f32 %v4349, %v5009
    %v5040 = vsub.f32 %v4350, %v5014
    %v5041 = vsub.f32 %v4351, %v5019
    %v5042 = vsub.f32 %v4352, %v5024
    %v5043 = vmax.f32 %v5027, 0.0
    %v5044 = vmax.f32 %v5028, 0.0
    %v5045 = vmax.f32 %v5029, 0.0
    %v5046 = vmax.f32 %v5030, 0.0
    %v5047 = vmax.f32 %v5031, 0.0
    %v5048 = vmax.f32 %v5032, 0.0
    %v5049 = vmax.f32 %v5033, 0.0
    %v5050 = vmax.f32 %v5034, 0.0
    %v5051 = vmax.f32 %v5035, 0.0
    %v5052 = vmax.f32 %v5036, 0.0
    %v5053 = vmax.f32 %v5037, 0.0
    %v5054 = vmax.f32 %v5038, 0.0
    %v5055 = vmax.f32 %v5039, 0.0
    %v5056 = vmax.f32 %v5040, 0.0
    %v5057 = vmax.f32 %v5041, 0.0
    %v5058 = vmax.f32 %v5042, 0.0
    %5059 = vst.msk [vmem:[#allocation2] sm:$0xff] %vm508, %v5043
    %5060 = vst.msk [vmem:[#allocation2 + $0x8] sm:$0xff] %vm508, %v5044
    %5061 = vst.msk [vmem:[#allocation2 + $0x10] sm:$0xff] %vm508, %v5045
    %5062 = vst.msk [vmem:[#allocation2 + $0x18] sm:$0xff] %vm508, %v5046
    %5063 = vst.msk [vmem:[#allocation2 + $0x20] sm:$0xff] %vm508, %v5047
    %5064 = vst.msk [vmem:[#allocation2 + $0x28] sm:$0xff] %vm508, %v5048
    %5065 = vst.msk [vmem:[#allocation2 + $0x30] sm:$0xff] %vm508, %v5049
    %5066 = vst.msk [vmem:[#allocation2 + $0x38] sm:$0xff] %vm508, %v5050
    %5067 = vst.msk [vmem:[#allocation2 + $0x40] sm:$0xff] %vm508, %v5051
    %5068 = vst.msk [vmem:[#allocation2 + $0x48] sm:$0xff] %vm508, %v5052
    %5069 = vst.msk [vmem:[#allocation2 + $0x50] sm:$0xff] %vm508, %v5053
    %5070 = vst.msk [vmem:[#allocation2 + $0x58] sm:$0xff] %vm508, %v5054
    %5071 = vst.msk [vmem:[#allocation2 + $0x60] sm:$0xff] %vm508, %v5055
    %5072 = vst.msk [vmem:[#allocation2 + $0x68] sm:$0xff] %vm508, %v5056
    %5073 = vst.msk [vmem:[#allocation2 + $0x70] sm:$0xff] %vm508, %v5057
    %5074 = vst.msk [vmem:[#allocation2 + $0x78] sm:$0xff] %vm508, %v5058
    %v5075 = vmul.f32 %v4764, %v4770
    %v5076 = vsub.f32 %v4353, %v5075
    %v5077 = vmax.f32 %v5076, 0.0
    %5078 = vst [vmem:[#allocation3] sm:$0x1] %v5077
    %v5079 = vld [vmem:[#allocation2] sm:$0xff]
    %v5080 = vld [vmem:[#allocation2 + $0x8] sm:$0xff]
    %v5081 = vld [vmem:[#allocation2 + $0x10] sm:$0xff]
    %v5082 = vld [vmem:[#allocation2 + $0x18] sm:$0xff]
    %v5083 = vld [vmem:[#allocation2 + $0x20] sm:$0xff]
    %v5084 = vld [vmem:[#allocation2 + $0x28] sm:$0xff]
    %v5085 = vld [vmem:[#allocation2 + $0x30] sm:$0xff]
    %v5086 = vld [vmem:[#allocation2 + $0x38] sm:$0xff]
    %v5087 = vld [vmem:[#allocation2 + $0x40] sm:$0xff]
    %v5088 = vld [vmem:[#allocation2 + $0x48] sm:$0xff]
    %v5089 = vld [vmem:[#allocation2 + $0x50] sm:$0xff]
    %v5090 = vld [vmem:[#allocation2 + $0x58] sm:$0xff]
    %v5091 = vld [vmem:[#allocation2 + $0x60] sm:$0xff]
    %v5092 = vld [vmem:[#allocation2 + $0x68] sm:$0xff]
    %v5093 = vld [vmem:[#allocation2 + $0x70] sm:$0xff]
    %v5094 = vld [vmem:[#allocation2 + $0x78] sm:$0xff]
    %v5095 = vld [vmem:[#allocation3] sm:$0x1]
    %v5096 = vmul.f32 %v3596, -4.0
    %v5097 = vmul.f32 %v3597, -4.0
    %v5098 = vmul.f32 %v3598, -4.0
    %v5099 = vmul.f32 %v3599, -4.0
    %v5100 = vmul.f32 %v3600, -4.0
    %v5101 = vmul.f32 %v3601, -4.0
    %v5102 = vmul.f32 %v3602, -4.0
    %v5103 = vmul.f32 %v3603, -4.0
    %v5104 = vmul.f32 %v3604, -4.0
    %v5105 = vmul.f32 %v3605, -4.0
    %v5106 = vmul.f32 %v3606, -4.0
    %v5107 = vmul.f32 %v3607, -4.0
    %v5108 = vmul.f32 %v3608, -4.0
    %v5109 = vmul.f32 %v3609, -4.0
    %v5110 = vmul.f32 %v3610, -4.0
    %v5111 = vmul.f32 %v3611, -4.0
    %v5112 = vmul.f32 %v5096, 1.442695
    %v5113 = vpow.pop %v5112
    %v5114 = vmul.f32 %v5097, 1.442695
    %v5115 = vpow.pop %v5114
    %v5116 = vmul.f32 %v5098, 1.442695
    %v5117 = vpow.pop %v5116
    %v5118 = vmul.f32 %v5099, 1.442695
    %v5119 = vpow.pop %v5118
    %v5120 = vmul.f32 %v5100, 1.442695
    %v5121 = vpow.pop %v5120
    %v5122 = vmul.f32 %v5101, 1.442695
    %v5123 = vpow.pop %v5122
    %v5124 = vmul.f32 %v5102, 1.442695
    %v5125 = vpow.pop %v5124
    %v5126 = vmul.f32 %v5103, 1.442695
    %v5127 = vpow.pop %v5126
    %v5128 = vmul.f32 %v5104, 1.442695
    %v5129 = vpow.pop %v5128
    %v5130 = vmul.f32 %v5105, 1.442695
    %v5131 = vpow.pop %v5130
    %v5132 = vmul.f32 %v5106, 1.442695
    %v5133 = vpow.pop %v5132
    %v5134 = vmul.f32 %v5107, 1.442695
    %v5135 = vpow.pop %v5134
    %v5136 = vmul.f32 %v5108, 1.442695
    %v5137 = vpow.pop %v5136
    %v5138 = vmul.f32 %v5109, 1.442695
    %v5139 = vpow.pop %v5138
    %v5140 = vmul.f32 %v5110, 1.442695
    %v5141 = vpow.pop %v5140
    %v5142 = vmul.f32 %v5111, 1.442695
    %v5143 = vpow.pop %v5142
    %v5145 = vlaneseq
    %v5146 = vshrl.u32 %v5145, 7
    %v5147 = vsub.s32 0, %v5146
    %v5148 = vrot.slane %v5095, %v5147
    %v5150 = vmul.f32 %v5113, %v5148
    %v5151 = vmul.f32 %v5115, %v5148
    %v5152 = vmul.f32 %v5117, %v5148
    %v5153 = vmul.f32 %v5119, %v5148
    %v5154 = vmul.f32 %v5121, %v5148
    %v5155 = vmul.f32 %v5123, %v5148
    %v5156 = vmul.f32 %v5125, %v5148
    %v5157 = vmul.f32 %v5127, %v5148
    %v5158 = vmul.f32 %v5129, %v5148
    %v5159 = vmul.f32 %v5131, %v5148
    %v5160 = vmul.f32 %v5133, %v5148
    %v5161 = vmul.f32 %v5135, %v5148
    %v5162 = vmul.f32 %v5137, %v5148
    %v5163 = vmul.f32 %v5139, %v5148
    %v5164 = vmul.f32 %v5141, %v5148
    %v5165 = vmul.f32 %v5143, %v5148
    %5166 = vmatprep.subr.mxu0 0.0
    %5167 = vmatpush1.msra.mxu0 1.0
    %5168 = vmatprep.subr.mxu0 0.0
    %5169 = vmatpush1.msra.mxu0 1.0
    %5170 = vmatprep.subr.mxu0 0.0
    %5171 = vmatpush1.msra.mxu0 1.0
    %5172 = vmatprep.subr.mxu0 0.0
    %5173 = vmatpush1.msra.mxu0 1.0
    %5174 = vmatprep.subr.mxu0 0.0
    %5175 = vmatpush1.msra.mxu0 1.0
    %5176 = vmatprep.subr.mxu0 0.0
    %5177 = vmatpush1.msra.mxu0 1.0
    %5178 = vmatprep.subr.mxu0 0.0
    %5179 = vmatpush1.msra.mxu0 1.0
    %5180 = vmatprep.subr.mxu0 0.0
    %5181 = vmatpush1.msra.mxu0 1.0
    %5182 = vmatprep.subr.mxu0 0.0
    %5183 = vmatpush1.msra.mxu0 1.0
    %5184 = vmatprep.subr.mxu0 0.0
    %5185 = vmatpush1.msra.mxu0 1.0
    %5186 = vmatprep.subr.mxu0 0.0
    %5187 = vmatpush1.msra.mxu0 1.0
    %5188 = vmatprep.subr.mxu0 0.0
    %5189 = vmatpush1.msra.mxu0 1.0
    %5190 = vmatprep.subr.mxu0 0.0
    %5191 = vmatpush1.msra.mxu0 1.0
    %5192 = vmatprep.subr.mxu0 0.0
    %5193 = vmatpush1.msra.mxu0 1.0
    %5194 = vmatprep.subr.mxu0 0.0
    %5195 = vmatpush1.msra.mxu0 1.0
    %5196 = vmatprep.subr.mxu0 0.0
    %5197 = vmatpush1.msra.mxu0 1.0
    %5198 = vmatprep.subr.mxu0 0.0
    %5199 = vmatpush1.msra.mxu0 0.0
    %5200 = vmatprep.subr.mxu0 0.0
    %5201 = vmatpush1.msra.mxu0 0.0
    %5202 = vmatprep.subr.mxu0 0.0
    %5203 = vmatpush1.msra.mxu0 0.0
    %5204 = vmatprep.subr.mxu0 0.0
    %5205 = vmatpush1.msra.mxu0 0.0
    %5206 = vmatprep.subr.mxu0 0.0
    %5207 = vmatpush1.msra.mxu0 0.0
    %5208 = vmatprep.subr.mxu0 0.0
    %5209 = vmatpush1.msra.mxu0 0.0
    %5210 = vmatprep.subr.mxu0 0.0
    %5211 = vmatpush1.msra.mxu0 0.0
    %5212 = vmatprep.subr.mxu0 0.0
    %5213 = vmatpush1.msra.mxu0 0.0
    %5214 = vmatprep.subr.mxu0 0.0
    %5215 = vmatpush1.msra.mxu0 0.0
    %5216 = vmatprep.subr.mxu0 0.0
    %5217 = vmatpush1.msra.mxu0 0.0
    %5218 = vmatprep.subr.mxu0 0.0
    %5219 = vmatpush1.msra.mxu0 0.0
    %5220 = vmatprep.subr.mxu0 0.0
    %5221 = vmatpush1.msra.mxu0 0.0
    %5222 = vmatprep.subr.mxu0 0.0
    %5223 = vmatpush1.msra.mxu0 0.0
    %5224 = vmatprep.subr.mxu0 0.0
    %5225 = vmatpush1.msra.mxu0 0.0
    %5226 = vmatprep.subr.mxu0 0.0
    %5227 = vmatpush1.msra.mxu0 0.0
    %5228 = vmatprep.subr.mxu0 0.0
    %5229 = vmatpush1.msra.mxu0 0.0
    %5230 = vmatprep.mubr.f32.mxu0 0.0
    %5231 = vmatmul.mubr.f32.gmra.mrb[0].mxu0 %v5150
    %v5232 = vpop.f32.mrb[0].mxu0
    %v5233 = vadd.f32 1e-09, %v5232
    %v5234 = vpop.f32.mrb[0].mxu0
    %5235 = vmatprep.mubr.f32.mxu0 0.0
    %5236 = vmatmul.mubr.f32.gmra.mrb[0].mxu0 %v5151
    %v5237 = vpop.f32.mrb[0].mxu0
    %v5238 = vadd.f32 1e-09, %v5237
    %v5239 = vpop.f32.mrb[0].mxu0
    %5240 = vmatprep.mubr.f32.mxu0 0.0
    %5241 = vmatmul.mubr.f32.gmra.mrb[0].mxu0 %v5152
    %v5242 = vpop.f32.mrb[0].mxu0
    %v5243 = vadd.f32 1e-09, %v5242
    %v5244 = vpop.f32.mrb[0].mxu0
    %5245 = vmatprep.mubr.f32.mxu0 0.0
    %5246 = vmatmul.mubr.f32.gmra.mrb[0].mxu0 %v5153
    %v5247 = vpop.f32.mrb[0].mxu0
    %v5248 = vadd.f32 1e-09, %v5247
    %v5249 = vpop.f32.mrb[0].mxu0
    %5250 = vmatprep.mubr.f32.mxu0 0.0
    %5251 = vmatmul.mubr.f32.gmra.mrb[0].mxu0 %v5154
    %v5252 = vpop.f32.mrb[0].mxu0
    %v5253 = vadd.f32 1e-09, %v5252
    %v5254 = vpop.f32.mrb[0].mxu0
    %5255 = vmatprep.mubr.f32.mxu0 0.0
    %5256 = vmatmul.mubr.f32.gmra.mrb[0].mxu0 %v5155
    %v5257 = vpop.f32.mrb[0].mxu0
    %v5258 = vadd.f32 1e-09, %v5257
    %v5259 = vpop.f32.mrb[0].mxu0
    %5260 = vmatprep.mubr.f32.mxu0 0.0
    %5261 = vmatmul.mubr.f32.gmra.mrb[0].mxu0 %v5156
    %v5262 = vpop.f32.mrb[0].mxu0
    %v5263 = vadd.f32 1e-09, %v5262
    %v5264 = vpop.f32.mrb[0].mxu0
    %5265 = vmatprep.mubr.f32.mxu0 0.0
    %5266 = vmatmul.mubr.f32.gmra.mrb[0].mxu0 %v5157
    %v5267 = vpop.f32.mrb[0].mxu0
    %v5268 = vadd.f32 1e-09, %v5267
    %v5269 = vpop.f32.mrb[0].mxu0
    %5270 = vmatprep.mubr.f32.mxu0 0.0
    %5271 = vmatmul.mubr.f32.gmra.mrb[0].mxu0 %v5158
    %v5272 = vpop.f32.mrb[0].mxu0
    %v5273 = vadd.f32 1e-09, %v5272
    %v5274 = vpop.f32.mrb[0].mxu0
    %5275 = vmatprep.mubr.f32.mxu0 0.0
    %5276 = vmatmul.mubr.f32.gmra.mrb[0].mxu0 %v5159
    %v5277 = vpop.f32.mrb[0].mxu0
    %v5278 = vadd.f32 1e-09, %v5277
    %v5279 = vpop.f32.mrb[0].mxu0
    %5280 = vmatprep.mubr.f32.mxu0 0.0
    %5281 = vmatmul.mubr.f32.gmra.mrb[0].mxu0 %v5160
    %v5282 = vpop.f32.mrb[0].mxu0
    %v5283 = vadd.f32 1e-09, %v5282
    %v5284 = vpop.f32.mrb[0].mxu0
    %5285 = vmatprep.mubr.f32.mxu0 0.0
    %5286 = vmatmul.mubr.f32.gmra.mrb[0].mxu0 %v5161
    %v5287 = vpop.f32.mrb[0].mxu0
    %v5288 = vadd.f32 1e-09, %v5287
    %v5289 = vpop.f32.mrb[0].mxu0
    %5290 = vmatprep.mubr.f32.mxu0 0.0
    %5291 = vmatmul.mubr.f32.gmra.mrb[0].mxu0 %v5162
    %v5292 = vpop.f32.mrb[0].mxu0
    %v5293 = vadd.f32 1e-09, %v5292
    %v5294 = vpop.f32.mrb[0].mxu0
    %5295 = vmatprep.mubr.f32.mxu0 0.0
    %5296 = vmatmul.mubr.f32.gmra.mrb[0].mxu0 %v5163
    %v5297 = vpop.f32.mrb[0].mxu0
    %v5298 = vadd.f32 1e-09, %v5297
    %v5299 = vpop.f32.mrb[0].mxu0
    %5300 = vmatprep.mubr.f32.mxu0 0.0
    %5301 = vmatmul.mubr.f32.gmra.mrb[0].mxu0 %v5164
    %v5302 = vpop.f32.mrb[0].mxu0
    %v5303 = vadd.f32 1e-09, %v5302
    %v5304 = vpop.f32.mrb[0].mxu0
    %5305 = vmatprep.mubr.f32.mxu0 0.0
    %5306 = vmatmul.mubr.f32.gmra.mrb[0].mxu0 %v5165
    %v5307 = vpop.f32.mrb[0].mxu0
    %v5308 = vadd.f32 1e-09, %v5307
    %v5309 = vpop.f32.mrb[0].mxu0
    %5310 = vdwg.mxu0
    %v5311 = vrcp.pop %v5233
    %v5312 = vmul.f32 %v5079, %v5311
    %v5313 = vrcp.pop %v5238
    %v5314 = vmul.f32 %v5080, %v5313
    %v5315 = vrcp.pop %v5243
    %v5316 = vmul.f32 %v5081, %v5315
    %v5317 = vrcp.pop %v5248
    %v5318 = vmul.f32 %v5082, %v5317
    %v5319 = vrcp.pop %v5253
    %v5320 = vmul.f32 %v5083, %v5319
    %v5321 = vrcp.pop %v5258
    %v5322 = vmul.f32 %v5084, %v5321
    %v5323 = vrcp.pop %v5263
    %v5324 = vmul.f32 %v5085, %v5323
    %v5325 = vrcp.pop %v5268
    %v5326 = vmul.f32 %v5086, %v5325
    %v5327 = vrcp.pop %v5273
    %v5328 = vmul.f32 %v5087, %v5327
    %v5329 = vrcp.pop %v5278
    %v5330 = vmul.f32 %v5088, %v5329
    %v5331 = vrcp.pop %v5283
    %v5332 = vmul.f32 %v5089, %v5331
    %v5333 = vrcp.pop %v5288
    %v5334 = vmul.f32 %v5090, %v5333
    %v5335 = vrcp.pop %v5293
    %v5336 = vmul.f32 %v5091, %v5335
    %v5337 = vrcp.pop %v5298
    %v5338 = vmul.f32 %v5092, %v5337
    %v5339 = vrcp.pop %v5303
    %v5340 = vmul.f32 %v5093, %v5339
    %v5341 = vrcp.pop %v5308
    %v5342 = vmul.f32 %v5094, %v5341
    %5344 = vset.pattern.permute.xlu0 0
    %5345 = vperm.xlu0 %5344, %v5312
    %v5346 = vpop.permute.xlu0 %5345
    %5349 = vset.pattern.permute.xlu0 0
    %5350 = vperm.xlu0 %5349, %v5314
    %v5351 = vpop.permute.xlu0 %5350
    %5354 = vset.pattern.permute.xlu0 0
    %5355 = vperm.xlu0 %5354, %v5316
    %v5356 = vpop.permute.xlu0 %5355
    %5359 = vset.pattern.permute.xlu0 0
    %5360 = vperm.xlu0 %5359, %v5318
    %v5361 = vpop.permute.xlu0 %5360
    %5364 = vset.pattern.permute.xlu0 0
    %5365 = vperm.xlu0 %5364, %v5320
    %v5366 = vpop.permute.xlu0 %5365
    %5369 = vset.pattern.permute.xlu0 0
    %5370 = vperm.xlu0 %5369, %v5322
    %v5371 = vpop.permute.xlu0 %5370
    %5374 = vset.pattern.permute.xlu0 0
    %5375 = vperm.xlu0 %5374, %v5324
    %v5376 = vpop.permute.xlu0 %5375
    %5379 = vset.pattern.permute.xlu0 0
    %5380 = vperm.xlu0 %5379, %v5326
    %v5381 = vpop.permute.xlu0 %5380
    %5384 = vset.pattern.permute.xlu0 0
    %5385 = vperm.xlu0 %5384, %v5328
    %v5386 = vpop.permute.xlu0 %5385
    %5389 = vset.pattern.permute.xlu0 0
    %5390 = vperm.xlu0 %5389, %v5330
    %v5391 = vpop.permute.xlu0 %5390
    %5394 = vset.pattern.permute.xlu0 0
    %5395 = vperm.xlu0 %5394, %v5332
    %v5396 = vpop.permute.xlu0 %5395
    %5399 = vset.pattern.permute.xlu0 0
    %5400 = vperm.xlu0 %5399, %v5334
    %v5401 = vpop.permute.xlu0 %5400
    %5404 = vset.pattern.permute.xlu0 0
    %5405 = vperm.xlu0 %5404, %v5336
    %v5406 = vpop.permute.xlu0 %5405
    %5409 = vset.pattern.permute.xlu0 0
    %5410 = vperm.xlu0 %5409, %v5338
    %v5411 = vpop.permute.xlu0 %5410
    %5414 = vset.pattern.permute.xlu0 0
    %5415 = vperm.xlu0 %5414, %v5340
    %v5416 = vpop.permute.xlu0 %5415
    %5419 = vset.pattern.permute.xlu0 0
    %5420 = vperm.xlu0 %5419, %v5342
    %v5421 = vpop.permute.xlu0 %5420
    %v5423 = vmul.f32 %v5150, %v5346
    %v5424 = vmul.f32 %v5151, %v5351
    %v5425 = vmul.f32 %v5152, %v5356
    %v5426 = vmul.f32 %v5153, %v5361
    %v5427 = vmul.f32 %v5154, %v5366
    %v5428 = vmul.f32 %v5155, %v5371
    %v5429 = vmul.f32 %v5156, %v5376
    %v5430 = vmul.f32 %v5157, %v5381
    %v5431 = vmul.f32 %v5158, %v5386
    %v5432 = vmul.f32 %v5159, %v5391
    %v5433 = vmul.f32 %v5160, %v5396
    %v5434 = vmul.f32 %v5161, %v5401
    %v5435 = vmul.f32 %v5162, %v5406
    %v5436 = vmul.f32 %v5163, %v5411
    %v5437 = vmul.f32 %v5164, %v5416
    %v5438 = vmul.f32 %v5165, %v5421
    %5439 = vmatprep.subr.mxu0 0.0
    %5440 = vmatpush1.msra.mxu0 %v5423
    %5441 = vmatprep.subr.mxu0 0.0
    %5442 = vmatpush1.msra.mxu0 %v5424
    %5443 = vmatprep.subr.mxu0 0.0
    %5444 = vmatpush1.msra.mxu0 %v5425
    %5445 = vmatprep.subr.mxu0 0.0
    %5446 = vmatpush1.msra.mxu0 %v5426
    %5447 = vmatprep.subr.mxu0 0.0
    %5448 = vmatpush1.msra.mxu0 %v5427
    %5449 = vmatprep.subr.mxu0 0.0
    %5450 = vmatpush1.msra.mxu0 %v5428
    %5451 = vmatprep.subr.mxu0 0.0
    %5452 = vmatpush1.msra.mxu0 %v5429
    %5453 = vmatprep.subr.mxu0 0.0
    %5454 = vmatpush1.msra.mxu0 %v5430
    %5455 = vmatprep.subr.mxu0 0.0
    %5456 = vmatpush1.msra.mxu0 %v5431
    %5457 = vmatprep.subr.mxu0 0.0
    %5458 = vmatpush1.msra.mxu0 %v5432
    %5459 = vmatprep.subr.mxu0 0.0
    %5460 = vmatpush1.msra.mxu0 %v5433
    %5461 = vmatprep.subr.mxu0 0.0
    %5462 = vmatpush1.msra.mxu0 %v5434
    %5463 = vmatprep.subr.mxu0 0.0
    %5464 = vmatpush1.msra.mxu0 %v5435
    %5465 = vmatprep.subr.mxu0 0.0
    %5466 = vmatpush1.msra.mxu0 %v5436
    %5467 = vmatprep.subr.mxu0 0.0
    %5468 = vmatpush1.msra.mxu0 %v5437
    %5469 = vmatprep.subr.mxu0 0.0
    %5470 = vmatpush1.msra.mxu0 %v5438
    %5471 = vmatprep.subr.mxu0 0.0
    %5472 = vmatpush1.msra.mxu0 0.0
    %5473 = vmatprep.subr.mxu0 0.0
    %5474 = vmatpush1.msra.mxu0 0.0
    %5475 = vmatprep.subr.mxu0 0.0
    %5476 = vmatpush1.msra.mxu0 0.0
    %5477 = vmatprep.subr.mxu0 0.0
    %5478 = vmatpush1.msra.mxu0 0.0
    %5479 = vmatprep.subr.mxu0 0.0
    %5480 = vmatpush1.msra.mxu0 0.0
    %5481 = vmatprep.subr.mxu0 0.0
    %5482 = vmatpush1.msra.mxu0 0.0
    %5483 = vmatprep.subr.mxu0 0.0
    %5484 = vmatpush1.msra.mxu0 0.0
    %5485 = vmatprep.subr.mxu0 0.0
    %5486 = vmatpush1.msra.mxu0 0.0
    %5487 = vmatprep.subr.mxu0 0.0
    %5488 = vmatpush1.msra.mxu0 0.0
    %5489 = vmatprep.subr.mxu0 0.0
    %5490 = vmatpush1.msra.mxu0 0.0
    %5491 = vmatprep.subr.mxu0 0.0
    %5492 = vmatpush1.msra.mxu0 0.0
    %5493 = vmatprep.subr.mxu0 0.0
    %5494 = vmatpush1.msra.mxu0 0.0
    %5495 = vmatprep.subr.mxu0 0.0
    %5496 = vmatpush1.msra.mxu0 0.0
    %5497 = vmatprep.subr.mxu0 0.0
    %5498 = vmatpush1.msra.mxu0 0.0
    %5499 = vmatprep.subr.mxu0 0.0
    %5500 = vmatpush1.msra.mxu0 0.0
    %5501 = vmatprep.subr.mxu0 0.0
    %5502 = vmatpush1.msra.mxu0 0.0
    %5503 = vmatprep.mubr.f32.mxu0 0.0
    %5504 = vmatmul.mubr.f32.gmra.mrb[0].mxu0 1.0
    %v5505 = vpop.f32.mrb[0].mxu0
    %v5506 = vadd.f32 0.0, %v5505
    %v5507 = vpop.f32.mrb[0].mxu0
    %5508 = vdwg.mxu0
    %v5509 = vadd.f32 %v5506, 1e-09
    %v5510 = vrcp.pop %v5509
    %v5511 = vmul.f32 %v5095, %v5510
    %v5512 = vmin.f32 %v5511, 1.0
    %v5514 = vlaneseq
    %v5515 = vshrl.u32 %v5514, 7
    %v5516 = vsub.s32 0, %v5515
    %v5517 = vrot.slane %v5512, %v5516
    %v5519 = vmul.f32 %v5423, %v5517
    %v5520 = vmul.f32 %v5424, %v5517
    %v5521 = vmul.f32 %v5425, %v5517
    %v5522 = vmul.f32 %v5426, %v5517
    %v5523 = vmul.f32 %v5427, %v5517
    %v5524 = vmul.f32 %v5428, %v5517
    %v5525 = vmul.f32 %v5429, %v5517
    %v5526 = vmul.f32 %v5430, %v5517
    %v5527 = vmul.f32 %v5431, %v5517
    %v5528 = vmul.f32 %v5432, %v5517
    %v5529 = vmul.f32 %v5433, %v5517
    %v5530 = vmul.f32 %v5434, %v5517
    %v5531 = vmul.f32 %v5435, %v5517
    %v5532 = vmul.f32 %v5436, %v5517
    %v5533 = vmul.f32 %v5437, %v5517
    %v5534 = vmul.f32 %v5438, %v5517
    %v5535 = vld [vmem:[#allocation4] sm:$0x1]
    %v5536 = vmul.f32 %v378, %v5519
    %v5537 = vmul.f32 %v385, %v5520
    %v5538 = vmul.f32 %v392, %v5521
    %v5539 = vmul.f32 %v399, %v5522
    %v5540 = vmul.f32 %v406, %v5523
    %v5541 = vmul.f32 %v413, %v5524
    %v5542 = vmul.f32 %v420, %v5525
    %v5543 = vmul.f32 %v427, %v5526
    %v5544 = vmul.f32 %v434, %v5527
    %v5545 = vmul.f32 %v441, %v5528
    %v5546 = vmul.f32 %v448, %v5529
    %v5547 = vmul.f32 %v455, %v5530
    %v5548 = vmul.f32 %v462, %v5531
    %v5549 = vmul.f32 %v469, %v5532
    %v5550 = vmul.f32 %v476, %v5533
    %v5551 = vmul.f32 %v483, %v5534
    %5552 = vmatprep.subr.mxu0 0.0
    %5553 = vmatpush1.msra.mxu0 %v5536
    %5554 = vmatprep.subr.mxu0 0.0
    %5555 = vmatpush1.msra.mxu0 %v5537
    %5556 = vmatprep.subr.mxu0 0.0
    %5557 = vmatpush1.msra.mxu0 %v5538
    %5558 = vmatprep.subr.mxu0 0.0
    %5559 = vmatpush1.msra.mxu0 %v5539
    %5560 = vmatprep.subr.mxu0 0.0
    %5561 = vmatpush1.msra.mxu0 %v5540
    %5562 = vmatprep.subr.mxu0 0.0
    %5563 = vmatpush1.msra.mxu0 %v5541
    %5564 = vmatprep.subr.mxu0 0.0
    %5565 = vmatpush1.msra.mxu0 %v5542
    %5566 = vmatprep.subr.mxu0 0.0
    %5567 = vmatpush1.msra.mxu0 %v5543
    %5568 = vmatprep.subr.mxu0 0.0
    %5569 = vmatpush1.msra.mxu0 %v5544
    %5570 = vmatprep.subr.mxu0 0.0
    %5571 = vmatpush1.msra.mxu0 %v5545
    %5572 = vmatprep.subr.mxu0 0.0
    %5573 = vmatpush1.msra.mxu0 %v5546
    %5574 = vmatprep.subr.mxu0 0.0
    %5575 = vmatpush1.msra.mxu0 %v5547
    %5576 = vmatprep.subr.mxu0 0.0
    %5577 = vmatpush1.msra.mxu0 %v5548
    %5578 = vmatprep.subr.mxu0 0.0
    %5579 = vmatpush1.msra.mxu0 %v5549
    %5580 = vmatprep.subr.mxu0 0.0
    %5581 = vmatpush1.msra.mxu0 %v5550
    %5582 = vmatprep.subr.mxu0 0.0
    %5583 = vmatpush1.msra.mxu0 %v5551
    %5584 = vmatprep.subr.mxu0 0.0
    %5585 = vmatpush1.msra.mxu0 0.0
    %5586 = vmatprep.subr.mxu0 0.0
    %5587 = vmatpush1.msra.mxu0 0.0
    %5588 = vmatprep.subr.mxu0 0.0
    %5589 = vmatpush1.msra.mxu0 0.0
    %5590 = vmatprep.subr.mxu0 0.0
    %5591 = vmatpush1.msra.mxu0 0.0
    %5592 = vmatprep.subr.mxu0 0.0
    %5593 = vmatpush1.msra.mxu0 0.0
    %5594 = vmatprep.subr.mxu0 0.0
    %5595 = vmatpush1.msra.mxu0 0.0
    %5596 = vmatprep.subr.mxu0 0.0
    %5597 = vmatpush1.msra.mxu0 0.0
    %5598 = vmatprep.subr.mxu0 0.0
    %5599 = vmatpush1.msra.mxu0 0.0
    %5600 = vmatprep.subr.mxu0 0.0
    %5601 = vmatpush1.msra.mxu0 0.0
    %5602 = vmatprep.subr.mxu0 0.0
    %5603 = vmatpush1.msra.mxu0 0.0
    %5604 = vmatprep.subr.mxu0 0.0
    %5605 = vmatpush1.msra.mxu0 0.0
    %5606 = vmatprep.subr.mxu0 0.0
    %5607 = vmatpush1.msra.mxu0 0.0
    %5608 = vmatprep.subr.mxu0 0.0
    %5609 = vmatpush1.msra.mxu0 0.0
    %5610 = vmatprep.subr.mxu0 0.0
    %5611 = vmatpush1.msra.mxu0 0.0
    %5612 = vmatprep.subr.mxu0 0.0
    %5613 = vmatpush1.msra.mxu0 0.0
    %5614 = vmatprep.subr.mxu0 0.0
    %5615 = vmatpush1.msra.mxu0 0.0
    %5616 = vmatprep.mubr.f32.mxu0 0.0
    %5617 = vmatmul.mubr.f32.gmra.mrb[0].mxu0 1.0
    %v5618 = vpop.f32.mrb[0].mxu0
    %v5619 = vadd.f32 0.0, %v5618
    %v5620 = vpop.f32.mrb[0].mxu0
    %5621 = vdwg.mxu0
    %v5622 = vadd.f32 %v5535, %v5619
    %5623 = vst [vmem:[#allocation4] sm:$0x1] %v5622
    %5624 = vmatprep.subr.mxu0 0.0
    %5625 = vmatpush1.msra.mxu0 1.0
    %5626 = vmatprep.subr.mxu0 0.0
    %5627 = vmatpush1.msra.mxu0 1.0
    %5628 = vmatprep.subr.mxu0 0.0
    %5629 = vmatpush1.msra.mxu0 1.0
    %5630 = vmatprep.subr.mxu0 0.0
    %5631 = vmatpush1.msra.mxu0 1.0
    %5632 = vmatprep.subr.mxu0 0.0
    %5633 = vmatpush1.msra.mxu0 1.0
    %5634 = vmatprep.subr.mxu0 0.0
    %5635 = vmatpush1.msra.mxu0 1.0
    %5636 = vmatprep.subr.mxu0 0.0
    %5637 = vmatpush1.msra.mxu0 1.0
    %5638 = vmatprep.subr.mxu0 0.0
    %5639 = vmatpush1.msra.mxu0 1.0
    %5640 = vmatprep.subr.mxu0 0.0
    %5641 = vmatpush1.msra.mxu0 1.0
    %5642 = vmatprep.subr.mxu0 0.0
    %5643 = vmatpush1.msra.mxu0 1.0
    %5644 = vmatprep.subr.mxu0 0.0
    %5645 = vmatpush1.msra.mxu0 1.0
    %5646 = vmatprep.subr.mxu0 0.0
    %5647 = vmatpush1.msra.mxu0 1.0
    %5648 = vmatprep.subr.mxu0 0.0
    %5649 = vmatpush1.msra.mxu0 1.0
    %5650 = vmatprep.subr.mxu0 0.0
    %5651 = vmatpush1.msra.mxu0 1.0
    %5652 = vmatprep.subr.mxu0 0.0
    %5653 = vmatpush1.msra.mxu0 1.0
    %5654 = vmatprep.subr.mxu0 0.0
    %5655 = vmatpush1.msra.mxu0 1.0
    %5656 = vmatprep.subr.mxu0 0.0
    %5657 = vmatpush1.msra.mxu0 0.0
    %5658 = vmatprep.subr.mxu0 0.0
    %5659 = vmatpush1.msra.mxu0 0.0
    %5660 = vmatprep.subr.mxu0 0.0
    %5661 = vmatpush1.msra.mxu0 0.0
    %5662 = vmatprep.subr.mxu0 0.0
    %5663 = vmatpush1.msra.mxu0 0.0
    %5664 = vmatprep.subr.mxu0 0.0
    %5665 = vmatpush1.msra.mxu0 0.0
    %5666 = vmatprep.subr.mxu0 0.0
    %5667 = vmatpush1.msra.mxu0 0.0
    %5668 = vmatprep.subr.mxu0 0.0
    %5669 = vmatpush1.msra.mxu0 0.0
    %5670 = vmatprep.subr.mxu0 0.0
    %5671 = vmatpush1.msra.mxu0 0.0
    %5672 = vmatprep.subr.mxu0 0.0
    %5673 = vmatpush1.msra.mxu0 0.0
    %5674 = vmatprep.subr.mxu0 0.0
    %5675 = vmatpush1.msra.mxu0 0.0
    %5676 = vmatprep.subr.mxu0 0.0
    %5677 = vmatpush1.msra.mxu0 0.0
    %5678 = vmatprep.subr.mxu0 0.0
    %5679 = vmatpush1.msra.mxu0 0.0
    %5680 = vmatprep.subr.mxu0 0.0
    %5681 = vmatpush1.msra.mxu0 0.0
    %5682 = vmatprep.subr.mxu0 0.0
    %5683 = vmatpush1.msra.mxu0 0.0
    %5684 = vmatprep.subr.mxu0 0.0
    %5685 = vmatpush1.msra.mxu0 0.0
    %5686 = vmatprep.subr.mxu0 0.0
    %5687 = vmatpush1.msra.mxu0 0.0
    %5688 = vmatprep.mubr.f32.mxu0 0.0
    %5689 = vmatmul.mubr.f32.gmra.mrb[0].mxu0 %v5519
    %v5690 = vpop.f32.mrb[0].mxu0
    %v5691 = vadd.f32 0.0, %v5690
    %v5692 = vpop.f32.mrb[0].mxu0
    %5693 = vmatprep.mubr.f32.mxu0 0.0
    %5694 = vmatmul.mubr.f32.gmra.mrb[0].mxu0 %v5520
    %v5695 = vpop.f32.mrb[0].mxu0
    %v5696 = vadd.f32 0.0, %v5695
    %v5697 = vpop.f32.mrb[0].mxu0
    %5698 = vmatprep.mubr.f32.mxu0 0.0
    %5699 = vmatmul.mubr.f32.gmra.mrb[0].mxu0 %v5521
    %v5700 = vpop.f32.mrb[0].mxu0
    %v5701 = vadd.f32 0.0, %v5700
    %v5702 = vpop.f32.mrb[0].mxu0
    %5703 = vmatprep.mubr.f32.mxu0 0.0
    %5704 = vmatmul.mubr.f32.gmra.mrb[0].mxu0 %v5522
    %v5705 = vpop.f32.mrb[0].mxu0
    %v5706 = vadd.f32 0.0, %v5705
    %v5707 = vpop.f32.mrb[0].mxu0
    %5708 = vmatprep.mubr.f32.mxu0 0.0
    %5709 = vmatmul.mubr.f32.gmra.mrb[0].mxu0 %v5523
    %v5710 = vpop.f32.mrb[0].mxu0
    %v5711 = vadd.f32 0.0, %v5710
    %v5712 = vpop.f32.mrb[0].mxu0
    %5713 = vmatprep.mubr.f32.mxu0 0.0
    %5714 = vmatmul.mubr.f32.gmra.mrb[0].mxu0 %v5524
    %v5715 = vpop.f32.mrb[0].mxu0
    %v5716 = vadd.f32 0.0, %v5715
    %v5717 = vpop.f32.mrb[0].mxu0
    %5718 = vmatprep.mubr.f32.mxu0 0.0
    %5719 = vmatmul.mubr.f32.gmra.mrb[0].mxu0 %v5525
    %v5720 = vpop.f32.mrb[0].mxu0
    %v5721 = vadd.f32 0.0, %v5720
    %v5722 = vpop.f32.mrb[0].mxu0
    %5723 = vmatprep.mubr.f32.mxu0 0.0
    %5724 = vmatmul.mubr.f32.gmra.mrb[0].mxu0 %v5526
    %v5725 = vpop.f32.mrb[0].mxu0
    %v5726 = vadd.f32 0.0, %v5725
    %v5727 = vpop.f32.mrb[0].mxu0
    %5728 = vmatprep.mubr.f32.mxu0 0.0
    %5729 = vmatmul.mubr.f32.gmra.mrb[0].mxu0 %v5527
    %v5730 = vpop.f32.mrb[0].mxu0
    %v5731 = vadd.f32 0.0, %v5730
    %v5732 = vpop.f32.mrb[0].mxu0
    %5733 = vmatprep.mubr.f32.mxu0 0.0
    %5734 = vmatmul.mubr.f32.gmra.mrb[0].mxu0 %v5528
    %v5735 = vpop.f32.mrb[0].mxu0
    %v5736 = vadd.f32 0.0, %v5735
    %v5737 = vpop.f32.mrb[0].mxu0
    %5738 = vmatprep.mubr.f32.mxu0 0.0
    %5739 = vmatmul.mubr.f32.gmra.mrb[0].mxu0 %v5529
    %v5740 = vpop.f32.mrb[0].mxu0
    %v5741 = vadd.f32 0.0, %v5740
    %v5742 = vpop.f32.mrb[0].mxu0
    %5743 = vmatprep.mubr.f32.mxu0 0.0
    %5744 = vmatmul.mubr.f32.gmra.mrb[0].mxu0 %v5530
    %v5745 = vpop.f32.mrb[0].mxu0
    %v5746 = vadd.f32 0.0, %v5745
    %v5747 = vpop.f32.mrb[0].mxu0
    %5748 = vmatprep.mubr.f32.mxu0 0.0
    %5749 = vmatmul.mubr.f32.gmra.mrb[0].mxu0 %v5531
    %v5750 = vpop.f32.mrb[0].mxu0
    %v5751 = vadd.f32 0.0, %v5750
    %v5752 = vpop.f32.mrb[0].mxu0
    %5753 = vmatprep.mubr.f32.mxu0 0.0
    %5754 = vmatmul.mubr.f32.gmra.mrb[0].mxu0 %v5532
    %v5755 = vpop.f32.mrb[0].mxu0
    %v5756 = vadd.f32 0.0, %v5755
    %v5757 = vpop.f32.mrb[0].mxu0
    %5758 = vmatprep.mubr.f32.mxu0 0.0
    %5759 = vmatmul.mubr.f32.gmra.mrb[0].mxu0 %v5533
    %v5760 = vpop.f32.mrb[0].mxu0
    %v5761 = vadd.f32 0.0, %v5760
    %v5762 = vpop.f32.mrb[0].mxu0
    %5763 = vmatprep.mubr.f32.mxu0 0.0
    %5764 = vmatmul.mubr.f32.gmra.mrb[0].mxu0 %v5534
    %v5765 = vpop.f32.mrb[0].mxu0
    %v5766 = vadd.f32 0.0, %v5765
    %v5767 = vpop.f32.mrb[0].mxu0
    %5768 = vdwg.mxu0
    %v5769 = vsub.f32 %v5079, %v5691
    %v5770 = vsub.f32 %v5080, %v5696
    %v5771 = vsub.f32 %v5081, %v5701
    %v5772 = vsub.f32 %v5082, %v5706
    %v5773 = vsub.f32 %v5083, %v5711
    %v5774 = vsub.f32 %v5084, %v5716
    %v5775 = vsub.f32 %v5085, %v5721
    %v5776 = vsub.f32 %v5086, %v5726
    %v5777 = vsub.f32 %v5087, %v5731
    %v5778 = vsub.f32 %v5088, %v5736
    %v5779 = vsub.f32 %v5089, %v5741
    %v5780 = vsub.f32 %v5090, %v5746
    %v5781 = vsub.f32 %v5091, %v5751
    %v5782 = vsub.f32 %v5092, %v5756
    %v5783 = vsub.f32 %v5093, %v5761
    %v5784 = vsub.f32 %v5094, %v5766
    %v5785 = vmax.f32 %v5769, 0.0
    %v5786 = vmax.f32 %v5770, 0.0
    %v5787 = vmax.f32 %v5771, 0.0
    %v5788 = vmax.f32 %v5772, 0.0
    %v5789 = vmax.f32 %v5773, 0.0
    %v5790 = vmax.f32 %v5774, 0.0
    %v5791 = vmax.f32 %v5775, 0.0
    %v5792 = vmax.f32 %v5776, 0.0
    %v5793 = vmax.f32 %v5777, 0.0
    %v5794 = vmax.f32 %v5778, 0.0
    %v5795 = vmax.f32 %v5779, 0.0
    %v5796 = vmax.f32 %v5780, 0.0
    %v5797 = vmax.f32 %v5781, 0.0
    %v5798 = vmax.f32 %v5782, 0.0
    %v5799 = vmax.f32 %v5783, 0.0
    %v5800 = vmax.f32 %v5784, 0.0
    %5801 = vst.msk [vmem:[#allocation2] sm:$0xff] %vm508, %v5785
    %5802 = vst.msk [vmem:[#allocation2 + $0x8] sm:$0xff] %vm508, %v5786
    %5803 = vst.msk [vmem:[#allocation2 + $0x10] sm:$0xff] %vm508, %v5787
    %5804 = vst.msk [vmem:[#allocation2 + $0x18] sm:$0xff] %vm508, %v5788
    %5805 = vst.msk [vmem:[#allocation2 + $0x20] sm:$0xff] %vm508, %v5789
    %5806 = vst.msk [vmem:[#allocation2 + $0x28] sm:$0xff] %vm508, %v5790
    %5807 = vst.msk [vmem:[#allocation2 + $0x30] sm:$0xff] %vm508, %v5791
    %5808 = vst.msk [vmem:[#allocation2 + $0x38] sm:$0xff] %vm508, %v5792
    %5809 = vst.msk [vmem:[#allocation2 + $0x40] sm:$0xff] %vm508, %v5793
    %5810 = vst.msk [vmem:[#allocation2 + $0x48] sm:$0xff] %vm508, %v5794
    %5811 = vst.msk [vmem:[#allocation2 + $0x50] sm:$0xff] %vm508, %v5795
    %5812 = vst.msk [vmem:[#allocation2 + $0x58] sm:$0xff] %vm508, %v5796
    %5813 = vst.msk [vmem:[#allocation2 + $0x60] sm:$0xff] %vm508, %v5797
    %5814 = vst.msk [vmem:[#allocation2 + $0x68] sm:$0xff] %vm508, %v5798
    %5815 = vst.msk [vmem:[#allocation2 + $0x70] sm:$0xff] %vm508, %v5799
    %5816 = vst.msk [vmem:[#allocation2 + $0x78] sm:$0xff] %vm508, %v5800
    %v5817 = vmul.f32 %v5506, %v5512
    %v5818 = vsub.f32 %v5095, %v5817
    %v5819 = vmax.f32 %v5818, 0.0
    %5820 = vst [vmem:[#allocation3] sm:$0x1] %v5819
    %v5821 = vld [vmem:[#allocation2] sm:$0xff]
    %v5822 = vld [vmem:[#allocation2 + $0x8] sm:$0xff]
    %v5823 = vld [vmem:[#allocation2 + $0x10] sm:$0xff]
    %v5824 = vld [vmem:[#allocation2 + $0x18] sm:$0xff]
    %v5825 = vld [vmem:[#allocation2 + $0x20] sm:$0xff]
    %v5826 = vld [vmem:[#allocation2 + $0x28] sm:$0xff]
    %v5827 = vld [vmem:[#allocation2 + $0x30] sm:$0xff]
    %v5828 = vld [vmem:[#allocation2 + $0x38] sm:$0xff]
    %v5829 = vld [vmem:[#allocation2 + $0x40] sm:$0xff]
    %v5830 = vld [vmem:[#allocation2 + $0x48] sm:$0xff]
    %v5831 = vld [vmem:[#allocation2 + $0x50] sm:$0xff]
    %v5832 = vld [vmem:[#allocation2 + $0x58] sm:$0xff]
    %v5833 = vld [vmem:[#allocation2 + $0x60] sm:$0xff]
    %v5834 = vld [vmem:[#allocation2 + $0x68] sm:$0xff]
    %v5835 = vld [vmem:[#allocation2 + $0x70] sm:$0xff]
    %v5836 = vld [vmem:[#allocation2 + $0x78] sm:$0xff]
    %v5837 = vld [vmem:[#allocation3] sm:$0x1]
    %v5838 = vmul.f32 %v3596, -1.0
    %v5839 = vmul.f32 %v3597, -1.0
    %v5840 = vmul.f32 %v3598, -1.0
    %v5841 = vmul.f32 %v3599, -1.0
    %v5842 = vmul.f32 %v3600, -1.0
    %v5843 = vmul.f32 %v3601, -1.0
    %v5844 = vmul.f32 %v3602, -1.0
    %v5845 = vmul.f32 %v3603, -1.0
    %v5846 = vmul.f32 %v3604, -1.0
    %v5847 = vmul.f32 %v3605, -1.0
    %v5848 = vmul.f32 %v3606, -1.0
    %v5849 = vmul.f32 %v3607, -1.0
    %v5850 = vmul.f32 %v3608, -1.0
    %v5851 = vmul.f32 %v3609, -1.0
    %v5852 = vmul.f32 %v3610, -1.0
    %v5853 = vmul.f32 %v3611, -1.0
    %v5854 = vmul.f32 %v5838, 1.442695
    %v5855 = vpow.pop %v5854
    %v5856 = vmul.f32 %v5839, 1.442695
    %v5857 = vpow.pop %v5856
    %v5858 = vmul.f32 %v5840, 1.442695
    %v5859 = vpow.pop %v5858
    %v5860 = vmul.f32 %v5841, 1.442695
    %v5861 = vpow.pop %v5860
    %v5862 = vmul.f32 %v5842, 1.442695
    %v5863 = vpow.pop %v5862
    %v5864 = vmul.f32 %v5843, 1.442695
    %v5865 = vpow.pop %v5864
    %v5866 = vmul.f32 %v5844, 1.442695
    %v5867 = vpow.pop %v5866
    %v5868 = vmul.f32 %v5845, 1.442695
    %v5869 = vpow.pop %v5868
    %v5870 = vmul.f32 %v5846, 1.442695
    %v5871 = vpow.pop %v5870
    %v5872 = vmul.f32 %v5847, 1.442695
    %v5873 = vpow.pop %v5872
    %v5874 = vmul.f32 %v5848, 1.442695
    %v5875 = vpow.pop %v5874
    %v5876 = vmul.f32 %v5849, 1.442695
    %v5877 = vpow.pop %v5876
    %v5878 = vmul.f32 %v5850, 1.442695
    %v5879 = vpow.pop %v5878
    %v5880 = vmul.f32 %v5851, 1.442695
    %v5881 = vpow.pop %v5880
    %v5882 = vmul.f32 %v5852, 1.442695
    %v5883 = vpow.pop %v5882
    %v5884 = vmul.f32 %v5853, 1.442695
    %v5885 = vpow.pop %v5884
    %v5887 = vlaneseq
    %v5888 = vshrl.u32 %v5887, 7
    %v5889 = vsub.s32 0, %v5888
    %v5890 = vrot.slane %v5837, %v5889
    %v5892 = vmul.f32 %v5855, %v5890
    %v5893 = vmul.f32 %v5857, %v5890
    %v5894 = vmul.f32 %v5859, %v5890
    %v5895 = vmul.f32 %v5861, %v5890
    %v5896 = vmul.f32 %v5863, %v5890
    %v5897 = vmul.f32 %v5865, %v5890
    %v5898 = vmul.f32 %v5867, %v5890
    %v5899 = vmul.f32 %v5869, %v5890
    %v5900 = vmul.f32 %v5871, %v5890
    %v5901 = vmul.f32 %v5873, %v5890
    %v5902 = vmul.f32 %v5875, %v5890
    %v5903 = vmul.f32 %v5877, %v5890
    %v5904 = vmul.f32 %v5879, %v5890
    %v5905 = vmul.f32 %v5881, %v5890
    %v5906 = vmul.f32 %v5883, %v5890
    %v5907 = vmul.f32 %v5885, %v5890
    %5908 = vmatprep.subr.mxu0 0.0
    %5909 = vmatpush1.msra.mxu0 1.0
    %5910 = vmatprep.subr.mxu0 0.0
    %5911 = vmatpush1.msra.mxu0 1.0
    %5912 = vmatprep.subr.mxu0 0.0
    %5913 = vmatpush1.msra.mxu0 1.0
    %5914 = vmatprep.subr.mxu0 0.0
    %5915 = vmatpush1.msra.mxu0 1.0
    %5916 = vmatprep.subr.mxu0 0.0
    %5917 = vmatpush1.msra.mxu0 1.0
    %5918 = vmatprep.subr.mxu0 0.0
    %5919 = vmatpush1.msra.mxu0 1.0
    %5920 = vmatprep.subr.mxu0 0.0
    %5921 = vmatpush1.msra.mxu0 1.0
    %5922 = vmatprep.subr.mxu0 0.0
    %5923 = vmatpush1.msra.mxu0 1.0
    %5924 = vmatprep.subr.mxu0 0.0
    %5925 = vmatpush1.msra.mxu0 1.0
    %5926 = vmatprep.subr.mxu0 0.0
    %5927 = vmatpush1.msra.mxu0 1.0
    %5928 = vmatprep.subr.mxu0 0.0
    %5929 = vmatpush1.msra.mxu0 1.0
    %5930 = vmatprep.subr.mxu0 0.0
    %5931 = vmatpush1.msra.mxu0 1.0
    %5932 = vmatprep.subr.mxu0 0.0
    %5933 = vmatpush1.msra.mxu0 1.0
    %5934 = vmatprep.subr.mxu0 0.0
    %5935 = vmatpush1.msra.mxu0 1.0
    %5936 = vmatprep.subr.mxu0 0.0
    %5937 = vmatpush1.msra.mxu0 1.0
    %5938 = vmatprep.subr.mxu0 0.0
    %5939 = vmatpush1.msra.mxu0 1.0
    %5940 = vmatprep.subr.mxu0 0.0
    %5941 = vmatpush1.msra.mxu0 0.0
    %5942 = vmatprep.subr.mxu0 0.0
    %5943 = vmatpush1.msra.mxu0 0.0
    %5944 = vmatprep.subr.mxu0 0.0
    %5945 = vmatpush1.msra.mxu0 0.0
    %5946 = vmatprep.subr.mxu0 0.0
    %5947 = vmatpush1.msra.mxu0 0.0
    %5948 = vmatprep.subr.mxu0 0.0
    %5949 = vmatpush1.msra.mxu0 0.0
    %5950 = vmatprep.subr.mxu0 0.0
    %5951 = vmatpush1.msra.mxu0 0.0
    %5952 = vmatprep.subr.mxu0 0.0
    %5953 = vmatpush1.msra.mxu0 0.0
    %5954 = vmatprep.subr.mxu0 0.0
    %5955 = vmatpush1.msra.mxu0 0.0
    %5956 = vmatprep.subr.mxu0 0.0
    %5957 = vmatpush1.msra.mxu0 0.0
    %5958 = vmatprep.subr.mxu0 0.0
    %5959 = vmatpush1.msra.mxu0 0.0
    %5960 = vmatprep.subr.mxu0 0.0
    %5961 = vmatpush1.msra.mxu0 0.0
    %5962 = vmatprep.subr.mxu0 0.0
    %5963 = vmatpush1.msra.mxu0 0.0
    %5964 = vmatprep.subr.mxu0 0.0
    %5965 = vmatpush1.msra.mxu0 0.0
    %5966 = vmatprep.subr.mxu0 0.0
    %5967 = vmatpush1.msra.mxu0 0.0
    %5968 = vmatprep.subr.mxu0 0.0
    %5969 = vmatpush1.msra.mxu0 0.0
    %5970 = vmatprep.subr.mxu0 0.0
    %5971 = vmatpush1.msra.mxu0 0.0
    %5972 = vmatprep.mubr.f32.mxu0 0.0
    %5973 = vmatmul.mubr.f32.gmra.mrb[0].mxu0 %v5892
    %v5974 = vpop.f32.mrb[0].mxu0
    %v5975 = vadd.f32 1e-09, %v5974
    %v5976 = vpop.f32.mrb[0].mxu0
    %5977 = vmatprep.mubr.f32.mxu0 0.0
    %5978 = vmatmul.mubr.f32.gmra.mrb[0].mxu0 %v5893
    %v5979 = vpop.f32.mrb[0].mxu0
    %v5980 = vadd.f32 1e-09, %v5979
    %v5981 = vpop.f32.mrb[0].mxu0
    %5982 = vmatprep.mubr.f32.mxu0 0.0
    %5983 = vmatmul.mubr.f32.gmra.mrb[0].mxu0 %v5894
    %v5984 = vpop.f32.mrb[0].mxu0
    %v5985 = vadd.f32 1e-09, %v5984
    %v5986 = vpop.f32.mrb[0].mxu0
    %5987 = vmatprep.mubr.f32.mxu0 0.0
    %5988 = vmatmul.mubr.f32.gmra.mrb[0].mxu0 %v5895
    %v5989 = vpop.f32.mrb[0].mxu0
    %v5990 = vadd.f32 1e-09, %v5989
    %v5991 = vpop.f32.mrb[0].mxu0
    %5992 = vmatprep.mubr.f32.mxu0 0.0
    %5993 = vmatmul.mubr.f32.gmra.mrb[0].mxu0 %v5896
    %v5994 = vpop.f32.mrb[0].mxu0
    %v5995 = vadd.f32 1e-09, %v5994
    %v5996 = vpop.f32.mrb[0].mxu0
    %5997 = vmatprep.mubr.f32.mxu0 0.0
    %5998 = vmatmul.mubr.f32.gmra.mrb[0].mxu0 %v5897
    %v5999 = vpop.f32.mrb[0].mxu0
    %v6000 = vadd.f32 1e-09, %v5999
    %v6001 = vpop.f32.mrb[0].mxu0
    %6002 = vmatprep.mubr.f32.mxu0 0.0
    %6003 = vmatmul.mubr.f32.gmra.mrb[0].mxu0 %v5898
    %v6004 = vpop.f32.mrb[0].mxu0
    %v6005 = vadd.f32 1e-09, %v6004
    %v6006 = vpop.f32.mrb[0].mxu0
    %6007 = vmatprep.mubr.f32.mxu0 0.0
    %6008 = vmatmul.mubr.f32.gmra.mrb[0].mxu0 %v5899
    %v6009 = vpop.f32.mrb[0].mxu0
    %v6010 = vadd.f32 1e-09, %v6009
    %v6011 = vpop.f32.mrb[0].mxu0
    %6012 = vmatprep.mubr.f32.mxu0 0.0
    %6013 = vmatmul.mubr.f32.gmra.mrb[0].mxu0 %v5900
    %v6014 = vpop.f32.mrb[0].mxu0
    %v6015 = vadd.f32 1e-09, %v6014
    %v6016 = vpop.f32.mrb[0].mxu0
    %6017 = vmatprep.mubr.f32.mxu0 0.0
    %6018 = vmatmul.mubr.f32.gmra.mrb[0].mxu0 %v5901
    %v6019 = vpop.f32.mrb[0].mxu0
    %v6020 = vadd.f32 1e-09, %v6019
    %v6021 = vpop.f32.mrb[0].mxu0
    %6022 = vmatprep.mubr.f32.mxu0 0.0
    %6023 = vmatmul.mubr.f32.gmra.mrb[0].mxu0 %v5902
    %v6024 = vpop.f32.mrb[0].mxu0
    %v6025 = vadd.f32 1e-09, %v6024
    %v6026 = vpop.f32.mrb[0].mxu0
    %6027 = vmatprep.mubr.f32.mxu0 0.0
    %6028 = vmatmul.mubr.f32.gmra.mrb[0].mxu0 %v5903
    %v6029 = vpop.f32.mrb[0].mxu0
    %v6030 = vadd.f32 1e-09, %v6029
    %v6031 = vpop.f32.mrb[0].mxu0
    %6032 = vmatprep.mubr.f32.mxu0 0.0
    %6033 = vmatmul.mubr.f32.gmra.mrb[0].mxu0 %v5904
    %v6034 = vpop.f32.mrb[0].mxu0
    %v6035 = vadd.f32 1e-09, %v6034
    %v6036 = vpop.f32.mrb[0].mxu0
    %6037 = vmatprep.mubr.f32.mxu0 0.0
    %6038 = vmatmul.mubr.f32.gmra.mrb[0].mxu0 %v5905
    %v6039 = vpop.f32.mrb[0].mxu0
    %v6040 = vadd.f32 1e-09, %v6039
    %v6041 = vpop.f32.mrb[0].mxu0
    %6042 = vmatprep.mubr.f32.mxu0 0.0
    %6043 = vmatmul.mubr.f32.gmra.mrb[0].mxu0 %v5906
    %v6044 = vpop.f32.mrb[0].mxu0
    %v6045 = vadd.f32 1e-09, %v6044
    %v6046 = vpop.f32.mrb[0].mxu0
    %6047 = vmatprep.mubr.f32.mxu0 0.0
    %6048 = vmatmul.mubr.f32.gmra.mrb[0].mxu0 %v5907
    %v6049 = vpop.f32.mrb[0].mxu0
    %v6050 = vadd.f32 1e-09, %v6049
    %v6051 = vpop.f32.mrb[0].mxu0
    %6052 = vdwg.mxu0
    %v6053 = vrcp.pop %v5975
    %v6054 = vmul.f32 %v5821, %v6053
    %v6055 = vrcp.pop %v5980
    %v6056 = vmul.f32 %v5822, %v6055
    %v6057 = vrcp.pop %v5985
    %v6058 = vmul.f32 %v5823, %v6057
    %v6059 = vrcp.pop %v5990
    %v6060 = vmul.f32 %v5824, %v6059
    %v6061 = vrcp.pop %v5995
    %v6062 = vmul.f32 %v5825, %v6061
    %v6063 = vrcp.pop %v6000
    %v6064 = vmul.f32 %v5826, %v6063
    %v6065 = vrcp.pop %v6005
    %v6066 = vmul.f32 %v5827, %v6065
    %v6067 = vrcp.pop %v6010
    %v6068 = vmul.f32 %v5828, %v6067
    %v6069 = vrcp.pop %v6015
    %v6070 = vmul.f32 %v5829, %v6069
    %v6071 = vrcp.pop %v6020
    %v6072 = vmul.f32 %v5830, %v6071
    %v6073 = vrcp.pop %v6025
    %v6074 = vmul.f32 %v5831, %v6073
    %v6075 = vrcp.pop %v6030
    %v6076 = vmul.f32 %v5832, %v6075
    %v6077 = vrcp.pop %v6035
    %v6078 = vmul.f32 %v5833, %v6077
    %v6079 = vrcp.pop %v6040
    %v6080 = vmul.f32 %v5834, %v6079
    %v6081 = vrcp.pop %v6045
    %v6082 = vmul.f32 %v5835, %v6081
    %v6083 = vrcp.pop %v6050
    %v6084 = vmul.f32 %v5836, %v6083
    %6086 = vset.pattern.permute.xlu0 0
    %6087 = vperm.xlu0 %6086, %v6054
    %v6088 = vpop.permute.xlu0 %6087
    %6091 = vset.pattern.permute.xlu0 0
    %6092 = vperm.xlu0 %6091, %v6056
    %v6093 = vpop.permute.xlu0 %6092
    %6096 = vset.pattern.permute.xlu0 0
    %6097 = vperm.xlu0 %6096, %v6058
    %v6098 = vpop.permute.xlu0 %6097
    %6101 = vset.pattern.permute.xlu0 0
    %6102 = vperm.xlu0 %6101, %v6060
    %v6103 = vpop.permute.xlu0 %6102
    %6106 = vset.pattern.permute.xlu0 0
    %6107 = vperm.xlu0 %6106, %v6062
    %v6108 = vpop.permute.xlu0 %6107
    %6111 = vset.pattern.permute.xlu0 0
    %6112 = vperm.xlu0 %6111, %v6064
    %v6113 = vpop.permute.xlu0 %6112
    %6116 = vset.pattern.permute.xlu0 0
    %6117 = vperm.xlu0 %6116, %v6066
    %v6118 = vpop.permute.xlu0 %6117
    %6121 = vset.pattern.permute.xlu0 0
    %6122 = vperm.xlu0 %6121, %v6068
    %v6123 = vpop.permute.xlu0 %6122
    %6126 = vset.pattern.permute.xlu0 0
    %6127 = vperm.xlu0 %6126, %v6070
    %v6128 = vpop.permute.xlu0 %6127
    %6131 = vset.pattern.permute.xlu0 0
    %6132 = vperm.xlu0 %6131, %v6072
    %v6133 = vpop.permute.xlu0 %6132
    %6136 = vset.pattern.permute.xlu0 0
    %6137 = vperm.xlu0 %6136, %v6074
    %v6138 = vpop.permute.xlu0 %6137
    %6141 = vset.pattern.permute.xlu0 0
    %6142 = vperm.xlu0 %6141, %v6076
    %v6143 = vpop.permute.xlu0 %6142
    %6146 = vset.pattern.permute.xlu0 0
    %6147 = vperm.xlu0 %6146, %v6078
    %v6148 = vpop.permute.xlu0 %6147
    %6151 = vset.pattern.permute.xlu0 0
    %6152 = vperm.xlu0 %6151, %v6080
    %v6153 = vpop.permute.xlu0 %6152
    %6156 = vset.pattern.permute.xlu0 0
    %6157 = vperm.xlu0 %6156, %v6082
    %v6158 = vpop.permute.xlu0 %6157
    %6161 = vset.pattern.permute.xlu0 0
    %6162 = vperm.xlu0 %6161, %v6084
    %v6163 = vpop.permute.xlu0 %6162
    %v6165 = vmul.f32 %v5892, %v6088
    %v6166 = vmul.f32 %v5893, %v6093
    %v6167 = vmul.f32 %v5894, %v6098
    %v6168 = vmul.f32 %v5895, %v6103
    %v6169 = vmul.f32 %v5896, %v6108
    %v6170 = vmul.f32 %v5897, %v6113
    %v6171 = vmul.f32 %v5898, %v6118
    %v6172 = vmul.f32 %v5899, %v6123
    %v6173 = vmul.f32 %v5900, %v6128
    %v6174 = vmul.f32 %v5901, %v6133
    %v6175 = vmul.f32 %v5902, %v6138
    %v6176 = vmul.f32 %v5903, %v6143
    %v6177 = vmul.f32 %v5904, %v6148
    %v6178 = vmul.f32 %v5905, %v6153
    %v6179 = vmul.f32 %v5906, %v6158
    %v6180 = vmul.f32 %v5907, %v6163
    %6181 = vmatprep.subr.mxu0 0.0
    %6182 = vmatpush1.msra.mxu0 %v6165
    %6183 = vmatprep.subr.mxu0 0.0
    %6184 = vmatpush1.msra.mxu0 %v6166
    %6185 = vmatprep.subr.mxu0 0.0
    %6186 = vmatpush1.msra.mxu0 %v6167
    %6187 = vmatprep.subr.mxu0 0.0
    %6188 = vmatpush1.msra.mxu0 %v6168
    %6189 = vmatprep.subr.mxu0 0.0
    %6190 = vmatpush1.msra.mxu0 %v6169
    %6191 = vmatprep.subr.mxu0 0.0
    %6192 = vmatpush1.msra.mxu0 %v6170
    %6193 = vmatprep.subr.mxu0 0.0
    %6194 = vmatpush1.msra.mxu0 %v6171
    %6195 = vmatprep.subr.mxu0 0.0
    %6196 = vmatpush1.msra.mxu0 %v6172
    %6197 = vmatprep.subr.mxu0 0.0
    %6198 = vmatpush1.msra.mxu0 %v6173
    %6199 = vmatprep.subr.mxu0 0.0
    %6200 = vmatpush1.msra.mxu0 %v6174
    %6201 = vmatprep.subr.mxu0 0.0
    %6202 = vmatpush1.msra.mxu0 %v6175
    %6203 = vmatprep.subr.mxu0 0.0
    %6204 = vmatpush1.msra.mxu0 %v6176
    %6205 = vmatprep.subr.mxu0 0.0
    %6206 = vmatpush1.msra.mxu0 %v6177
    %6207 = vmatprep.subr.mxu0 0.0
    %6208 = vmatpush1.msra.mxu0 %v6178
    %6209 = vmatprep.subr.mxu0 0.0
    %6210 = vmatpush1.msra.mxu0 %v6179
    %6211 = vmatprep.subr.mxu0 0.0
    %6212 = vmatpush1.msra.mxu0 %v6180
    %6213 = vmatprep.subr.mxu0 0.0
    %6214 = vmatpush1.msra.mxu0 0.0
    %6215 = vmatprep.subr.mxu0 0.0
    %6216 = vmatpush1.msra.mxu0 0.0
    %6217 = vmatprep.subr.mxu0 0.0
    %6218 = vmatpush1.msra.mxu0 0.0
    %6219 = vmatprep.subr.mxu0 0.0
    %6220 = vmatpush1.msra.mxu0 0.0
    %6221 = vmatprep.subr.mxu0 0.0
    %6222 = vmatpush1.msra.mxu0 0.0
    %6223 = vmatprep.subr.mxu0 0.0
    %6224 = vmatpush1.msra.mxu0 0.0
    %6225 = vmatprep.subr.mxu0 0.0
    %6226 = vmatpush1.msra.mxu0 0.0
    %6227 = vmatprep.subr.mxu0 0.0
    %6228 = vmatpush1.msra.mxu0 0.0
    %6229 = vmatprep.subr.mxu0 0.0
    %6230 = vmatpush1.msra.mxu0 0.0
    %6231 = vmatprep.subr.mxu0 0.0
    %6232 = vmatpush1.msra.mxu0 0.0
    %6233 = vmatprep.subr.mxu0 0.0
    %6234 = vmatpush1.msra.mxu0 0.0
    %6235 = vmatprep.subr.mxu0 0.0
    %6236 = vmatpush1.msra.mxu0 0.0
    %6237 = vmatprep.subr.mxu0 0.0
    %6238 = vmatpush1.msra.mxu0 0.0
    %6239 = vmatprep.subr.mxu0 0.0
    %6240 = vmatpush1.msra.mxu0 0.0
    %6241 = vmatprep.subr.mxu0 0.0
    %6242 = vmatpush1.msra.mxu0 0.0
    %6243 = vmatprep.subr.mxu0 0.0
    %6244 = vmatpush1.msra.mxu0 0.0
    %6245 = vmatprep.mubr.f32.mxu0 0.0
    %6246 = vmatmul.mubr.f32.gmra.mrb[0].mxu0 1.0
    %v6247 = vpop.f32.mrb[0].mxu0
    %v6248 = vadd.f32 0.0, %v6247
    %v6249 = vpop.f32.mrb[0].mxu0
    %6250 = vdwg.mxu0
    %v6251 = vadd.f32 %v6248, 1e-09
    %v6252 = vrcp.pop %v6251
    %v6253 = vmul.f32 %v5837, %v6252
    %v6254 = vmin.f32 %v6253, 1.0
    %v6256 = vlaneseq
    %v6257 = vshrl.u32 %v6256, 7
    %v6258 = vsub.s32 0, %v6257
    %v6259 = vrot.slane %v6254, %v6258
    %v6261 = vmul.f32 %v6165, %v6259
    %v6262 = vmul.f32 %v6166, %v6259
    %v6263 = vmul.f32 %v6167, %v6259
    %v6264 = vmul.f32 %v6168, %v6259
    %v6265 = vmul.f32 %v6169, %v6259
    %v6266 = vmul.f32 %v6170, %v6259
    %v6267 = vmul.f32 %v6171, %v6259
    %v6268 = vmul.f32 %v6172, %v6259
    %v6269 = vmul.f32 %v6173, %v6259
    %v6270 = vmul.f32 %v6174, %v6259
    %v6271 = vmul.f32 %v6175, %v6259
    %v6272 = vmul.f32 %v6176, %v6259
    %v6273 = vmul.f32 %v6177, %v6259
    %v6274 = vmul.f32 %v6178, %v6259
    %v6275 = vmul.f32 %v6179, %v6259
    %v6276 = vmul.f32 %v6180, %v6259
    %v6277 = vld [vmem:[#allocation4] sm:$0x1]
    %v6278 = vmul.f32 %v378, %v6261
    %v6279 = vmul.f32 %v385, %v6262
    %v6280 = vmul.f32 %v392, %v6263
    %v6281 = vmul.f32 %v399, %v6264
    %v6282 = vmul.f32 %v406, %v6265
    %v6283 = vmul.f32 %v413, %v6266
    %v6284 = vmul.f32 %v420, %v6267
    %v6285 = vmul.f32 %v427, %v6268
    %v6286 = vmul.f32 %v434, %v6269
    %v6287 = vmul.f32 %v441, %v6270
    %v6288 = vmul.f32 %v448, %v6271
    %v6289 = vmul.f32 %v455, %v6272
    %v6290 = vmul.f32 %v462, %v6273
    %v6291 = vmul.f32 %v469, %v6274
    %v6292 = vmul.f32 %v476, %v6275
    %v6293 = vmul.f32 %v483, %v6276
    %6294 = vmatprep.subr.mxu0 0.0
    %6295 = vmatpush1.msra.mxu0 %v6278
    %6296 = vmatprep.subr.mxu0 0.0
    %6297 = vmatpush1.msra.mxu0 %v6279
    %6298 = vmatprep.subr.mxu0 0.0
    %6299 = vmatpush1.msra.mxu0 %v6280
    %6300 = vmatprep.subr.mxu0 0.0
    %6301 = vmatpush1.msra.mxu0 %v6281
    %6302 = vmatprep.subr.mxu0 0.0
    %6303 = vmatpush1.msra.mxu0 %v6282
    %6304 = vmatprep.subr.mxu0 0.0
    %6305 = vmatpush1.msra.mxu0 %v6283
    %6306 = vmatprep.subr.mxu0 0.0
    %6307 = vmatpush1.msra.mxu0 %v6284
    %6308 = vmatprep.subr.mxu0 0.0
    %6309 = vmatpush1.msra.mxu0 %v6285
    %6310 = vmatprep.subr.mxu0 0.0
    %6311 = vmatpush1.msra.mxu0 %v6286
    %6312 = vmatprep.subr.mxu0 0.0
    %6313 = vmatpush1.msra.mxu0 %v6287
    %6314 = vmatprep.subr.mxu0 0.0
    %6315 = vmatpush1.msra.mxu0 %v6288
    %6316 = vmatprep.subr.mxu0 0.0
    %6317 = vmatpush1.msra.mxu0 %v6289
    %6318 = vmatprep.subr.mxu0 0.0
    %6319 = vmatpush1.msra.mxu0 %v6290
    %6320 = vmatprep.subr.mxu0 0.0
    %6321 = vmatpush1.msra.mxu0 %v6291
    %6322 = vmatprep.subr.mxu0 0.0
    %6323 = vmatpush1.msra.mxu0 %v6292
    %6324 = vmatprep.subr.mxu0 0.0
    %6325 = vmatpush1.msra.mxu0 %v6293
    %6326 = vmatprep.subr.mxu0 0.0
    %6327 = vmatpush1.msra.mxu0 0.0
    %6328 = vmatprep.subr.mxu0 0.0
    %6329 = vmatpush1.msra.mxu0 0.0
    %6330 = vmatprep.subr.mxu0 0.0
    %6331 = vmatpush1.msra.mxu0 0.0
    %6332 = vmatprep.subr.mxu0 0.0
    %6333 = vmatpush1.msra.mxu0 0.0
    %6334 = vmatprep.subr.mxu0 0.0
    %6335 = vmatpush1.msra.mxu0 0.0
    %6336 = vmatprep.subr.mxu0 0.0
    %6337 = vmatpush1.msra.mxu0 0.0
    %6338 = vmatprep.subr.mxu0 0.0
    %6339 = vmatpush1.msra.mxu0 0.0
    %6340 = vmatprep.subr.mxu0 0.0
    %6341 = vmatpush1.msra.mxu0 0.0
    %6342 = vmatprep.subr.mxu0 0.0
    %6343 = vmatpush1.msra.mxu0 0.0
    %6344 = vmatprep.subr.mxu0 0.0
    %6345 = vmatpush1.msra.mxu0 0.0
    %6346 = vmatprep.subr.mxu0 0.0
    %6347 = vmatpush1.msra.mxu0 0.0
    %6348 = vmatprep.subr.mxu0 0.0
    %6349 = vmatpush1.msra.mxu0 0.0
    %6350 = vmatprep.subr.mxu0 0.0
    %6351 = vmatpush1.msra.mxu0 0.0
    %6352 = vmatprep.subr.mxu0 0.0
    %6353 = vmatpush1.msra.mxu0 0.0
    %6354 = vmatprep.subr.mxu0 0.0
    %6355 = vmatpush1.msra.mxu0 0.0
    %6356 = vmatprep.subr.mxu0 0.0
    %6357 = vmatpush1.msra.mxu0 0.0
    %6358 = vmatprep.mubr.f32.mxu0 0.0
    %6359 = vmatmul.mubr.f32.gmra.mrb[0].mxu0 1.0
    %v6360 = vpop.f32.mrb[0].mxu0
    %v6361 = vadd.f32 0.0, %v6360
    %v6362 = vpop.f32.mrb[0].mxu0
    %6363 = vdwg.mxu0
    %v6364 = vadd.f32 %v6277, %v6361
    %6365 = vst [vmem:[#allocation4] sm:$0x1] %v6364
    %6366 = vmatprep.subr.mxu0 0.0
    %6367 = vmatpush1.msra.mxu0 1.0
    %6368 = vmatprep.subr.mxu0 0.0
    %6369 = vmatpush1.msra.mxu0 1.0
    %6370 = vmatprep.subr.mxu0 0.0
    %6371 = vmatpush1.msra.mxu0 1.0
    %6372 = vmatprep.subr.mxu0 0.0
    %6373 = vmatpush1.msra.mxu0 1.0
    %6374 = vmatprep.subr.mxu0 0.0
    %6375 = vmatpush1.msra.mxu0 1.0
    %6376 = vmatprep.subr.mxu0 0.0
    %6377 = vmatpush1.msra.mxu0 1.0
    %6378 = vmatprep.subr.mxu0 0.0
    %6379 = vmatpush1.msra.mxu0 1.0
    %6380 = vmatprep.subr.mxu0 0.0
    %6381 = vmatpush1.msra.mxu0 1.0
    %6382 = vmatprep.subr.mxu0 0.0
    %6383 = vmatpush1.msra.mxu0 1.0
    %6384 = vmatprep.subr.mxu0 0.0
    %6385 = vmatpush1.msra.mxu0 1.0
    %6386 = vmatprep.subr.mxu0 0.0
    %6387 = vmatpush1.msra.mxu0 1.0
    %6388 = vmatprep.subr.mxu0 0.0
    %6389 = vmatpush1.msra.mxu0 1.0
    %6390 = vmatprep.subr.mxu0 0.0
    %6391 = vmatpush1.msra.mxu0 1.0
    %6392 = vmatprep.subr.mxu0 0.0
    %6393 = vmatpush1.msra.mxu0 1.0
    %6394 = vmatprep.subr.mxu0 0.0
    %6395 = vmatpush1.msra.mxu0 1.0
    %6396 = vmatprep.subr.mxu0 0.0
    %6397 = vmatpush1.msra.mxu0 1.0
    %6398 = vmatprep.subr.mxu0 0.0
    %6399 = vmatpush1.msra.mxu0 0.0
    %6400 = vmatprep.subr.mxu0 0.0
    %6401 = vmatpush1.msra.mxu0 0.0
    %6402 = vmatprep.subr.mxu0 0.0
    %6403 = vmatpush1.msra.mxu0 0.0
    %6404 = vmatprep.subr.mxu0 0.0
    %6405 = vmatpush1.msra.mxu0 0.0
    %6406 = vmatprep.subr.mxu0 0.0
    %6407 = vmatpush1.msra.mxu0 0.0
    %6408 = vmatprep.subr.mxu0 0.0
    %6409 = vmatpush1.msra.mxu0 0.0
    %6410 = vmatprep.subr.mxu0 0.0
    %6411 = vmatpush1.msra.mxu0 0.0
    %6412 = vmatprep.subr.mxu0 0.0
    %6413 = vmatpush1.msra.mxu0 0.0
    %6414 = vmatprep.subr.mxu0 0.0
    %6415 = vmatpush1.msra.mxu0 0.0
    %6416 = vmatprep.subr.mxu0 0.0
    %6417 = vmatpush1.msra.mxu0 0.0
    %6418 = vmatprep.subr.mxu0 0.0
    %6419 = vmatpush1.msra.mxu0 0.0
    %6420 = vmatprep.subr.mxu0 0.0
    %6421 = vmatpush1.msra.mxu0 0.0
    %6422 = vmatprep.subr.mxu0 0.0
    %6423 = vmatpush1.msra.mxu0 0.0
    %6424 = vmatprep.subr.mxu0 0.0
    %6425 = vmatpush1.msra.mxu0 0.0
    %6426 = vmatprep.subr.mxu0 0.0
    %6427 = vmatpush1.msra.mxu0 0.0
    %6428 = vmatprep.subr.mxu0 0.0
    %6429 = vmatpush1.msra.mxu0 0.0
    %6430 = vmatprep.mubr.f32.mxu0 0.0
    %6431 = vmatmul.mubr.f32.gmra.mrb[0].mxu0 %v6261
    %v6432 = vpop.f32.mrb[0].mxu0
    %v6433 = vadd.f32 0.0, %v6432
    %v6434 = vpop.f32.mrb[0].mxu0
    %6435 = vmatprep.mubr.f32.mxu0 0.0
    %6436 = vmatmul.mubr.f32.gmra.mrb[0].mxu0 %v6262
    %v6437 = vpop.f32.mrb[0].mxu0
    %v6438 = vadd.f32 0.0, %v6437
    %v6439 = vpop.f32.mrb[0].mxu0
    %6440 = vmatprep.mubr.f32.mxu0 0.0
    %6441 = vmatmul.mubr.f32.gmra.mrb[0].mxu0 %v6263
    %v6442 = vpop.f32.mrb[0].mxu0
    %v6443 = vadd.f32 0.0, %v6442
    %v6444 = vpop.f32.mrb[0].mxu0
    %6445 = vmatprep.mubr.f32.mxu0 0.0
    %6446 = vmatmul.mubr.f32.gmra.mrb[0].mxu0 %v6264
    %v6447 = vpop.f32.mrb[0].mxu0
    %v6448 = vadd.f32 0.0, %v6447
    %v6449 = vpop.f32.mrb[0].mxu0
    %6450 = vmatprep.mubr.f32.mxu0 0.0
    %6451 = vmatmul.mubr.f32.gmra.mrb[0].mxu0 %v6265
    %v6452 = vpop.f32.mrb[0].mxu0
    %v6453 = vadd.f32 0.0, %v6452
    %v6454 = vpop.f32.mrb[0].mxu0
    %6455 = vmatprep.mubr.f32.mxu0 0.0
    %6456 = vmatmul.mubr.f32.gmra.mrb[0].mxu0 %v6266
    %v6457 = vpop.f32.mrb[0].mxu0
    %v6458 = vadd.f32 0.0, %v6457
    %v6459 = vpop.f32.mrb[0].mxu0
    %6460 = vmatprep.mubr.f32.mxu0 0.0
    %6461 = vmatmul.mubr.f32.gmra.mrb[0].mxu0 %v6267
    %v6462 = vpop.f32.mrb[0].mxu0
    %v6463 = vadd.f32 0.0, %v6462
    %v6464 = vpop.f32.mrb[0].mxu0
    %6465 = vmatprep.mubr.f32.mxu0 0.0
    %6466 = vmatmul.mubr.f32.gmra.mrb[0].mxu0 %v6268
    %v6467 = vpop.f32.mrb[0].mxu0
    %v6468 = vadd.f32 0.0, %v6467
    %v6469 = vpop.f32.mrb[0].mxu0
    %6470 = vmatprep.mubr.f32.mxu0 0.0
    %6471 = vmatmul.mubr.f32.gmra.mrb[0].mxu0 %v6269
    %v6472 = vpop.f32.mrb[0].mxu0
    %v6473 = vadd.f32 0.0, %v6472
    %v6474 = vpop.f32.mrb[0].mxu0
    %6475 = vmatprep.mubr.f32.mxu0 0.0
    %6476 = vmatmul.mubr.f32.gmra.mrb[0].mxu0 %v6270
    %v6477 = vpop.f32.mrb[0].mxu0
    %v6478 = vadd.f32 0.0, %v6477
    %v6479 = vpop.f32.mrb[0].mxu0
    %6480 = vmatprep.mubr.f32.mxu0 0.0
    %6481 = vmatmul.mubr.f32.gmra.mrb[0].mxu0 %v6271
    %v6482 = vpop.f32.mrb[0].mxu0
    %v6483 = vadd.f32 0.0, %v6482
    %v6484 = vpop.f32.mrb[0].mxu0
    %6485 = vmatprep.mubr.f32.mxu0 0.0
    %6486 = vmatmul.mubr.f32.gmra.mrb[0].mxu0 %v6272
    %v6487 = vpop.f32.mrb[0].mxu0
    %v6488 = vadd.f32 0.0, %v6487
    %v6489 = vpop.f32.mrb[0].mxu0
    %6490 = vmatprep.mubr.f32.mxu0 0.0
    %6491 = vmatmul.mubr.f32.gmra.mrb[0].mxu0 %v6273
    %v6492 = vpop.f32.mrb[0].mxu0
    %v6493 = vadd.f32 0.0, %v6492
    %v6494 = vpop.f32.mrb[0].mxu0
    %6495 = vmatprep.mubr.f32.mxu0 0.0
    %6496 = vmatmul.mubr.f32.gmra.mrb[0].mxu0 %v6274
    %v6497 = vpop.f32.mrb[0].mxu0
    %v6498 = vadd.f32 0.0, %v6497
    %v6499 = vpop.f32.mrb[0].mxu0
    %6500 = vmatprep.mubr.f32.mxu0 0.0
    %6501 = vmatmul.mubr.f32.gmra.mrb[0].mxu0 %v6275
    %v6502 = vpop.f32.mrb[0].mxu0
    %v6503 = vadd.f32 0.0, %v6502
    %v6504 = vpop.f32.mrb[0].mxu0
    %6505 = vmatprep.mubr.f32.mxu0 0.0
    %6506 = vmatmul.mubr.f32.gmra.mrb[0].mxu0 %v6276
    %v6507 = vpop.f32.mrb[0].mxu0
    %v6508 = vadd.f32 0.0, %v6507
    %v6509 = vpop.f32.mrb[0].mxu0
    %6510 = vdwg.mxu0
    %v6511 = vsub.f32 %v5821, %v6433
    %v6512 = vsub.f32 %v5822, %v6438
    %v6513 = vsub.f32 %v5823, %v6443
    %v6514 = vsub.f32 %v5824, %v6448
    %v6515 = vsub.f32 %v5825, %v6453
    %v6516 = vsub.f32 %v5826, %v6458
    %v6517 = vsub.f32 %v5827, %v6463
    %v6518 = vsub.f32 %v5828, %v6468
    %v6519 = vsub.f32 %v5829, %v6473
    %v6520 = vsub.f32 %v5830, %v6478
    %v6521 = vsub.f32 %v5831, %v6483
    %v6522 = vsub.f32 %v5832, %v6488
    %v6523 = vsub.f32 %v5833, %v6493
    %v6524 = vsub.f32 %v5834, %v6498
    %v6525 = vsub.f32 %v5835, %v6503
    %v6526 = vsub.f32 %v5836, %v6508
    %v6527 = vmax.f32 %v6511, 0.0
    %v6528 = vmax.f32 %v6512, 0.0
    %v6529 = vmax.f32 %v6513, 0.0
    %v6530 = vmax.f32 %v6514, 0.0
    %v6531 = vmax.f32 %v6515, 0.0
    %v6532 = vmax.f32 %v6516, 0.0
    %v6533 = vmax.f32 %v6517, 0.0
    %v6534 = vmax.f32 %v6518, 0.0
    %v6535 = vmax.f32 %v6519, 0.0
    %v6536 = vmax.f32 %v6520, 0.0
    %v6537 = vmax.f32 %v6521, 0.0
    %v6538 = vmax.f32 %v6522, 0.0
    %v6539 = vmax.f32 %v6523, 0.0
    %v6540 = vmax.f32 %v6524, 0.0
    %v6541 = vmax.f32 %v6525, 0.0
    %v6542 = vmax.f32 %v6526, 0.0
    %6543 = vst.msk [vmem:[#allocation2] sm:$0xff] %vm508, %v6527
    %6544 = vst.msk [vmem:[#allocation2 + $0x8] sm:$0xff] %vm508, %v6528
    %6545 = vst.msk [vmem:[#allocation2 + $0x10] sm:$0xff] %vm508, %v6529
    %6546 = vst.msk [vmem:[#allocation2 + $0x18] sm:$0xff] %vm508, %v6530
    %6547 = vst.msk [vmem:[#allocation2 + $0x20] sm:$0xff] %vm508, %v6531
    %6548 = vst.msk [vmem:[#allocation2 + $0x28] sm:$0xff] %vm508, %v6532
    %6549 = vst.msk [vmem:[#allocation2 + $0x30] sm:$0xff] %vm508, %v6533
    %6550 = vst.msk [vmem:[#allocation2 + $0x38] sm:$0xff] %vm508, %v6534
    %6551 = vst.msk [vmem:[#allocation2 + $0x40] sm:$0xff] %vm508, %v6535
    %6552 = vst.msk [vmem:[#allocation2 + $0x48] sm:$0xff] %vm508, %v6536
    %6553 = vst.msk [vmem:[#allocation2 + $0x50] sm:$0xff] %vm508, %v6537
    %6554 = vst.msk [vmem:[#allocation2 + $0x58] sm:$0xff] %vm508, %v6538
    %6555 = vst.msk [vmem:[#allocation2 + $0x60] sm:$0xff] %vm508, %v6539
    %6556 = vst.msk [vmem:[#allocation2 + $0x68] sm:$0xff] %vm508, %v6540
    %6557 = vst.msk [vmem:[#allocation2 + $0x70] sm:$0xff] %vm508, %v6541
    %6558 = vst.msk [vmem:[#allocation2 + $0x78] sm:$0xff] %vm508, %v6542
    %v6559 = vmul.f32 %v6248, %v6254
    %v6560 = vsub.f32 %v5837, %v6559
    %v6561 = vmax.f32 %v6560, 0.0
    %6562 = vst [vmem:[#allocation3] sm:$0x1] %v6561
    %v6563 = vld [vmem:[#allocation2] sm:$0xff]
    %v6564 = vld [vmem:[#allocation2 + $0x8] sm:$0xff]
    %v6565 = vld [vmem:[#allocation2 + $0x10] sm:$0xff]
    %v6566 = vld [vmem:[#allocation2 + $0x18] sm:$0xff]
    %v6567 = vld [vmem:[#allocation2 + $0x20] sm:$0xff]
    %v6568 = vld [vmem:[#allocation2 + $0x28] sm:$0xff]
    %v6569 = vld [vmem:[#allocation2 + $0x30] sm:$0xff]
    %v6570 = vld [vmem:[#allocation2 + $0x38] sm:$0xff]
    %v6571 = vld [vmem:[#allocation2 + $0x40] sm:$0xff]
    %v6572 = vld [vmem:[#allocation2 + $0x48] sm:$0xff]
    %v6573 = vld [vmem:[#allocation2 + $0x50] sm:$0xff]
    %v6574 = vld [vmem:[#allocation2 + $0x58] sm:$0xff]
    %v6575 = vld [vmem:[#allocation2 + $0x60] sm:$0xff]
    %v6576 = vld [vmem:[#allocation2 + $0x68] sm:$0xff]
    %v6577 = vld [vmem:[#allocation2 + $0x70] sm:$0xff]
    %v6578 = vld [vmem:[#allocation2 + $0x78] sm:$0xff]
    %v6579 = vld [vmem:[#allocation3] sm:$0x1]
    %v6580 = vmul.f32 %v3596, -0.25
    %v6581 = vmul.f32 %v3597, -0.25
    %v6582 = vmul.f32 %v3598, -0.25
    %v6583 = vmul.f32 %v3599, -0.25
    %v6584 = vmul.f32 %v3600, -0.25
    %v6585 = vmul.f32 %v3601, -0.25
    %v6586 = vmul.f32 %v3602, -0.25
    %v6587 = vmul.f32 %v3603, -0.25
    %v6588 = vmul.f32 %v3604, -0.25
    %v6589 = vmul.f32 %v3605, -0.25
    %v6590 = vmul.f32 %v3606, -0.25
    %v6591 = vmul.f32 %v3607, -0.25
    %v6592 = vmul.f32 %v3608, -0.25
    %v6593 = vmul.f32 %v3609, -0.25
    %v6594 = vmul.f32 %v3610, -0.25
    %v6595 = vmul.f32 %v3611, -0.25
    %v6596 = vmul.f32 %v6580, 1.442695
    %v6597 = vpow.pop %v6596
    %v6598 = vmul.f32 %v6581, 1.442695
    %v6599 = vpow.pop %v6598
    %v6600 = vmul.f32 %v6582, 1.442695
    %v6601 = vpow.pop %v6600
    %v6602 = vmul.f32 %v6583, 1.442695
    %v6603 = vpow.pop %v6602
    %v6604 = vmul.f32 %v6584, 1.442695
    %v6605 = vpow.pop %v6604
    %v6606 = vmul.f32 %v6585, 1.442695
    %v6607 = vpow.pop %v6606
    %v6608 = vmul.f32 %v6586, 1.442695
    %v6609 = vpow.pop %v6608
    %v6610 = vmul.f32 %v6587, 1.442695
    %v6611 = vpow.pop %v6610
    %v6612 = vmul.f32 %v6588, 1.442695
    %v6613 = vpow.pop %v6612
    %v6614 = vmul.f32 %v6589, 1.442695
    %v6615 = vpow.pop %v6614
    %v6616 = vmul.f32 %v6590, 1.442695
    %v6617 = vpow.pop %v6616
    %v6618 = vmul.f32 %v6591, 1.442695
    %v6619 = vpow.pop %v6618
    %v6620 = vmul.f32 %v6592, 1.442695
    %v6621 = vpow.pop %v6620
    %v6622 = vmul.f32 %v6593, 1.442695
    %v6623 = vpow.pop %v6622
    %v6624 = vmul.f32 %v6594, 1.442695
    %v6625 = vpow.pop %v6624
    %v6626 = vmul.f32 %v6595, 1.442695
    %v6627 = vpow.pop %v6626
    %v6629 = vlaneseq
    %v6630 = vshrl.u32 %v6629, 7
    %v6631 = vsub.s32 0, %v6630
    %v6632 = vrot.slane %v6579, %v6631
    %v6634 = vmul.f32 %v6597, %v6632
    %v6635 = vmul.f32 %v6599, %v6632
    %v6636 = vmul.f32 %v6601, %v6632
    %v6637 = vmul.f32 %v6603, %v6632
    %v6638 = vmul.f32 %v6605, %v6632
    %v6639 = vmul.f32 %v6607, %v6632
    %v6640 = vmul.f32 %v6609, %v6632
    %v6641 = vmul.f32 %v6611, %v6632
    %v6642 = vmul.f32 %v6613, %v6632
    %v6643 = vmul.f32 %v6615, %v6632
    %v6644 = vmul.f32 %v6617, %v6632
    %v6645 = vmul.f32 %v6619, %v6632
    %v6646 = vmul.f32 %v6621, %v6632
    %v6647 = vmul.f32 %v6623, %v6632
    %v6648 = vmul.f32 %v6625, %v6632
    %v6649 = vmul.f32 %v6627, %v6632
    %6650 = vmatprep.subr.mxu0 0.0
    %6651 = vmatpush1.msra.mxu0 1.0
    %6652 = vmatprep.subr.mxu0 0.0
    %6653 = vmatpush1.msra.mxu0 1.0
    %6654 = vmatprep.subr.mxu0 0.0
    %6655 = vmatpush1.msra.mxu0 1.0
    %6656 = vmatprep.subr.mxu0 0.0
    %6657 = vmatpush1.msra.mxu0 1.0
    %6658 = vmatprep.subr.mxu0 0.0
    %6659 = vmatpush1.msra.mxu0 1.0
    %6660 = vmatprep.subr.mxu0 0.0
    %6661 = vmatpush1.msra.mxu0 1.0
    %6662 = vmatprep.subr.mxu0 0.0
    %6663 = vmatpush1.msra.mxu0 1.0
    %6664 = vmatprep.subr.mxu0 0.0
    %6665 = vmatpush1.msra.mxu0 1.0
    %6666 = vmatprep.subr.mxu0 0.0
    %6667 = vmatpush1.msra.mxu0 1.0
    %6668 = vmatprep.subr.mxu0 0.0
    %6669 = vmatpush1.msra.mxu0 1.0
    %6670 = vmatprep.subr.mxu0 0.0
    %6671 = vmatpush1.msra.mxu0 1.0
    %6672 = vmatprep.subr.mxu0 0.0
    %6673 = vmatpush1.msra.mxu0 1.0
    %6674 = vmatprep.subr.mxu0 0.0
    %6675 = vmatpush1.msra.mxu0 1.0
    %6676 = vmatprep.subr.mxu0 0.0
    %6677 = vmatpush1.msra.mxu0 1.0
    %6678 = vmatprep.subr.mxu0 0.0
    %6679 = vmatpush1.msra.mxu0 1.0
    %6680 = vmatprep.subr.mxu0 0.0
    %6681 = vmatpush1.msra.mxu0 1.0
    %6682 = vmatprep.subr.mxu0 0.0
    %6683 = vmatpush1.msra.mxu0 0.0
    %6684 = vmatprep.subr.mxu0 0.0
    %6685 = vmatpush1.msra.mxu0 0.0
    %6686 = vmatprep.subr.mxu0 0.0
    %6687 = vmatpush1.msra.mxu0 0.0
    %6688 = vmatprep.subr.mxu0 0.0
    %6689 = vmatpush1.msra.mxu0 0.0
    %6690 = vmatprep.subr.mxu0 0.0
    %6691 = vmatpush1.msra.mxu0 0.0
    %6692 = vmatprep.subr.mxu0 0.0
    %6693 = vmatpush1.msra.mxu0 0.0
    %6694 = vmatprep.subr.mxu0 0.0
    %6695 = vmatpush1.msra.mxu0 0.0
    %6696 = vmatprep.subr.mxu0 0.0
    %6697 = vmatpush1.msra.mxu0 0.0
    %6698 = vmatprep.subr.mxu0 0.0
    %6699 = vmatpush1.msra.mxu0 0.0
    %6700 = vmatprep.subr.mxu0 0.0
    %6701 = vmatpush1.msra.mxu0 0.0
    %6702 = vmatprep.subr.mxu0 0.0
    %6703 = vmatpush1.msra.mxu0 0.0
    %6704 = vmatprep.subr.mxu0 0.0
    %6705 = vmatpush1.msra.mxu0 0.0
    %6706 = vmatprep.subr.mxu0 0.0
    %6707 = vmatpush1.msra.mxu0 0.0
    %6708 = vmatprep.subr.mxu0 0.0
    %6709 = vmatpush1.msra.mxu0 0.0
    %6710 = vmatprep.subr.mxu0 0.0
    %6711 = vmatpush1.msra.mxu0 0.0
    %6712 = vmatprep.subr.mxu0 0.0
    %6713 = vmatpush1.msra.mxu0 0.0
    %6714 = vmatprep.mubr.f32.mxu0 0.0
    %6715 = vmatmul.mubr.f32.gmra.mrb[0].mxu0 %v6634
    %v6716 = vpop.f32.mrb[0].mxu0
    %v6717 = vadd.f32 1e-09, %v6716
    %v6718 = vpop.f32.mrb[0].mxu0
    %6719 = vmatprep.mubr.f32.mxu0 0.0
    %6720 = vmatmul.mubr.f32.gmra.mrb[0].mxu0 %v6635
    %v6721 = vpop.f32.mrb[0].mxu0
    %v6722 = vadd.f32 1e-09, %v6721
    %v6723 = vpop.f32.mrb[0].mxu0
    %6724 = vmatprep.mubr.f32.mxu0 0.0
    %6725 = vmatmul.mubr.f32.gmra.mrb[0].mxu0 %v6636
    %v6726 = vpop.f32.mrb[0].mxu0
    %v6727 = vadd.f32 1e-09, %v6726
    %v6728 = vpop.f32.mrb[0].mxu0
    %6729 = vmatprep.mubr.f32.mxu0 0.0
    %6730 = vmatmul.mubr.f32.gmra.mrb[0].mxu0 %v6637
    %v6731 = vpop.f32.mrb[0].mxu0
    %v6732 = vadd.f32 1e-09, %v6731
    %v6733 = vpop.f32.mrb[0].mxu0
    %6734 = vmatprep.mubr.f32.mxu0 0.0
    %6735 = vmatmul.mubr.f32.gmra.mrb[0].mxu0 %v6638
    %v6736 = vpop.f32.mrb[0].mxu0
    %v6737 = vadd.f32 1e-09, %v6736
    %v6738 = vpop.f32.mrb[0].mxu0
    %6739 = vmatprep.mubr.f32.mxu0 0.0
    %6740 = vmatmul.mubr.f32.gmra.mrb[0].mxu0 %v6639
    %v6741 = vpop.f32.mrb[0].mxu0
    %v6742 = vadd.f32 1e-09, %v6741
    %v6743 = vpop.f32.mrb[0].mxu0
    %6744 = vmatprep.mubr.f32.mxu0 0.0
    %6745 = vmatmul.mubr.f32.gmra.mrb[0].mxu0 %v6640
    %v6746 = vpop.f32.mrb[0].mxu0
    %v6747 = vadd.f32 1e-09, %v6746
    %v6748 = vpop.f32.mrb[0].mxu0
    %6749 = vmatprep.mubr.f32.mxu0 0.0
    %6750 = vmatmul.mubr.f32.gmra.mrb[0].mxu0 %v6641
    %v6751 = vpop.f32.mrb[0].mxu0
    %v6752 = vadd.f32 1e-09, %v6751
    %v6753 = vpop.f32.mrb[0].mxu0
    %6754 = vmatprep.mubr.f32.mxu0 0.0
    %6755 = vmatmul.mubr.f32.gmra.mrb[0].mxu0 %v6642
    %v6756 = vpop.f32.mrb[0].mxu0
    %v6757 = vadd.f32 1e-09, %v6756
    %v6758 = vpop.f32.mrb[0].mxu0
    %6759 = vmatprep.mubr.f32.mxu0 0.0
    %6760 = vmatmul.mubr.f32.gmra.mrb[0].mxu0 %v6643
    %v6761 = vpop.f32.mrb[0].mxu0
    %v6762 = vadd.f32 1e-09, %v6761
    %v6763 = vpop.f32.mrb[0].mxu0
    %6764 = vmatprep.mubr.f32.mxu0 0.0
    %6765 = vmatmul.mubr.f32.gmra.mrb[0].mxu0 %v6644
    %v6766 = vpop.f32.mrb[0].mxu0
    %v6767 = vadd.f32 1e-09, %v6766
    %v6768 = vpop.f32.mrb[0].mxu0
    %6769 = vmatprep.mubr.f32.mxu0 0.0
    %6770 = vmatmul.mubr.f32.gmra.mrb[0].mxu0 %v6645
    %v6771 = vpop.f32.mrb[0].mxu0
    %v6772 = vadd.f32 1e-09, %v6771
    %v6773 = vpop.f32.mrb[0].mxu0
    %6774 = vmatprep.mubr.f32.mxu0 0.0
    %6775 = vmatmul.mubr.f32.gmra.mrb[0].mxu0 %v6646
    %v6776 = vpop.f32.mrb[0].mxu0
    %v6777 = vadd.f32 1e-09, %v6776
    %v6778 = vpop.f32.mrb[0].mxu0
    %6779 = vmatprep.mubr.f32.mxu0 0.0
    %6780 = vmatmul.mubr.f32.gmra.mrb[0].mxu0 %v6647
    %v6781 = vpop.f32.mrb[0].mxu0
    %v6782 = vadd.f32 1e-09, %v6781
    %v6783 = vpop.f32.mrb[0].mxu0
    %6784 = vmatprep.mubr.f32.mxu0 0.0
    %6785 = vmatmul.mubr.f32.gmra.mrb[0].mxu0 %v6648
    %v6786 = vpop.f32.mrb[0].mxu0
    %v6787 = vadd.f32 1e-09, %v6786
    %v6788 = vpop.f32.mrb[0].mxu0
    %6789 = vmatprep.mubr.f32.mxu0 0.0
    %6790 = vmatmul.mubr.f32.gmra.mrb[0].mxu0 %v6649
    %v6791 = vpop.f32.mrb[0].mxu0
    %v6792 = vadd.f32 1e-09, %v6791
    %v6793 = vpop.f32.mrb[0].mxu0
    %6794 = vdwg.mxu0
    %v6795 = vrcp.pop %v6717
    %v6796 = vmul.f32 %v6563, %v6795
    %v6797 = vrcp.pop %v6722
    %v6798 = vmul.f32 %v6564, %v6797
    %v6799 = vrcp.pop %v6727
    %v6800 = vmul.f32 %v6565, %v6799
    %v6801 = vrcp.pop %v6732
    %v6802 = vmul.f32 %v6566, %v6801
    %v6803 = vrcp.pop %v6737
    %v6804 = vmul.f32 %v6567, %v6803
    %v6805 = vrcp.pop %v6742
    %v6806 = vmul.f32 %v6568, %v6805
    %v6807 = vrcp.pop %v6747
    %v6808 = vmul.f32 %v6569, %v6807
    %v6809 = vrcp.pop %v6752
    %v6810 = vmul.f32 %v6570, %v6809
    %v6811 = vrcp.pop %v6757
    %v6812 = vmul.f32 %v6571, %v6811
    %v6813 = vrcp.pop %v6762
    %v6814 = vmul.f32 %v6572, %v6813
    %v6815 = vrcp.pop %v6767
    %v6816 = vmul.f32 %v6573, %v6815
    %v6817 = vrcp.pop %v6772
    %v6818 = vmul.f32 %v6574, %v6817
    %v6819 = vrcp.pop %v6777
    %v6820 = vmul.f32 %v6575, %v6819
    %v6821 = vrcp.pop %v6782
    %v6822 = vmul.f32 %v6576, %v6821
    %v6823 = vrcp.pop %v6787
    %v6824 = vmul.f32 %v6577, %v6823
    %v6825 = vrcp.pop %v6792
    %v6826 = vmul.f32 %v6578, %v6825
    %6828 = vset.pattern.permute.xlu0 0
    %6829 = vperm.xlu0 %6828, %v6796
    %v6830 = vpop.permute.xlu0 %6829
    %6833 = vset.pattern.permute.xlu0 0
    %6834 = vperm.xlu0 %6833, %v6798
    %v6835 = vpop.permute.xlu0 %6834
    %6838 = vset.pattern.permute.xlu0 0
    %6839 = vperm.xlu0 %6838, %v6800
    %v6840 = vpop.permute.xlu0 %6839
    %6843 = vset.pattern.permute.xlu0 0
    %6844 = vperm.xlu0 %6843, %v6802
    %v6845 = vpop.permute.xlu0 %6844
    %6848 = vset.pattern.permute.xlu0 0
    %6849 = vperm.xlu0 %6848, %v6804
    %v6850 = vpop.permute.xlu0 %6849
    %6853 = vset.pattern.permute.xlu0 0
    %6854 = vperm.xlu0 %6853, %v6806
    %v6855 = vpop.permute.xlu0 %6854
    %6858 = vset.pattern.permute.xlu0 0
    %6859 = vperm.xlu0 %6858, %v6808
    %v6860 = vpop.permute.xlu0 %6859
    %6863 = vset.pattern.permute.xlu0 0
    %6864 = vperm.xlu0 %6863, %v6810
    %v6865 = vpop.permute.xlu0 %6864
    %6868 = vset.pattern.permute.xlu0 0
    %6869 = vperm.xlu0 %6868, %v6812
    %v6870 = vpop.permute.xlu0 %6869
    %6873 = vset.pattern.permute.xlu0 0
    %6874 = vperm.xlu0 %6873, %v6814
    %v6875 = vpop.permute.xlu0 %6874
    %6878 = vset.pattern.permute.xlu0 0
    %6879 = vperm.xlu0 %6878, %v6816
    %v6880 = vpop.permute.xlu0 %6879
    %6883 = vset.pattern.permute.xlu0 0
    %6884 = vperm.xlu0 %6883, %v6818
    %v6885 = vpop.permute.xlu0 %6884
    %6888 = vset.pattern.permute.xlu0 0
    %6889 = vperm.xlu0 %6888, %v6820
    %v6890 = vpop.permute.xlu0 %6889
    %6893 = vset.pattern.permute.xlu0 0
    %6894 = vperm.xlu0 %6893, %v6822
    %v6895 = vpop.permute.xlu0 %6894
    %6898 = vset.pattern.permute.xlu0 0
    %6899 = vperm.xlu0 %6898, %v6824
    %v6900 = vpop.permute.xlu0 %6899
    %6903 = vset.pattern.permute.xlu0 0
    %6904 = vperm.xlu0 %6903, %v6826
    %v6905 = vpop.permute.xlu0 %6904
    %v6907 = vmul.f32 %v6634, %v6830
    %v6908 = vmul.f32 %v6635, %v6835
    %v6909 = vmul.f32 %v6636, %v6840
    %v6910 = vmul.f32 %v6637, %v6845
    %v6911 = vmul.f32 %v6638, %v6850
    %v6912 = vmul.f32 %v6639, %v6855
    %v6913 = vmul.f32 %v6640, %v6860
    %v6914 = vmul.f32 %v6641, %v6865
    %v6915 = vmul.f32 %v6642, %v6870
    %v6916 = vmul.f32 %v6643, %v6875
    %v6917 = vmul.f32 %v6644, %v6880
    %v6918 = vmul.f32 %v6645, %v6885
    %v6919 = vmul.f32 %v6646, %v6890
    %v6920 = vmul.f32 %v6647, %v6895
    %v6921 = vmul.f32 %v6648, %v6900
    %v6922 = vmul.f32 %v6649, %v6905
    %6923 = vmatprep.subr.mxu0 0.0
    %6924 = vmatpush1.msra.mxu0 %v6907
    %6925 = vmatprep.subr.mxu0 0.0
    %6926 = vmatpush1.msra.mxu0 %v6908
    %6927 = vmatprep.subr.mxu0 0.0
    %6928 = vmatpush1.msra.mxu0 %v6909
    %6929 = vmatprep.subr.mxu0 0.0
    %6930 = vmatpush1.msra.mxu0 %v6910
    %6931 = vmatprep.subr.mxu0 0.0
    %6932 = vmatpush1.msra.mxu0 %v6911
    %6933 = vmatprep.subr.mxu0 0.0
    %6934 = vmatpush1.msra.mxu0 %v6912
    %6935 = vmatprep.subr.mxu0 0.0
    %6936 = vmatpush1.msra.mxu0 %v6913
    %6937 = vmatprep.subr.mxu0 0.0
    %6938 = vmatpush1.msra.mxu0 %v6914
    %6939 = vmatprep.subr.mxu0 0.0
    %6940 = vmatpush1.msra.mxu0 %v6915
    %6941 = vmatprep.subr.mxu0 0.0
    %6942 = vmatpush1.msra.mxu0 %v6916
    %6943 = vmatprep.subr.mxu0 0.0
    %6944 = vmatpush1.msra.mxu0 %v6917
    %6945 = vmatprep.subr.mxu0 0.0
    %6946 = vmatpush1.msra.mxu0 %v6918
    %6947 = vmatprep.subr.mxu0 0.0
    %6948 = vmatpush1.msra.mxu0 %v6919
    %6949 = vmatprep.subr.mxu0 0.0
    %6950 = vmatpush1.msra.mxu0 %v6920
    %6951 = vmatprep.subr.mxu0 0.0
    %6952 = vmatpush1.msra.mxu0 %v6921
    %6953 = vmatprep.subr.mxu0 0.0
    %6954 = vmatpush1.msra.mxu0 %v6922
    %6955 = vmatprep.subr.mxu0 0.0
    %6956 = vmatpush1.msra.mxu0 0.0
    %6957 = vmatprep.subr.mxu0 0.0
    %6958 = vmatpush1.msra.mxu0 0.0
    %6959 = vmatprep.subr.mxu0 0.0
    %6960 = vmatpush1.msra.mxu0 0.0
    %6961 = vmatprep.subr.mxu0 0.0
    %6962 = vmatpush1.msra.mxu0 0.0
    %6963 = vmatprep.subr.mxu0 0.0
    %6964 = vmatpush1.msra.mxu0 0.0
    %6965 = vmatprep.subr.mxu0 0.0
    %6966 = vmatpush1.msra.mxu0 0.0
    %6967 = vmatprep.subr.mxu0 0.0
    %6968 = vmatpush1.msra.mxu0 0.0
    %6969 = vmatprep.subr.mxu0 0.0
    %6970 = vmatpush1.msra.mxu0 0.0
    %6971 = vmatprep.subr.mxu0 0.0
    %6972 = vmatpush1.msra.mxu0 0.0
    %6973 = vmatprep.subr.mxu0 0.0
    %6974 = vmatpush1.msra.mxu0 0.0
    %6975 = vmatprep.subr.mxu0 0.0
    %6976 = vmatpush1.msra.mxu0 0.0
    %6977 = vmatprep.subr.mxu0 0.0
    %6978 = vmatpush1.msra.mxu0 0.0
    %6979 = vmatprep.subr.mxu0 0.0
    %6980 = vmatpush1.msra.mxu0 0.0
    %6981 = vmatprep.subr.mxu0 0.0
    %6982 = vmatpush1.msra.mxu0 0.0
    %6983 = vmatprep.subr.mxu0 0.0
    %6984 = vmatpush1.msra.mxu0 0.0
    %6985 = vmatprep.subr.mxu0 0.0
    %6986 = vmatpush1.msra.mxu0 0.0
    %6987 = vmatprep.mubr.f32.mxu0 0.0
    %6988 = vmatmul.mubr.f32.gmra.mrb[0].mxu0 1.0
    %v6989 = vpop.f32.mrb[0].mxu0
    %v6990 = vadd.f32 0.0, %v6989
    %v6991 = vpop.f32.mrb[0].mxu0
    %6992 = vdwg.mxu0
    %v6993 = vadd.f32 %v6990, 1e-09
    %v6994 = vrcp.pop %v6993
    %v6995 = vmul.f32 %v6579, %v6994
    %v6996 = vmin.f32 %v6995, 1.0
    %v6998 = vlaneseq
    %v6999 = vshrl.u32 %v6998, 7
    %v7000 = vsub.s32 0, %v6999
    %v7001 = vrot.slane %v6996, %v7000
    %v7003 = vmul.f32 %v6907, %v7001
    %v7004 = vmul.f32 %v6908, %v7001
    %v7005 = vmul.f32 %v6909, %v7001
    %v7006 = vmul.f32 %v6910, %v7001
    %v7007 = vmul.f32 %v6911, %v7001
    %v7008 = vmul.f32 %v6912, %v7001
    %v7009 = vmul.f32 %v6913, %v7001
    %v7010 = vmul.f32 %v6914, %v7001
    %v7011 = vmul.f32 %v6915, %v7001
    %v7012 = vmul.f32 %v6916, %v7001
    %v7013 = vmul.f32 %v6917, %v7001
    %v7014 = vmul.f32 %v6918, %v7001
    %v7015 = vmul.f32 %v6919, %v7001
    %v7016 = vmul.f32 %v6920, %v7001
    %v7017 = vmul.f32 %v6921, %v7001
    %v7018 = vmul.f32 %v6922, %v7001
    %v7019 = vld [vmem:[#allocation4] sm:$0x1]
    %v7020 = vmul.f32 %v378, %v7003
    %v7021 = vmul.f32 %v385, %v7004
    %v7022 = vmul.f32 %v392, %v7005
    %v7023 = vmul.f32 %v399, %v7006
    %v7024 = vmul.f32 %v406, %v7007
    %v7025 = vmul.f32 %v413, %v7008
    %v7026 = vmul.f32 %v420, %v7009
    %v7027 = vmul.f32 %v427, %v7010
    %v7028 = vmul.f32 %v434, %v7011
    %v7029 = vmul.f32 %v441, %v7012
    %v7030 = vmul.f32 %v448, %v7013
    %v7031 = vmul.f32 %v455, %v7014
    %v7032 = vmul.f32 %v462, %v7015
    %v7033 = vmul.f32 %v469, %v7016
    %v7034 = vmul.f32 %v476, %v7017
    %v7035 = vmul.f32 %v483, %v7018
    %7036 = vmatprep.subr.mxu0 0.0
    %7037 = vmatpush1.msra.mxu0 %v7020
    %7038 = vmatprep.subr.mxu0 0.0
    %7039 = vmatpush1.msra.mxu0 %v7021
    %7040 = vmatprep.subr.mxu0 0.0
    %7041 = vmatpush1.msra.mxu0 %v7022
    %7042 = vmatprep.subr.mxu0 0.0
    %7043 = vmatpush1.msra.mxu0 %v7023
    %7044 = vmatprep.subr.mxu0 0.0
    %7045 = vmatpush1.msra.mxu0 %v7024
    %7046 = vmatprep.subr.mxu0 0.0
    %7047 = vmatpush1.msra.mxu0 %v7025
    %7048 = vmatprep.subr.mxu0 0.0
    %7049 = vmatpush1.msra.mxu0 %v7026
    %7050 = vmatprep.subr.mxu0 0.0
    %7051 = vmatpush1.msra.mxu0 %v7027
    %7052 = vmatprep.subr.mxu0 0.0
    %7053 = vmatpush1.msra.mxu0 %v7028
    %7054 = vmatprep.subr.mxu0 0.0
    %7055 = vmatpush1.msra.mxu0 %v7029
    %7056 = vmatprep.subr.mxu0 0.0
    %7057 = vmatpush1.msra.mxu0 %v7030
    %7058 = vmatprep.subr.mxu0 0.0
    %7059 = vmatpush1.msra.mxu0 %v7031
    %7060 = vmatprep.subr.mxu0 0.0
    %7061 = vmatpush1.msra.mxu0 %v7032
    %7062 = vmatprep.subr.mxu0 0.0
    %7063 = vmatpush1.msra.mxu0 %v7033
    %7064 = vmatprep.subr.mxu0 0.0
    %7065 = vmatpush1.msra.mxu0 %v7034
    %7066 = vmatprep.subr.mxu0 0.0
    %7067 = vmatpush1.msra.mxu0 %v7035
    %7068 = vmatprep.subr.mxu0 0.0
    %7069 = vmatpush1.msra.mxu0 0.0
    %7070 = vmatprep.subr.mxu0 0.0
    %7071 = vmatpush1.msra.mxu0 0.0
    %7072 = vmatprep.subr.mxu0 0.0
    %7073 = vmatpush1.msra.mxu0 0.0
    %7074 = vmatprep.subr.mxu0 0.0
    %7075 = vmatpush1.msra.mxu0 0.0
    %7076 = vmatprep.subr.mxu0 0.0
    %7077 = vmatpush1.msra.mxu0 0.0
    %7078 = vmatprep.subr.mxu0 0.0
    %7079 = vmatpush1.msra.mxu0 0.0
    %7080 = vmatprep.subr.mxu0 0.0
    %7081 = vmatpush1.msra.mxu0 0.0
    %7082 = vmatprep.subr.mxu0 0.0
    %7083 = vmatpush1.msra.mxu0 0.0
    %7084 = vmatprep.subr.mxu0 0.0
    %7085 = vmatpush1.msra.mxu0 0.0
    %7086 = vmatprep.subr.mxu0 0.0
    %7087 = vmatpush1.msra.mxu0 0.0
    %7088 = vmatprep.subr.mxu0 0.0
    %7089 = vmatpush1.msra.mxu0 0.0
    %7090 = vmatprep.subr.mxu0 0.0
    %7091 = vmatpush1.msra.mxu0 0.0
    %7092 = vmatprep.subr.mxu0 0.0
    %7093 = vmatpush1.msra.mxu0 0.0
    %7094 = vmatprep.subr.mxu0 0.0
    %7095 = vmatpush1.msra.mxu0 0.0
    %7096 = vmatprep.subr.mxu0 0.0
    %7097 = vmatpush1.msra.mxu0 0.0
    %7098 = vmatprep.subr.mxu0 0.0
    %7099 = vmatpush1.msra.mxu0 0.0
    %7100 = vmatprep.mubr.f32.mxu0 0.0
    %7101 = vmatmul.mubr.f32.gmra.mrb[0].mxu0 1.0
    %v7102 = vpop.f32.mrb[0].mxu0
    %v7103 = vadd.f32 0.0, %v7102
    %v7104 = vpop.f32.mrb[0].mxu0
    %7105 = vdwg.mxu0
    %v7106 = vadd.f32 %v7019, %v7103
    %7107 = vst [vmem:[#allocation4] sm:$0x1] %v7106
    %7108 = vmatprep.subr.mxu0 0.0
    %7109 = vmatpush1.msra.mxu0 1.0
    %7110 = vmatprep.subr.mxu0 0.0
    %7111 = vmatpush1.msra.mxu0 1.0
    %7112 = vmatprep.subr.mxu0 0.0
    %7113 = vmatpush1.msra.mxu0 1.0
    %7114 = vmatprep.subr.mxu0 0.0
    %7115 = vmatpush1.msra.mxu0 1.0
    %7116 = vmatprep.subr.mxu0 0.0
    %7117 = vmatpush1.msra.mxu0 1.0
    %7118 = vmatprep.subr.mxu0 0.0
    %7119 = vmatpush1.msra.mxu0 1.0
    %7120 = vmatprep.subr.mxu0 0.0
    %7121 = vmatpush1.msra.mxu0 1.0
    %7122 = vmatprep.subr.mxu0 0.0
    %7123 = vmatpush1.msra.mxu0 1.0
    %7124 = vmatprep.subr.mxu0 0.0
    %7125 = vmatpush1.msra.mxu0 1.0
    %7126 = vmatprep.subr.mxu0 0.0
    %7127 = vmatpush1.msra.mxu0 1.0
    %7128 = vmatprep.subr.mxu0 0.0
    %7129 = vmatpush1.msra.mxu0 1.0
    %7130 = vmatprep.subr.mxu0 0.0
    %7131 = vmatpush1.msra.mxu0 1.0
    %7132 = vmatprep.subr.mxu0 0.0
    %7133 = vmatpush1.msra.mxu0 1.0
    %7134 = vmatprep.subr.mxu0 0.0
    %7135 = vmatpush1.msra.mxu0 1.0
    %7136 = vmatprep.subr.mxu0 0.0
    %7137 = vmatpush1.msra.mxu0 1.0
    %7138 = vmatprep.subr.mxu0 0.0
    %7139 = vmatpush1.msra.mxu0 1.0
    %7140 = vmatprep.subr.mxu0 0.0
    %7141 = vmatpush1.msra.mxu0 0.0
    %7142 = vmatprep.subr.mxu0 0.0
    %7143 = vmatpush1.msra.mxu0 0.0
    %7144 = vmatprep.subr.mxu0 0.0
    %7145 = vmatpush1.msra.mxu0 0.0
    %7146 = vmatprep.subr.mxu0 0.0
    %7147 = vmatpush1.msra.mxu0 0.0
    %7148 = vmatprep.subr.mxu0 0.0
    %7149 = vmatpush1.msra.mxu0 0.0
    %7150 = vmatprep.subr.mxu0 0.0
    %7151 = vmatpush1.msra.mxu0 0.0
    %7152 = vmatprep.subr.mxu0 0.0
    %7153 = vmatpush1.msra.mxu0 0.0
    %7154 = vmatprep.subr.mxu0 0.0
    %7155 = vmatpush1.msra.mxu0 0.0
    %7156 = vmatprep.subr.mxu0 0.0
    %7157 = vmatpush1.msra.mxu0 0.0
    %7158 = vmatprep.subr.mxu0 0.0
    %7159 = vmatpush1.msra.mxu0 0.0
    %7160 = vmatprep.subr.mxu0 0.0
    %7161 = vmatpush1.msra.mxu0 0.0
    %7162 = vmatprep.subr.mxu0 0.0
    %7163 = vmatpush1.msra.mxu0 0.0
    %7164 = vmatprep.subr.mxu0 0.0
    %7165 = vmatpush1.msra.mxu0 0.0
    %7166 = vmatprep.subr.mxu0 0.0
    %7167 = vmatpush1.msra.mxu0 0.0
    %7168 = vmatprep.subr.mxu0 0.0
    %7169 = vmatpush1.msra.mxu0 0.0
    %7170 = vmatprep.subr.mxu0 0.0
    %7171 = vmatpush1.msra.mxu0 0.0
    %7172 = vmatprep.mubr.f32.mxu0 0.0
    %7173 = vmatmul.mubr.f32.gmra.mrb[0].mxu0 %v7003
    %v7174 = vpop.f32.mrb[0].mxu0
    %v7175 = vadd.f32 0.0, %v7174
    %v7176 = vpop.f32.mrb[0].mxu0
    %7177 = vmatprep.mubr.f32.mxu0 0.0
    %7178 = vmatmul.mubr.f32.gmra.mrb[0].mxu0 %v7004
    %v7179 = vpop.f32.mrb[0].mxu0
    %v7180 = vadd.f32 0.0, %v7179
    %v7181 = vpop.f32.mrb[0].mxu0
    %7182 = vmatprep.mubr.f32.mxu0 0.0
    %7183 = vmatmul.mubr.f32.gmra.mrb[0].mxu0 %v7005
    %v7184 = vpop.f32.mrb[0].mxu0
    %v7185 = vadd.f32 0.0, %v7184
    %v7186 = vpop.f32.mrb[0].mxu0
    %7187 = vmatprep.mubr.f32.mxu0 0.0
    %7188 = vmatmul.mubr.f32.gmra.mrb[0].mxu0 %v7006
    %v7189 = vpop.f32.mrb[0].mxu0
    %v7190 = vadd.f32 0.0, %v7189
    %v7191 = vpop.f32.mrb[0].mxu0
    %7192 = vmatprep.mubr.f32.mxu0 0.0
    %7193 = vmatmul.mubr.f32.gmra.mrb[0].mxu0 %v7007
    %v7194 = vpop.f32.mrb[0].mxu0
    %v7195 = vadd.f32 0.0, %v7194
    %v7196 = vpop.f32.mrb[0].mxu0
    %7197 = vmatprep.mubr.f32.mxu0 0.0
    %7198 = vmatmul.mubr.f32.gmra.mrb[0].mxu0 %v7008
    %v7199 = vpop.f32.mrb[0].mxu0
    %v7200 = vadd.f32 0.0, %v7199
    %v7201 = vpop.f32.mrb[0].mxu0
    %7202 = vmatprep.mubr.f32.mxu0 0.0
    %7203 = vmatmul.mubr.f32.gmra.mrb[0].mxu0 %v7009
    %v7204 = vpop.f32.mrb[0].mxu0
    %v7205 = vadd.f32 0.0, %v7204
    %v7206 = vpop.f32.mrb[0].mxu0
    %7207 = vmatprep.mubr.f32.mxu0 0.0
    %7208 = vmatmul.mubr.f32.gmra.mrb[0].mxu0 %v7010
    %v7209 = vpop.f32.mrb[0].mxu0
    %v7210 = vadd.f32 0.0, %v7209
    %v7211 = vpop.f32.mrb[0].mxu0
    %7212 = vmatprep.mubr.f32.mxu0 0.0
    %7213 = vmatmul.mubr.f32.gmra.mrb[0].mxu0 %v7011
    %v7214 = vpop.f32.mrb[0].mxu0
    %v7215 = vadd.f32 0.0, %v7214
    %v7216 = vpop.f32.mrb[0].mxu0
    %7217 = vmatprep.mubr.f32.mxu0 0.0
    %7218 = vmatmul.mubr.f32.gmra.mrb[0].mxu0 %v7012
    %v7219 = vpop.f32.mrb[0].mxu0
    %v7220 = vadd.f32 0.0, %v7219
    %v7221 = vpop.f32.mrb[0].mxu0
    %7222 = vmatprep.mubr.f32.mxu0 0.0
    %7223 = vmatmul.mubr.f32.gmra.mrb[0].mxu0 %v7013
    %v7224 = vpop.f32.mrb[0].mxu0
    %v7225 = vadd.f32 0.0, %v7224
    %v7226 = vpop.f32.mrb[0].mxu0
    %7227 = vmatprep.mubr.f32.mxu0 0.0
    %7228 = vmatmul.mubr.f32.gmra.mrb[0].mxu0 %v7014
    %v7229 = vpop.f32.mrb[0].mxu0
    %v7230 = vadd.f32 0.0, %v7229
    %v7231 = vpop.f32.mrb[0].mxu0
    %7232 = vmatprep.mubr.f32.mxu0 0.0
    %7233 = vmatmul.mubr.f32.gmra.mrb[0].mxu0 %v7015
    %v7234 = vpop.f32.mrb[0].mxu0
    %v7235 = vadd.f32 0.0, %v7234
    %v7236 = vpop.f32.mrb[0].mxu0
    %7237 = vmatprep.mubr.f32.mxu0 0.0
    %7238 = vmatmul.mubr.f32.gmra.mrb[0].mxu0 %v7016
    %v7239 = vpop.f32.mrb[0].mxu0
    %v7240 = vadd.f32 0.0, %v7239
    %v7241 = vpop.f32.mrb[0].mxu0
    %7242 = vmatprep.mubr.f32.mxu0 0.0
    %7243 = vmatmul.mubr.f32.gmra.mrb[0].mxu0 %v7017
    %v7244 = vpop.f32.mrb[0].mxu0
    %v7245 = vadd.f32 0.0, %v7244
    %v7246 = vpop.f32.mrb[0].mxu0
    %7247 = vmatprep.mubr.f32.mxu0 0.0
    %7248 = vmatmul.mubr.f32.gmra.mrb[0].mxu0 %v7018
    %v7249 = vpop.f32.mrb[0].mxu0
    %v7250 = vadd.f32 0.0, %v7249
    %v7251 = vpop.f32.mrb[0].mxu0
    %7252 = vdwg.mxu0
    %v7253 = vsub.f32 %v6563, %v7175
    %v7254 = vsub.f32 %v6564, %v7180
    %v7255 = vsub.f32 %v6565, %v7185
    %v7256 = vsub.f32 %v6566, %v7190
    %v7257 = vsub.f32 %v6567, %v7195
    %v7258 = vsub.f32 %v6568, %v7200
    %v7259 = vsub.f32 %v6569, %v7205
    %v7260 = vsub.f32 %v6570, %v7210
    %v7261 = vsub.f32 %v6571, %v7215
    %v7262 = vsub.f32 %v6572, %v7220
    %v7263 = vsub.f32 %v6573, %v7225
    %v7264 = vsub.f32 %v6574, %v7230
    %v7265 = vsub.f32 %v6575, %v7235
    %v7266 = vsub.f32 %v6576, %v7240
    %v7267 = vsub.f32 %v6577, %v7245
    %v7268 = vsub.f32 %v6578, %v7250
    %v7269 = vmax.f32 %v7253, 0.0
    %v7270 = vmax.f32 %v7254, 0.0
    %v7271 = vmax.f32 %v7255, 0.0
    %v7272 = vmax.f32 %v7256, 0.0
    %v7273 = vmax.f32 %v7257, 0.0
    %v7274 = vmax.f32 %v7258, 0.0
    %v7275 = vmax.f32 %v7259, 0.0
    %v7276 = vmax.f32 %v7260, 0.0
    %v7277 = vmax.f32 %v7261, 0.0
    %v7278 = vmax.f32 %v7262, 0.0
    %v7279 = vmax.f32 %v7263, 0.0
    %v7280 = vmax.f32 %v7264, 0.0
    %v7281 = vmax.f32 %v7265, 0.0
    %v7282 = vmax.f32 %v7266, 0.0
    %v7283 = vmax.f32 %v7267, 0.0
    %v7284 = vmax.f32 %v7268, 0.0
    %7285 = vst.msk [vmem:[#allocation2] sm:$0xff] %vm508, %v7269
    %7286 = vst.msk [vmem:[#allocation2 + $0x8] sm:$0xff] %vm508, %v7270
    %7287 = vst.msk [vmem:[#allocation2 + $0x10] sm:$0xff] %vm508, %v7271
    %7288 = vst.msk [vmem:[#allocation2 + $0x18] sm:$0xff] %vm508, %v7272
    %7289 = vst.msk [vmem:[#allocation2 + $0x20] sm:$0xff] %vm508, %v7273
    %7290 = vst.msk [vmem:[#allocation2 + $0x28] sm:$0xff] %vm508, %v7274
    %7291 = vst.msk [vmem:[#allocation2 + $0x30] sm:$0xff] %vm508, %v7275
    %7292 = vst.msk [vmem:[#allocation2 + $0x38] sm:$0xff] %vm508, %v7276
    %7293 = vst.msk [vmem:[#allocation2 + $0x40] sm:$0xff] %vm508, %v7277
    %7294 = vst.msk [vmem:[#allocation2 + $0x48] sm:$0xff] %vm508, %v7278
    %7295 = vst.msk [vmem:[#allocation2 + $0x50] sm:$0xff] %vm508, %v7279
    %7296 = vst.msk [vmem:[#allocation2 + $0x58] sm:$0xff] %vm508, %v7280
    %7297 = vst.msk [vmem:[#allocation2 + $0x60] sm:$0xff] %vm508, %v7281
    %7298 = vst.msk [vmem:[#allocation2 + $0x68] sm:$0xff] %vm508, %v7282
    %7299 = vst.msk [vmem:[#allocation2 + $0x70] sm:$0xff] %vm508, %v7283
    %7300 = vst.msk [vmem:[#allocation2 + $0x78] sm:$0xff] %vm508, %v7284
    %v7301 = vmul.f32 %v6990, %v6996
    %v7302 = vsub.f32 %v6579, %v7301
    %v7303 = vmax.f32 %v7302, 0.0
    %7304 = vst [vmem:[#allocation3] sm:$0x1] %v7303
    %v7305 = vld [vmem:[#allocation2] sm:$0xff]
    %v7306 = vld [vmem:[#allocation2 + $0x8] sm:$0xff]
    %v7307 = vld [vmem:[#allocation2 + $0x10] sm:$0xff]
    %v7308 = vld [vmem:[#allocation2 + $0x18] sm:$0xff]
    %v7309 = vld [vmem:[#allocation2 + $0x20] sm:$0xff]
    %v7310 = vld [vmem:[#allocation2 + $0x28] sm:$0xff]
    %v7311 = vld [vmem:[#allocation2 + $0x30] sm:$0xff]
    %v7312 = vld [vmem:[#allocation2 + $0x38] sm:$0xff]
    %v7313 = vld [vmem:[#allocation2 + $0x40] sm:$0xff]
    %v7314 = vld [vmem:[#allocation2 + $0x48] sm:$0xff]
    %v7315 = vld [vmem:[#allocation2 + $0x50] sm:$0xff]
    %v7316 = vld [vmem:[#allocation2 + $0x58] sm:$0xff]
    %v7317 = vld [vmem:[#allocation2 + $0x60] sm:$0xff]
    %v7318 = vld [vmem:[#allocation2 + $0x68] sm:$0xff]
    %v7319 = vld [vmem:[#allocation2 + $0x70] sm:$0xff]
    %v7320 = vld [vmem:[#allocation2 + $0x78] sm:$0xff]
    %v7321 = vld [vmem:[#allocation3] sm:$0x1]
    %v7323 = vlaneseq
    %v7324 = vshrl.u32 %v7323, 7
    %v7325 = vsub.s32 0, %v7324
    %v7326 = vrot.slane %v7321, %v7325
    %7328 = vmatprep.subr.mxu0 0.0
    %7329 = vmatpush1.msra.mxu0 1.0
    %7330 = vmatprep.subr.mxu0 0.0
    %7331 = vmatpush1.msra.mxu0 1.0
    %7332 = vmatprep.subr.mxu0 0.0
    %7333 = vmatpush1.msra.mxu0 1.0
    %7334 = vmatprep.subr.mxu0 0.0
    %7335 = vmatpush1.msra.mxu0 1.0
    %7336 = vmatprep.subr.mxu0 0.0
    %7337 = vmatpush1.msra.mxu0 1.0
    %7338 = vmatprep.subr.mxu0 0.0
    %7339 = vmatpush1.msra.mxu0 1.0
    %7340 = vmatprep.subr.mxu0 0.0
    %7341 = vmatpush1.msra.mxu0 1.0
    %7342 = vmatprep.subr.mxu0 0.0
    %7343 = vmatpush1.msra.mxu0 1.0
    %7344 = vmatprep.subr.mxu0 0.0
    %7345 = vmatpush1.msra.mxu0 1.0
    %7346 = vmatprep.subr.mxu0 0.0
    %7347 = vmatpush1.msra.mxu0 1.0
    %7348 = vmatprep.subr.mxu0 0.0
    %7349 = vmatpush1.msra.mxu0 1.0
    %7350 = vmatprep.subr.mxu0 0.0
    %7351 = vmatpush1.msra.mxu0 1.0
    %7352 = vmatprep.subr.mxu0 0.0
    %7353 = vmatpush1.msra.mxu0 1.0
    %7354 = vmatprep.subr.mxu0 0.0
    %7355 = vmatpush1.msra.mxu0 1.0
    %7356 = vmatprep.subr.mxu0 0.0
    %7357 = vmatpush1.msra.mxu0 1.0
    %7358 = vmatprep.subr.mxu0 0.0
    %7359 = vmatpush1.msra.mxu0 1.0
    %7360 = vmatprep.subr.mxu0 0.0
    %7361 = vmatpush1.msra.mxu0 0.0
    %7362 = vmatprep.subr.mxu0 0.0
    %7363 = vmatpush1.msra.mxu0 0.0
    %7364 = vmatprep.subr.mxu0 0.0
    %7365 = vmatpush1.msra.mxu0 0.0
    %7366 = vmatprep.subr.mxu0 0.0
    %7367 = vmatpush1.msra.mxu0 0.0
    %7368 = vmatprep.subr.mxu0 0.0
    %7369 = vmatpush1.msra.mxu0 0.0
    %7370 = vmatprep.subr.mxu0 0.0
    %7371 = vmatpush1.msra.mxu0 0.0
    %7372 = vmatprep.subr.mxu0 0.0
    %7373 = vmatpush1.msra.mxu0 0.0
    %7374 = vmatprep.subr.mxu0 0.0
    %7375 = vmatpush1.msra.mxu0 0.0
    %7376 = vmatprep.subr.mxu0 0.0
    %7377 = vmatpush1.msra.mxu0 0.0
    %7378 = vmatprep.subr.mxu0 0.0
    %7379 = vmatpush1.msra.mxu0 0.0
    %7380 = vmatprep.subr.mxu0 0.0
    %7381 = vmatpush1.msra.mxu0 0.0
    %7382 = vmatprep.subr.mxu0 0.0
    %7383 = vmatpush1.msra.mxu0 0.0
    %7384 = vmatprep.subr.mxu0 0.0
    %7385 = vmatpush1.msra.mxu0 0.0
    %7386 = vmatprep.subr.mxu0 0.0
    %7387 = vmatpush1.msra.mxu0 0.0
    %7388 = vmatprep.subr.mxu0 0.0
    %7389 = vmatpush1.msra.mxu0 0.0
    %7390 = vmatprep.subr.mxu0 0.0
    %7391 = vmatpush1.msra.mxu0 0.0
    %7392 = vmatprep.mubr.f32.mxu0 0.0
    %7393 = vmatmul.mubr.f32.gmra.mrb[0].mxu0 %v7326
    %v7394 = vpop.f32.mrb[0].mxu0
    %v7395 = vadd.f32 1e-09, %v7394
    %v7396 = vpop.f32.mrb[0].mxu0
    %7397 = vmatprep.mubr.f32.mxu0 0.0
    %7398 = vmatmul.mubr.f32.gmra.mrb[0].mxu0 %v7326
    %v7399 = vpop.f32.mrb[0].mxu0
    %v7400 = vadd.f32 1e-09, %v7399
    %v7401 = vpop.f32.mrb[0].mxu0
    %7402 = vmatprep.mubr.f32.mxu0 0.0
    %7403 = vmatmul.mubr.f32.gmra.mrb[0].mxu0 %v7326
    %v7404 = vpop.f32.mrb[0].mxu0
    %v7405 = vadd.f32 1e-09, %v7404
    %v7406 = vpop.f32.mrb[0].mxu0
    %7407 = vmatprep.mubr.f32.mxu0 0.0
    %7408 = vmatmul.mubr.f32.gmra.mrb[0].mxu0 %v7326
    %v7409 = vpop.f32.mrb[0].mxu0
    %v7410 = vadd.f32 1e-09, %v7409
    %v7411 = vpop.f32.mrb[0].mxu0
    %7412 = vmatprep.mubr.f32.mxu0 0.0
    %7413 = vmatmul.mubr.f32.gmra.mrb[0].mxu0 %v7326
    %v7414 = vpop.f32.mrb[0].mxu0
    %v7415 = vadd.f32 1e-09, %v7414
    %v7416 = vpop.f32.mrb[0].mxu0
    %7417 = vmatprep.mubr.f32.mxu0 0.0
    %7418 = vmatmul.mubr.f32.gmra.mrb[0].mxu0 %v7326
    %v7419 = vpop.f32.mrb[0].mxu0
    %v7420 = vadd.f32 1e-09, %v7419
    %v7421 = vpop.f32.mrb[0].mxu0
    %7422 = vmatprep.mubr.f32.mxu0 0.0
    %7423 = vmatmul.mubr.f32.gmra.mrb[0].mxu0 %v7326
    %v7424 = vpop.f32.mrb[0].mxu0
    %v7425 = vadd.f32 1e-09, %v7424
    %v7426 = vpop.f32.mrb[0].mxu0
    %7427 = vmatprep.mubr.f32.mxu0 0.0
    %7428 = vmatmul.mubr.f32.gmra.mrb[0].mxu0 %v7326
    %v7429 = vpop.f32.mrb[0].mxu0
    %v7430 = vadd.f32 1e-09, %v7429
    %v7431 = vpop.f32.mrb[0].mxu0
    %7432 = vmatprep.mubr.f32.mxu0 0.0
    %7433 = vmatmul.mubr.f32.gmra.mrb[0].mxu0 %v7326
    %v7434 = vpop.f32.mrb[0].mxu0
    %v7435 = vadd.f32 1e-09, %v7434
    %v7436 = vpop.f32.mrb[0].mxu0
    %7437 = vmatprep.mubr.f32.mxu0 0.0
    %7438 = vmatmul.mubr.f32.gmra.mrb[0].mxu0 %v7326
    %v7439 = vpop.f32.mrb[0].mxu0
    %v7440 = vadd.f32 1e-09, %v7439
    %v7441 = vpop.f32.mrb[0].mxu0
    %7442 = vmatprep.mubr.f32.mxu0 0.0
    %7443 = vmatmul.mubr.f32.gmra.mrb[0].mxu0 %v7326
    %v7444 = vpop.f32.mrb[0].mxu0
    %v7445 = vadd.f32 1e-09, %v7444
    %v7446 = vpop.f32.mrb[0].mxu0
    %7447 = vmatprep.mubr.f32.mxu0 0.0
    %7448 = vmatmul.mubr.f32.gmra.mrb[0].mxu0 %v7326
    %v7449 = vpop.f32.mrb[0].mxu0
    %v7450 = vadd.f32 1e-09, %v7449
    %v7451 = vpop.f32.mrb[0].mxu0
    %7452 = vmatprep.mubr.f32.mxu0 0.0
    %7453 = vmatmul.mubr.f32.gmra.mrb[0].mxu0 %v7326
    %v7454 = vpop.f32.mrb[0].mxu0
    %v7455 = vadd.f32 1e-09, %v7454
    %v7456 = vpop.f32.mrb[0].mxu0
    %7457 = vmatprep.mubr.f32.mxu0 0.0
    %7458 = vmatmul.mubr.f32.gmra.mrb[0].mxu0 %v7326
    %v7459 = vpop.f32.mrb[0].mxu0
    %v7460 = vadd.f32 1e-09, %v7459
    %v7461 = vpop.f32.mrb[0].mxu0
    %7462 = vmatprep.mubr.f32.mxu0 0.0
    %7463 = vmatmul.mubr.f32.gmra.mrb[0].mxu0 %v7326
    %v7464 = vpop.f32.mrb[0].mxu0
    %v7465 = vadd.f32 1e-09, %v7464
    %v7466 = vpop.f32.mrb[0].mxu0
    %7467 = vmatprep.mubr.f32.mxu0 0.0
    %7468 = vmatmul.mubr.f32.gmra.mrb[0].mxu0 %v7326
    %v7469 = vpop.f32.mrb[0].mxu0
    %v7470 = vadd.f32 1e-09, %v7469
    %v7471 = vpop.f32.mrb[0].mxu0
    %7472 = vdwg.mxu0
    %v7473 = vrcp.pop %v7395
    %v7474 = vmul.f32 %v7305, %v7473
    %v7475 = vrcp.pop %v7400
    %v7476 = vmul.f32 %v7306, %v7475
    %v7477 = vrcp.pop %v7405
    %v7478 = vmul.f32 %v7307, %v7477
    %v7479 = vrcp.pop %v7410
    %v7480 = vmul.f32 %v7308, %v7479
    %v7481 = vrcp.pop %v7415
    %v7482 = vmul.f32 %v7309, %v7481
    %v7483 = vrcp.pop %v7420
    %v7484 = vmul.f32 %v7310, %v7483
    %v7485 = vrcp.pop %v7425
    %v7486 = vmul.f32 %v7311, %v7485
    %v7487 = vrcp.pop %v7430
    %v7488 = vmul.f32 %v7312, %v7487
    %v7489 = vrcp.pop %v7435
    %v7490 = vmul.f32 %v7313, %v7489
    %v7491 = vrcp.pop %v7440
    %v7492 = vmul.f32 %v7314, %v7491
    %v7493 = vrcp.pop %v7445
    %v7494 = vmul.f32 %v7315, %v7493
    %v7495 = vrcp.pop %v7450
    %v7496 = vmul.f32 %v7316, %v7495
    %v7497 = vrcp.pop %v7455
    %v7498 = vmul.f32 %v7317, %v7497
    %v7499 = vrcp.pop %v7460
    %v7500 = vmul.f32 %v7318, %v7499
    %v7501 = vrcp.pop %v7465
    %v7502 = vmul.f32 %v7319, %v7501
    %v7503 = vrcp.pop %v7470
    %v7504 = vmul.f32 %v7320, %v7503
    %7506 = vset.pattern.permute.xlu0 0
    %7507 = vperm.xlu0 %7506, %v7474
    %v7508 = vpop.permute.xlu0 %7507
    %7511 = vset.pattern.permute.xlu0 0
    %7512 = vperm.xlu0 %7511, %v7476
    %v7513 = vpop.permute.xlu0 %7512
    %7516 = vset.pattern.permute.xlu0 0
    %7517 = vperm.xlu0 %7516, %v7478
    %v7518 = vpop.permute.xlu0 %7517
    %7521 = vset.pattern.permute.xlu0 0
    %7522 = vperm.xlu0 %7521, %v7480
    %v7523 = vpop.permute.xlu0 %7522
    %7526 = vset.pattern.permute.xlu0 0
    %7527 = vperm.xlu0 %7526, %v7482
    %v7528 = vpop.permute.xlu0 %7527
    %7531 = vset.pattern.permute.xlu0 0
    %7532 = vperm.xlu0 %7531, %v7484
    %v7533 = vpop.permute.xlu0 %7532
    %7536 = vset.pattern.permute.xlu0 0
    %7537 = vperm.xlu0 %7536, %v7486
    %v7538 = vpop.permute.xlu0 %7537
    %7541 = vset.pattern.permute.xlu0 0
    %7542 = vperm.xlu0 %7541, %v7488
    %v7543 = vpop.permute.xlu0 %7542
    %7546 = vset.pattern.permute.xlu0 0
    %7547 = vperm.xlu0 %7546, %v7490
    %v7548 = vpop.permute.xlu0 %7547
    %7551 = vset.pattern.permute.xlu0 0
    %7552 = vperm.xlu0 %7551, %v7492
    %v7553 = vpop.permute.xlu0 %7552
    %7556 = vset.pattern.permute.xlu0 0
    %7557 = vperm.xlu0 %7556, %v7494
    %v7558 = vpop.permute.xlu0 %7557
    %7561 = vset.pattern.permute.xlu0 0
    %7562 = vperm.xlu0 %7561, %v7496
    %v7563 = vpop.permute.xlu0 %7562
    %7566 = vset.pattern.permute.xlu0 0
    %7567 = vperm.xlu0 %7566, %v7498
    %v7568 = vpop.permute.xlu0 %7567
    %7571 = vset.pattern.permute.xlu0 0
    %7572 = vperm.xlu0 %7571, %v7500
    %v7573 = vpop.permute.xlu0 %7572
    %7576 = vset.pattern.permute.xlu0 0
    %7577 = vperm.xlu0 %7576, %v7502
    %v7578 = vpop.permute.xlu0 %7577
    %7581 = vset.pattern.permute.xlu0 0
    %7582 = vperm.xlu0 %7581, %v7504
    %v7583 = vpop.permute.xlu0 %7582
    %v7585 = vmul.f32 %v7326, %v7508
    %v7586 = vmul.f32 %v7326, %v7513
    %v7587 = vmul.f32 %v7326, %v7518
    %v7588 = vmul.f32 %v7326, %v7523
    %v7589 = vmul.f32 %v7326, %v7528
    %v7590 = vmul.f32 %v7326, %v7533
    %v7591 = vmul.f32 %v7326, %v7538
    %v7592 = vmul.f32 %v7326, %v7543
    %v7593 = vmul.f32 %v7326, %v7548
    %v7594 = vmul.f32 %v7326, %v7553
    %v7595 = vmul.f32 %v7326, %v7558
    %v7596 = vmul.f32 %v7326, %v7563
    %v7597 = vmul.f32 %v7326, %v7568
    %v7598 = vmul.f32 %v7326, %v7573
    %v7599 = vmul.f32 %v7326, %v7578
    %v7600 = vmul.f32 %v7326, %v7583
    %7601 = vmatprep.subr.mxu0 0.0
    %7602 = vmatpush1.msra.mxu0 %v7585
    %7603 = vmatprep.subr.mxu0 0.0
    %7604 = vmatpush1.msra.mxu0 %v7586
    %7605 = vmatprep.subr.mxu0 0.0
    %7606 = vmatpush1.msra.mxu0 %v7587
    %7607 = vmatprep.subr.mxu0 0.0
    %7608 = vmatpush1.msra.mxu0 %v7588
    %7609 = vmatprep.subr.mxu0 0.0
    %7610 = vmatpush1.msra.mxu0 %v7589
    %7611 = vmatprep.subr.mxu0 0.0
    %7612 = vmatpush1.msra.mxu0 %v7590
    %7613 = vmatprep.subr.mxu0 0.0
    %7614 = vmatpush1.msra.mxu0 %v7591
    %7615 = vmatprep.subr.mxu0 0.0
    %7616 = vmatpush1.msra.mxu0 %v7592
    %7617 = vmatprep.subr.mxu0 0.0
    %7618 = vmatpush1.msra.mxu0 %v7593
    %7619 = vmatprep.subr.mxu0 0.0
    %7620 = vmatpush1.msra.mxu0 %v7594
    %7621 = vmatprep.subr.mxu0 0.0
    %7622 = vmatpush1.msra.mxu0 %v7595
    %7623 = vmatprep.subr.mxu0 0.0
    %7624 = vmatpush1.msra.mxu0 %v7596
    %7625 = vmatprep.subr.mxu0 0.0
    %7626 = vmatpush1.msra.mxu0 %v7597
    %7627 = vmatprep.subr.mxu0 0.0
    %7628 = vmatpush1.msra.mxu0 %v7598
    %7629 = vmatprep.subr.mxu0 0.0
    %7630 = vmatpush1.msra.mxu0 %v7599
    %7631 = vmatprep.subr.mxu0 0.0
    %7632 = vmatpush1.msra.mxu0 %v7600
    %7633 = vmatprep.subr.mxu0 0.0
    %7634 = vmatpush1.msra.mxu0 0.0
    %7635 = vmatprep.subr.mxu0 0.0
    %7636 = vmatpush1.msra.mxu0 0.0
    %7637 = vmatprep.subr.mxu0 0.0
    %7638 = vmatpush1.msra.mxu0 0.0
    %7639 = vmatprep.subr.mxu0 0.0
    %7640 = vmatpush1.msra.mxu0 0.0
    %7641 = vmatprep.subr.mxu0 0.0
    %7642 = vmatpush1.msra.mxu0 0.0
    %7643 = vmatprep.subr.mxu0 0.0
    %7644 = vmatpush1.msra.mxu0 0.0
    %7645 = vmatprep.subr.mxu0 0.0
    %7646 = vmatpush1.msra.mxu0 0.0
    %7647 = vmatprep.subr.mxu0 0.0
    %7648 = vmatpush1.msra.mxu0 0.0
    %7649 = vmatprep.subr.mxu0 0.0
    %7650 = vmatpush1.msra.mxu0 0.0
    %7651 = vmatprep.subr.mxu0 0.0
    %7652 = vmatpush1.msra.mxu0 0.0
    %7653 = vmatprep.subr.mxu0 0.0
    %7654 = vmatpush1.msra.mxu0 0.0
    %7655 = vmatprep.subr.mxu0 0.0
    %7656 = vmatpush1.msra.mxu0 0.0
    %7657 = vmatprep.subr.mxu0 0.0
    %7658 = vmatpush1.msra.mxu0 0.0
    %7659 = vmatprep.subr.mxu0 0.0
    %7660 = vmatpush1.msra.mxu0 0.0
    %7661 = vmatprep.subr.mxu0 0.0
    %7662 = vmatpush1.msra.mxu0 0.0
    %7663 = vmatprep.subr.mxu0 0.0
    %7664 = vmatpush1.msra.mxu0 0.0
    %7665 = vmatprep.mubr.f32.mxu0 0.0
    %7666 = vmatmul.mubr.f32.gmra.mrb[0].mxu0 1.0
    %v7667 = vpop.f32.mrb[0].mxu0
    %v7668 = vadd.f32 0.0, %v7667
    %v7669 = vpop.f32.mrb[0].mxu0
    %7670 = vdwg.mxu0
    %v7671 = vadd.f32 %v7668, 1e-09
    %v7672 = vrcp.pop %v7671
    %v7673 = vmul.f32 %v7321, %v7672
    %v7674 = vmin.f32 %v7673, 1.0
    %v7676 = vlaneseq
    %v7677 = vshrl.u32 %v7676, 7
    %v7678 = vsub.s32 0, %v7677
    %v7679 = vrot.slane %v7674, %v7678
    %v7681 = vmul.f32 %v7585, %v7679
    %v7682 = vmul.f32 %v7586, %v7679
    %v7683 = vmul.f32 %v7587, %v7679
    %v7684 = vmul.f32 %v7588, %v7679
    %v7685 = vmul.f32 %v7589, %v7679
    %v7686 = vmul.f32 %v7590, %v7679
    %v7687 = vmul.f32 %v7591, %v7679
    %v7688 = vmul.f32 %v7592, %v7679
    %v7689 = vmul.f32 %v7593, %v7679
    %v7690 = vmul.f32 %v7594, %v7679
    %v7691 = vmul.f32 %v7595, %v7679
    %v7692 = vmul.f32 %v7596, %v7679
    %v7693 = vmul.f32 %v7597, %v7679
    %v7694 = vmul.f32 %v7598, %v7679
    %v7695 = vmul.f32 %v7599, %v7679
    %v7696 = vmul.f32 %v7600, %v7679
    %v7697 = vld [vmem:[#allocation4] sm:$0x1]
    %v7698 = vmul.f32 %v378, %v7681
    %v7699 = vmul.f32 %v385, %v7682
    %v7700 = vmul.f32 %v392, %v7683
    %v7701 = vmul.f32 %v399, %v7684
    %v7702 = vmul.f32 %v406, %v7685
    %v7703 = vmul.f32 %v413, %v7686
    %v7704 = vmul.f32 %v420, %v7687
    %v7705 = vmul.f32 %v427, %v7688
    %v7706 = vmul.f32 %v434, %v7689
    %v7707 = vmul.f32 %v441, %v7690
    %v7708 = vmul.f32 %v448, %v7691
    %v7709 = vmul.f32 %v455, %v7692
    %v7710 = vmul.f32 %v462, %v7693
    %v7711 = vmul.f32 %v469, %v7694
    %v7712 = vmul.f32 %v476, %v7695
    %v7713 = vmul.f32 %v483, %v7696
    %7714 = vmatprep.subr.mxu0 0.0
    %7715 = vmatpush1.msra.mxu0 %v7698
    %7716 = vmatprep.subr.mxu0 0.0
    %7717 = vmatpush1.msra.mxu0 %v7699
    %7718 = vmatprep.subr.mxu0 0.0
    %7719 = vmatpush1.msra.mxu0 %v7700
    %7720 = vmatprep.subr.mxu0 0.0
    %7721 = vmatpush1.msra.mxu0 %v7701
    %7722 = vmatprep.subr.mxu0 0.0
    %7723 = vmatpush1.msra.mxu0 %v7702
    %7724 = vmatprep.subr.mxu0 0.0
    %7725 = vmatpush1.msra.mxu0 %v7703
    %7726 = vmatprep.subr.mxu0 0.0
    %7727 = vmatpush1.msra.mxu0 %v7704
    %7728 = vmatprep.subr.mxu0 0.0
    %7729 = vmatpush1.msra.mxu0 %v7705
    %7730 = vmatprep.subr.mxu0 0.0
    %7731 = vmatpush1.msra.mxu0 %v7706
    %7732 = vmatprep.subr.mxu0 0.0
    %7733 = vmatpush1.msra.mxu0 %v7707
    %7734 = vmatprep.subr.mxu0 0.0
    %7735 = vmatpush1.msra.mxu0 %v7708
    %7736 = vmatprep.subr.mxu0 0.0
    %7737 = vmatpush1.msra.mxu0 %v7709
    %7738 = vmatprep.subr.mxu0 0.0
    %7739 = vmatpush1.msra.mxu0 %v7710
    %7740 = vmatprep.subr.mxu0 0.0
    %7741 = vmatpush1.msra.mxu0 %v7711
    %7742 = vmatprep.subr.mxu0 0.0
    %7743 = vmatpush1.msra.mxu0 %v7712
    %7744 = vmatprep.subr.mxu0 0.0
    %7745 = vmatpush1.msra.mxu0 %v7713
    %7746 = vmatprep.subr.mxu0 0.0
    %7747 = vmatpush1.msra.mxu0 0.0
    %7748 = vmatprep.subr.mxu0 0.0
    %7749 = vmatpush1.msra.mxu0 0.0
    %7750 = vmatprep.subr.mxu0 0.0
    %7751 = vmatpush1.msra.mxu0 0.0
    %7752 = vmatprep.subr.mxu0 0.0
    %7753 = vmatpush1.msra.mxu0 0.0
    %7754 = vmatprep.subr.mxu0 0.0
    %7755 = vmatpush1.msra.mxu0 0.0
    %7756 = vmatprep.subr.mxu0 0.0
    %7757 = vmatpush1.msra.mxu0 0.0
    %7758 = vmatprep.subr.mxu0 0.0
    %7759 = vmatpush1.msra.mxu0 0.0
    %7760 = vmatprep.subr.mxu0 0.0
    %7761 = vmatpush1.msra.mxu0 0.0
    %7762 = vmatprep.subr.mxu0 0.0
    %7763 = vmatpush1.msra.mxu0 0.0
    %7764 = vmatprep.subr.mxu0 0.0
    %7765 = vmatpush1.msra.mxu0 0.0
    %7766 = vmatprep.subr.mxu0 0.0
    %7767 = vmatpush1.msra.mxu0 0.0
    %7768 = vmatprep.subr.mxu0 0.0
    %7769 = vmatpush1.msra.mxu0 0.0
    %7770 = vmatprep.subr.mxu0 0.0
    %7771 = vmatpush1.msra.mxu0 0.0
    %7772 = vmatprep.subr.mxu0 0.0
    %7773 = vmatpush1.msra.mxu0 0.0
    %7774 = vmatprep.subr.mxu0 0.0
    %7775 = vmatpush1.msra.mxu0 0.0
    %7776 = vmatprep.subr.mxu0 0.0
    %7777 = vmatpush1.msra.mxu0 0.0
    %7778 = vmatprep.mubr.f32.mxu0 0.0
    %7779 = vmatmul.mubr.f32.gmra.mrb[0].mxu0 1.0
    %v7780 = vpop.f32.mrb[0].mxu0
    %v7781 = vadd.f32 0.0, %v7780
    %v7782 = vpop.f32.mrb[0].mxu0
    %7783 = vdwg.mxu0
    %v7784 = vadd.f32 %v7697, %v7781
    %7785 = vst [vmem:[#allocation4] sm:$0x1] %v7784
    %7786 = vmatprep.subr.mxu0 0.0
    %7787 = vmatpush1.msra.mxu0 1.0
    %7788 = vmatprep.subr.mxu0 0.0
    %7789 = vmatpush1.msra.mxu0 1.0
    %7790 = vmatprep.subr.mxu0 0.0
    %7791 = vmatpush1.msra.mxu0 1.0
    %7792 = vmatprep.subr.mxu0 0.0
    %7793 = vmatpush1.msra.mxu0 1.0
    %7794 = vmatprep.subr.mxu0 0.0
    %7795 = vmatpush1.msra.mxu0 1.0
    %7796 = vmatprep.subr.mxu0 0.0
    %7797 = vmatpush1.msra.mxu0 1.0
    %7798 = vmatprep.subr.mxu0 0.0
    %7799 = vmatpush1.msra.mxu0 1.0
    %7800 = vmatprep.subr.mxu0 0.0
    %7801 = vmatpush1.msra.mxu0 1.0
    %7802 = vmatprep.subr.mxu0 0.0
    %7803 = vmatpush1.msra.mxu0 1.0
    %7804 = vmatprep.subr.mxu0 0.0
    %7805 = vmatpush1.msra.mxu0 1.0
    %7806 = vmatprep.subr.mxu0 0.0
    %7807 = vmatpush1.msra.mxu0 1.0
    %7808 = vmatprep.subr.mxu0 0.0
    %7809 = vmatpush1.msra.mxu0 1.0
    %7810 = vmatprep.subr.mxu0 0.0
    %7811 = vmatpush1.msra.mxu0 1.0
    %7812 = vmatprep.subr.mxu0 0.0
    %7813 = vmatpush1.msra.mxu0 1.0
    %7814 = vmatprep.subr.mxu0 0.0
    %7815 = vmatpush1.msra.mxu0 1.0
    %7816 = vmatprep.subr.mxu0 0.0
    %7817 = vmatpush1.msra.mxu0 1.0
    %7818 = vmatprep.subr.mxu0 0.0
    %7819 = vmatpush1.msra.mxu0 0.0
    %7820 = vmatprep.subr.mxu0 0.0
    %7821 = vmatpush1.msra.mxu0 0.0
    %7822 = vmatprep.subr.mxu0 0.0
    %7823 = vmatpush1.msra.mxu0 0.0
    %7824 = vmatprep.subr.mxu0 0.0
    %7825 = vmatpush1.msra.mxu0 0.0
    %7826 = vmatprep.subr.mxu0 0.0
    %7827 = vmatpush1.msra.mxu0 0.0
    %7828 = vmatprep.subr.mxu0 0.0
    %7829 = vmatpush1.msra.mxu0 0.0
    %7830 = vmatprep.subr.mxu0 0.0
    %7831 = vmatpush1.msra.mxu0 0.0
    %7832 = vmatprep.subr.mxu0 0.0
    %7833 = vmatpush1.msra.mxu0 0.0
    %7834 = vmatprep.subr.mxu0 0.0
    %7835 = vmatpush1.msra.mxu0 0.0
    %7836 = vmatprep.subr.mxu0 0.0
    %7837 = vmatpush1.msra.mxu0 0.0
    %7838 = vmatprep.subr.mxu0 0.0
    %7839 = vmatpush1.msra.mxu0 0.0
    %7840 = vmatprep.subr.mxu0 0.0
    %7841 = vmatpush1.msra.mxu0 0.0
    %7842 = vmatprep.subr.mxu0 0.0
    %7843 = vmatpush1.msra.mxu0 0.0
    %7844 = vmatprep.subr.mxu0 0.0
    %7845 = vmatpush1.msra.mxu0 0.0
    %7846 = vmatprep.subr.mxu0 0.0
    %7847 = vmatpush1.msra.mxu0 0.0
    %7848 = vmatprep.subr.mxu0 0.0
    %7849 = vmatpush1.msra.mxu0 0.0
    %7850 = vmatprep.mubr.f32.mxu0 0.0
    %7851 = vmatmul.mubr.f32.gmra.mrb[0].mxu0 %v7681
    %v7852 = vpop.f32.mrb[0].mxu0
    %v7853 = vadd.f32 0.0, %v7852
    %v7854 = vpop.f32.mrb[0].mxu0
    %7855 = vmatprep.mubr.f32.mxu0 0.0
    %7856 = vmatmul.mubr.f32.gmra.mrb[0].mxu0 %v7682
    %v7857 = vpop.f32.mrb[0].mxu0
    %v7858 = vadd.f32 0.0, %v7857
    %v7859 = vpop.f32.mrb[0].mxu0
    %7860 = vmatprep.mubr.f32.mxu0 0.0
    %7861 = vmatmul.mubr.f32.gmra.mrb[0].mxu0 %v7683
    %v7862 = vpop.f32.mrb[0].mxu0
    %v7863 = vadd.f32 0.0, %v7862
    %v7864 = vpop.f32.mrb[0].mxu0
    %7865 = vmatprep.mubr.f32.mxu0 0.0
    %7866 = vmatmul.mubr.f32.gmra.mrb[0].mxu0 %v7684
    %v7867 = vpop.f32.mrb[0].mxu0
    %v7868 = vadd.f32 0.0, %v7867
    %v7869 = vpop.f32.mrb[0].mxu0
    %7870 = vmatprep.mubr.f32.mxu0 0.0
    %7871 = vmatmul.mubr.f32.gmra.mrb[0].mxu0 %v7685
    %v7872 = vpop.f32.mrb[0].mxu0
    %v7873 = vadd.f32 0.0, %v7872
    %v7874 = vpop.f32.mrb[0].mxu0
    %7875 = vmatprep.mubr.f32.mxu0 0.0
    %7876 = vmatmul.mubr.f32.gmra.mrb[0].mxu0 %v7686
    %v7877 = vpop.f32.mrb[0].mxu0
    %v7878 = vadd.f32 0.0, %v7877
    %v7879 = vpop.f32.mrb[0].mxu0
    %7880 = vmatprep.mubr.f32.mxu0 0.0
    %7881 = vmatmul.mubr.f32.gmra.mrb[0].mxu0 %v7687
    %v7882 = vpop.f32.mrb[0].mxu0
    %v7883 = vadd.f32 0.0, %v7882
    %v7884 = vpop.f32.mrb[0].mxu0
    %7885 = vmatprep.mubr.f32.mxu0 0.0
    %7886 = vmatmul.mubr.f32.gmra.mrb[0].mxu0 %v7688
    %v7887 = vpop.f32.mrb[0].mxu0
    %v7888 = vadd.f32 0.0, %v7887
    %v7889 = vpop.f32.mrb[0].mxu0
    %7890 = vmatprep.mubr.f32.mxu0 0.0
    %7891 = vmatmul.mubr.f32.gmra.mrb[0].mxu0 %v7689
    %v7892 = vpop.f32.mrb[0].mxu0
    %v7893 = vadd.f32 0.0, %v7892
    %v7894 = vpop.f32.mrb[0].mxu0
    %7895 = vmatprep.mubr.f32.mxu0 0.0
    %7896 = vmatmul.mubr.f32.gmra.mrb[0].mxu0 %v7690
    %v7897 = vpop.f32.mrb[0].mxu0
    %v7898 = vadd.f32 0.0, %v7897
    %v7899 = vpop.f32.mrb[0].mxu0
    %7900 = vmatprep.mubr.f32.mxu0 0.0
    %7901 = vmatmul.mubr.f32.gmra.mrb[0].mxu0 %v7691
    %v7902 = vpop.f32.mrb[0].mxu0
    %v7903 = vadd.f32 0.0, %v7902
    %v7904 = vpop.f32.mrb[0].mxu0
    %7905 = vmatprep.mubr.f32.mxu0 0.0
    %7906 = vmatmul.mubr.f32.gmra.mrb[0].mxu0 %v7692
    %v7907 = vpop.f32.mrb[0].mxu0
    %v7908 = vadd.f32 0.0, %v7907
    %v7909 = vpop.f32.mrb[0].mxu0
    %7910 = vmatprep.mubr.f32.mxu0 0.0
    %7911 = vmatmul.mubr.f32.gmra.mrb[0].mxu0 %v7693
    %v7912 = vpop.f32.mrb[0].mxu0
    %v7913 = vadd.f32 0.0, %v7912
    %v7914 = vpop.f32.mrb[0].mxu0
    %7915 = vmatprep.mubr.f32.mxu0 0.0
    %7916 = vmatmul.mubr.f32.gmra.mrb[0].mxu0 %v7694
    %v7917 = vpop.f32.mrb[0].mxu0
    %v7918 = vadd.f32 0.0, %v7917
    %v7919 = vpop.f32.mrb[0].mxu0
    %7920 = vmatprep.mubr.f32.mxu0 0.0
    %7921 = vmatmul.mubr.f32.gmra.mrb[0].mxu0 %v7695
    %v7922 = vpop.f32.mrb[0].mxu0
    %v7923 = vadd.f32 0.0, %v7922
    %v7924 = vpop.f32.mrb[0].mxu0
    %7925 = vmatprep.mubr.f32.mxu0 0.0
    %7926 = vmatmul.mubr.f32.gmra.mrb[0].mxu0 %v7696
    %v7927 = vpop.f32.mrb[0].mxu0
    %v7928 = vadd.f32 0.0, %v7927
    %v7929 = vpop.f32.mrb[0].mxu0
    %7930 = vdwg.mxu0
    %v7931 = vsub.f32 %v7305, %v7853
    %v7932 = vsub.f32 %v7306, %v7858
    %v7933 = vsub.f32 %v7307, %v7863
    %v7934 = vsub.f32 %v7308, %v7868
    %v7935 = vsub.f32 %v7309, %v7873
    %v7936 = vsub.f32 %v7310, %v7878
    %v7937 = vsub.f32 %v7311, %v7883
    %v7938 = vsub.f32 %v7312, %v7888
    %v7939 = vsub.f32 %v7313, %v7893
    %v7940 = vsub.f32 %v7314, %v7898
    %v7941 = vsub.f32 %v7315, %v7903
    %v7942 = vsub.f32 %v7316, %v7908
    %v7943 = vsub.f32 %v7317, %v7913
    %v7944 = vsub.f32 %v7318, %v7918
    %v7945 = vsub.f32 %v7319, %v7923
    %v7946 = vsub.f32 %v7320, %v7928
    %v7947 = vmax.f32 %v7931, 0.0
    %v7948 = vmax.f32 %v7932, 0.0
    %v7949 = vmax.f32 %v7933, 0.0
    %v7950 = vmax.f32 %v7934, 0.0
    %v7951 = vmax.f32 %v7935, 0.0
    %v7952 = vmax.f32 %v7936, 0.0
    %v7953 = vmax.f32 %v7937, 0.0
    %v7954 = vmax.f32 %v7938, 0.0
    %v7955 = vmax.f32 %v7939, 0.0
    %v7956 = vmax.f32 %v7940, 0.0
    %v7957 = vmax.f32 %v7941, 0.0
    %v7958 = vmax.f32 %v7942, 0.0
    %v7959 = vmax.f32 %v7943, 0.0
    %v7960 = vmax.f32 %v7944, 0.0
    %v7961 = vmax.f32 %v7945, 0.0
    %v7962 = vmax.f32 %v7946, 0.0
    %7963 = vst.msk [vmem:[#allocation2] sm:$0xff] %vm508, %v7947
    %7964 = vst.msk [vmem:[#allocation2 + $0x8] sm:$0xff] %vm508, %v7948
    %7965 = vst.msk [vmem:[#allocation2 + $0x10] sm:$0xff] %vm508, %v7949
    %7966 = vst.msk [vmem:[#allocation2 + $0x18] sm:$0xff] %vm508, %v7950
    %7967 = vst.msk [vmem:[#allocation2 + $0x20] sm:$0xff] %vm508, %v7951
    %7968 = vst.msk [vmem:[#allocation2 + $0x28] sm:$0xff] %vm508, %v7952
    %7969 = vst.msk [vmem:[#allocation2 + $0x30] sm:$0xff] %vm508, %v7953
    %7970 = vst.msk [vmem:[#allocation2 + $0x38] sm:$0xff] %vm508, %v7954
    %7971 = vst.msk [vmem:[#allocation2 + $0x40] sm:$0xff] %vm508, %v7955
    %7972 = vst.msk [vmem:[#allocation2 + $0x48] sm:$0xff] %vm508, %v7956
    %7973 = vst.msk [vmem:[#allocation2 + $0x50] sm:$0xff] %vm508, %v7957
    %7974 = vst.msk [vmem:[#allocation2 + $0x58] sm:$0xff] %vm508, %v7958
    %7975 = vst.msk [vmem:[#allocation2 + $0x60] sm:$0xff] %vm508, %v7959
    %7976 = vst.msk [vmem:[#allocation2 + $0x68] sm:$0xff] %vm508, %v7960
    %7977 = vst.msk [vmem:[#allocation2 + $0x70] sm:$0xff] %vm508, %v7961
    %7978 = vst.msk [vmem:[#allocation2 + $0x78] sm:$0xff] %vm508, %v7962
    %v7979 = vmul.f32 %v7668, %v7674
    %v7980 = vsub.f32 %v7321, %v7979
    %v7981 = vmax.f32 %v7980, 0.0
    %7982 = vst [vmem:[#allocation3] sm:$0x1] %v7981
    %v7983 = vld [vmem:[#allocation4] sm:$0x1]
    %vm7984 = vcmask 1040384
    %v7985 = vsel %vm7984, %v7983, 0.0
    %7986 = vadd.xlane.f32.xlu0 %v7985
    %v7987 = vpop.xlane.xlu0 %7986
    %v7988 = vrot.slane %v7987, 4
    %v7989 = vadd.f32 %v7987, %v7988
    %v7990 = vrot.slane %v7989, 2
    %v7991 = vadd.f32 %v7989, %v7990
    %v7992 = vrot.slane %v7991, 1
    %v7993 = vadd.f32 %v7991, %v7992
    %s7994 = vtos %v7993
    %v7995 = vstv %s7994
    %s7996 = smul.u32 %s12, 8
    %s7997 = scalar_lea.vmem %s2, %s7996
    %7998 = vst [vmem:[%s7997] sm:$0xff] %v7995
  $region14: #{emd_loss.1} parent=0 // loop_footer
    %s16 = sadd.s32 1, %s12
  $region15: #{emd_loss.1} parent=0 // loop_footer_branch
    %11 = sbr.rel target = $region11
  $region16: #{emd_loss.1} parent=0 // loop_exit
    _
  // Predicated region
  $region33: #{emd_loss.1} parent=0 // pred_check
    _
  $region34: #{emd_loss.1} parent=0 // pred_check_branch
    %8000 = sbr.rel (0) target = $region36
  $region35: #{emd_loss.1} parent=0 // pred_region
    _
  $region36: #{emd_loss.1} parent=0 // pred_fallthru
    _
  // Predicated region
  $region37: #{emd_loss.1} parent=0 // pred_check
    _
  $region38: #{emd_loss.1} parent=0 // pred_check_branch
    %8002 = sbr.rel (0) target = $region40
  $region39: #{emd_loss.1} parent=0 // pred_region
    _
  $region40: #{emd_loss.1} parent=0 // pred_fallthru
    _

</llo_original>
